<compile_context>
chip_gen: v6e
topology: v6e:2x2x1
jax: 0.10.0
libtpu: 0.0.40
codegen_flags: <defaults>
</compile_context>

<pallas_src>
import jax
import jax.numpy as jnp
from jax import lax
from jax.experimental import pallas as pl
from jax.experimental.pallas import tpu as pltpu

BN_EPS = 1e-5
LANE = 128
SUBLANE = 8


def _round_up(x, m):
    return (x + m - 1) // m * m


def _pad_last(x, target):
    c = x.shape[-1]
    if c == target:
        return x
    return jnp.pad(x, [(0, 0)] * (x.ndim - 1) + [(0, target - c)])


# ----------------------------------------------------------------------------
# Kernel 1: ConvTranspose2d(kernel=2, stride=2) as one matmul per image.
# Output is written in (N, H, kh, W, kw*Cout) layout so the depth-to-space
# interleave is a *free* row-major reshape outside the kernel (no transpose).
# ----------------------------------------------------------------------------
def _upsample_kernel(x_ref, w_ref, b_ref, o_ref):
    h0 = o_ref.shape[1]
    w0 = o_ref.shape[3]
    c2 = o_ref.shape[4]  # == 2 * Cout_p   (kw, cout) packed on lanes
    y = jnp.dot(x_ref[0], w_ref[...], preferred_element_type=jnp.float32)
    y = (y + b_ref[...]).astype(o_ref.dtype)            # (H0*W0, 4*Cout_p)
    o_ref[0, :, 0, :, :] = y[:, :c2].reshape(h0, w0, c2)
    o_ref[0, :, 1, :, :] = y[:, c2:].reshape(h0, w0, c2)


def conv_transpose_2x2_s2(x_nhwc, w_torch, b, cout_p):
    """x_nhwc: (N,H0,W0,Cin) f32.  w_torch: (Cin,Cout,2,2).  Returns (N,2H0,2W0,cout_p) bf16."""
    n, h0, w0, cin = x_nhwc.shape
    cout = w_torch.shape[1]
    cin_p = _round_up(cin, LANE)

    x = _pad_last(x_nhwc, cin_p).astype(jnp.bfloat16).reshape(n, h0 * w0, cin_p)
    # (Cin,Cout,2,2) -> (Cin_p, kh, kw, Cout_p) -> (Cin_p, 4*Cout_p); columns ordered (kh,kw,o)
    wk = jnp.transpose(w_torch, (0, 2, 3, 1))
    wk = jnp.pad(wk, ((0, cin_p - cin), (0, 0), (0, 0), (0, cout_p - cout)))
    wk = wk.reshape(cin_p, 4 * cout_p).astype(jnp.bfloat16)
    b4 = jnp.tile(_pad_last(b, cout_p), 4).reshape(1, 4 * cout_p).astype(jnp.float32)

    out = pl.pallas_call(
        _upsample_kernel,
        grid=(n,),
        in_specs=[
            pl.BlockSpec((1, h0 * w0, cin_p), lambda i: (i, 0, 0)),
            pl.BlockSpec((cin_p, 4 * cout_p), lambda i: (0, 0)),
            pl.BlockSpec((1, 4 * cout_p), lambda i: (0, 0)),
        ],
        out_specs=pl.BlockSpec((1, h0, 2, w0, 2 * cout_p), lambda i: (i, 0, 0, 0, 0)),
        out_shape=jax.ShapeDtypeStruct((n, h0, 2, w0, 2 * cout_p), jnp.bfloat16),
        compiler_params=pltpu.CompilerParams(
            dimension_semantics=("parallel",),
            vmem_limit_bytes=32 * 1024 * 1024,
        ),
        cost_estimate=pl.CostEstimate(
            flops=2 * n * h0 * w0 * cin_p * 4 * cout_p,
            transcendentals=0,
            bytes_accessed=x.size * 2 + wk.size * 2 + n * h0 * w0 * 4 * cout_p * 2,
        ),
    )(x, wk, b4)
    # free (pure row-major) reshape: (N,H0,2,W0,2,Coutp) -> (N,2H0,2W0,Coutp)
    return out.reshape(n, 2 * h0, 2 * w0, cout_p)


# ----------------------------------------------------------------------------
# Kernel 2 (pass 1): fused 3x3 conv (+ fused channel concat) + per-tile BN partial stats.
# Grid = (N, H/tile_h).  The halo'd input rows live in HBM (pl.ANY) and are copied into a
# double-buffered VMEM scratch; tile t prefetches tile t+1 while computing (manual pipeline).
# ----------------------------------------------------------------------------
def _make_conv_stats_kernel(n_inputs, tile_h, w_valid, wp, cout_p):
    th2 = tile_h + 2
    m = tile_h * wp

    def kernel(*refs):
        x_hbm = refs[:n_inputs]
        w_refs = refs[n_inputs:2 * n_inputs]
        b_ref = refs[2 * n_inputs]
        raw_ref = refs[2 * n_inputs + 1]
        st_ref = refs[2 * n_inputs + 2]
        bufs = refs[2 * n_inputs + 3: 2 * n_inputs + 3 + n_inputs]
        sem = refs[2 * n_inputs + 3 + n_inputs]

        n = pl.program_id(0)
        t = pl.program_id(1)
        n_t = pl.num_programs(1)
        slot = t % 2

        def start_fetch(tt, sl):
            for i in range(n_inputs):
                pltpu.make_async_copy(
                    x_hbm[i].at[n, pl.ds(tt * tile_h * wp, th2 * wp)],
                    bufs[i].at[sl],
                    sem.at[i, sl],
                ).start()

        def wait_fetch(sl):
            for i in range(n_inputs):
                pltpu.make_async_copy(
                    x_hbm[i].at[n, pl.ds(0, th2 * wp)],  # shape-matching descriptor
                    bufs[i].at[sl],
                    sem.at[i, sl],
                ).wait()

        @pl.when(t == 0)
        def _():
            start_fetch(0, 0)

        wait_fetch(slot)

        # prefetch the next row-tile of this image (overlaps with the MXU work below)
        @pl.when(t + 1 < n_t)
        def _():
            start_fetch(t + 1, 1 - slot)

        # 3x3 conv as 9 aligned-slice matmuls; the kw-shift is applied to the Cout-wide
        # partial (2 cheap shifted adds) instead of copying the input 9 times.
        acc = None
        for dw in range(3):
            p = None
            for i in range(n_inputs):
                for dh in range(3):
                    rows = bufs[i][slot, pl.ds(dh * wp, m), :]       # aligned, no copy
                    contrib = jnp.dot(rows, w_refs[i][dh * 3 + dw],
                                      preferred_element_type=jnp.float32)
                    p = contrib if p is None else p + contrib
            if dw:
                p = jnp.concatenate([p[dw:], p[:dw]], axis=0)        # shift left by dw rows
            acc = p if acc is None else acc + p
        acc = acc + b_ref[...]                                       # conv bias (f32)

        # per-tile BatchNorm partial statistics over the valid output columns (f32)
        col = lax.broadcasted_iota(jnp.int32, (m, 1), 0) % wp
        masked = jnp.where(col < w_valid, acc, 0.0)
        s1 = jnp.sum(masked, axis=0, keepdims=True)
        s2 = jnp.sum(masked * masked, axis=0, keepdims=True)
        st_ref[0, 0] = jnp.concatenate([s1, s2], axis=0)

        # raw conv output travels to pass 2 as bf16 (halves HBM traffic on this intermediate)
        raw_ref[0] = acc.reshape(tile_h, wp, cout_p)[:, :w_valid, :].astype(raw_ref.dtype)

    return kernel


# Kernel 3 (pass 2): fused BN affine + ReLU (one FMA + max per element), lane-dense output.
def _affine_relu_kernel(x_ref, sc_ref, sh_ref, o_ref):
    y = x_ref[...] * sc_ref[...] + sh_ref[...]
    o_ref[...] = jnp.maximum(y, 0.0).astype(o_ref.dtype)


def _conv_bn_relu(xs, w_parts, bias, gamma, beta, *, tile_h):
    """Fused Conv3x3(pad=1) + BatchNorm(batch stats) + ReLU.

    xs:       list of NHWC bf16 tensors (channel-padded); they are the channel-concat
              operands (torch.cat is fused by splitting the weight along Cin).
    w_parts:  matching list of PyTorch-layout (Cout, Cin_part, 3, 3) f32 weights.
    Returns (N, H, W, Cout_p) bf16.
    """
    n, h, w, _ = xs[0].shape
    cout = w_parts[0].shape[0]
    cout_p = _round_up(cout, LANE)
    assert h % tile_h == 0, (h, tile_h)
    n_t = h // tile_h
    wp = _round_up(w + 2, SUBLANE)
    hp = h + 2

    # spatial zero padding + free row-major flatten of (Hp, Wp) rows.
    # TODO(synk): fuse this zero-padding into the halo DMA (edge-tile masking) to save
    #             one HBM round trip per conv block.
    xs_flat, cin_ps = [], []
    for x in xs:
        ci = x.shape[-1]
        cin_ps.append(ci)
        xpad = jnp.pad(x, ((0, 0), (1, 1), (1, wp - w - 1), (0, 0)))
        xs_flat.append(xpad.reshape(n, hp * wp, ci))

    w_flats = []
    for ci, wt in zip(cin_ps, w_parts):
        whwio = jnp.transpose(wt, (2, 3, 1, 0))                    # (3,3,Cin_part,Cout)
        whwio = jnp.pad(whwio, ((0, 0), (0, 0),
                                (0, ci - wt.shape[1]),
                                (0, cout_p - cout)))
        w_flats.append(whwio.reshape(9, ci, cout_p).astype(jnp.bfloat16))

    b2 = _pad_last(bias, cout_p).reshape(1, cout_p).astype(jnp.float32)

    n_in = len(xs)
    kernel = _make_conv_stats_kernel(n_in, tile_h, w, wp, cout_p)

    in_specs = ([pl.BlockSpec(memory_space=pl.ANY)] * n_in
                + [pl.BlockSpec((9, ci, cout_p), lambda i, j: (0, 0, 0)) for ci in cin_ps]
                + [pl.BlockSpec((1, cout_p), lambda i, j: (0, 0))])
    out_specs = (
        pl.BlockSpec((1, tile_h, w, cout_p), lambda i, j: (i, j, 0, 0)),
        pl.BlockSpec((1, 1, 2, cout_p), lambda i, j: (i, j, 0, 0)),
    )
    out_shape = (
        jax.ShapeDtypeStruct((n, h, w, cout_p), jnp.bfloat16),
        jax.ShapeDtypeStruct((n, n_t, 2, cout_p), jnp.float32),
    )
    scratch = [pltpu.VMEM((2, (tile_h + 2) * wp, ci), jnp.bfloat16) for ci in cin_ps]
    scratch.append(pltpu.SemaphoreType.DMA((n_in, 2)))

    flops = 2 * n * h * wp * 9 * sum(cin_ps) * cout_p
    bytes_acc = (sum(xf.size for xf in xs_flat) * 2
                 + sum(wf.size for wf in w_flats) * 2
                 + n * h * w * cout_p * 2)

    raw, stats = pl.pallas_call(
        kernel,
        grid=(n, n_t),
        in_specs=in_specs,
        out_specs=out_specs,
        out_shape=out_shape,
        scratch_shapes=scratch,
        compiler_params=pltpu.CompilerParams(
            dimension_semantics=("parallel", "arbitrary"),
            vmem_limit_bytes=32 * 1024 * 1024,
        ),
        cost_estimate=pl.CostEstimate(flops=flops, transcendentals=0,
                                      bytes_accessed=bytes_acc),
    )(*xs_flat, *w_flats, b2)

    # global BN statistics: tiny per-channel reduction + folded scale/shift (f32).
    count = n * h * w
    s1 = jnp.sum(stats[:, :, 0, :], axis=(0, 1))
    s2 = jnp.sum(stats[:, :, 1, :], axis=(0, 1))
    mean = s1 / count
    var = jnp.maximum(s2 / count - mean * mean, 0.0)
    scale = _pad_last(gamma, cout_p) * lax.rsqrt(var + BN_EPS)
    shift = _pad_last(beta, cout_p) - mean * scale

    act = pl.pallas_call(
        _affine_relu_kernel,
        grid=(n, n_t),
        in_specs=[
            pl.BlockSpec((1, tile_h, w, cout_p), lambda i, j: (i, j, 0, 0)),
            pl.BlockSpec((1, 1, 1, cout_p), lambda i, j: (0, 0, 0, 0)),
            pl.BlockSpec((1, 1, 1, cout_p), lambda i, j: (0, 0, 0, 0)),
        ],
        out_specs=pl.BlockSpec((1, tile_h, w, cout_p), lambda i, j: (i, j, 0, 0)),
        out_shape=jax.ShapeDtypeStruct((n, h, w, cout_p), jnp.bfloat16),
        compiler_params=pltpu.CompilerParams(
            dimension_semantics=("parallel", "parallel"),
            vmem_limit_bytes=32 * 1024 * 1024,
        ),
    )(raw, scale.reshape(1, 1, 1, cout_p), shift.reshape(1, 1, 1, cout_p))
    return act


# ----------------------------------------------------------------------------
# UpsampleBlock forward (wrapper in NCHW, like the PyTorch module)
# ----------------------------------------------------------------------------
def upsample_block_forward(params, up_x_nchw, down_x_nchw, *, tile_h=None):
    up = jnp.transpose(up_x_nchw, (0, 2, 3, 1)).astype(jnp.float32)
    down = jnp.transpose(down_x_nchw, (0, 2, 3, 1)).astype(jnp.float32)

    n, h0, w0, _ = up.shape
    h = 2 * h0
    if tile_h is None:
        tile_h = next(t for t in range(min(h, 32), 0, -1) if h % t == 0)

    up_cout = params["up_w"].shape[1]
    up_cout_p = _round_up(up_cout, LANE)
    x_up = conv_transpose_2x2_s2(up, params["up_w"], params["up_b"], up_cout_p)

    skip_cp = _round_up(down.shape[-1], LANE)
    x_skip = _pad_last(down, skip_cp).astype(jnp.bfloat16)

    # torch.cat([x, down_x], dim=1) is fused into conv_block_1 by splitting its weight
    # along the input-channel axis (upsample channels first, skip channels second).
    w1 = params["c1_w"]
    act1 = _conv_bn_relu([x_up, x_skip], [w1[:, :up_cout], w1[:, up_cout:]],
                         params["c1_b"], params["c1_gamma"], params["c1_beta"],
                         tile_h=tile_h)
    act2 = _conv_bn_relu([act1], [params["c2_w"]],
                         params["c2_b"], params["c2_gamma"], params["c2_beta"],
                         tile_h=tile_h)

    out_c = params["c2_w"].shape[0]
    out = act2[..., :out_c].astype(jnp.float32)
    return jnp.transpose(out, (0, 3, 1, 2))


def init_params(key, in_channels, out_channels,
                up_conv_in_channels=None, up_conv_out_channels=None):
    if up_conv_in_channels is None:
        up_conv_in_channels = in_channels
    if up_conv_out_channels is None:
        up_conv_out_channels = out_channels
    ks = jax.random.split(key, 6)
    p = {}
    # ConvTranspose2d weight layout: [Cin, Cout, kh, kw]
    p["up_w"] = 0.1 * jax.random.normal(
        ks[0], (up_conv_in_channels, up_conv_out_channels, 2, 2), jnp.float32)
    p["up_b"] = 0.05 * jax.random.normal(ks[1], (up_conv_out_channels,), jnp.float32)
    # Conv2d weight layout: [Cout, Cin, kh, kw]; BN gamma=1, beta=0 (PyTorch default)
    p["c1_w"] = 0.1 * jax.random.normal(ks[2], (out_channels, in_channels, 3, 3), jnp.float32)
    p["c1_b"] = 0.05 * jax.random.normal(ks[3], (out_channels,), jnp.float32)
    p["c1_gamma"] = jnp.ones((out_channels,), jnp.float32)
    p["c1_beta"] = jnp.zeros((out_channels,), jnp.float32)
    p["c2_w"] = 0.1 * jax.random.normal(ks[4], (out_channels, out_channels, 3, 3), jnp.float32)
    p["c2_b"] = 0.05 * jax.random.normal(ks[5], (out_channels,), jnp.float32)
    p["c2_gamma"] = jnp.ones((out_channels,), jnp.float32)
    p["c2_beta"] = jnp.zeros((out_channels,), jnp.float32)
    return p


# ----------------------------------------------------------------------------
# Pure-JAX reference (independent lowering path).  Matmul operands are cast to bf16
# exactly like the kernel path (f32 accumulation, f32 BN), so tolerances stay tight.
# ----------------------------------------------------------------------------
def _ref_conv_transpose(x, w, b):
    n, h0, w0, _ = x.shape
    cout = w.shape[1]
    y = jnp.einsum("nhwc,cokl->nhkwlo",
                   x.astype(jnp.bfloat16), w.astype(jnp.bfloat16),
                   preferred_element_type=jnp.float32)
    y = y.reshape(n, 2 * h0, 2 * w0, cout) + b.reshape(1, 1, 1, cout)
    return y.astype(jnp.bfloat16).astype(jnp.float32)


def _ref_conv_block(x, w_torch, b, gamma, beta):
    w_hwio = jnp.transpose(w_torch, (2, 3, 1, 0)).astype(jnp.bfloat16)
    y = lax.conv_general_dilated(x.astype(jnp.bfloat16), w_hwio, (1, 1), "SAME",
                                 dimension_numbers=("NHWC", "HWIO", "NHWC"),
                                 preferred_element_type=jnp.float32)
    y = y + b.reshape(1, 1, 1, -1)
    mean = jnp.mean(y, axis=(0, 1, 2), keepdims=True)
    var = jnp.mean(jnp.square(y - mean), axis=(0, 1, 2), keepdims=True)
    y = (y - mean) * lax.rsqrt(var + BN_EPS) * gamma.reshape(1, 1, 1, -1) + beta.reshape(1, 1, 1, -1)
    y = jnp.maximum(y, 0.0)
    return y.astype(jnp.bfloat16).astype(jnp.float32)


def reference_forward(params, up_x_nchw, down_x_nchw):
    up = jnp.transpose(up_x_nchw, (0, 2, 3, 1))
    down = jnp.transpose(down_x_nchw, (0, 2, 3, 1))
    x = _ref_conv_transpose(up, params["up_w"], params["up_b"])
    d = down.astype(jnp.bfloat16).astype(jnp.float32)
    x = jnp.concatenate([x, d], axis=-1)
    x = _ref_conv_block(x, params["c1_w"], params["c1_b"], params["c1_gamma"], params["c1_beta"])
    x = _ref_conv_block(x, params["c2_w"], params["c2_b"], params["c2_gamma"], params["c2_beta"])
    return jnp.transpose(x, (0, 3, 1, 2))


if __name__ == "__main__":
    in_channels, out_channels = 8, 4
    n, h0, w0 = 2, 8, 8                     # up_x spatial; doubled to 16x16 by the upsample

    key = jax.random.PRNGKey(0)
    k_up, k_down, k_p = jax.random.split(key, 3)
    up_x = jax.random.normal(k_up, (n, in_channels, h0, w0), jnp.float32)            # NCHW
    # skip connection: channels = in_channels - out_channels so the (fused) cat has in_channels
    down_x = jax.random.normal(k_down, (n, in_channels - out_channels, 2 * h0, 2 * w0), jnp.float32)
    params = init_params(k_p, in_channels, out_channels)

    fwd = jax.jit(lambda p, a, b: upsample_block_forward(p, a, b, tile_h=4))
    out = jax.block_until_ready(fwd(params, up_x, down_x))
    ref = jax.block_until_ready(reference_forward(params, up_x, down_x))

    assert out.shape == (n, out_channels, 2 * h0, 2 * w0), out.shape
    max_err = float(jnp.max(jnp.abs(out - ref)))
    assert max_err < 0.1, f"mismatch vs reference: {max_err}"
    print("KERNEL_OK")
</pallas_src>

<mosaic_0001>
module attributes {stable_mosaic.version = 11 : i64} {
  func.func @_upsample_kernel(%arg0: i32, %arg1: memref<1x64x128xbf16, #tpu.memory_space<vmem>>, %arg2: memref<128x512xbf16, #tpu.memory_space<vmem>>, %arg3: memref<1x512xf32, #tpu.memory_space<vmem>>, %arg4: memref<1x8x2x8x256xbf16, #tpu.memory_space<vmem>>) attributes {dimension_semantics = [#tpu.dimension_semantics<parallel>], iteration_bounds = array<i64: 2>, scalar_prefetch = 0 : i64, scratch_operands = 0 : i64, tpu.core_type = #tpu.core_type<tc>, window_params = [{transform_indices = @transform_0, window_bounds = array<i64: 1, 64, 128>}, {pipeline_mode = #tpu.pipeline_mode<synchronous>, transform_indices = @transform_1, window_bounds = array<i64: 128, 512>}, {pipeline_mode = #tpu.pipeline_mode<synchronous>, transform_indices = @transform_2, window_bounds = array<i64: 1, 512>}, {transform_indices = @transform_3, window_bounds = array<i64: 1, 8, 2, 8, 256>}]} {
    %c0 = arith.constant 0 : index
    %c0_0 = arith.constant 0 : index
    %c0_1 = arith.constant 0 : index
    %0 = vector.load %arg1[%c0, %c0_0, %c0_1] : memref<1x64x128xbf16, #tpu.memory_space<vmem>>, vector<1x64x128xbf16>
    %1 = vector.shape_cast %0 : vector<1x64x128xbf16> to vector<64x128xbf16>
    %c0_2 = arith.constant 0 : index
    %c0_3 = arith.constant 0 : index
    %2 = vector.load %arg2[%c0_2, %c0_3] : memref<128x512xbf16, #tpu.memory_space<vmem>>, vector<128x512xbf16>
    %cst = arith.constant dense<0.000000e+00> : vector<64x512xf32>
    %3 = tpu.matmul %1, %2, %cst {dimension_numbers = #tpu.dot_dimension_numbers<[1], [0], [0], [1], [0, 0, 1, 1], [], []>} : vector<64x128xbf16>, vector<128x512xbf16>, vector<64x512xf32> -> vector<64x512xf32>
    %c0_4 = arith.constant 0 : index
    %c0_5 = arith.constant 0 : index
    %4 = vector.load %arg3[%c0_4, %c0_5] : memref<1x512xf32, #tpu.memory_space<vmem>>, vector<1x512xf32>
    %5 = vector.broadcast %4 : vector<1x512xf32> to vector<64x512xf32>
    %6 = arith.addf %3, %5 : vector<64x512xf32>
    %7 = arith.truncf %6 : vector<64x512xf32> to vector<64x512xbf16>
    %8 = vector.extract_strided_slice %7 {offsets = [0, 0], sizes = [64, 256], strides = [1, 1]} : vector<64x512xbf16> to vector<64x256xbf16>
    %9 = vector.shape_cast %8 : vector<64x256xbf16> to vector<8x8x256xbf16>
    %c0_6 = arith.constant 0 : index
    %c0_7 = arith.constant 0 : index
    %c0_8 = arith.constant 0 : index
    %c0_9 = arith.constant 0 : index
    %c0_10 = arith.constant 0 : index
    %10 = vector.load %arg4[%c0_6, %c0_7, %c0_8, %c0_9, %c0_10] : memref<1x8x2x8x256xbf16, #tpu.memory_space<vmem>>, vector<1x8x1x8x256xbf16>
    %11 = vector.shape_cast %10 : vector<1x8x1x8x256xbf16> to vector<8x8x256xbf16>
    %12 = vector.shape_cast %9 : vector<8x8x256xbf16> to vector<1x8x1x8x256xbf16>
    tpu.vector_store %arg4[%c0_6, %c0_7, %c0_8, %c0_9, %c0_10], %12 {strides = array<i32>} : memref<1x8x2x8x256xbf16, #tpu.memory_space<vmem>>, vector<1x8x1x8x256xbf16>,
    %13 = vector.extract_strided_slice %7 {offsets = [0, 256], sizes = [64, 256], strides = [1, 1]} : vector<64x512xbf16> to vector<64x256xbf16>
    %14 = vector.shape_cast %13 : vector<64x256xbf16> to vector<8x8x256xbf16>
    %c0_11 = arith.constant 0 : index
    %c0_12 = arith.constant 0 : index
    %c1 = arith.constant 1 : index
    %c0_13 = arith.constant 0 : index
    %c0_14 = arith.constant 0 : index
    %15 = vector.load %arg4[%c0_11, %c0_12, %c1, %c0_13, %c0_14] : memref<1x8x2x8x256xbf16, #tpu.memory_space<vmem>>, vector<1x8x1x8x256xbf16>
    %16 = vector.shape_cast %15 : vector<1x8x1x8x256xbf16> to vector<8x8x256xbf16>
    %17 = vector.shape_cast %14 : vector<8x8x256xbf16> to vector<1x8x1x8x256xbf16>
    tpu.vector_store %arg4[%c0_11, %c0_12, %c1, %c0_13, %c0_14], %17 {strides = array<i32>} : memref<1x8x2x8x256xbf16, #tpu.memory_space<vmem>>, vector<1x8x1x8x256xbf16>,
    return
  }
  func.func @transform_0(%arg0: i32) -> (i32, i32, i32) {
    %c0_i32 = arith.constant 0 : i32
    %c0_i32_0 = arith.constant 0 : i32
    %c0_i32_1 = arith.constant 0 : i32
    return %arg0, %c0_i32, %c0_i32_0 : i32, i32, i32
  }
  func.func @transform_1(%arg0: i32) -> (i32, i32) {
    %c0_i32 = arith.constant 0 : i32
    %c0_i32_0 = arith.constant 0 : i32
    %c0_i32_1 = arith.constant 0 : i32
    return %c0_i32, %c0_i32_0 : i32, i32
  }
  func.func @transform_2(%arg0: i32) -> (i32, i32) {
    %c0_i32 = arith.constant 0 : i32
    %c0_i32_0 = arith.constant 0 : i32
    %c0_i32_1 = arith.constant 0 : i32
    return %c0_i32, %c0_i32_0 : i32, i32
  }
  func.func @transform_3(%arg0: i32) -> (i32, i32, i32, i32, i32) {
    %c0_i32 = arith.constant 0 : i32
    %c0_i32_0 = arith.constant 0 : i32
    %c0_i32_1 = arith.constant 0 : i32
    %c0_i32_2 = arith.constant 0 : i32
    %c0_i32_3 = arith.constant 0 : i32
    return %arg0, %c0_i32, %c0_i32_0, %c0_i32_1, %c0_i32_2 : i32, i32, i32, i32, i32
  }
}

module attributes {stable_mosaic.version = 11 : i64} {
  func.func @kernel(%arg0: i32, %arg1: i32, %arg2: memref<2x432x128xbf16, #tpu.memory_space<any>>, %arg3: memref<2x432x128xbf16, #tpu.memory_space<any>>, %arg4: memref<9x128x128xbf16, #tpu.memory_space<vmem>>, %arg5: memref<9x128x128xbf16, #tpu.memory_space<vmem>>, %arg6: memref<1x128xf32, #tpu.memory_space<vmem>>, %arg7: memref<1x4x16x128xbf16, #tpu.memory_space<vmem>>, %arg8: memref<1x1x2x128xf32, #tpu.memory_space<vmem>>, %arg9: memref<2x144x128xbf16, #tpu.memory_space<vmem>>, %arg10: memref<2x144x128xbf16, #tpu.memory_space<vmem>>, %arg11: memref<2x2x!tpu.dma_semaphore, #tpu.memory_space<semaphore_mem>>) attributes {dimension_semantics = [#tpu.dimension_semantics<parallel>, #tpu.dimension_semantics<arbitrary>], iteration_bounds = array<i64: 2, 4>, scalar_prefetch = 0 : i64, scratch_operands = 3 : i64, tpu.core_type = #tpu.core_type<tc>, window_params = [{}, {}, {pipeline_mode = #tpu.pipeline_mode<synchronous>, transform_indices = @transform_2, window_bounds = array<i64: 9, 128, 128>}, {pipeline_mode = #tpu.pipeline_mode<synchronous>, transform_indices = @transform_3, window_bounds = array<i64: 9, 128, 128>}, {pipeline_mode = #tpu.pipeline_mode<synchronous>, transform_indices = @transform_4, window_bounds = array<i64: 1, 128>}, {transform_indices = @transform_5, window_bounds = array<i64: 1, 4, 16, 128>}, {transform_indices = @transform_6, window_bounds = array<i64: 1, 1, 2, 128>}]} {
    %c2_i32 = arith.constant 2 : i32
    %c0_i32 = arith.constant 0 : i32
    %0 = arith.cmpi eq, %c2_i32, %c0_i32 : i32
    %c1_i32 = arith.constant 1 : i32
    %1 = arith.select %0, %c1_i32, %c2_i32 : i32
    %2 = arith.remsi %arg1, %1 : i32
    %c0_i32_0 = arith.constant 0 : i32
    %3 = arith.cmpi ne, %2, %c0_i32_0 : i32
    %c0_i32_1 = arith.constant 0 : i32
    %4 = arith.cmpi slt, %2, %c0_i32_1 : i32
    %c0_i32_2 = arith.constant 0 : i32
    %5 = arith.cmpi slt, %1, %c0_i32_2 : i32
    %6 = arith.xori %4, %5 : i1
    %7 = arith.andi %6, %3 : i1
    %8 = arith.addi %2, %1 : i32
    %9 = arith.select %7, %8, %2 : i32
    %c0_i32_3 = arith.constant 0 : i32
    %10 = arith.cmpi eq, %arg1, %c0_i32_3 : i32
    %11 = arith.extui %10 : i1 to i32
    %c0_i32_4 = arith.constant 0 : i32
    %12 = arith.cmpi ne, %11, %c0_i32_4 : i32
    scf.if %12 {
      %c0_i32_131 = arith.constant 0 : i32
      %c0_i32_132 = arith.constant 0 : i32
      %c0_i32_133 = arith.constant 0 : i32
      %c0_i32_134 = arith.constant 0 : i32
      %c0_i32_135 = arith.constant 0 : i32
      %201 = tpu.memref_slice %arg2[%arg0, %c0_i32_134, %c0_i32_135] : memref<2x432x128xbf16, #tpu.memory_space<any>> -> memref<1x144x128xbf16, #tpu.memory_space<any>>
      %202 = tpu.memref_squeeze %201 : memref<1x144x128xbf16, #tpu.memory_space<any>> -> memref<144x128xbf16, #tpu.memory_space<any>>
      %c0_i32_136 = arith.constant 0 : i32
      %c0_i32_137 = arith.constant 0 : i32
      %203 = tpu.memref_slice %arg9[%c0_i32_131, %c0_i32_136, %c0_i32_137] : memref<2x144x128xbf16, #tpu.memory_space<vmem>> -> memref<1x144x128xbf16, #tpu.memory_space<vmem>>
      %204 = tpu.memref_squeeze %203 : memref<1x144x128xbf16, #tpu.memory_space<vmem>> -> memref<144x128xbf16, #tpu.memory_space<vmem>>
      %205 = tpu.memref_slice %arg11[%c0_i32_132, %c0_i32_133] : memref<2x2x!tpu.dma_semaphore, #tpu.memory_space<semaphore_mem>> -> memref<1x1x!tpu.dma_semaphore, #tpu.memory_space<semaphore_mem>>
      %206 = tpu.memref_squeeze %205 : memref<1x1x!tpu.dma_semaphore, #tpu.memory_space<semaphore_mem>> -> memref<!tpu.dma_semaphore, #tpu.memory_space<semaphore_mem>>
      tpu.enqueue_dma source(%202 : memref<144x128xbf16, #tpu.memory_space<any>>) target(%204 : memref<144x128xbf16, #tpu.memory_space<vmem>>) target_semaphore(%206 : memref<!tpu.dma_semaphore, #tpu.memory_space<semaphore_mem>>)
      %c0_i32_138 = arith.constant 0 : i32
      %c1_i32_139 = arith.constant 1 : i32
      %c0_i32_140 = arith.constant 0 : i32
      %c0_i32_141 = arith.constant 0 : i32
      %c0_i32_142 = arith.constant 0 : i32
      %207 = tpu.memref_slice %arg3[%arg0, %c0_i32_141, %c0_i32_142] : memref<2x432x128xbf16, #tpu.memory_space<any>> -> memref<1x144x128xbf16, #tpu.memory_space<any>>
      %208 = tpu.memref_squeeze %207 : memref<1x144x128xbf16, #tpu.memory_space<any>> -> memref<144x128xbf16, #tpu.memory_space<any>>
      %c0_i32_143 = arith.constant 0 : i32
      %c0_i32_144 = arith.constant 0 : i32
      %209 = tpu.memref_slice %arg10[%c0_i32_138, %c0_i32_143, %c0_i32_144] : memref<2x144x128xbf16, #tpu.memory_space<vmem>> -> memref<1x144x128xbf16, #tpu.memory_space<vmem>>
      %210 = tpu.memref_squeeze %209 : memref<1x144x128xbf16, #tpu.memory_space<vmem>> -> memref<144x128xbf16, #tpu.memory_space<vmem>>
      %211 = tpu.memref_slice %arg11[%c1_i32_139, %c0_i32_140] : memref<2x2x!tpu.dma_semaphore, #tpu.memory_space<semaphore_mem>> -> memref<1x1x!tpu.dma_semaphore, #tpu.memory_space<semaphore_mem>>
      %212 = tpu.memref_squeeze %211 : memref<1x1x!tpu.dma_semaphore, #tpu.memory_space<semaphore_mem>> -> memref<!tpu.dma_semaphore, #tpu.memory_space<semaphore_mem>>
      tpu.enqueue_dma source(%208 : memref<144x128xbf16, #tpu.memory_space<any>>) target(%210 : memref<144x128xbf16, #tpu.memory_space<vmem>>) target_semaphore(%212 : memref<!tpu.dma_semaphore, #tpu.memory_space<semaphore_mem>>)
    } else {
    }
    %c0_i32_5 = arith.constant 0 : i32
    %c0_i32_6 = arith.constant 0 : i32
    %c0_i32_7 = arith.constant 0 : i32
    %13 = tpu.memref_slice %arg2[%arg0, %c0_i32_6, %c0_i32_7] : memref<2x432x128xbf16, #tpu.memory_space<any>> -> memref<1x144x128xbf16, #tpu.memory_space<any>>
    %14 = tpu.memref_squeeze %13 : memref<1x144x128xbf16, #tpu.memory_space<any>> -> memref<144x128xbf16, #tpu.memory_space<any>>
    %c0_i32_8 = arith.constant 0 : i32
    %c0_i32_9 = arith.constant 0 : i32
    %15 = tpu.memref_slice %arg9[%9, %c0_i32_8, %c0_i32_9] : memref<2x144x128xbf16, #tpu.memory_space<vmem>> -> memref<1x144x128xbf16, #tpu.memory_space<vmem>>
    %16 = tpu.memref_squeeze %15 : memref<1x144x128xbf16, #tpu.memory_space<vmem>> -> memref<144x128xbf16, #tpu.memory_space<vmem>>
    %17 = tpu.memref_slice %arg11[%c0_i32_5, %9] : memref<2x2x!tpu.dma_semaphore, #tpu.memory_space<semaphore_mem>> -> memref<1x1x!tpu.dma_semaphore, #tpu.memory_space<semaphore_mem>>
    %18 = tpu.memref_squeeze %17 : memref<1x1x!tpu.dma_semaphore, #tpu.memory_space<semaphore_mem>> -> memref<!tpu.dma_semaphore, #tpu.memory_space<semaphore_mem>>
    tpu.wait_dma2 semaphore(%18 : memref<!tpu.dma_semaphore, #tpu.memory_space<semaphore_mem>>) src(%14 : memref<144x128xbf16, #tpu.memory_space<any>>) dst(%16 : memref<144x128xbf16, #tpu.memory_space<vmem>>)
    %c1_i32_10 = arith.constant 1 : i32
    %c0_i32_11 = arith.constant 0 : i32
    %c0_i32_12 = arith.constant 0 : i32
    %19 = tpu.memref_slice %arg3[%arg0, %c0_i32_11, %c0_i32_12] : memref<2x432x128xbf16, #tpu.memory_space<any>> -> memref<1x144x128xbf16, #tpu.memory_space<any>>
    %20 = tpu.memref_squeeze %19 : memref<1x144x128xbf16, #tpu.memory_space<any>> -> memref<144x128xbf16, #tpu.memory_space<any>>
    %c0_i32_13 = arith.constant 0 : i32
    %c0_i32_14 = arith.constant 0 : i32
    %21 = tpu.memref_slice %arg10[%9, %c0_i32_13, %c0_i32_14] : memref<2x144x128xbf16, #tpu.memory_space<vmem>> -> memref<1x144x128xbf16, #tpu.memory_space<vmem>>
    %22 = tpu.memref_squeeze %21 : memref<1x144x128xbf16, #tpu.memory_space<vmem>> -> memref<144x128xbf16, #tpu.memory_space<vmem>>
    %23 = tpu.memref_slice %arg11[%c1_i32_10, %9] : memref<2x2x!tpu.dma_semaphore, #tpu.memory_space<semaphore_mem>> -> memref<1x1x!tpu.dma_semaphore, #tpu.memory_space<semaphore_mem>>
    %24 = tpu.memref_squeeze %23 : memref<1x1x!tpu.dma_semaphore, #tpu.memory_space<semaphore_mem>> -> memref<!tpu.dma_semaphore, #tpu.memory_space<semaphore_mem>>
    tpu.wait_dma2 semaphore(%24 : memref<!tpu.dma_semaphore, #tpu.memory_space<semaphore_mem>>) src(%20 : memref<144x128xbf16, #tpu.memory_space<any>>) dst(%22 : memref<144x128xbf16, #tpu.memory_space<vmem>>)
    %c1_i32_15 = arith.constant 1 : i32
    %25 = arith.addi %arg1, %c1_i32_15 : i32
    %c4_i32 = arith.constant 4 : i32
    %26 = arith.cmpi slt, %25, %c4_i32 : i32
    %27 = arith.extui %26 : i1 to i32
    %c0_i32_16 = arith.constant 0 : i32
    %28 = arith.cmpi ne, %27, %c0_i32_16 : i32
    scf.if %28 {
      %c1_i32_131 = arith.constant 1 : i32
      %201 = arith.addi %arg1, %c1_i32_131 : i32
      %c1_i32_132 = arith.constant 1 : i32
      %202 = arith.subi %c1_i32_132, %9 : i32
      %c4_i32_133 = arith.constant 4 : i32
      %203 = arith.muli %201, %c4_i32_133 : i32
      %c24_i32_134 = arith.constant 24 : i32
      %204 = arith.muli %203, %c24_i32_134 : i32
      %c0_i32_135 = arith.constant 0 : i32
      %c0_i32_136 = arith.constant 0 : i32
      %205 = tpu.memref_slice %arg2[%arg0, %204, %c0_i32_136] : memref<2x432x128xbf16, #tpu.memory_space<any>> -> memref<1x144x128xbf16, #tpu.memory_space<any>>
      %206 = tpu.memref_squeeze %205 : memref<1x144x128xbf16, #tpu.memory_space<any>> -> memref<144x128xbf16, #tpu.memory_space<any>>
      %c0_i32_137 = arith.constant 0 : i32
      %c0_i32_138 = arith.constant 0 : i32
      %207 = tpu.memref_slice %arg9[%202, %c0_i32_137, %c0_i32_138] : memref<2x144x128xbf16, #tpu.memory_space<vmem>> -> memref<1x144x128xbf16, #tpu.memory_space<vmem>>
      %208 = tpu.memref_squeeze %207 : memref<1x144x128xbf16, #tpu.memory_space<vmem>> -> memref<144x128xbf16, #tpu.memory_space<vmem>>
      %209 = tpu.memref_slice %arg11[%c0_i32_135, %202] : memref<2x2x!tpu.dma_semaphore, #tpu.memory_space<semaphore_mem>> -> memref<1x1x!tpu.dma_semaphore, #tpu.memory_space<semaphore_mem>>
      %210 = tpu.memref_squeeze %209 : memref<1x1x!tpu.dma_semaphore, #tpu.memory_space<semaphore_mem>> -> memref<!tpu.dma_semaphore, #tpu.memory_space<semaphore_mem>>
      tpu.enqueue_dma source(%206 : memref<144x128xbf16, #tpu.memory_space<any>>) target(%208 : memref<144x128xbf16, #tpu.memory_space<vmem>>) target_semaphore(%210 : memref<!tpu.dma_semaphore, #tpu.memory_space<semaphore_mem>>)
      %c4_i32_139 = arith.constant 4 : i32
      %211 = arith.muli %201, %c4_i32_139 : i32
      %c24_i32_140 = arith.constant 24 : i32
      %212 = arith.muli %211, %c24_i32_140 : i32
      %c1_i32_141 = arith.constant 1 : i32
      %c0_i32_142 = arith.constant 0 : i32
      %213 = tpu.memref_slice %arg3[%arg0, %212, %c0_i32_142] : memref<2x432x128xbf16, #tpu.memory_space<any>> -> memref<1x144x128xbf16, #tpu.memory_space<any>>
      %214 = tpu.memref_squeeze %213 : memref<1x144x128xbf16, #tpu.memory_space<any>> -> memref<144x128xbf16, #tpu.memory_space<any>>
      %c0_i32_143 = arith.constant 0 : i32
      %c0_i32_144 = arith.constant 0 : i32
      %215 = tpu.memref_slice %arg10[%202, %c0_i32_143, %c0_i32_144] : memref<2x144x128xbf16, #tpu.memory_space<vmem>> -> memref<1x144x128xbf16, #tpu.memory_space<vmem>>
      %216 = tpu.memref_squeeze %215 : memref<1x144x128xbf16, #tpu.memory_space<vmem>> -> memref<144x128xbf16, #tpu.memory_space<vmem>>
      %217 = tpu.memref_slice %arg11[%c1_i32_141, %202] : memref<2x2x!tpu.dma_semaphore, #tpu.memory_space<semaphore_mem>> -> memref<1x1x!tpu.dma_semaphore, #tpu.memory_space<semaphore_mem>>
      %218 = tpu.memref_squeeze %217 : memref<1x1x!tpu.dma_semaphore, #tpu.memory_space<semaphore_mem>> -> memref<!tpu.dma_semaphore, #tpu.memory_space<semaphore_mem>>
      tpu.enqueue_dma source(%214 : memref<144x128xbf16, #tpu.memory_space<any>>) target(%216 : memref<144x128xbf16, #tpu.memory_space<vmem>>) target_semaphore(%218 : memref<!tpu.dma_semaphore, #tpu.memory_space<semaphore_mem>>)
    } else {
    }
    %29 = arith.index_cast %9 : i32 to index
    %c0 = arith.constant 0 : index
    %c0_17 = arith.constant 0 : index
    %30 = vector.load %arg9[%29, %c0, %c0_17] : memref<2x144x128xbf16, #tpu.memory_space<vmem>>, vector<1x96x128xbf16>
    %31 = vector.shape_cast %30 : vector<1x96x128xbf16> to vector<96x128xbf16>
    %c0_18 = arith.constant 0 : index
    %c0_19 = arith.constant 0 : index
    %c0_20 = arith.constant 0 : index
    %32 = vector.load %arg4[%c0_18, %c0_19, %c0_20] : memref<9x128x128xbf16, #tpu.memory_space<vmem>>, vector<1x128x128xbf16>
    %33 = vector.shape_cast %32 : vector<1x128x128xbf16> to vector<128x128xbf16>
    %cst = arith.constant dense<0.000000e+00> : vector<96x128xf32>
    %34 = tpu.matmul %31, %33, %cst {dimension_numbers = #tpu.dot_dimension_numbers<[1], [0], [0], [1], [0, 0, 1, 1], [], []>} : vector<96x128xbf16>, vector<128x128xbf16>, vector<96x128xf32> -> vector<96x128xf32>
    %35 = arith.index_cast %9 : i32 to index
    %c24 = arith.constant 24 : index
    %c0_21 = arith.constant 0 : index
    %36 = vector.load %arg9[%35, %c24, %c0_21] : memref<2x144x128xbf16, #tpu.memory_space<vmem>>, vector<1x96x128xbf16>
    %37 = vector.shape_cast %36 : vector<1x96x128xbf16> to vector<96x128xbf16>
    %c3 = arith.constant 3 : index
    %c0_22 = arith.constant 0 : index
    %c0_23 = arith.constant 0 : index
    %38 = vector.load %arg4[%c3, %c0_22, %c0_23] : memref<9x128x128xbf16, #tpu.memory_space<vmem>>, vector<1x128x128xbf16>
    %39 = vector.shape_cast %38 : vector<1x128x128xbf16> to vector<128x128xbf16>
    %cst_24 = arith.constant dense<0.000000e+00> : vector<96x128xf32>
    %40 = tpu.matmul %37, %39, %cst_24 {dimension_numbers = #tpu.dot_dimension_numbers<[1], [0], [0], [1], [0, 0, 1, 1], [], []>} : vector<96x128xbf16>, vector<128x128xbf16>, vector<96x128xf32> -> vector<96x128xf32>
    %41 = arith.addf %34, %40 : vector<96x128xf32>
    %42 = arith.index_cast %9 : i32 to index
    %c48 = arith.constant 48 : index
    %c0_25 = arith.constant 0 : index
    %43 = vector.load %arg9[%42, %c48, %c0_25] : memref<2x144x128xbf16, #tpu.memory_space<vmem>>, vector<1x96x128xbf16>
    %44 = vector.shape_cast %43 : vector<1x96x128xbf16> to vector<96x128xbf16>
    %c6 = arith.constant 6 : index
    %c0_26 = arith.constant 0 : index
    %c0_27 = arith.constant 0 : index
    %45 = vector.load %arg4[%c6, %c0_26, %c0_27] : memref<9x128x128xbf16, #tpu.memory_space<vmem>>, vector<1x128x128xbf16>
    %46 = vector.shape_cast %45 : vector<1x128x128xbf16> to vector<128x128xbf16>
    %cst_28 = arith.constant dense<0.000000e+00> : vector<96x128xf32>
    %47 = tpu.matmul %44, %46, %cst_28 {dimension_numbers = #tpu.dot_dimension_numbers<[1], [0], [0], [1], [0, 0, 1, 1], [], []>} : vector<96x128xbf16>, vector<128x128xbf16>, vector<96x128xf32> -> vector<96x128xf32>
    %48 = arith.addf %41, %47 : vector<96x128xf32>
    %49 = arith.index_cast %9 : i32 to index
    %c0_29 = arith.constant 0 : index
    %c0_30 = arith.constant 0 : index
    %50 = vector.load %arg10[%49, %c0_29, %c0_30] : memref<2x144x128xbf16, #tpu.memory_space<vmem>>, vector<1x96x128xbf16>
    %51 = vector.shape_cast %50 : vector<1x96x128xbf16> to vector<96x128xbf16>
    %c0_31 = arith.constant 0 : index
    %c0_32 = arith.constant 0 : index
    %c0_33 = arith.constant 0 : index
    %52 = vector.load %arg5[%c0_31, %c0_32, %c0_33] : memref<9x128x128xbf16, #tpu.memory_space<vmem>>, vector<1x128x128xbf16>
    %53 = vector.shape_cast %52 : vector<1x128x128xbf16> to vector<128x128xbf16>
    %cst_34 = arith.constant dense<0.000000e+00> : vector<96x128xf32>
    %54 = tpu.matmul %51, %53, %cst_34 {dimension_numbers = #tpu.dot_dimension_numbers<[1], [0], [0], [1], [0, 0, 1, 1], [], []>} : vector<96x128xbf16>, vector<128x128xbf16>, vector<96x128xf32> -> vector<96x128xf32>
    %55 = arith.addf %48, %54 : vector<96x128xf32>
    %56 = arith.index_cast %9 : i32 to index
    %c24_35 = arith.constant 24 : index
    %c0_36 = arith.constant 0 : index
    %57 = vector.load %arg10[%56, %c24_35, %c0_36] : memref<2x144x128xbf16, #tpu.memory_space<vmem>>, vector<1x96x128xbf16>
    %58 = vector.shape_cast %57 : vector<1x96x128xbf16> to vector<96x128xbf16>
    %c3_37 = arith.constant 3 : index
    %c0_38 = arith.constant 0 : index
    %c0_39 = arith.constant 0 : index
    %59 = vector.load %arg5[%c3_37, %c0_38, %c0_39] : memref<9x128x128xbf16, #tpu.memory_space<vmem>>, vector<1x128x128xbf16>
    %60 = vector.shape_cast %59 : vector<1x128x128xbf16> to vector<128x128xbf16>
    %cst_40 = arith.constant dense<0.000000e+00> : vector<96x128xf32>
    %61 = tpu.matmul %58, %60, %cst_40 {dimension_numbers = #tpu.dot_dimension_numbers<[1], [0], [0], [1], [0, 0, 1, 1], [], []>} : vector<96x128xbf16>, vector<128x128xbf16>, vector<96x128xf32> -> vector<96x128xf32>
    %62 = arith.addf %55, %61 : vector<96x128xf32>
    %63 = arith.index_cast %9 : i32 to index
    %c48_41 = arith.constant 48 : index
    %c0_42 = arith.constant 0 : index
    %64 = vector.load %arg10[%63, %c48_41, %c0_42] : memref<2x144x128xbf16, #tpu.memory_space<vmem>>, vector<1x96x128xbf16>
    %65 = vector.shape_cast %64 : vector<1x96x128xbf16> to vector<96x128xbf16>
    %c6_43 = arith.constant 6 : index
    %c0_44 = arith.constant 0 : index
    %c0_45 = arith.constant 0 : index
    %66 = vector.load %arg5[%c6_43, %c0_44, %c0_45] : memref<9x128x128xbf16, #tpu.memory_space<vmem>>, vector<1x128x128xbf16>
    %67 = vector.shape_cast %66 : vector<1x128x128xbf16> to vector<128x128xbf16>
    %cst_46 = arith.constant dense<0.000000e+00> : vector<96x128xf32>
    %68 = tpu.matmul %65, %67, %cst_46 {dimension_numbers = #tpu.dot_dimension_numbers<[1], [0], [0], [1], [0, 0, 1, 1], [], []>} : vector<96x128xbf16>, vector<128x128xbf16>, vector<96x128xf32> -> vector<96x128xf32>
    %69 = arith.addf %62, %68 : vector<96x128xf32>
    %70 = arith.index_cast %9 : i32 to index
    %c0_47 = arith.constant 0 : index
    %c0_48 = arith.constant 0 : index
    %71 = vector.load %arg9[%70, %c0_47, %c0_48] : memref<2x144x128xbf16, #tpu.memory_space<vmem>>, vector<1x96x128xbf16>
    %72 = vector.shape_cast %71 : vector<1x96x128xbf16> to vector<96x128xbf16>
    %c1 = arith.constant 1 : index
    %c0_49 = arith.constant 0 : index
    %c0_50 = arith.constant 0 : index
    %73 = vector.load %arg4[%c1, %c0_49, %c0_50] : memref<9x128x128xbf16, #tpu.memory_space<vmem>>, vector<1x128x128xbf16>
    %74 = vector.shape_cast %73 : vector<1x128x128xbf16> to vector<128x128xbf16>
    %cst_51 = arith.constant dense<0.000000e+00> : vector<96x128xf32>
    %75 = tpu.matmul %72, %74, %cst_51 {dimension_numbers = #tpu.dot_dimension_numbers<[1], [0], [0], [1], [0, 0, 1, 1], [], []>} : vector<96x128xbf16>, vector<128x128xbf16>, vector<96x128xf32> -> vector<96x128xf32>
    %76 = arith.index_cast %9 : i32 to index
    %c24_52 = arith.constant 24 : index
    %c0_53 = arith.constant 0 : index
    %77 = vector.load %arg9[%76, %c24_52, %c0_53] : memref<2x144x128xbf16, #tpu.memory_space<vmem>>, vector<1x96x128xbf16>
    %78 = vector.shape_cast %77 : vector<1x96x128xbf16> to vector<96x128xbf16>
    %c4 = arith.constant 4 : index
    %c0_54 = arith.constant 0 : index
    %c0_55 = arith.constant 0 : index
    %79 = vector.load %arg4[%c4, %c0_54, %c0_55] : memref<9x128x128xbf16, #tpu.memory_space<vmem>>, vector<1x128x128xbf16>
    %80 = vector.shape_cast %79 : vector<1x128x128xbf16> to vector<128x128xbf16>
    %cst_56 = arith.constant dense<0.000000e+00> : vector<96x128xf32>
    %81 = tpu.matmul %78, %80, %cst_56 {dimension_numbers = #tpu.dot_dimension_numbers<[1], [0], [0], [1], [0, 0, 1, 1], [], []>} : vector<96x128xbf16>, vector<128x128xbf16>, vector<96x128xf32> -> vector<96x128xf32>
    %82 = arith.addf %75, %81 : vector<96x128xf32>
    %83 = arith.index_cast %9 : i32 to index
    %c48_57 = arith.constant 48 : index
    %c0_58 = arith.constant 0 : index
    %84 = vector.load %arg9[%83, %c48_57, %c0_58] : memref<2x144x128xbf16, #tpu.memory_space<vmem>>, vector<1x96x128xbf16>
    %85 = vector.shape_cast %84 : vector<1x96x128xbf16> to vector<96x128xbf16>
    %c7 = arith.constant 7 : index
    %c0_59 = arith.constant 0 : index
    %c0_60 = arith.constant 0 : index
    %86 = vector.load %arg4[%c7, %c0_59, %c0_60] : memref<9x128x128xbf16, #tpu.memory_space<vmem>>, vector<1x128x128xbf16>
    %87 = vector.shape_cast %86 : vector<1x128x128xbf16> to vector<128x128xbf16>
    %cst_61 = arith.constant dense<0.000000e+00> : vector<96x128xf32>
    %88 = tpu.matmul %85, %87, %cst_61 {dimension_numbers = #tpu.dot_dimension_numbers<[1], [0], [0], [1], [0, 0, 1, 1], [], []>} : vector<96x128xbf16>, vector<128x128xbf16>, vector<96x128xf32> -> vector<96x128xf32>
    %89 = arith.addf %82, %88 : vector<96x128xf32>
    %90 = arith.index_cast %9 : i32 to index
    %c0_62 = arith.constant 0 : index
    %c0_63 = arith.constant 0 : index
    %91 = vector.load %arg10[%90, %c0_62, %c0_63] : memref<2x144x128xbf16, #tpu.memory_space<vmem>>, vector<1x96x128xbf16>
    %92 = vector.shape_cast %91 : vector<1x96x128xbf16> to vector<96x128xbf16>
    %c1_64 = arith.constant 1 : index
    %c0_65 = arith.constant 0 : index
    %c0_66 = arith.constant 0 : index
    %93 = vector.load %arg5[%c1_64, %c0_65, %c0_66] : memref<9x128x128xbf16, #tpu.memory_space<vmem>>, vector<1x128x128xbf16>
    %94 = vector.shape_cast %93 : vector<1x128x128xbf16> to vector<128x128xbf16>
    %cst_67 = arith.constant dense<0.000000e+00> : vector<96x128xf32>
    %95 = tpu.matmul %92, %94, %cst_67 {dimension_numbers = #tpu.dot_dimension_numbers<[1], [0], [0], [1], [0, 0, 1, 1], [], []>} : vector<96x128xbf16>, vector<128x128xbf16>, vector<96x128xf32> -> vector<96x128xf32>
    %96 = arith.addf %89, %95 : vector<96x128xf32>
    %97 = arith.index_cast %9 : i32 to index
    %c24_68 = arith.constant 24 : index
    %c0_69 = arith.constant 0 : index
    %98 = vector.load %arg10[%97, %c24_68, %c0_69] : memref<2x144x128xbf16, #tpu.memory_space<vmem>>, vector<1x96x128xbf16>
    %99 = vector.shape_cast %98 : vector<1x96x128xbf16> to vector<96x128xbf16>
    %c4_70 = arith.constant 4 : index
    %c0_71 = arith.constant 0 : index
    %c0_72 = arith.constant 0 : index
    %100 = vector.load %arg5[%c4_70, %c0_71, %c0_72] : memref<9x128x128xbf16, #tpu.memory_space<vmem>>, vector<1x128x128xbf16>
    %101 = vector.shape_cast %100 : vector<1x128x128xbf16> to vector<128x128xbf16>
    %cst_73 = arith.constant dense<0.000000e+00> : vector<96x128xf32>
    %102 = tpu.matmul %99, %101, %cst_73 {dimension_numbers = #tpu.dot_dimension_numbers<[1], [0], [0], [1], [0, 0, 1, 1], [], []>} : vector<96x128xbf16>, vector<128x128xbf16>, vector<96x128xf32> -> vector<96x128xf32>
    %103 = arith.addf %96, %102 : vector<96x128xf32>
    %104 = arith.index_cast %9 : i32 to index
    %c48_74 = arith.constant 48 : index
    %c0_75 = arith.constant 0 : index
    %105 = vector.load %arg10[%104, %c48_74, %c0_75] : memref<2x144x128xbf16, #tpu.memory_space<vmem>>, vector<1x96x128xbf16>
    %106 = vector.shape_cast %105 : vector<1x96x128xbf16> to vector<96x128xbf16>
    %c7_76 = arith.constant 7 : index
    %c0_77 = arith.constant 0 : index
    %c0_78 = arith.constant 0 : index
    %107 = vector.load %arg5[%c7_76, %c0_77, %c0_78] : memref<9x128x128xbf16, #tpu.memory_space<vmem>>, vector<1x128x128xbf16>
    %108 = vector.shape_cast %107 : vector<1x128x128xbf16> to vector<128x128xbf16>
    %cst_79 = arith.constant dense<0.000000e+00> : vector<96x128xf32>
    %109 = tpu.matmul %106, %108, %cst_79 {dimension_numbers = #tpu.dot_dimension_numbers<[1], [0], [0], [1], [0, 0, 1, 1], [], []>} : vector<96x128xbf16>, vector<128x128xbf16>, vector<96x128xf32> -> vector<96x128xf32>
    %110 = arith.addf %103, %109 : vector<96x128xf32>
    %111 = vector.extract_strided_slice %110 {offsets = [1, 0], sizes = [95, 128], strides = [1, 1]} : vector<96x128xf32> to vector<95x128xf32>
    %112 = vector.extract_strided_slice %110 {offsets = [0, 0], sizes = [1, 128], strides = [1, 1]} : vector<96x128xf32> to vector<1x128xf32>
    %113 = tpu.concatenate %111, %112 in 0 : vector<95x128xf32>, vector<1x128xf32> -> vector<96x128xf32>
    %114 = arith.addf %69, %113 : vector<96x128xf32>
    %115 = arith.index_cast %9 : i32 to index
    %c0_80 = arith.constant 0 : index
    %c0_81 = arith.constant 0 : index
    %116 = vector.load %arg9[%115, %c0_80, %c0_81] : memref<2x144x128xbf16, #tpu.memory_space<vmem>>, vector<1x96x128xbf16>
    %117 = vector.shape_cast %116 : vector<1x96x128xbf16> to vector<96x128xbf16>
    %c2 = arith.constant 2 : index
    %c0_82 = arith.constant 0 : index
    %c0_83 = arith.constant 0 : index
    %118 = vector.load %arg4[%c2, %c0_82, %c0_83] : memref<9x128x128xbf16, #tpu.memory_space<vmem>>, vector<1x128x128xbf16>
    %119 = vector.shape_cast %118 : vector<1x128x128xbf16> to vector<128x128xbf16>
    %cst_84 = arith.constant dense<0.000000e+00> : vector<96x128xf32>
    %120 = tpu.matmul %117, %119, %cst_84 {dimension_numbers = #tpu.dot_dimension_numbers<[1], [0], [0], [1], [0, 0, 1, 1], [], []>} : vector<96x128xbf16>, vector<128x128xbf16>, vector<96x128xf32> -> vector<96x128xf32>
    %121 = arith.index_cast %9 : i32 to index
    %c24_85 = arith.constant 24 : index
    %c0_86 = arith.constant 0 : index
    %122 = vector.load %arg9[%121, %c24_85, %c0_86] : memref<2x144x128xbf16, #tpu.memory_space<vmem>>, vector<1x96x128xbf16>
    %123 = vector.shape_cast %122 : vector<1x96x128xbf16> to vector<96x128xbf16>
    %c5 = arith.constant 5 : index
    %c0_87 = arith.constant 0 : index
    %c0_88 = arith.constant 0 : index
    %124 = vector.load %arg4[%c5, %c0_87, %c0_88] : memref<9x128x128xbf16, #tpu.memory_space<vmem>>, vector<1x128x128xbf16>
    %125 = vector.shape_cast %124 : vector<1x128x128xbf16> to vector<128x128xbf16>
    %cst_89 = arith.constant dense<0.000000e+00> : vector<96x128xf32>
    %126 = tpu.matmul %123, %125, %cst_89 {dimension_numbers = #tpu.dot_dimension_numbers<[1], [0], [0], [1], [0, 0, 1, 1], [], []>} : vector<96x128xbf16>, vector<128x128xbf16>, vector<96x128xf32> -> vector<96x128xf32>
    %127 = arith.addf %120, %126 : vector<96x128xf32>
    %128 = arith.index_cast %9 : i32 to index
    %c48_90 = arith.constant 48 : index
    %c0_91 = arith.constant 0 : index
    %129 = vector.load %arg9[%128, %c48_90, %c0_91] : memref<2x144x128xbf16, #tpu.memory_space<vmem>>, vector<1x96x128xbf16>
    %130 = vector.shape_cast %129 : vector<1x96x128xbf16> to vector<96x128xbf16>
    %c8 = arith.constant 8 : index
    %c0_92 = arith.constant 0 : index
    %c0_93 = arith.constant 0 : index
    %131 = vector.load %arg4[%c8, %c0_92, %c0_93] : memref<9x128x128xbf16, #tpu.memory_space<vmem>>, vector<1x128x128xbf16>
    %132 = vector.shape_cast %131 : vector<1x128x128xbf16> to vector<128x128xbf16>
    %cst_94 = arith.constant dense<0.000000e+00> : vector<96x128xf32>
    %133 = tpu.matmul %130, %132, %cst_94 {dimension_numbers = #tpu.dot_dimension_numbers<[1], [0], [0], [1], [0, 0, 1, 1], [], []>} : vector<96x128xbf16>, vector<128x128xbf16>, vector<96x128xf32> -> vector<96x128xf32>
    %134 = arith.addf %127, %133 : vector<96x128xf32>
    %135 = arith.index_cast %9 : i32 to index
    %c0_95 = arith.constant 0 : index
    %c0_96 = arith.constant 0 : index
    %136 = vector.load %arg10[%135, %c0_95, %c0_96] : memref<2x144x128xbf16, #tpu.memory_space<vmem>>, vector<1x96x128xbf16>
    %137 = vector.shape_cast %136 : vector<1x96x128xbf16> to vector<96x128xbf16>
    %c2_97 = arith.constant 2 : index
    %c0_98 = arith.constant 0 : index
    %c0_99 = arith.constant 0 : index
    %138 = vector.load %arg5[%c2_97, %c0_98, %c0_99] : memref<9x128x128xbf16, #tpu.memory_space<vmem>>, vector<1x128x128xbf16>
    %139 = vector.shape_cast %138 : vector<1x128x128xbf16> to vector<128x128xbf16>
    %cst_100 = arith.constant dense<0.000000e+00> : vector<96x128xf32>
    %140 = tpu.matmul %137, %139, %cst_100 {dimension_numbers = #tpu.dot_dimension_numbers<[1], [0], [0], [1], [0, 0, 1, 1], [], []>} : vector<96x128xbf16>, vector<128x128xbf16>, vector<96x128xf32> -> vector<96x128xf32>
    %141 = arith.addf %134, %140 : vector<96x128xf32>
    %142 = arith.index_cast %9 : i32 to index
    %c24_101 = arith.constant 24 : index
    %c0_102 = arith.constant 0 : index
    %143 = vector.load %arg10[%142, %c24_101, %c0_102] : memref<2x144x128xbf16, #tpu.memory_space<vmem>>, vector<1x96x128xbf16>
    %144 = vector.shape_cast %143 : vector<1x96x128xbf16> to vector<96x128xbf16>
    %c5_103 = arith.constant 5 : index
    %c0_104 = arith.constant 0 : index
    %c0_105 = arith.constant 0 : index
    %145 = vector.load %arg5[%c5_103, %c0_104, %c0_105] : memref<9x128x128xbf16, #tpu.memory_space<vmem>>, vector<1x128x128xbf16>
    %146 = vector.shape_cast %145 : vector<1x128x128xbf16> to vector<128x128xbf16>
    %cst_106 = arith.constant dense<0.000000e+00> : vector<96x128xf32>
    %147 = tpu.matmul %144, %146, %cst_106 {dimension_numbers = #tpu.dot_dimension_numbers<[1], [0], [0], [1], [0, 0, 1, 1], [], []>} : vector<96x128xbf16>, vector<128x128xbf16>, vector<96x128xf32> -> vector<96x128xf32>
    %148 = arith.addf %141, %147 : vector<96x128xf32>
    %149 = arith.index_cast %9 : i32 to index
    %c48_107 = arith.constant 48 : index
    %c0_108 = arith.constant 0 : index
    %150 = vector.load %arg10[%149, %c48_107, %c0_108] : memref<2x144x128xbf16, #tpu.memory_space<vmem>>, vector<1x96x128xbf16>
    %151 = vector.shape_cast %150 : vector<1x96x128xbf16> to vector<96x128xbf16>
    %c8_109 = arith.constant 8 : index
    %c0_110 = arith.constant 0 : index
    %c0_111 = arith.constant 0 : index
    %152 = vector.load %arg5[%c8_109, %c0_110, %c0_111] : memref<9x128x128xbf16, #tpu.memory_space<vmem>>, vector<1x128x128xbf16>
    %153 = vector.shape_cast %152 : vector<1x128x128xbf16> to vector<128x128xbf16>
    %cst_112 = arith.constant dense<0.000000e+00> : vector<96x128xf32>
    %154 = tpu.matmul %151, %153, %cst_112 {dimension_numbers = #tpu.dot_dimension_numbers<[1], [0], [0], [1], [0, 0, 1, 1], [], []>} : vector<96x128xbf16>, vector<128x128xbf16>, vector<96x128xf32> -> vector<96x128xf32>
    %155 = arith.addf %148, %154 : vector<96x128xf32>
    %156 = vector.extract_strided_slice %155 {offsets = [2, 0], sizes = [94, 128], strides = [1, 1]} : vector<96x128xf32> to vector<94x128xf32>
    %157 = vector.extract_strided_slice %155 {offsets = [0, 0], sizes = [2, 128], strides = [1, 1]} : vector<96x128xf32> to vector<2x128xf32>
    %158 = tpu.concatenate %156, %157 in 0 : vector<94x128xf32>, vector<2x128xf32> -> vector<96x128xf32>
    %159 = arith.addf %114, %158 : vector<96x128xf32>
    %c0_113 = arith.constant 0 : index
    %c0_114 = arith.constant 0 : index
    %160 = vector.load %arg6[%c0_113, %c0_114] : memref<1x128xf32, #tpu.memory_space<vmem>>, vector<1x128xf32>
    %161 = vector.broadcast %160 : vector<1x128xf32> to vector<96x128xf32>
    %162 = arith.addf %159, %161 : vector<96x128xf32>
    %163 = tpu.iota {dimensions = array<i32: 0>} : vector<96x1xi32>
    %c24_i32 = arith.constant 24 : i32
    %c0_i32_115 = arith.constant 0 : i32
    %164 = arith.cmpi eq, %c24_i32, %c0_i32_115 : i32
    %c1_i32_116 = arith.constant 1 : i32
    %165 = arith.select %164, %c1_i32_116, %c24_i32 : i32
    %166 = vector.broadcast %165 : i32 to vector<96x1xi32>
    %167 = arith.remsi %163, %166 : vector<96x1xi32>
    %c0_i32_117 = arith.constant 0 : i32
    %168 = vector.broadcast %c0_i32_117 : i32 to vector<96x1xi32>
    %169 = arith.cmpi ne, %167, %168 : vector<96x1xi32>
    %c0_i32_118 = arith.constant 0 : i32
    %170 = vector.broadcast %c0_i32_118 : i32 to vector<96x1xi32>
    %171 = arith.cmpi slt, %167, %170 : vector<96x1xi32>
    %c0_i32_119 = arith.constant 0 : i32
    %172 = arith.cmpi slt, %165, %c0_i32_119 : i32
    %173 = vector.broadcast %172 : i1 to vector<96x1xi1>
    %174 = vector.broadcast %173 : vector<96x1xi1> to vector<96x1xi1>
    %175 = arith.xori %171, %174 : vector<96x1xi1>
    %176 = arith.andi %175, %169 : vector<96x1xi1>
    %177 = vector.broadcast %165 : i32 to vector<96x1xi32>
    %178 = arith.addi %167, %177 : vector<96x1xi32>
    %179 = arith.select %176, %178, %167 : vector<96x1xi1>, vector<96x1xi32>
    %c16_i32 = arith.constant 16 : i32
    %180 = vector.broadcast %c16_i32 : i32 to vector<96x1xi32>
    %181 = arith.cmpi slt, %179, %180 : vector<96x1xi32>
    %cst_120 = arith.constant 0.000000e+00 : f32
    %182 = vector.shape_cast %181 : vector<96x1xi1> to vector<96x1xi1>
    %183 = vector.broadcast %182 : vector<96x1xi1> to vector<96x128xi1>
    %184 = vector.broadcast %cst_120 : f32 to vector<96x128xf32>
    %185 = arith.select %183, %162, %184 : vector<96x128xi1>, vector<96x128xf32>
    %cst_121 = arith.constant dense<0.000000e+00> : vector<128xf32>
    %186 = vector.multi_reduction <add>, %185, %cst_121 [0] : vector<96x128xf32> to vector<128xf32>
    %187 = vector.shape_cast %186 : vector<128xf32> to vector<1x128xf32>
    %188 = arith.mulf %185, %185 : vector<96x128xf32>
    %cst_122 = arith.constant dense<0.000000e+00> : vector<128xf32>
    %189 = vector.multi_reduction <add>, %188, %cst_122 [0] : vector<96x128xf32> to vector<128xf32>
    %190 = vector.shape_cast %189 : vector<128xf32> to vector<1x128xf32>
    %191 = tpu.concatenate %187, %190 in 0 : vector<1x128xf32>, vector<1x128xf32> -> vector<2x128xf32>
    %c0_123 = arith.constant 0 : index
    %c0_124 = arith.constant 0 : index
    %c0_125 = arith.constant 0 : index
    %c0_126 = arith.constant 0 : index
    %192 = vector.load %arg8[%c0_123, %c0_124, %c0_125, %c0_126] : memref<1x1x2x128xf32, #tpu.memory_space<vmem>>, vector<1x1x2x128xf32>
    %193 = vector.shape_cast %192 : vector<1x1x2x128xf32> to vector<2x128xf32>
    %194 = vector.shape_cast %191 : vector<2x128xf32> to vector<1x1x2x128xf32>
    tpu.vector_store %arg8[%c0_123, %c0_124, %c0_125, %c0_126], %194 {strides = array<i32>} : memref<1x1x2x128xf32, #tpu.memory_space<vmem>>, vector<1x1x2x128xf32>,
    %195 = vector.shape_cast %162 : vector<96x128xf32> to vector<4x24x128xf32>
    %196 = vector.extract_strided_slice %195 {offsets = [0, 0, 0], sizes = [4, 16, 128], strides = [1, 1, 1]} : vector<4x24x128xf32> to vector<4x16x128xf32>
    %197 = arith.truncf %196 : vector<4x16x128xf32> to vector<4x16x128xbf16>
    %c0_127 = arith.constant 0 : index
    %c0_128 = arith.constant 0 : index
    %c0_129 = arith.constant 0 : index
    %c0_130 = arith.constant 0 : index
    %198 = vector.load %arg7[%c0_127, %c0_128, %c0_129, %c0_130] : memref<1x4x16x128xbf16, #tpu.memory_space<vmem>>, vector<1x4x16x128xbf16>
    %199 = vector.shape_cast %198 : vector<1x4x16x128xbf16> to vector<4x16x128xbf16>
    %200 = vector.shape_cast %197 : vector<4x16x128xbf16> to vector<1x4x16x128xbf16>
    tpu.vector_store %arg7[%c0_127, %c0_128, %c0_129, %c0_130], %200 {strides = array<i32>} : memref<1x4x16x128xbf16, #tpu.memory_space<vmem>>, vector<1x4x16x128xbf16>,
    return
  }
  func.func @transform_2(%arg0: i32, %arg1: i32) -> (i32, i32, i32) {
    %c0_i32 = arith.constant 0 : i32
    %c0_i32_0 = arith.constant 0 : i32
    %c0_i32_1 = arith.constant 0 : i32
    %c0_i32_2 = arith.constant 0 : i32
    return %c0_i32, %c0_i32_0, %c0_i32_1 : i32, i32, i32
  }
  func.func @transform_3(%arg0: i32, %arg1: i32) -> (i32, i32, i32) {
    %c0_i32 = arith.constant 0 : i32
    %c0_i32_0 = arith.constant 0 : i32
    %c0_i32_1 = arith.constant 0 : i32
    %c0_i32_2 = arith.constant 0 : i32
    return %c0_i32, %c0_i32_0, %c0_i32_1 : i32, i32, i32
  }
  func.func @transform_4(%arg0: i32, %arg1: i32) -> (i32, i32) {
    %c0_i32 = arith.constant 0 : i32
    %c0_i32_0 = arith.constant 0 : i32
    %c0_i32_1 = arith.constant 0 : i32
    return %c0_i32, %c0_i32_0 : i32, i32
  }
  func.func @transform_5(%arg0: i32, %arg1: i32) -> (i32, i32, i32, i32) {
    %c0_i32 = arith.constant 0 : i32
    %c0_i32_0 = arith.constant 0 : i32
    %c0_i32_1 = arith.constant 0 : i32
    return %arg0, %arg1, %c0_i32, %c0_i32_0 : i32, i32, i32, i32
  }
  func.func @transform_6(%arg0: i32, %arg1: i32) -> (i32, i32, i32, i32) {
    %c0_i32 = arith.constant 0 : i32
    %c0_i32_0 = arith.constant 0 : i32
    %c0_i32_1 = arith.constant 0 : i32
    return %arg0, %arg1, %c0_i32, %c0_i32_0 : i32, i32, i32, i32
  }
}

module attributes {stable_mosaic.version = 11 : i64} {
  func.func @_affine_relu_kernel(%arg0: i32, %arg1: i32, %arg2: memref<1x4x16x128xbf16, #tpu.memory_space<vmem>>, %arg3: memref<1x1x1x128xf32, #tpu.memory_space<vmem>>, %arg4: memref<1x1x1x128xf32, #tpu.memory_space<vmem>>, %arg5: memref<1x4x16x128xbf16, #tpu.memory_space<vmem>>) attributes {dimension_semantics = [#tpu.dimension_semantics<parallel>, #tpu.dimension_semantics<parallel>], iteration_bounds = array<i64: 2, 4>, scalar_prefetch = 0 : i64, scratch_operands = 0 : i64, tpu.core_type = #tpu.core_type<tc>, window_params = [{transform_indices = @transform_0, window_bounds = array<i64: 1, 4, 16, 128>}, {pipeline_mode = #tpu.pipeline_mode<synchronous>, transform_indices = @transform_1, window_bounds = array<i64: 1, 1, 1, 128>}, {pipeline_mode = #tpu.pipeline_mode<synchronous>, transform_indices = @transform_2, window_bounds = array<i64: 1, 1, 1, 128>}, {transform_indices = @transform_3, window_bounds = array<i64: 1, 4, 16, 128>}]} {
    %c0 = arith.constant 0 : index
    %c0_0 = arith.constant 0 : index
    %c0_1 = arith.constant 0 : index
    %c0_2 = arith.constant 0 : index
    %0 = vector.load %arg2[%c0, %c0_0, %c0_1, %c0_2] : memref<1x4x16x128xbf16, #tpu.memory_space<vmem>>, vector<1x4x16x128xbf16>
    %c0_3 = arith.constant 0 : index
    %c0_4 = arith.constant 0 : index
    %c0_5 = arith.constant 0 : index
    %c0_6 = arith.constant 0 : index
    %1 = vector.load %arg3[%c0_3, %c0_4, %c0_5, %c0_6] : memref<1x1x1x128xf32, #tpu.memory_space<vmem>>, vector<1x1x1x128xf32>
    %2 = arith.extf %0 : vector<1x4x16x128xbf16> to vector<1x4x16x128xf32>
    %3 = vector.broadcast %1 : vector<1x1x1x128xf32> to vector<1x4x16x128xf32>
    %4 = arith.mulf %2, %3 : vector<1x4x16x128xf32>
    %c0_7 = arith.constant 0 : index
    %c0_8 = arith.constant 0 : index
    %c0_9 = arith.constant 0 : index
    %c0_10 = arith.constant 0 : index
    %5 = vector.load %arg4[%c0_7, %c0_8, %c0_9, %c0_10] : memref<1x1x1x128xf32, #tpu.memory_space<vmem>>, vector<1x1x1x128xf32>
    %6 = vector.broadcast %5 : vector<1x1x1x128xf32> to vector<1x4x16x128xf32>
    %7 = arith.addf %4, %6 : vector<1x4x16x128xf32>
    %cst = arith.constant 0.000000e+00 : f32
    %8 = vector.broadcast %cst : f32 to vector<1x4x16x128xf32>
    %9 = arith.maximumf %7, %8 : vector<1x4x16x128xf32>
    %10 = arith.truncf %9 : vector<1x4x16x128xf32> to vector<1x4x16x128xbf16>
    %c0_11 = arith.constant 0 : index
    %c0_12 = arith.constant 0 : index
    %c0_13 = arith.constant 0 : index
    %c0_14 = arith.constant 0 : index
    %11 = vector.load %arg5[%c0_11, %c0_12, %c0_13, %c0_14] : memref<1x4x16x128xbf16, #tpu.memory_space<vmem>>, vector<1x4x16x128xbf16>
    tpu.vector_store %arg5[%c0_11, %c0_12, %c0_13, %c0_14], %10 {strides = array<i32>} : memref<1x4x16x128xbf16, #tpu.memory_space<vmem>>, vector<1x4x16x128xbf16>,
    return
  }
  func.func @transform_0(%arg0: i32, %arg1: i32) -> (i32, i32, i32, i32) {
    %c0_i32 = arith.constant 0 : i32
    %c0_i32_0 = arith.constant 0 : i32
    %c0_i32_1 = arith.constant 0 : i32
    return %arg0, %arg1, %c0_i32, %c0_i32_0 : i32, i32, i32, i32
  }
  func.func @transform_1(%arg0: i32, %arg1: i32) -> (i32, i32, i32, i32) {
    %c0_i32 = arith.constant 0 : i32
    %c0_i32_0 = arith.constant 0 : i32
    %c0_i32_1 = arith.constant 0 : i32
    %c0_i32_2 = arith.constant 0 : i32
    %c0_i32_3 = arith.constant 0 : i32
    return %c0_i32, %c0_i32_0, %c0_i32_1, %c0_i32_2 : i32, i32, i32, i32
  }
  func.func @transform_2(%arg0: i32, %arg1: i32) -> (i32, i32, i32, i32) {
    %c0_i32 = arith.constant 0 : i32
    %c0_i32_0 = arith.constant 0 : i32
    %c0_i32_1 = arith.constant 0 : i32
    %c0_i32_2 = arith.constant 0 : i32
    %c0_i32_3 = arith.constant 0 : i32
    return %c0_i32, %c0_i32_0, %c0_i32_1, %c0_i32_2 : i32, i32, i32, i32
  }
  func.func @transform_3(%arg0: i32, %arg1: i32) -> (i32, i32, i32, i32) {
    %c0_i32 = arith.constant 0 : i32
    %c0_i32_0 = arith.constant 0 : i32
    %c0_i32_1 = arith.constant 0 : i32
    return %arg0, %arg1, %c0_i32, %c0_i32_0 : i32, i32, i32, i32
  }
}

module attributes {stable_mosaic.version = 11 : i64} {
  func.func @kernel(%arg0: i32, %arg1: i32, %arg2: memref<2x432x128xbf16, #tpu.memory_space<any>>, %arg3: memref<9x128x128xbf16, #tpu.memory_space<vmem>>, %arg4: memref<1x128xf32, #tpu.memory_space<vmem>>, %arg5: memref<1x4x16x128xbf16, #tpu.memory_space<vmem>>, %arg6: memref<1x1x2x128xf32, #tpu.memory_space<vmem>>, %arg7: memref<2x144x128xbf16, #tpu.memory_space<vmem>>, %arg8: memref<1x2x!tpu.dma_semaphore, #tpu.memory_space<semaphore_mem>>) attributes {dimension_semantics = [#tpu.dimension_semantics<parallel>, #tpu.dimension_semantics<arbitrary>], iteration_bounds = array<i64: 2, 4>, scalar_prefetch = 0 : i64, scratch_operands = 2 : i64, tpu.core_type = #tpu.core_type<tc>, window_params = [{}, {pipeline_mode = #tpu.pipeline_mode<synchronous>, transform_indices = @transform_1, window_bounds = array<i64: 9, 128, 128>}, {pipeline_mode = #tpu.pipeline_mode<synchronous>, transform_indices = @transform_2, window_bounds = array<i64: 1, 128>}, {transform_indices = @transform_3, window_bounds = array<i64: 1, 4, 16, 128>}, {transform_indices = @transform_4, window_bounds = array<i64: 1, 1, 2, 128>}]} {
    %c2_i32 = arith.constant 2 : i32
    %c0_i32 = arith.constant 0 : i32
    %0 = arith.cmpi eq, %c2_i32, %c0_i32 : i32
    %c1_i32 = arith.constant 1 : i32
    %1 = arith.select %0, %c1_i32, %c2_i32 : i32
    %2 = arith.remsi %arg1, %1 : i32
    %c0_i32_0 = arith.constant 0 : i32
    %3 = arith.cmpi ne, %2, %c0_i32_0 : i32
    %c0_i32_1 = arith.constant 0 : i32
    %4 = arith.cmpi slt, %2, %c0_i32_1 : i32
    %c0_i32_2 = arith.constant 0 : i32
    %5 = arith.cmpi slt, %1, %c0_i32_2 : i32
    %6 = arith.xori %4, %5 : i1
    %7 = arith.andi %6, %3 : i1
    %8 = arith.addi %2, %1 : i32
    %9 = arith.select %7, %8, %2 : i32
    %c0_i32_3 = arith.constant 0 : i32
    %10 = arith.cmpi eq, %arg1, %c0_i32_3 : i32
    %11 = arith.extui %10 : i1 to i32
    %c0_i32_4 = arith.constant 0 : i32
    %12 = arith.cmpi ne, %11, %c0_i32_4 : i32
    scf.if %12 {
      %c0_i32_72 = arith.constant 0 : i32
      %c0_i32_73 = arith.constant 0 : i32
      %c0_i32_74 = arith.constant 0 : i32
      %c0_i32_75 = arith.constant 0 : i32
      %c0_i32_76 = arith.constant 0 : i32
      %132 = tpu.memref_slice %arg2[%arg0, %c0_i32_75, %c0_i32_76] : memref<2x432x128xbf16, #tpu.memory_space<any>> -> memref<1x144x128xbf16, #tpu.memory_space<any>>
      %133 = tpu.memref_squeeze %132 : memref<1x144x128xbf16, #tpu.memory_space<any>> -> memref<144x128xbf16, #tpu.memory_space<any>>
      %c0_i32_77 = arith.constant 0 : i32
      %c0_i32_78 = arith.constant 0 : i32
      %134 = tpu.memref_slice %arg7[%c0_i32_72, %c0_i32_77, %c0_i32_78] : memref<2x144x128xbf16, #tpu.memory_space<vmem>> -> memref<1x144x128xbf16, #tpu.memory_space<vmem>>
      %135 = tpu.memref_squeeze %134 : memref<1x144x128xbf16, #tpu.memory_space<vmem>> -> memref<144x128xbf16, #tpu.memory_space<vmem>>
      %136 = tpu.memref_slice %arg8[%c0_i32_73, %c0_i32_74] : memref<1x2x!tpu.dma_semaphore, #tpu.memory_space<semaphore_mem>> -> memref<1x1x!tpu.dma_semaphore, #tpu.memory_space<semaphore_mem>>
      %137 = tpu.memref_squeeze %136 : memref<1x1x!tpu.dma_semaphore, #tpu.memory_space<semaphore_mem>> -> memref<!tpu.dma_semaphore, #tpu.memory_space<semaphore_mem>>
      tpu.enqueue_dma source(%133 : memref<144x128xbf16, #tpu.memory_space<any>>) target(%135 : memref<144x128xbf16, #tpu.memory_space<vmem>>) target_semaphore(%137 : memref<!tpu.dma_semaphore, #tpu.memory_space<semaphore_mem>>)
    } else {
    }
    %c0_i32_5 = arith.constant 0 : i32
    %c0_i32_6 = arith.constant 0 : i32
    %c0_i32_7 = arith.constant 0 : i32
    %13 = tpu.memref_slice %arg2[%arg0, %c0_i32_6, %c0_i32_7] : memref<2x432x128xbf16, #tpu.memory_space<any>> -> memref<1x144x128xbf16, #tpu.memory_space<any>>
    %14 = tpu.memref_squeeze %13 : memref<1x144x128xbf16, #tpu.memory_space<any>> -> memref<144x128xbf16, #tpu.memory_space<any>>
    %c0_i32_8 = arith.constant 0 : i32
    %c0_i32_9 = arith.constant 0 : i32
    %15 = tpu.memref_slice %arg7[%9, %c0_i32_8, %c0_i32_9] : memref<2x144x128xbf16, #tpu.memory_space<vmem>> -> memref<1x144x128xbf16, #tpu.memory_space<vmem>>
    %16 = tpu.memref_squeeze %15 : memref<1x144x128xbf16, #tpu.memory_space<vmem>> -> memref<144x128xbf16, #tpu.memory_space<vmem>>
    %17 = tpu.memref_slice %arg8[%c0_i32_5, %9] : memref<1x2x!tpu.dma_semaphore, #tpu.memory_space<semaphore_mem>> -> memref<1x1x!tpu.dma_semaphore, #tpu.memory_space<semaphore_mem>>
    %18 = tpu.memref_squeeze %17 : memref<1x1x!tpu.dma_semaphore, #tpu.memory_space<semaphore_mem>> -> memref<!tpu.dma_semaphore, #tpu.memory_space<semaphore_mem>>
    tpu.wait_dma2 semaphore(%18 : memref<!tpu.dma_semaphore, #tpu.memory_space<semaphore_mem>>) src(%14 : memref<144x128xbf16, #tpu.memory_space<any>>) dst(%16 : memref<144x128xbf16, #tpu.memory_space<vmem>>)
    %c1_i32_10 = arith.constant 1 : i32
    %19 = arith.addi %arg1, %c1_i32_10 : i32
    %c4_i32 = arith.constant 4 : i32
    %20 = arith.cmpi slt, %19, %c4_i32 : i32
    %21 = arith.extui %20 : i1 to i32
    %c0_i32_11 = arith.constant 0 : i32
    %22 = arith.cmpi ne, %21, %c0_i32_11 : i32
    scf.if %22 {
      %c1_i32_72 = arith.constant 1 : i32
      %132 = arith.addi %arg1, %c1_i32_72 : i32
      %c1_i32_73 = arith.constant 1 : i32
      %133 = arith.subi %c1_i32_73, %9 : i32
      %c4_i32_74 = arith.constant 4 : i32
      %134 = arith.muli %132, %c4_i32_74 : i32
      %c24_i32_75 = arith.constant 24 : i32
      %135 = arith.muli %134, %c24_i32_75 : i32
      %c0_i32_76 = arith.constant 0 : i32
      %c0_i32_77 = arith.constant 0 : i32
      %136 = tpu.memref_slice %arg2[%arg0, %135, %c0_i32_77] : memref<2x432x128xbf16, #tpu.memory_space<any>> -> memref<1x144x128xbf16, #tpu.memory_space<any>>
      %137 = tpu.memref_squeeze %136 : memref<1x144x128xbf16, #tpu.memory_space<any>> -> memref<144x128xbf16, #tpu.memory_space<any>>
      %c0_i32_78 = arith.constant 0 : i32
      %c0_i32_79 = arith.constant 0 : i32
      %138 = tpu.memref_slice %arg7[%133, %c0_i32_78, %c0_i32_79] : memref<2x144x128xbf16, #tpu.memory_space<vmem>> -> memref<1x144x128xbf16, #tpu.memory_space<vmem>>
      %139 = tpu.memref_squeeze %138 : memref<1x144x128xbf16, #tpu.memory_space<vmem>> -> memref<144x128xbf16, #tpu.memory_space<vmem>>
      %140 = tpu.memref_slice %arg8[%c0_i32_76, %133] : memref<1x2x!tpu.dma_semaphore, #tpu.memory_space<semaphore_mem>> -> memref<1x1x!tpu.dma_semaphore, #tpu.memory_space<semaphore_mem>>
      %141 = tpu.memref_squeeze %140 : memref<1x1x!tpu.dma_semaphore, #tpu.memory_space<semaphore_mem>> -> memref<!tpu.dma_semaphore, #tpu.memory_space<semaphore_mem>>
      tpu.enqueue_dma source(%137 : memref<144x128xbf16, #tpu.memory_space<any>>) target(%139 : memref<144x128xbf16, #tpu.memory_space<vmem>>) target_semaphore(%141 : memref<!tpu.dma_semaphore, #tpu.memory_space<semaphore_mem>>)
    } else {
    }
    %23 = arith.index_cast %9 : i32 to index
    %c0 = arith.constant 0 : index
    %c0_12 = arith.constant 0 : index
    %24 = vector.load %arg7[%23, %c0, %c0_12] : memref<2x144x128xbf16, #tpu.memory_space<vmem>>, vector<1x96x128xbf16>
    %25 = vector.shape_cast %24 : vector<1x96x128xbf16> to vector<96x128xbf16>
    %c0_13 = arith.constant 0 : index
    %c0_14 = arith.constant 0 : index
    %c0_15 = arith.constant 0 : index
    %26 = vector.load %arg3[%c0_13, %c0_14, %c0_15] : memref<9x128x128xbf16, #tpu.memory_space<vmem>>, vector<1x128x128xbf16>
    %27 = vector.shape_cast %26 : vector<1x128x128xbf16> to vector<128x128xbf16>
    %cst = arith.constant dense<0.000000e+00> : vector<96x128xf32>
    %28 = tpu.matmul %25, %27, %cst {dimension_numbers = #tpu.dot_dimension_numbers<[1], [0], [0], [1], [0, 0, 1, 1], [], []>} : vector<96x128xbf16>, vector<128x128xbf16>, vector<96x128xf32> -> vector<96x128xf32>
    %29 = arith.index_cast %9 : i32 to index
    %c24 = arith.constant 24 : index
    %c0_16 = arith.constant 0 : index
    %30 = vector.load %arg7[%29, %c24, %c0_16] : memref<2x144x128xbf16, #tpu.memory_space<vmem>>, vector<1x96x128xbf16>
    %31 = vector.shape_cast %30 : vector<1x96x128xbf16> to vector<96x128xbf16>
    %c3 = arith.constant 3 : index
    %c0_17 = arith.constant 0 : index
    %c0_18 = arith.constant 0 : index
    %32 = vector.load %arg3[%c3, %c0_17, %c0_18] : memref<9x128x128xbf16, #tpu.memory_space<vmem>>, vector<1x128x128xbf16>
    %33 = vector.shape_cast %32 : vector<1x128x128xbf16> to vector<128x128xbf16>
    %cst_19 = arith.constant dense<0.000000e+00> : vector<96x128xf32>
    %34 = tpu.matmul %31, %33, %cst_19 {dimension_numbers = #tpu.dot_dimension_numbers<[1], [0], [0], [1], [0, 0, 1, 1], [], []>} : vector<96x128xbf16>, vector<128x128xbf16>, vector<96x128xf32> -> vector<96x128xf32>
    %35 = arith.addf %28, %34 : vector<96x128xf32>
    %36 = arith.index_cast %9 : i32 to index
    %c48 = arith.constant 48 : index
    %c0_20 = arith.constant 0 : index
    %37 = vector.load %arg7[%36, %c48, %c0_20] : memref<2x144x128xbf16, #tpu.memory_space<vmem>>, vector<1x96x128xbf16>
    %38 = vector.shape_cast %37 : vector<1x96x128xbf16> to vector<96x128xbf16>
    %c6 = arith.constant 6 : index
    %c0_21 = arith.constant 0 : index
    %c0_22 = arith.constant 0 : index
    %39 = vector.load %arg3[%c6, %c0_21, %c0_22] : memref<9x128x128xbf16, #tpu.memory_space<vmem>>, vector<1x128x128xbf16>
    %40 = vector.shape_cast %39 : vector<1x128x128xbf16> to vector<128x128xbf16>
    %cst_23 = arith.constant dense<0.000000e+00> : vector<96x128xf32>
    %41 = tpu.matmul %38, %40, %cst_23 {dimension_numbers = #tpu.dot_dimension_numbers<[1], [0], [0], [1], [0, 0, 1, 1], [], []>} : vector<96x128xbf16>, vector<128x128xbf16>, vector<96x128xf32> -> vector<96x128xf32>
    %42 = arith.addf %35, %41 : vector<96x128xf32>
    %43 = arith.index_cast %9 : i32 to index
    %c0_24 = arith.constant 0 : index
    %c0_25 = arith.constant 0 : index
    %44 = vector.load %arg7[%43, %c0_24, %c0_25] : memref<2x144x128xbf16, #tpu.memory_space<vmem>>, vector<1x96x128xbf16>
    %45 = vector.shape_cast %44 : vector<1x96x128xbf16> to vector<96x128xbf16>
    %c1 = arith.constant 1 : index
    %c0_26 = arith.constant 0 : index
    %c0_27 = arith.constant 0 : index
    %46 = vector.load %arg3[%c1, %c0_26, %c0_27] : memref<9x128x128xbf16, #tpu.memory_space<vmem>>, vector<1x128x128xbf16>
    %47 = vector.shape_cast %46 : vector<1x128x128xbf16> to vector<128x128xbf16>
    %cst_28 = arith.constant dense<0.000000e+00> : vector<96x128xf32>
    %48 = tpu.matmul %45, %47, %cst_28 {dimension_numbers = #tpu.dot_dimension_numbers<[1], [0], [0], [1], [0, 0, 1, 1], [], []>} : vector<96x128xbf16>, vector<128x128xbf16>, vector<96x128xf32> -> vector<96x128xf32>
    %49 = arith.index_cast %9 : i32 to index
    %c24_29 = arith.constant 24 : index
    %c0_30 = arith.constant 0 : index
    %50 = vector.load %arg7[%49, %c24_29, %c0_30] : memref<2x144x128xbf16, #tpu.memory_space<vmem>>, vector<1x96x128xbf16>
    %51 = vector.shape_cast %50 : vector<1x96x128xbf16> to vector<96x128xbf16>
    %c4 = arith.constant 4 : index
    %c0_31 = arith.constant 0 : index
    %c0_32 = arith.constant 0 : index
    %52 = vector.load %arg3[%c4, %c0_31, %c0_32] : memref<9x128x128xbf16, #tpu.memory_space<vmem>>, vector<1x128x128xbf16>
    %53 = vector.shape_cast %52 : vector<1x128x128xbf16> to vector<128x128xbf16>
    %cst_33 = arith.constant dense<0.000000e+00> : vector<96x128xf32>
    %54 = tpu.matmul %51, %53, %cst_33 {dimension_numbers = #tpu.dot_dimension_numbers<[1], [0], [0], [1], [0, 0, 1, 1], [], []>} : vector<96x128xbf16>, vector<128x128xbf16>, vector<96x128xf32> -> vector<96x128xf32>
    %55 = arith.addf %48, %54 : vector<96x128xf32>
    %56 = arith.index_cast %9 : i32 to index
    %c48_34 = arith.constant 48 : index
    %c0_35 = arith.constant 0 : index
    %57 = vector.load %arg7[%56, %c48_34, %c0_35] : memref<2x144x128xbf16, #tpu.memory_space<vmem>>, vector<1x96x128xbf16>
    %58 = vector.shape_cast %57 : vector<1x96x128xbf16> to vector<96x128xbf16>
    %c7 = arith.constant 7 : index
    %c0_36 = arith.constant 0 : index
    %c0_37 = arith.constant 0 : index
    %59 = vector.load %arg3[%c7, %c0_36, %c0_37] : memref<9x128x128xbf16, #tpu.memory_space<vmem>>, vector<1x128x128xbf16>
    %60 = vector.shape_cast %59 : vector<1x128x128xbf16> to vector<128x128xbf16>
    %cst_38 = arith.constant dense<0.000000e+00> : vector<96x128xf32>
    %61 = tpu.matmul %58, %60, %cst_38 {dimension_numbers = #tpu.dot_dimension_numbers<[1], [0], [0], [1], [0, 0, 1, 1], [], []>} : vector<96x128xbf16>, vector<128x128xbf16>, vector<96x128xf32> -> vector<96x128xf32>
    %62 = arith.addf %55, %61 : vector<96x128xf32>
    %63 = vector.extract_strided_slice %62 {offsets = [1, 0], sizes = [95, 128], strides = [1, 1]} : vector<96x128xf32> to vector<95x128xf32>
    %64 = vector.extract_strided_slice %62 {offsets = [0, 0], sizes = [1, 128], strides = [1, 1]} : vector<96x128xf32> to vector<1x128xf32>
    %65 = tpu.concatenate %63, %64 in 0 : vector<95x128xf32>, vector<1x128xf32> -> vector<96x128xf32>
    %66 = arith.addf %42, %65 : vector<96x128xf32>
    %67 = arith.index_cast %9 : i32 to index
    %c0_39 = arith.constant 0 : index
    %c0_40 = arith.constant 0 : index
    %68 = vector.load %arg7[%67, %c0_39, %c0_40] : memref<2x144x128xbf16, #tpu.memory_space<vmem>>, vector<1x96x128xbf16>
    %69 = vector.shape_cast %68 : vector<1x96x128xbf16> to vector<96x128xbf16>
    %c2 = arith.constant 2 : index
    %c0_41 = arith.constant 0 : index
    %c0_42 = arith.constant 0 : index
    %70 = vector.load %arg3[%c2, %c0_41, %c0_42] : memref<9x128x128xbf16, #tpu.memory_space<vmem>>, vector<1x128x128xbf16>
    %71 = vector.shape_cast %70 : vector<1x128x128xbf16> to vector<128x128xbf16>
    %cst_43 = arith.constant dense<0.000000e+00> : vector<96x128xf32>
    %72 = tpu.matmul %69, %71, %cst_43 {dimension_numbers = #tpu.dot_dimension_numbers<[1], [0], [0], [1], [0, 0, 1, 1], [], []>} : vector<96x128xbf16>, vector<128x128xbf16>, vector<96x128xf32> -> vector<96x128xf32>
    %73 = arith.index_cast %9 : i32 to index
    %c24_44 = arith.constant 24 : index
    %c0_45 = arith.constant 0 : index
    %74 = vector.load %arg7[%73, %c24_44, %c0_45] : memref<2x144x128xbf16, #tpu.memory_space<vmem>>, vector<1x96x128xbf16>
    %75 = vector.shape_cast %74 : vector<1x96x128xbf16> to vector<96x128xbf16>
    %c5 = arith.constant 5 : index
    %c0_46 = arith.constant 0 : index
    %c0_47 = arith.constant 0 : index
    %76 = vector.load %arg3[%c5, %c0_46, %c0_47] : memref<9x128x128xbf16, #tpu.memory_space<vmem>>, vector<1x128x128xbf16>
    %77 = vector.shape_cast %76 : vector<1x128x128xbf16> to vector<128x128xbf16>
    %cst_48 = arith.constant dense<0.000000e+00> : vector<96x128xf32>
    %78 = tpu.matmul %75, %77, %cst_48 {dimension_numbers = #tpu.dot_dimension_numbers<[1], [0], [0], [1], [0, 0, 1, 1], [], []>} : vector<96x128xbf16>, vector<128x128xbf16>, vector<96x128xf32> -> vector<96x128xf32>
    %79 = arith.addf %72, %78 : vector<96x128xf32>
    %80 = arith.index_cast %9 : i32 to index
    %c48_49 = arith.constant 48 : index
    %c0_50 = arith.constant 0 : index
    %81 = vector.load %arg7[%80, %c48_49, %c0_50] : memref<2x144x128xbf16, #tpu.memory_space<vmem>>, vector<1x96x128xbf16>
    %82 = vector.shape_cast %81 : vector<1x96x128xbf16> to vector<96x128xbf16>
    %c8 = arith.constant 8 : index
    %c0_51 = arith.constant 0 : index
    %c0_52 = arith.constant 0 : index
    %83 = vector.load %arg3[%c8, %c0_51, %c0_52] : memref<9x128x128xbf16, #tpu.memory_space<vmem>>, vector<1x128x128xbf16>
    %84 = vector.shape_cast %83 : vector<1x128x128xbf16> to vector<128x128xbf16>
    %cst_53 = arith.constant dense<0.000000e+00> : vector<96x128xf32>
    %85 = tpu.matmul %82, %84, %cst_53 {dimension_numbers = #tpu.dot_dimension_numbers<[1], [0], [0], [1], [0, 0, 1, 1], [], []>} : vector<96x128xbf16>, vector<128x128xbf16>, vector<96x128xf32> -> vector<96x128xf32>
    %86 = arith.addf %79, %85 : vector<96x128xf32>
    %87 = vector.extract_strided_slice %86 {offsets = [2, 0], sizes = [94, 128], strides = [1, 1]} : vector<96x128xf32> to vector<94x128xf32>
    %88 = vector.extract_strided_slice %86 {offsets = [0, 0], sizes = [2, 128], strides = [1, 1]} : vector<96x128xf32> to vector<2x128xf32>
    %89 = tpu.concatenate %87, %88 in 0 : vector<94x128xf32>, vector<2x128xf32> -> vector<96x128xf32>
    %90 = arith.addf %66, %89 : vector<96x128xf32>
    %c0_54 = arith.constant 0 : index
    %c0_55 = arith.constant 0 : index
    %91 = vector.load %arg4[%c0_54, %c0_55] : memref<1x128xf32, #tpu.memory_space<vmem>>, vector<1x128xf32>
    %92 = vector.broadcast %91 : vector<1x128xf32> to vector<96x128xf32>
    %93 = arith.addf %90, %92 : vector<96x128xf32>
    %94 = tpu.iota {dimensions = array<i32: 0>} : vector<96x1xi32>
    %c24_i32 = arith.constant 24 : i32
    %c0_i32_56 = arith.constant 0 : i32
    %95 = arith.cmpi eq, %c24_i32, %c0_i32_56 : i32
    %c1_i32_57 = arith.constant 1 : i32
    %96 = arith.select %95, %c1_i32_57, %c24_i32 : i32
    %97 = vector.broadcast %96 : i32 to vector<96x1xi32>
    %98 = arith.remsi %94, %97 : vector<96x1xi32>
    %c0_i32_58 = arith.constant 0 : i32
    %99 = vector.broadcast %c0_i32_58 : i32 to vector<96x1xi32>
    %100 = arith.cmpi ne, %98, %99 : vector<96x1xi32>
    %c0_i32_59 = arith.constant 0 : i32
    %101 = vector.broadcast %c0_i32_59 : i32 to vector<96x1xi32>
    %102 = arith.cmpi slt, %98, %101 : vector<96x1xi32>
    %c0_i32_60 = arith.constant 0 : i32
    %103 = arith.cmpi slt, %96, %c0_i32_60 : i32
    %104 = vector.broadcast %103 : i1 to vector<96x1xi1>
    %105 = vector.broadcast %104 : vector<96x1xi1> to vector<96x1xi1>
    %106 = arith.xori %102, %105 : vector<96x1xi1>
    %107 = arith.andi %106, %100 : vector<96x1xi1>
    %108 = vector.broadcast %96 : i32 to vector<96x1xi32>
    %109 = arith.addi %98, %108 : vector<96x1xi32>
    %110 = arith.select %107, %109, %98 : vector<96x1xi1>, vector<96x1xi32>
    %c16_i32 = arith.constant 16 : i32
    %111 = vector.broadcast %c16_i32 : i32 to vector<96x1xi32>
    %112 = arith.cmpi slt, %110, %111 : vector<96x1xi32>
    %cst_61 = arith.constant 0.000000e+00 : f32
    %113 = vector.shape_cast %112 : vector<96x1xi1> to vector<96x1xi1>
    %114 = vector.broadcast %113 : vector<96x1xi1> to vector<96x128xi1>
    %115 = vector.broadcast %cst_61 : f32 to vector<96x128xf32>
    %116 = arith.select %114, %93, %115 : vector<96x128xi1>, vector<96x128xf32>
    %cst_62 = arith.constant dense<0.000000e+00> : vector<128xf32>
    %117 = vector.multi_reduction <add>, %116, %cst_62 [0] : vector<96x128xf32> to vector<128xf32>
    %118 = vector.shape_cast %117 : vector<128xf32> to vector<1x128xf32>
    %119 = arith.mulf %116, %116 : vector<96x128xf32>
    %cst_63 = arith.constant dense<0.000000e+00> : vector<128xf32>
    %120 = vector.multi_reduction <add>, %119, %cst_63 [0] : vector<96x128xf32> to vector<128xf32>
    %121 = vector.shape_cast %120 : vector<128xf32> to vector<1x128xf32>
    %122 = tpu.concatenate %118, %121 in 0 : vector<1x128xf32>, vector<1x128xf32> -> vector<2x128xf32>
    %c0_64 = arith.constant 0 : index
    %c0_65 = arith.constant 0 : index
    %c0_66 = arith.constant 0 : index
    %c0_67 = arith.constant 0 : index
    %123 = vector.load %arg6[%c0_64, %c0_65, %c0_66, %c0_67] : memref<1x1x2x128xf32, #tpu.memory_space<vmem>>, vector<1x1x2x128xf32>
    %124 = vector.shape_cast %123 : vector<1x1x2x128xf32> to vector<2x128xf32>
    %125 = vector.shape_cast %122 : vector<2x128xf32> to vector<1x1x2x128xf32>
    tpu.vector_store %arg6[%c0_64, %c0_65, %c0_66, %c0_67], %125 {strides = array<i32>} : memref<1x1x2x128xf32, #tpu.memory_space<vmem>>, vector<1x1x2x128xf32>,
    %126 = vector.shape_cast %93 : vector<96x128xf32> to vector<4x24x128xf32>
    %127 = vector.extract_strided_slice %126 {offsets = [0, 0, 0], sizes = [4, 16, 128], strides = [1, 1, 1]} : vector<4x24x128xf32> to vector<4x16x128xf32>
    %128 = arith.truncf %127 : vector<4x16x128xf32> to vector<4x16x128xbf16>
    %c0_68 = arith.constant 0 : index
    %c0_69 = arith.constant 0 : index
    %c0_70 = arith.constant 0 : index
    %c0_71 = arith.constant 0 : index
    %129 = vector.load %arg5[%c0_68, %c0_69, %c0_70, %c0_71] : memref<1x4x16x128xbf16, #tpu.memory_space<vmem>>, vector<1x4x16x128xbf16>
    %130 = vector.shape_cast %129 : vector<1x4x16x128xbf16> to vector<4x16x128xbf16>
    %131 = vector.shape_cast %128 : vector<4x16x128xbf16> to vector<1x4x16x128xbf16>
    tpu.vector_store %arg5[%c0_68, %c0_69, %c0_70, %c0_71], %131 {strides = array<i32>} : memref<1x4x16x128xbf16, #tpu.memory_space<vmem>>, vector<1x4x16x128xbf16>,
    return
  }
  func.func @transform_1(%arg0: i32, %arg1: i32) -> (i32, i32, i32) {
    %c0_i32 = arith.constant 0 : i32
    %c0_i32_0 = arith.constant 0 : i32
    %c0_i32_1 = arith.constant 0 : i32
    %c0_i32_2 = arith.constant 0 : i32
    return %c0_i32, %c0_i32_0, %c0_i32_1 : i32, i32, i32
  }
  func.func @transform_2(%arg0: i32, %arg1: i32) -> (i32, i32) {
    %c0_i32 = arith.constant 0 : i32
    %c0_i32_0 = arith.constant 0 : i32
    %c0_i32_1 = arith.constant 0 : i32
    return %c0_i32, %c0_i32_0 : i32, i32
  }
  func.func @transform_3(%arg0: i32, %arg1: i32) -> (i32, i32, i32, i32) {
    %c0_i32 = arith.constant 0 : i32
    %c0_i32_0 = arith.constant 0 : i32
    %c0_i32_1 = arith.constant 0 : i32
    return %arg0, %arg1, %c0_i32, %c0_i32_0 : i32, i32, i32, i32
  }
  func.func @transform_4(%arg0: i32, %arg1: i32) -> (i32, i32, i32, i32) {
    %c0_i32 = arith.constant 0 : i32
    %c0_i32_0 = arith.constant 0 : i32
    %c0_i32_1 = arith.constant 0 : i32
    return %arg0, %arg1, %c0_i32, %c0_i32_0 : i32, i32, i32, i32
  }
}

</mosaic_0001>

<llo_original>
// kernel: tile.8
$region0: #{tile.8}
  #allocation0 [shape = 's32[1]{0}', space=sflag, size = 0x4, scoped, tag = 'scoped memory for tile.8']
  %s0 = inlined_call_operand.vmem [shape: f32[128], index: 0, kind: input, shape index: {}]
  %s1 = inlined_call_operand.vmem [shape: f32[4,128], index: 1, kind: output, shape index: {}]
  // Predicated region
  $region2: #{tile.8} parent=0 // pred_check
    _
  $region3: #{tile.8} parent=0 // pred_check_branch
    %3 = sbr.rel (0) target = $region5
  $region4: #{tile.8} parent=0 // pred_region
    _
  $region5: #{tile.8} parent=0 // pred_fallthru
    _
  %v4 = vld [vmem:[%s0] ss:$0 sm:$0xff]
  %5 = vst [vmem:[%s1] sm:$0xf] %v4

// kernel: _lambda_.7
$region0: #{_lambda_.7}
  #allocation0 [shape = 'u32[]', space=smem, size = 0x4, offset = 0x4, fixed_abs, tag = 'smem constant byte address 0x4 - core index']
  #allocation1 [shape = 'u32[144,128]{1,0:T(1,128)}', space=vmem, size = 0x12000, scoped, tag = 'internal scratch']
  %s0 = inlined_call_operand.vmem [shape: bf16[2,16,16,128], index: 0, kind: input, shape index: {}]
  %s1 = inlined_call_operand.vmem [shape: f32[1,1,1,128], index: 1, kind: input, shape index: {}]
  %s2 = inlined_call_operand.vmem [shape: f32[1,1,1,128], index: 2, kind: input, shape index: {}]
  %s3 = inlined_call_operand.vmem [shape: bf16[2,16,16,128], index: 3, kind: output, shape index: {}]
  %s4 = sld [smem:[#allocation0]]
  $region45: #{_lambda_.7} parent=0
    _
  %s6 = ssub.s32 1, %s4
  %s7 = scalar_select 0, %s6, %s4
  loop: start=0, step=1, limit=10
  $region2: #{_lambda_.7} parent=0 // loop_pre_header
    _
  $region3: #{_lambda_.7} parent=0 // loop_header
    %s9 = sphi 0, %s13
    %p10 = scmp.ge.s32.totalorder %s9, 10
    %s16 = sphi 0, %s28
    %s17 = sphi 0, %s24
    %s18 = sphi 0, %s16
    %s19 = sphi 0, %s17
    %s20 = sphi 0, %s18
    %s21 = sphi 0, %s19
    %s33 = sphi 0, %s35
    %s36 = sphi 0, %s33
    %s37 = sphi 0, %s36
    %s53 = sphi 0, %s37
    %s57 = sphi 0, %s57
    %s59 = sphi 0, %s57
    %s60 = sphi 0, %s59
    %s74 = sphi 0, %s60
    %s78 = sphi 0, %s78
    %s80 = sphi 0, %s78
    %s81 = sphi 0, %s80
    %s95 = sphi 0, %s81
    %s103 = sphi 0, %s105
    %s106 = sphi 0, %s103
    %s107 = sphi 0, %s106
    %s123 = sphi 0, %s107
  $region4: #{_lambda_.7} parent=0 // loop_header_branch
    %12 = sbr.rel (%p10) target = $region8
  $region5: #{_lambda_.7} parent=0 // loop_body
    %s14 = ssub.s32 %s9, 1
    %s15 = ssub.s32 %s9, 2
    %s22 = sadd.s32 1, %s17
    %p23 = scmp.ge.s32.totalorder %s22, 4
    %s24 = scalar_select %p23, 0, %s22
    %s25 = sadd.s32 1, %s16
    %s26 = scalar_select %p23, %s25, %s16
    %p27 = scmp.ge.s32.totalorder %s26, 2
    %s28 = scalar_select %p27, 0, %s26
    %s29 = ssub.s32 %s16, %s28
    %s30 = ssub.s32 %s17, %s24
    %s31 = sor.u32 %s29, %s30
    %p32 = scmp.eq.s32.totalorder %s31, 0
    %s34 = sadd.s32 %s33, 1
    %s35 = scalar_select %p32, %s33, %s34
    %p38 = pneg %p32
    %p39 = scmp.eq.s32.totalorder %s9, 7
    %p40 = por %p38, %p39
    %p41 = scmp.ne.s32.totalorder %s33, %s36
    %p42 = scmp.eq.s32.totalorder %s9, 0
    %p43 = por %p41, %p42
    %p44 = scmp.ne.s32.totalorder %s33, %s36
    %p45 = scmp.eq.s32.totalorder %s14, 7
    %p46 = por %p44, %p45
    %p47 = scmp.ne.s32.totalorder %s36, %s37
    %p48 = scmp.eq.s32.totalorder %s14, 0
    %p49 = por %p47, %p48
    %p50 = scmp.ne.s32.totalorder %s36, %s37
    %p51 = scmp.eq.s32.totalorder %s15, 7
    %p52 = por %p50, %p51
    %p54 = scmp.ne.s32.totalorder %s37, %s53
    %p55 = scmp.eq.s32.totalorder %s15, 0
    %p56 = por %p54, %p55
    %s58 = sadd.s32 %s57, 1
    %p61 = scmp.eq.s32.totalorder %s9, 7
    %p62 = scmp.ne.s32.totalorder %s57, %s59
    %p63 = scmp.eq.s32.totalorder %s9, 0
    %p64 = por %p62, %p63
    %p65 = scmp.ne.s32.totalorder %s57, %s59
    %p66 = scmp.eq.s32.totalorder %s14, 7
    %p67 = por %p65, %p66
    %p68 = scmp.ne.s32.totalorder %s59, %s60
    %p69 = scmp.eq.s32.totalorder %s14, 0
    %p70 = por %p68, %p69
    %p71 = scmp.ne.s32.totalorder %s59, %s60
    %p72 = scmp.eq.s32.totalorder %s15, 7
    %p73 = por %p71, %p72
    %p75 = scmp.ne.s32.totalorder %s60, %s74
    %p76 = scmp.eq.s32.totalorder %s15, 0
    %p77 = por %p75, %p76
    %s79 = sadd.s32 %s78, 1
    %p82 = scmp.eq.s32.totalorder %s9, 7
    %p83 = scmp.ne.s32.totalorder %s78, %s80
    %p84 = scmp.eq.s32.totalorder %s9, 0
    %p85 = por %p83, %p84
    %p86 = scmp.ne.s32.totalorder %s78, %s80
    %p87 = scmp.eq.s32.totalorder %s14, 7
    %p88 = por %p86, %p87
    %p89 = scmp.ne.s32.totalorder %s80, %s81
    %p90 = scmp.eq.s32.totalorder %s14, 0
    %p91 = por %p89, %p90
    %p92 = scmp.ne.s32.totalorder %s80, %s81
    %p93 = scmp.eq.s32.totalorder %s15, 7
    %p94 = por %p92, %p93
    %p96 = scmp.ne.s32.totalorder %s81, %s95
    %p97 = scmp.eq.s32.totalorder %s15, 0
    %p98 = por %p96, %p97
    %s99 = ssub.s32 %s16, %s28
    %s100 = ssub.s32 %s17, %s24
    %s101 = sor.u32 %s99, %s100
    %p102 = scmp.eq.s32.totalorder %s101, 0
    %s104 = sadd.s32 %s103, 1
    %s105 = scalar_select %p102, %s103, %s104
    %p108 = pneg %p102
    %p109 = scmp.eq.s32.totalorder %s9, 7
    %p110 = por %p108, %p109
    %p111 = scmp.ne.s32.totalorder %s103, %s106
    %p112 = scmp.eq.s32.totalorder %s9, 0
    %p113 = por %p111, %p112
    %p114 = scmp.ne.s32.totalorder %s103, %s106
    %p115 = scmp.eq.s32.totalorder %s14, 7
    %p116 = por %p114, %p115
    %p117 = scmp.ne.s32.totalorder %s106, %s107
    %p118 = scmp.eq.s32.totalorder %s14, 0
    %p119 = por %p117, %p118
    %p120 = scmp.ne.s32.totalorder %s106, %s107
    %p121 = scmp.eq.s32.totalorder %s15, 7
    %p122 = por %p120, %p121
    %p124 = scmp.ne.s32.totalorder %s107, %s123
    %p125 = scmp.eq.s32.totalorder %s15, 0
    %p126 = por %p124, %p125
    %p127 = scmp.le.s32.totalorder 1, %s9
    %p128 = scmp.lt.s32.totalorder %s9, 9
    %p129 = pnand %p127, %p128
    %p130 = pneg %p129
    // Predicated region
    $region9: #{_lambda_.7} parent=5 // pred_check
      _
    $region10: #{_lambda_.7} parent=5 // pred_check_branch
      %132 = sbr.rel (%p129) target = $region12
    $region11: #{_lambda_.7} parent=5 // pred_region
      %s133 = ssub.s32 %s9, 1
      // Predicated region
      $region13: #{_lambda_.7} parent=11 // pred_check
        %p134 = pneg %p70
      $region14: #{_lambda_.7} parent=11 // pred_check_branch
        %136 = sbr.rel (%p134) target = $region16
      $region15: #{_lambda_.7} parent=11 // pred_region
        _
      $region16: #{_lambda_.7} parent=11 // pred_fallthru
        _
      // Predicated region
      $region17: #{_lambda_.7} parent=11 // pred_check
        %p137 = pneg %p91
      $region18: #{_lambda_.7} parent=11 // pred_check_branch
        %139 = sbr.rel (%p137) target = $region20
      $region19: #{_lambda_.7} parent=11 // pred_region
        _
      $region20: #{_lambda_.7} parent=11 // pred_fallthru
        _
    $region12: #{_lambda_.7} parent=5 // pred_fallthru
      _
    %p140 = scmp.lt.s32.totalorder %s9, 8
    // Predicated region
    $region21: #{_lambda_.7} parent=5 // pred_check
      %p141 = pneg %p140
    $region22: #{_lambda_.7} parent=5 // pred_check_branch
      %143 = sbr.rel (%p141) target = $region24
    $region23: #{_lambda_.7} parent=5 // pred_region
      // Predicated region
      $region25: #{_lambda_.7} parent=23 // pred_check
        %p144 = pneg %p43
      $region26: #{_lambda_.7} parent=23 // pred_check_branch
        %146 = sbr.rel (%p144) target = $region28
      $region27: #{_lambda_.7} parent=23 // pred_region
        %s147 = smul.u32 4, %s17
        %p148 = scmp.lt.s32.totalorder %s16, 1
        %s149 = scalar_select %p148, %s16, 1
        %p150 = scmp.lt.s32.totalorder %s147, 15
        %s151 = scalar_select %p150, %s147, 15
        %s152 = smul.addr %s151, 2
        %s153 = smul.addr %s149, 32
        %s154 = sadd.s32 %s152, %s153
        %s155 = smul.addr %s154, 4
        %s156 = scalar_lea.vmem %s0, %s155
        %s157 = smul.u32 4, %s17
      $region28: #{_lambda_.7} parent=23 // pred_fallthru
        _
    $region24: #{_lambda_.7} parent=5 // pred_fallthru
      _
    %p158 = scmp.le.s32.totalorder 1, %s9
    %p159 = scmp.lt.s32.totalorder %s9, 9
    %p160 = pnand %p158, %p159
    %p161 = pneg %p160
    // Predicated region
    $region29: #{_lambda_.7} parent=5 // pred_check
      _
    $region30: #{_lambda_.7} parent=5 // pred_check_branch
      %163 = sbr.rel (%p160) target = $region32
    $region31: #{_lambda_.7} parent=5 // pred_region
      %s164 = ssub.s32 %s9, 1
      %s165 = smul.u32 4, %s19
      %p166 = scmp.lt.s32.totalorder %s18, 1
      %s167 = scalar_select %p166, %s18, 1
      %p168 = scmp.lt.s32.totalorder %s165, 15
      %s169 = scalar_select %p168, %s165, 15
      %s170 = smul.addr %s169, 2
      %s171 = smul.addr %s167, 32
      %s172 = sadd.s32 %s170, %s171
      %s173 = smul.addr %s172, 4
      %s174 = scalar_lea.vmem %s0, %s173
      %p175 = pneg %p49
      %p176 = pneg %p46
      %p177 = pneg %p70
      %p178 = pneg %p67
      %p179 = pneg %p91
      %p180 = pneg %p88
      %p181 = pneg %p119
      %p182 = pneg %p116
      %s183 = smul.u32 4, %s19
      %p184 = scmp.lt.s32.totalorder %s18, 1
      %s185 = scalar_select %p184, %s18, 1
      %p186 = scmp.lt.s32.totalorder %s183, 15
      %s187 = scalar_select %p186, %s183, 15
      %s188 = smul.addr %s187, 2
      %s189 = smul.addr %s185, 32
      %s190 = sadd.s32 %s188, %s189
      %s191 = smul.addr %s190, 4
      %s192 = scalar_lea.vmem %s3, %s191
      %s193 = smul.u32 4, %s19
      %p194 = scmp.lt.s32.totalorder %s18, 1
      %s195 = scalar_select %p194, %s18, 1
      %p196 = scmp.lt.s32.totalorder %s193, 15
      %s197 = scalar_select %p196, %s193, 15
      %s198 = smul.addr %s197, 2
      %s199 = smul.addr %s195, 32
      %s200 = sadd.s32 %s198, %s199
      %s201 = smul.addr %s200, 4
      %s202 = scalar_lea.vmem %s0, %s201
      %s203 = smul.u32 4, %s19
      %s204 = smul.u32 4, %s19
      %p205 = scmp.lt.s32.totalorder %s18, 1
      %s206 = scalar_select %p205, %s18, 1
      %p207 = scmp.lt.s32.totalorder %s204, 15
      %s208 = scalar_select %p207, %s204, 15
      %s209 = smul.addr %s208, 2
      %s210 = smul.addr %s206, 32
      %s211 = sadd.s32 %s209, %s210
      %s212 = smul.addr %s211, 4
      %s213 = scalar_lea.vmem %s3, %s212
      %s214 = smul.u32 4, %s19
      %v215 = vld [vmem:[%s202] sm:$0xf]
      %v216 = vld [vmem:[%s202 + $0x4] sm:$0xf]
      %v217 = vld [vmem:[%s202 + $0x8] sm:$0xf]
      %v218 = vld [vmem:[%s202 + $0xc] sm:$0xf]
      %v219 = vld [vmem:[%s202 + $0x10] sm:$0xf]
      %v220 = vld [vmem:[%s202 + $0x14] sm:$0xf]
      %v221 = vld [vmem:[%s202 + $0x18] sm:$0xf]
      %v222 = vld [vmem:[%s202 + $0x1c] sm:$0xf]
      %v223 = vld [vmem:[%s1] sm:$0x1]
      %v224 = vunpack.c.l.bf16 %v215
      %v225 = vunpack.c.l.bf16 %v216
      %v226 = vunpack.c.l.bf16 %v217
      %v227 = vunpack.c.l.bf16 %v218
      %v228 = vunpack.c.l.bf16 %v219
      %v229 = vunpack.c.l.bf16 %v220
      %v230 = vunpack.c.l.bf16 %v221
      %v231 = vunpack.c.l.bf16 %v222
      %v233 = vlaneseq
      %v234 = vshrl.u32 %v233, 7
      %v235 = vsub.s32 0, %v234
      %v236 = vrot.slane %v223, %v235
      %v238 = vmul.f32 %v224, %v236
      %v239 = vmul.f32 %v225, %v236
      %v240 = vmul.f32 %v226, %v236
      %v241 = vmul.f32 %v227, %v236
      %v242 = vmul.f32 %v228, %v236
      %v243 = vmul.f32 %v229, %v236
      %v244 = vmul.f32 %v230, %v236
      %v245 = vmul.f32 %v231, %v236
      %v246 = vld [vmem:[%s2] sm:$0x1]
      %v248 = vlaneseq
      %v249 = vshrl.u32 %v248, 7
      %v250 = vsub.s32 0, %v249
      %v251 = vrot.slane %v246, %v250
      %v253 = vadd.f32 %v238, %v251
      %v254 = vadd.f32 %v239, %v251
      %v255 = vadd.f32 %v240, %v251
      %v256 = vadd.f32 %v241, %v251
      %v257 = vadd.f32 %v242, %v251
      %v258 = vadd.f32 %v243, %v251
      %v259 = vadd.f32 %v244, %v251
      %v260 = vadd.f32 %v245, %v251
      %v261 = vmax.f32 %v253, 0.0
      %v262 = vmax.f32 %v254, 0.0
      %v263 = vmax.f32 %v255, 0.0
      %v264 = vmax.f32 %v256, 0.0
      %v265 = vmax.f32 %v257, 0.0
      %v266 = vmax.f32 %v258, 0.0
      %v267 = vmax.f32 %v259, 0.0
      %v268 = vmax.f32 %v260, 0.0
      %v269 = vpack.c.bf16 %v262, %v261
      %v270 = vpack.c.bf16 %v264, %v263
      %v271 = vpack.c.bf16 %v266, %v265
      %v272 = vpack.c.bf16 %v268, %v267
      %v277 = vunpack.c.l.b16 %v269
      %v278 = vunpack.c.h.b16 %v269
      %v279 = vunpack.c.l.b16 %v270
      %v280 = vunpack.c.h.b16 %v270
      %v281 = vunpack.c.l.b16 %v271
      %v282 = vunpack.c.h.b16 %v271
      %v283 = vunpack.c.l.b16 %v272
      %v284 = vunpack.c.h.b16 %v272
      %v285 = vpack.c.b16 %v277, %v277
      %v286 = vpack.c.b16 %v278, %v278
      %v287 = vpack.c.b16 %v279, %v279
      %v288 = vpack.c.b16 %v280, %v280
      %v289 = vpack.c.b16 %v281, %v281
      %v290 = vpack.c.b16 %v282, %v282
      %v291 = vpack.c.b16 %v283, %v283
      %v292 = vpack.c.b16 %v284, %v284
      %301 = vst [vmem:[%s213] sm:$0xf] %v285
      %302 = vst [vmem:[%s213 + $0x4] sm:$0xf] %v286
      %303 = vst [vmem:[%s213 + $0x8] sm:$0xf] %v287
      %304 = vst [vmem:[%s213 + $0xc] sm:$0xf] %v288
      %305 = vst [vmem:[%s213 + $0x10] sm:$0xf] %v289
      %306 = vst [vmem:[%s213 + $0x14] sm:$0xf] %v290
      %307 = vst [vmem:[%s213 + $0x18] sm:$0xf] %v291
      %308 = vst [vmem:[%s213 + $0x1c] sm:$0xf] %v292
      %s309 = smul.u32 4, %s19
      %p310 = scmp.lt.s32.totalorder %s18, 1
      %s311 = scalar_select %p310, %s18, 1
      %p312 = scmp.lt.s32.totalorder %s309, 15
      %s313 = scalar_select %p312, %s309, 15
      %s314 = smul.addr %s313, 2
      %s315 = smul.addr %s311, 32
      %s316 = sadd.s32 %s314, %s315
      %s317 = smul.addr %s316, 4
      %s318 = scalar_lea.vmem %s3, %s317
      // Predicated region
      $region33: #{_lambda_.7} parent=31 // pred_check
        %p319 = pneg %p116
      $region34: #{_lambda_.7} parent=31 // pred_check_branch
        %321 = sbr.rel (%p319) target = $region36
      $region35: #{_lambda_.7} parent=31 // pred_region
        %s322 = smul.u32 4, %s19
      $region36: #{_lambda_.7} parent=31 // pred_fallthru
        _
    $region32: #{_lambda_.7} parent=5 // pred_fallthru
      _
    %p323 = scmp.le.s32.totalorder 2, %s9
    // Predicated region
    $region37: #{_lambda_.7} parent=5 // pred_check
      %p324 = pneg %p323
    $region38: #{_lambda_.7} parent=5 // pred_check_branch
      %326 = sbr.rel (%p324) target = $region40
    $region39: #{_lambda_.7} parent=5 // pred_region
      %s327 = ssub.s32 %s9, 2
      // Predicated region
      $region41: #{_lambda_.7} parent=39 // pred_check
        %p328 = pneg %p122
      $region42: #{_lambda_.7} parent=39 // pred_check_branch
        %330 = sbr.rel (%p328) target = $region44
      $region43: #{_lambda_.7} parent=39 // pred_region
        %s331 = smul.u32 4, %s21
        %p332 = scmp.lt.s32.totalorder %s20, 1
        %s333 = scalar_select %p332, %s20, 1
        %p334 = scmp.lt.s32.totalorder %s331, 15
        %s335 = scalar_select %p334, %s331, 15
        %s336 = smul.addr %s335, 2
        %s337 = smul.addr %s333, 32
        %s338 = sadd.s32 %s336, %s337
        %s339 = smul.addr %s338, 4
        %s340 = scalar_lea.vmem %s3, %s339
      $region44: #{_lambda_.7} parent=39 // pred_fallthru
        _
    $region40: #{_lambda_.7} parent=5 // pred_fallthru
      _
  $region6: #{_lambda_.7} parent=0 // loop_footer
    %s13 = sadd.s32 1, %s9
  $region7: #{_lambda_.7} parent=0 // loop_footer_branch
    %8 = sbr.rel target = $region3
  $region8: #{_lambda_.7} parent=0 // loop_exit
    _

// kernel: _lambda_.5
$region0: #{_lambda_.5}
  #allocation0 [shape = 'u32[]', space=smem, size = 0x4, offset = 0x4, fixed_abs, tag = 'smem constant byte address 0x4 - core index']
  #allocation1 [shape = 'u32[144,128]{1,0:T(1,128)}', space=vmem, size = 0x12000, scoped, tag = 'internal scratch']
  %s0 = inlined_call_operand.vmem [shape: bf16[2,64,128], index: 0, kind: input, shape index: {}]
  %s1 = inlined_call_operand.vmem [shape: bf16[128,512], index: 1, kind: input, shape index: {}]
  %s2 = inlined_call_operand.vmem [shape: f32[1,512], index: 2, kind: input, shape index: {}]
  %s3 = inlined_call_operand.vmem [shape: bf16[2,8,2,8,256], index: 3, kind: output, shape index: {}]
  %s4 = sld [smem:[#allocation0]]
  $region45: #{_lambda_.5} parent=0
    _
  %s6 = ssub.s32 1, %s4
  %s7 = scalar_select 0, %s6, %s4
  loop: start=0, step=1, limit=4
  $region2: #{_lambda_.5} parent=0 // loop_pre_header
    _
  $region3: #{_lambda_.5} parent=0 // loop_header
    %s9 = sphi 0, %s13
    %p10 = scmp.ge.s32.totalorder %s9, 4
    %s19 = sphi 0, %s21
    %s22 = sphi 0, %s19
    %s23 = sphi 0, %s22
    %s39 = sphi 0, %s23
    %s43 = sphi 0, %s43
    %s45 = sphi 0, %s43
    %s46 = sphi 0, %s45
    %s60 = sphi 0, %s46
    %s64 = sphi 0, %s64
    %s66 = sphi 0, %s64
    %s67 = sphi 0, %s66
    %s81 = sphi 0, %s67
    %s87 = sphi 0, %s89
    %s90 = sphi 0, %s87
    %s91 = sphi 0, %s90
    %s107 = sphi 0, %s91
  $region4: #{_lambda_.5} parent=0 // loop_header_branch
    %12 = sbr.rel (%p10) target = $region8
  $region5: #{_lambda_.5} parent=0 // loop_body
    %s14 = ssub.s32 %s9, 1
    %s15 = ssub.s32 %s9, 2
    %s16 = sadd.s32 %s9, 1
    %s17 = ssub.s32 %s9, %s16
    %p18 = scmp.eq.s32.totalorder %s17, 0
    %s20 = sadd.s32 %s19, 1
    %s21 = scalar_select %p18, %s19, %s20
    %p24 = pneg %p18
    %p25 = scmp.eq.s32.totalorder %s9, 1
    %p26 = por %p24, %p25
    %p27 = scmp.ne.s32.totalorder %s19, %s22
    %p28 = scmp.eq.s32.totalorder %s9, 0
    %p29 = por %p27, %p28
    %p30 = scmp.ne.s32.totalorder %s19, %s22
    %p31 = scmp.eq.s32.totalorder %s14, 1
    %p32 = por %p30, %p31
    %p33 = scmp.ne.s32.totalorder %s22, %s23
    %p34 = scmp.eq.s32.totalorder %s14, 0
    %p35 = por %p33, %p34
    %p36 = scmp.ne.s32.totalorder %s22, %s23
    %p37 = scmp.eq.s32.totalorder %s15, 1
    %p38 = por %p36, %p37
    %p40 = scmp.ne.s32.totalorder %s23, %s39
    %p41 = scmp.eq.s32.totalorder %s15, 0
    %p42 = por %p40, %p41
    %s44 = sadd.s32 %s43, 1
    %p47 = scmp.eq.s32.totalorder %s9, 1
    %p48 = scmp.ne.s32.totalorder %s43, %s45
    %p49 = scmp.eq.s32.totalorder %s9, 0
    %p50 = por %p48, %p49
    %p51 = scmp.ne.s32.totalorder %s43, %s45
    %p52 = scmp.eq.s32.totalorder %s14, 1
    %p53 = por %p51, %p52
    %p54 = scmp.ne.s32.totalorder %s45, %s46
    %p55 = scmp.eq.s32.totalorder %s14, 0
    %p56 = por %p54, %p55
    %p57 = scmp.ne.s32.totalorder %s45, %s46
    %p58 = scmp.eq.s32.totalorder %s15, 1
    %p59 = por %p57, %p58
    %p61 = scmp.ne.s32.totalorder %s46, %s60
    %p62 = scmp.eq.s32.totalorder %s15, 0
    %p63 = por %p61, %p62
    %s65 = sadd.s32 %s64, 1
    %p68 = scmp.eq.s32.totalorder %s9, 1
    %p69 = scmp.ne.s32.totalorder %s64, %s66
    %p70 = scmp.eq.s32.totalorder %s9, 0
    %p71 = por %p69, %p70
    %p72 = scmp.ne.s32.totalorder %s64, %s66
    %p73 = scmp.eq.s32.totalorder %s14, 1
    %p74 = por %p72, %p73
    %p75 = scmp.ne.s32.totalorder %s66, %s67
    %p76 = scmp.eq.s32.totalorder %s14, 0
    %p77 = por %p75, %p76
    %p78 = scmp.ne.s32.totalorder %s66, %s67
    %p79 = scmp.eq.s32.totalorder %s15, 1
    %p80 = por %p78, %p79
    %p82 = scmp.ne.s32.totalorder %s67, %s81
    %p83 = scmp.eq.s32.totalorder %s15, 0
    %p84 = por %p82, %p83
    %s85 = ssub.s32 %s9, %s16
    %p86 = scmp.eq.s32.totalorder %s85, 0
    %s88 = sadd.s32 %s87, 1
    %s89 = scalar_select %p86, %s87, %s88
    %p92 = pneg %p86
    %p93 = scmp.eq.s32.totalorder %s9, 1
    %p94 = por %p92, %p93
    %p95 = scmp.ne.s32.totalorder %s87, %s90
    %p96 = scmp.eq.s32.totalorder %s9, 0
    %p97 = por %p95, %p96
    %p98 = scmp.ne.s32.totalorder %s87, %s90
    %p99 = scmp.eq.s32.totalorder %s14, 1
    %p100 = por %p98, %p99
    %p101 = scmp.ne.s32.totalorder %s90, %s91
    %p102 = scmp.eq.s32.totalorder %s14, 0
    %p103 = por %p101, %p102
    %p104 = scmp.ne.s32.totalorder %s90, %s91
    %p105 = scmp.eq.s32.totalorder %s15, 1
    %p106 = por %p104, %p105
    %p108 = scmp.ne.s32.totalorder %s91, %s107
    %p109 = scmp.eq.s32.totalorder %s15, 0
    %p110 = por %p108, %p109
    %p111 = scmp.le.s32.totalorder 1, %s9
    %p112 = scmp.lt.s32.totalorder %s9, 3
    %p113 = pnand %p111, %p112
    %p114 = pneg %p113
    // Predicated region
    $region9: #{_lambda_.5} parent=5 // pred_check
      _
    $region10: #{_lambda_.5} parent=5 // pred_check_branch
      %116 = sbr.rel (%p113) target = $region12
    $region11: #{_lambda_.5} parent=5 // pred_region
      %s117 = ssub.s32 %s9, 1
      // Predicated region
      $region13: #{_lambda_.5} parent=11 // pred_check
        %p118 = pneg %p56
      $region14: #{_lambda_.5} parent=11 // pred_check_branch
        %120 = sbr.rel (%p118) target = $region16
      $region15: #{_lambda_.5} parent=11 // pred_region
        _
      $region16: #{_lambda_.5} parent=11 // pred_fallthru
        _
      // Predicated region
      $region17: #{_lambda_.5} parent=11 // pred_check
        %p121 = pneg %p77
      $region18: #{_lambda_.5} parent=11 // pred_check_branch
        %123 = sbr.rel (%p121) target = $region20
      $region19: #{_lambda_.5} parent=11 // pred_region
        _
      $region20: #{_lambda_.5} parent=11 // pred_fallthru
        _
    $region12: #{_lambda_.5} parent=5 // pred_fallthru
      _
    %p124 = scmp.lt.s32.totalorder %s9, 2
    // Predicated region
    $region21: #{_lambda_.5} parent=5 // pred_check
      %p125 = pneg %p124
    $region22: #{_lambda_.5} parent=5 // pred_check_branch
      %127 = sbr.rel (%p125) target = $region24
    $region23: #{_lambda_.5} parent=5 // pred_region
      // Predicated region
      $region25: #{_lambda_.5} parent=23 // pred_check
        %p128 = pneg %p29
      $region26: #{_lambda_.5} parent=23 // pred_check_branch
        %130 = sbr.rel (%p128) target = $region28
      $region27: #{_lambda_.5} parent=23 // pred_region
        %p131 = scmp.lt.s32.totalorder %s9, 1
        %s132 = scalar_select %p131, %s9, 1
        %s133 = smul.addr %s132, 8
        %s134 = smul.addr %s133, 4
        %s135 = scalar_lea.vmem %s0, %s134
      $region28: #{_lambda_.5} parent=23 // pred_fallthru
        _
    $region24: #{_lambda_.5} parent=5 // pred_fallthru
      _
    %p136 = scmp.le.s32.totalorder 1, %s9
    %p137 = scmp.lt.s32.totalorder %s9, 3
    %p138 = pnand %p136, %p137
    %p139 = pneg %p138
    // Predicated region
    $region29: #{_lambda_.5} parent=5 // pred_check
      _
    $region30: #{_lambda_.5} parent=5 // pred_check_branch
      %141 = sbr.rel (%p138) target = $region32
    $region31: #{_lambda_.5} parent=5 // pred_region
      %s142 = ssub.s32 %s9, 1
      %p143 = scmp.lt.s32.totalorder %s14, 1
      %s144 = scalar_select %p143, %s14, 1
      %s145 = smul.addr %s144, 8
      %s146 = smul.addr %s145, 4
      %s147 = scalar_lea.vmem %s0, %s146
      %p148 = pneg %p35
      %p149 = pneg %p32
      %p150 = pneg %p56
      %p151 = pneg %p53
      %p152 = pneg %p77
      %p153 = pneg %p74
      %p154 = pneg %p103
      %p155 = pneg %p100
      %p156 = scmp.lt.s32.totalorder %s14, 1
      %s157 = scalar_select %p156, %s14, 1
      %s158 = smul.addr %s157, 32
      %s159 = smul.addr %s158, 4
      %s160 = scalar_lea.vmem %s3, %s159
      %p161 = scmp.lt.s32.totalorder %s14, 1
      %s162 = scalar_select %p161, %s14, 1
      %s163 = smul.addr %s162, 8
      %s164 = smul.addr %s163, 4
      %s165 = scalar_lea.vmem %s0, %s164
      %p166 = scmp.lt.s32.totalorder %s14, 1
      %s167 = scalar_select %p166, %s14, 1
      %s168 = smul.addr %s167, 32
      %s169 = smul.addr %s168, 4
      %s170 = scalar_lea.vmem %s3, %s169
      %v172 = vld [vmem:[%s165] sm:$0xf]
      %v173 = vld [vmem:[%s165 + $0x4] sm:$0xf]
      %v174 = vld [vmem:[%s165 + $0x8] sm:$0xf]
      %v175 = vld [vmem:[%s165 + $0xc] sm:$0xf]
      %v176 = vld [vmem:[%s165 + $0x10] sm:$0xf]
      %v177 = vld [vmem:[%s165 + $0x14] sm:$0xf]
      %v178 = vld [vmem:[%s165 + $0x18] sm:$0xf]
      %v179 = vld [vmem:[%s165 + $0x1c] sm:$0xf]
      %v180 = vld [vmem:[%s1] sm:$0xff]
      %v181 = vld [vmem:[%s1 + $0x8] sm:$0xff]
      %v182 = vld [vmem:[%s1 + $0x10] sm:$0xff]
      %v183 = vld [vmem:[%s1 + $0x18] sm:$0xff]
      %v184 = vld [vmem:[%s1 + $0x20] sm:$0xff]
      %v185 = vld [vmem:[%s1 + $0x28] sm:$0xff]
      %v186 = vld [vmem:[%s1 + $0x30] sm:$0xff]
      %v187 = vld [vmem:[%s1 + $0x38] sm:$0xff]
      %v188 = vld [vmem:[%s1 + $0x40] sm:$0xff]
      %v189 = vld [vmem:[%s1 + $0x48] sm:$0xff]
      %v190 = vld [vmem:[%s1 + $0x50] sm:$0xff]
      %v191 = vld [vmem:[%s1 + $0x58] sm:$0xff]
      %v192 = vld [vmem:[%s1 + $0x60] sm:$0xff]
      %v193 = vld [vmem:[%s1 + $0x68] sm:$0xff]
      %v194 = vld [vmem:[%s1 + $0x70] sm:$0xff]
      %v195 = vld [vmem:[%s1 + $0x78] sm:$0xff]
      %v196 = vld [vmem:[%s1 + $0x80] sm:$0xff]
      %v197 = vld [vmem:[%s1 + $0x88] sm:$0xff]
      %v198 = vld [vmem:[%s1 + $0x90] sm:$0xff]
      %v199 = vld [vmem:[%s1 + $0x98] sm:$0xff]
      %v200 = vld [vmem:[%s1 + $0xa0] sm:$0xff]
      %v201 = vld [vmem:[%s1 + $0xa8] sm:$0xff]
      %v202 = vld [vmem:[%s1 + $0xb0] sm:$0xff]
      %v203 = vld [vmem:[%s1 + $0xb8] sm:$0xff]
      %v204 = vld [vmem:[%s1 + $0xc0] sm:$0xff]
      %v205 = vld [vmem:[%s1 + $0xc8] sm:$0xff]
      %v206 = vld [vmem:[%s1 + $0xd0] sm:$0xff]
      %v207 = vld [vmem:[%s1 + $0xd8] sm:$0xff]
      %v208 = vld [vmem:[%s1 + $0xe0] sm:$0xff]
      %v209 = vld [vmem:[%s1 + $0xe8] sm:$0xff]
      %v210 = vld [vmem:[%s1 + $0xf0] sm:$0xff]
      %v211 = vld [vmem:[%s1 + $0xf8] sm:$0xff]
      %v212 = vld [vmem:[%s2] sm:$0xf]
      %v214 = vlaneseq
      %v215 = vshrl.u32 %v214, 7
      %v216 = vsub.s32 0, %v215
      %v217 = vrot.slane %v212, %v216
      %v218 = vlaneseq
      %v219 = vshrl.u32 %v218, 7
      %v220 = vsub.s32 1, %v219
      %v221 = vrot.slane %v212, %v220
      %v222 = vlaneseq
      %v223 = vshrl.u32 %v222, 7
      %v224 = vsub.s32 2, %v223
      %v225 = vrot.slane %v212, %v224
      %v226 = vlaneseq
      %v227 = vshrl.u32 %v226, 7
      %v228 = vsub.s32 3, %v227
      %v229 = vrot.slane %v212, %v228
      %v242 = vunpack.c.l.b16 %v172
      %v243 = vunpack.c.l.b16 %v173
      %v244 = vunpack.c.l.b16 %v174
      %v245 = vunpack.c.l.b16 %v175
      %v246 = vunpack.c.l.b16 %v176
      %v247 = vunpack.c.l.b16 %v177
      %v248 = vunpack.c.l.b16 %v178
      %v249 = vunpack.c.l.b16 %v179
      %v250 = vpack.c.b16 %v243, %v242
      %v251 = vpack.c.b16 %v245, %v244
      %v252 = vpack.c.b16 %v247, %v246
      %v253 = vpack.c.b16 %v249, %v248
      %v290 = vunpack.c.l.b16 %v180
      %v291 = vunpack.c.h.b16 %v180
      %v292 = vunpack.c.l.b16 %v181
      %v293 = vunpack.c.h.b16 %v181
      %v294 = vunpack.c.l.b16 %v182
      %v295 = vunpack.c.h.b16 %v182
      %v296 = vunpack.c.l.b16 %v183
      %v297 = vunpack.c.h.b16 %v183
      %v298 = vunpack.c.l.b16 %v184
      %v299 = vunpack.c.h.b16 %v184
      %v300 = vunpack.c.l.b16 %v185
      %v301 = vunpack.c.h.b16 %v185
      %v302 = vunpack.c.l.b16 %v186
      %v303 = vunpack.c.h.b16 %v186
      %v304 = vunpack.c.l.b16 %v187
      %v305 = vunpack.c.h.b16 %v187
      %v306 = vunpack.c.l.b16 %v188
      %v307 = vunpack.c.h.b16 %v188
      %v308 = vunpack.c.l.b16 %v189
      %v309 = vunpack.c.h.b16 %v189
      %v310 = vunpack.c.l.b16 %v190
      %v311 = vunpack.c.h.b16 %v190
      %v312 = vunpack.c.l.b16 %v191
      %v313 = vunpack.c.h.b16 %v191
      %v314 = vunpack.c.l.b16 %v192
      %v315 = vunpack.c.h.b16 %v192
      %v316 = vunpack.c.l.b16 %v193
      %v317 = vunpack.c.h.b16 %v193
      %v318 = vunpack.c.l.b16 %v194
      %v319 = vunpack.c.h.b16 %v194
      %v320 = vunpack.c.l.b16 %v195
      %v321 = vunpack.c.h.b16 %v195
      %v322 = vunpack.c.l.b16 %v196
      %v323 = vunpack.c.h.b16 %v196
      %v324 = vunpack.c.l.b16 %v197
      %v325 = vunpack.c.h.b16 %v197
      %v326 = vunpack.c.l.b16 %v198
      %v327 = vunpack.c.h.b16 %v198
      %v328 = vunpack.c.l.b16 %v199
      %v329 = vunpack.c.h.b16 %v199
      %v330 = vunpack.c.l.b16 %v200
      %v331 = vunpack.c.h.b16 %v200
      %v332 = vunpack.c.l.b16 %v201
      %v333 = vunpack.c.h.b16 %v201
      %v334 = vunpack.c.l.b16 %v202
      %v335 = vunpack.c.h.b16 %v202
      %v336 = vunpack.c.l.b16 %v203
      %v337 = vunpack.c.h.b16 %v203
      %v338 = vunpack.c.l.b16 %v204
      %v339 = vunpack.c.h.b16 %v204
      %v340 = vunpack.c.l.b16 %v205
      %v341 = vunpack.c.h.b16 %v205
      %v342 = vunpack.c.l.b16 %v206
      %v343 = vunpack.c.h.b16 %v206
      %v344 = vunpack.c.l.b16 %v207
      %v345 = vunpack.c.h.b16 %v207
      %v346 = vunpack.c.l.b16 %v208
      %v347 = vunpack.c.h.b16 %v208
      %v348 = vunpack.c.l.b16 %v209
      %v349 = vunpack.c.h.b16 %v209
      %v350 = vunpack.c.l.b16 %v210
      %v351 = vunpack.c.h.b16 %v210
      %v352 = vunpack.c.l.b16 %v211
      %v353 = vunpack.c.h.b16 %v211
      %v354 = vpack.c.b16 %v294, %v290
      %v355 = vpack.c.b16 %v295, %v291
      %v356 = vpack.c.b16 %v296, %v292
      %v357 = vpack.c.b16 %v297, %v293
      %v358 = vpack.c.b16 %v302, %v298
      %v359 = vpack.c.b16 %v303, %v299
      %v360 = vpack.c.b16 %v304, %v300
      %v361 = vpack.c.b16 %v305, %v301
      %v362 = vpack.c.b16 %v310, %v306
      %v363 = vpack.c.b16 %v311, %v307
      %v364 = vpack.c.b16 %v312, %v308
      %v365 = vpack.c.b16 %v313, %v309
      %v366 = vpack.c.b16 %v318, %v314
      %v367 = vpack.c.b16 %v319, %v315
      %v368 = vpack.c.b16 %v320, %v316
      %v369 = vpack.c.b16 %v321, %v317
      %v370 = vpack.c.b16 %v326, %v322
      %v371 = vpack.c.b16 %v327, %v323
      %v372 = vpack.c.b16 %v328, %v324
      %v373 = vpack.c.b16 %v329, %v325
      %v374 = vpack.c.b16 %v334, %v330
      %v375 = vpack.c.b16 %v335, %v331
      %v376 = vpack.c.b16 %v336, %v332
      %v377 = vpack.c.b16 %v337, %v333
      %v378 = vpack.c.b16 %v342, %v338
      %v379 = vpack.c.b16 %v343, %v339
      %v380 = vpack.c.b16 %v344, %v340
      %v381 = vpack.c.b16 %v345, %v341
      %v382 = vpack.c.b16 %v350, %v346
      %v383 = vpack.c.b16 %v351, %v347
      %v384 = vpack.c.b16 %v352, %v348
      %v385 = vpack.c.b16 %v353, %v349
      %418 = vmatprep.subr.bf16.mxu0 %v383
      %419 = vmatpush1.bf16.msra.mxu0 %v382
      %420 = vmatprep.subr.bf16.mxu0 %v379
      %421 = vmatpush1.bf16.msra.mxu0 %v378
      %422 = vmatprep.subr.bf16.mxu0 %v375
      %423 = vmatpush1.bf16.msra.mxu0 %v374
      %424 = vmatprep.subr.bf16.mxu0 %v371
      %425 = vmatpush1.bf16.msra.mxu0 %v370
      %426 = vmatprep.subr.bf16.mxu0 %v367
      %427 = vmatpush1.bf16.msra.mxu0 %v366
      %428 = vmatprep.subr.bf16.mxu0 %v363
      %429 = vmatpush1.bf16.msra.mxu0 %v362
      %430 = vmatprep.subr.bf16.mxu0 %v359
      %431 = vmatpush1.bf16.msra.mxu0 %v358
      %432 = vmatprep.subr.bf16.mxu0 %v355
      %433 = vmatpush1.bf16.msra.mxu0 %v354
      %434 = vmatprep.subr.bf16.mxu0 0
      %435 = vmatpush2.bf16.msra.mxu0 0
      %436 = vmatprep.subr.bf16.mxu0 0
      %437 = vmatpush2.bf16.msra.mxu0 0
      %438 = vmatprep.subr.bf16.mxu0 0
      %439 = vmatpush2.bf16.msra.mxu0 0
      %440 = vmatprep.subr.bf16.mxu0 0
      %441 = vmatpush2.bf16.msra.mxu0 0
      %442 = vmatprep.subr.bf16.mxu0 0
      %443 = vmatpush2.bf16.msra.mxu0 0
      %444 = vmatprep.subr.bf16.mxu0 0
      %445 = vmatpush2.bf16.msra.mxu0 0
      %446 = vmatprep.subr.bf16.mxu0 0
      %447 = vmatpush2.bf16.msra.mxu0 0
      %448 = vmatprep.subr.bf16.mxu0 0
      %449 = vmatpush2.bf16.msra.mxu0 0
      %450 = vmatprep.mubr.bf16.mxu0 0
      %451 = vmatmul.mubr.bf16.gmra.mxu0 %v250
      %v452 = vpop.f32.mrf.mxu0
      %v453 = vadd.f32 %v217, %v452
      %v454 = vpop.f32.mrf.mxu0
      %v455 = vadd.f32 %v221, %v454
      %v456 = vpop.f32.mrf.mxu0
      %v457 = vadd.f32 %v217, %v456
      %v458 = vpop.f32.mrf.mxu0
      %v459 = vadd.f32 %v221, %v458
      %460 = vmatprep.mubr.bf16.mxu0 0
      %461 = vmatmul.mubr.bf16.gmra.mxu0 %v251
      %v462 = vpop.f32.mrf.mxu0
      %v463 = vadd.f32 %v217, %v462
      %v464 = vpop.f32.mrf.mxu0
      %v465 = vadd.f32 %v221, %v464
      %v466 = vpop.f32.mrf.mxu0
      %v467 = vadd.f32 %v217, %v466
      %v468 = vpop.f32.mrf.mxu0
      %v469 = vadd.f32 %v221, %v468
      %470 = vmatprep.mubr.bf16.mxu0 0
      %471 = vmatmul.mubr.bf16.gmra.mxu0 %v252
      %v472 = vpop.f32.mrf.mxu0
      %v473 = vadd.f32 %v217, %v472
      %v474 = vpop.f32.mrf.mxu0
      %v475 = vadd.f32 %v221, %v474
      %v476 = vpop.f32.mrf.mxu0
      %v477 = vadd.f32 %v217, %v476
      %v478 = vpop.f32.mrf.mxu0
      %v479 = vadd.f32 %v221, %v478
      %480 = vmatprep.mubr.bf16.mxu0 0
      %481 = vmatmul.mubr.bf16.gmra.mxu0 %v253
      %v482 = vpop.f32.mrf.mxu0
      %v483 = vadd.f32 %v217, %v482
      %v484 = vpop.f32.mrf.mxu0
      %v485 = vadd.f32 %v221, %v484
      %v486 = vpop.f32.mrf.mxu0
      %v487 = vadd.f32 %v217, %v486
      %v488 = vpop.f32.mrf.mxu0
      %v489 = vadd.f32 %v221, %v488
      %490 = vdwg.mxu0
      %491 = vmatprep.subr.bf16.mxu0 %v385
      %492 = vmatpush1.bf16.msra.mxu0 %v384
      %493 = vmatprep.subr.bf16.mxu0 %v381
      %494 = vmatpush1.bf16.msra.mxu0 %v380
      %495 = vmatprep.subr.bf16.mxu0 %v377
      %496 = vmatpush1.bf16.msra.mxu0 %v376
      %497 = vmatprep.subr.bf16.mxu0 %v373
      %498 = vmatpush1.bf16.msra.mxu0 %v372
      %499 = vmatprep.subr.bf16.mxu0 %v369
      %500 = vmatpush1.bf16.msra.mxu0 %v368
      %501 = vmatprep.subr.bf16.mxu0 %v365
      %502 = vmatpush1.bf16.msra.mxu0 %v364
      %503 = vmatprep.subr.bf16.mxu0 %v361
      %504 = vmatpush1.bf16.msra.mxu0 %v360
      %505 = vmatprep.subr.bf16.mxu0 %v357
      %506 = vmatpush1.bf16.msra.mxu0 %v356
      %507 = vmatprep.subr.bf16.mxu0 0
      %508 = vmatpush2.bf16.msra.mxu0 0
      %509 = vmatprep.subr.bf16.mxu0 0
      %510 = vmatpush2.bf16.msra.mxu0 0
      %511 = vmatprep.subr.bf16.mxu0 0
      %512 = vmatpush2.bf16.msra.mxu0 0
      %513 = vmatprep.subr.bf16.mxu0 0
      %514 = vmatpush2.bf16.msra.mxu0 0
      %515 = vmatprep.subr.bf16.mxu0 0
      %516 = vmatpush2.bf16.msra.mxu0 0
      %517 = vmatprep.subr.bf16.mxu0 0
      %518 = vmatpush2.bf16.msra.mxu0 0
      %519 = vmatprep.subr.bf16.mxu0 0
      %520 = vmatpush2.bf16.msra.mxu0 0
      %521 = vmatprep.subr.bf16.mxu0 0
      %522 = vmatpush2.bf16.msra.mxu0 0
      %523 = vmatprep.mubr.bf16.mxu0 0
      %524 = vmatmul.mubr.bf16.gmra.mxu0 %v250
      %v525 = vpop.f32.mrf.mxu0
      %v526 = vadd.f32 %v225, %v525
      %v527 = vpop.f32.mrf.mxu0
      %v528 = vadd.f32 %v229, %v527
      %v529 = vpop.f32.mrf.mxu0
      %v530 = vadd.f32 %v225, %v529
      %v531 = vpop.f32.mrf.mxu0
      %v532 = vadd.f32 %v229, %v531
      %533 = vmatprep.mubr.bf16.mxu0 0
      %534 = vmatmul.mubr.bf16.gmra.mxu0 %v251
      %v535 = vpop.f32.mrf.mxu0
      %v536 = vadd.f32 %v225, %v535
      %v537 = vpop.f32.mrf.mxu0
      %v538 = vadd.f32 %v229, %v537
      %v539 = vpop.f32.mrf.mxu0
      %v540 = vadd.f32 %v225, %v539
      %v541 = vpop.f32.mrf.mxu0
      %v542 = vadd.f32 %v229, %v541
      %543 = vmatprep.mubr.bf16.mxu0 0
      %544 = vmatmul.mubr.bf16.gmra.mxu0 %v252
      %v545 = vpop.f32.mrf.mxu0
      %v546 = vadd.f32 %v225, %v545
      %v547 = vpop.f32.mrf.mxu0
      %v548 = vadd.f32 %v229, %v547
      %v549 = vpop.f32.mrf.mxu0
      %v550 = vadd.f32 %v225, %v549
      %v551 = vpop.f32.mrf.mxu0
      %v552 = vadd.f32 %v229, %v551
      %553 = vmatprep.mubr.bf16.mxu0 0
      %554 = vmatmul.mubr.bf16.gmra.mxu0 %v253
      %v555 = vpop.f32.mrf.mxu0
      %v556 = vadd.f32 %v225, %v555
      %v557 = vpop.f32.mrf.mxu0
      %v558 = vadd.f32 %v229, %v557
      %v559 = vpop.f32.mrf.mxu0
      %v560 = vadd.f32 %v225, %v559
      %v561 = vpop.f32.mrf.mxu0
      %v562 = vadd.f32 %v229, %v561
      %563 = vdwg.mxu0
      %v564 = vpack.c.bf16 %v457, %v453
      %v565 = vpack.c.bf16 %v459, %v455
      %v566 = vpack.c.bf16 %v530, %v526
      %v567 = vpack.c.bf16 %v532, %v528
      %v568 = vpack.c.bf16 %v467, %v463
      %v569 = vpack.c.bf16 %v469, %v465
      %v570 = vpack.c.bf16 %v540, %v536
      %v571 = vpack.c.bf16 %v542, %v538
      %v572 = vpack.c.bf16 %v477, %v473
      %v573 = vpack.c.bf16 %v479, %v475
      %v574 = vpack.c.bf16 %v550, %v546
      %v575 = vpack.c.bf16 %v552, %v548
      %v576 = vpack.c.bf16 %v487, %v483
      %v577 = vpack.c.bf16 %v489, %v485
      %v578 = vpack.c.bf16 %v560, %v556
      %v579 = vpack.c.bf16 %v562, %v558
      %v588 = vunpack.c.l.b16 %v564
      %v589 = vunpack.c.l.b16 %v565
      %v590 = vunpack.c.h.b16 %v564
      %v591 = vunpack.c.h.b16 %v565
      %v592 = vunpack.c.l.b16 %v568
      %v593 = vunpack.c.l.b16 %v569
      %v594 = vunpack.c.h.b16 %v568
      %v595 = vunpack.c.h.b16 %v569
      %v596 = vunpack.c.l.b16 %v572
      %v597 = vunpack.c.l.b16 %v573
      %v598 = vunpack.c.h.b16 %v572
      %v599 = vunpack.c.h.b16 %v573
      %v600 = vunpack.c.l.b16 %v576
      %v601 = vunpack.c.l.b16 %v577
      %v602 = vunpack.c.h.b16 %v576
      %v603 = vunpack.c.h.b16 %v577
      %v604 = vpack.c.b16 %v589, %v588
      %v605 = vpack.c.b16 %v591, %v590
      %v606 = vpack.c.b16 %v593, %v592
      %v607 = vpack.c.b16 %v595, %v594
      %v608 = vpack.c.b16 %v597, %v596
      %v609 = vpack.c.b16 %v599, %v598
      %v610 = vpack.c.b16 %v601, %v600
      %v611 = vpack.c.b16 %v603, %v602
      %620 = vst [vmem:[%s170] sm:$0xff] %v604
      %621 = vst [vmem:[%s170 + $0x10] sm:$0xff] %v605
      %622 = vst [vmem:[%s170 + $0x20] sm:$0xff] %v606
      %623 = vst [vmem:[%s170 + $0x30] sm:$0xff] %v607
      %624 = vst [vmem:[%s170 + $0x40] sm:$0xff] %v608
      %625 = vst [vmem:[%s170 + $0x50] sm:$0xff] %v609
      %626 = vst [vmem:[%s170 + $0x60] sm:$0xff] %v610
      %627 = vst [vmem:[%s170 + $0x70] sm:$0xff] %v611
      %v636 = vunpack.c.l.b16 %v566
      %v637 = vunpack.c.l.b16 %v567
      %v638 = vunpack.c.h.b16 %v566
      %v639 = vunpack.c.h.b16 %v567
      %v640 = vunpack.c.l.b16 %v570
      %v641 = vunpack.c.l.b16 %v571
      %v642 = vunpack.c.h.b16 %v570
      %v643 = vunpack.c.h.b16 %v571
      %v644 = vunpack.c.l.b16 %v574
      %v645 = vunpack.c.l.b16 %v575
      %v646 = vunpack.c.h.b16 %v574
      %v647 = vunpack.c.h.b16 %v575
      %v648 = vunpack.c.l.b16 %v578
      %v649 = vunpack.c.l.b16 %v579
      %v650 = vunpack.c.h.b16 %v578
      %v651 = vunpack.c.h.b16 %v579
      %v652 = vpack.c.b16 %v637, %v636
      %v653 = vpack.c.b16 %v639, %v638
      %v654 = vpack.c.b16 %v641, %v640
      %v655 = vpack.c.b16 %v643, %v642
      %v656 = vpack.c.b16 %v645, %v644
      %v657 = vpack.c.b16 %v647, %v646
      %v658 = vpack.c.b16 %v649, %v648
      %v659 = vpack.c.b16 %v651, %v650
      %s668 = scalar_lea.vmem %s170, 8
      %669 = vst [vmem:[%s668] sm:$0xff] %v652
      %670 = vst [vmem:[%s668 + $0x10] sm:$0xff] %v653
      %671 = vst [vmem:[%s668 + $0x20] sm:$0xff] %v654
      %672 = vst [vmem:[%s668 + $0x30] sm:$0xff] %v655
      %673 = vst [vmem:[%s668 + $0x40] sm:$0xff] %v656
      %674 = vst [vmem:[%s668 + $0x50] sm:$0xff] %v657
      %675 = vst [vmem:[%s668 + $0x60] sm:$0xff] %v658
      %676 = vst [vmem:[%s668 + $0x70] sm:$0xff] %v659
      %p677 = scmp.lt.s32.totalorder %s14, 1
      %s678 = scalar_select %p677, %s14, 1
      %s679 = smul.addr %s678, 32
      %s680 = smul.addr %s679, 4
      %s681 = scalar_lea.vmem %s3, %s680
      // Predicated region
      $region33: #{_lambda_.5} parent=31 // pred_check
        %p682 = pneg %p100
      $region34: #{_lambda_.5} parent=31 // pred_check_branch
        %684 = sbr.rel (%p682) target = $region36
      $region35: #{_lambda_.5} parent=31 // pred_region
        _
      $region36: #{_lambda_.5} parent=31 // pred_fallthru
        _
    $region32: #{_lambda_.5} parent=5 // pred_fallthru
      _
    %p685 = scmp.le.s32.totalorder 2, %s9
    // Predicated region
    $region37: #{_lambda_.5} parent=5 // pred_check
      %p686 = pneg %p685
    $region38: #{_lambda_.5} parent=5 // pred_check_branch
      %688 = sbr.rel (%p686) target = $region40
    $region39: #{_lambda_.5} parent=5 // pred_region
      %s689 = ssub.s32 %s9, 2
      // Predicated region
      $region41: #{_lambda_.5} parent=39 // pred_check
        %p690 = pneg %p106
      $region42: #{_lambda_.5} parent=39 // pred_check_branch
        %692 = sbr.rel (%p690) target = $region44
      $region43: #{_lambda_.5} parent=39 // pred_region
        %p693 = scmp.lt.s32.totalorder %s15, 1
        %s694 = scalar_select %p693, %s15, 1
        %s695 = smul.addr %s694, 32
        %s696 = smul.addr %s695, 4
        %s697 = scalar_lea.vmem %s3, %s696
      $region44: #{_lambda_.5} parent=39 // pred_fallthru
        _
    $region40: #{_lambda_.5} parent=5 // pred_fallthru
      _
  $region6: #{_lambda_.5} parent=0 // loop_footer
    %s13 = sadd.s32 1, %s9
  $region7: #{_lambda_.5} parent=0 // loop_footer_branch
    %8 = sbr.rel target = $region3
  $region8: #{_lambda_.5} parent=0 // loop_exit
    _

// kernel: _lambda_.8
$region0: #{_lambda_.8}
  #allocation0 [shape = 'u32[]', space=smem, size = 0x4, offset = 0x4, fixed_abs, tag = 'smem constant byte address 0x4 - core index']
  #allocation1 [shape = 'u32[144,128]{1,0:T(1,128)}', space=vmem, size = 0x12000, scoped, tag = 'internal scratch']
  #allocation2 [shape = 'bf16[2,144,128]{2,1,0:T(8,128)(2,1)}', space=vmem, size = 0x12000, scoped, tag = 'scratch operand']
  #allocation3 [shape = 's32[2]{0}', space=sflag, size = 0x8, scoped, tag = 'scratch operand']
  #allocation4 [shape = 's32[]', space=sflag, size = 0x4, offset = 0, fixed_abs, tag = 'sflag constant byte address 0x0 - dummy sync flag']
  #allocation5 [shape = 's32[]', space=sflag, size = 0x4, offset = 0, fixed_abs, tag = 'sflag constant byte address 0x0 - dummy sync flag']
  %s0 = inlined_call_operand.vmem [shape: bf16[2,432,128], index: 0, kind: input, shape index: {}]
  %s1 = inlined_call_operand.vmem [shape: bf16[9,128,128], index: 1, kind: input, shape index: {}]
  %s2 = inlined_call_operand.vmem [shape: f32[1,128], index: 2, kind: input, shape index: {}]
  %s3 = inlined_call_operand.vmem [shape: bf16[2,16,16,128], index: 3, kind: output, shape index: {0}]
  %s4 = inlined_call_operand.vmem [shape: f32[2,4,2,128], index: 4, kind: output, shape index: {1}]
  %5 = xla_tuple %s3, %s4
  %s6 = sld [smem:[#allocation0]]
  $region125: #{_lambda_.8} parent=0
    _
  %s8 = ssub.s32 1, %s6
  %s9 = scalar_select 0, %s8, %s6
  loop: start=0, step=1, limit=10
  $region2: #{_lambda_.8} parent=0 // loop_pre_header
    _
  $region3: #{_lambda_.8} parent=0 // loop_header
    %s11 = sphi 0, %s15
    %p12 = scmp.ge.s32.totalorder %s11, 10
    %s18 = sphi 0, %s30
    %s19 = sphi 0, %s26
    %s20 = sphi 0, %s18
    %s21 = sphi 0, %s19
    %s22 = sphi 0, %s20
    %s23 = sphi 0, %s21
    %s31 = sphi 0, %s31
    %s33 = sphi 0, %s31
    %s34 = sphi 0, %s33
    %s48 = sphi 0, %s34
    %s52 = sphi 0, %s52
    %s54 = sphi 0, %s52
    %s55 = sphi 0, %s54
    %s69 = sphi 0, %s55
    %s77 = sphi 0, %s79
    %s80 = sphi 0, %s77
    %s81 = sphi 0, %s80
    %s97 = sphi 0, %s81
    %s105 = sphi 0, %s107
    %s108 = sphi 0, %s105
    %s109 = sphi 0, %s108
    %s125 = sphi 0, %s109
  $region4: #{_lambda_.8} parent=0 // loop_header_branch
    %14 = sbr.rel (%p12) target = $region8
  $region5: #{_lambda_.8} parent=0 // loop_body
    %s16 = ssub.s32 %s11, 1
    %s17 = ssub.s32 %s11, 2
    %s24 = sadd.s32 1, %s19
    %p25 = scmp.ge.s32.totalorder %s24, 4
    %s26 = scalar_select %p25, 0, %s24
    %s27 = sadd.s32 1, %s18
    %s28 = scalar_select %p25, %s27, %s18
    %p29 = scmp.ge.s32.totalorder %s28, 2
    %s30 = scalar_select %p29, 0, %s28
    %s32 = sadd.s32 %s31, 1
    %p35 = scmp.eq.s32.totalorder %s11, 7
    %p36 = scmp.ne.s32.totalorder %s31, %s33
    %p37 = scmp.eq.s32.totalorder %s11, 0
    %p38 = por %p36, %p37
    %p39 = scmp.ne.s32.totalorder %s31, %s33
    %p40 = scmp.eq.s32.totalorder %s16, 7
    %p41 = por %p39, %p40
    %p42 = scmp.ne.s32.totalorder %s33, %s34
    %p43 = scmp.eq.s32.totalorder %s16, 0
    %p44 = por %p42, %p43
    %p45 = scmp.ne.s32.totalorder %s33, %s34
    %p46 = scmp.eq.s32.totalorder %s17, 7
    %p47 = por %p45, %p46
    %p49 = scmp.ne.s32.totalorder %s34, %s48
    %p50 = scmp.eq.s32.totalorder %s17, 0
    %p51 = por %p49, %p50
    %s53 = sadd.s32 %s52, 1
    %p56 = scmp.eq.s32.totalorder %s11, 7
    %p57 = scmp.ne.s32.totalorder %s52, %s54
    %p58 = scmp.eq.s32.totalorder %s11, 0
    %p59 = por %p57, %p58
    %p60 = scmp.ne.s32.totalorder %s52, %s54
    %p61 = scmp.eq.s32.totalorder %s16, 7
    %p62 = por %p60, %p61
    %p63 = scmp.ne.s32.totalorder %s54, %s55
    %p64 = scmp.eq.s32.totalorder %s16, 0
    %p65 = por %p63, %p64
    %p66 = scmp.ne.s32.totalorder %s54, %s55
    %p67 = scmp.eq.s32.totalorder %s17, 7
    %p68 = por %p66, %p67
    %p70 = scmp.ne.s32.totalorder %s55, %s69
    %p71 = scmp.eq.s32.totalorder %s17, 0
    %p72 = por %p70, %p71
    %s73 = ssub.s32 %s18, %s30
    %s74 = ssub.s32 %s19, %s26
    %s75 = sor.u32 %s73, %s74
    %p76 = scmp.eq.s32.totalorder %s75, 0
    %s78 = sadd.s32 %s77, 1
    %s79 = scalar_select %p76, %s77, %s78
    %p82 = pneg %p76
    %p83 = scmp.eq.s32.totalorder %s11, 7
    %p84 = por %p82, %p83
    %p85 = scmp.ne.s32.totalorder %s77, %s80
    %p86 = scmp.eq.s32.totalorder %s11, 0
    %p87 = por %p85, %p86
    %p88 = scmp.ne.s32.totalorder %s77, %s80
    %p89 = scmp.eq.s32.totalorder %s16, 7
    %p90 = por %p88, %p89
    %p91 = scmp.ne.s32.totalorder %s80, %s81
    %p92 = scmp.eq.s32.totalorder %s16, 0
    %p93 = por %p91, %p92
    %p94 = scmp.ne.s32.totalorder %s80, %s81
    %p95 = scmp.eq.s32.totalorder %s17, 7
    %p96 = por %p94, %p95
    %p98 = scmp.ne.s32.totalorder %s81, %s97
    %p99 = scmp.eq.s32.totalorder %s17, 0
    %p100 = por %p98, %p99
    %s101 = ssub.s32 %s18, %s30
    %s102 = ssub.s32 %s19, %s26
    %s103 = sor.u32 %s101, %s102
    %p104 = scmp.eq.s32.totalorder %s103, 0
    %s106 = sadd.s32 %s105, 1
    %s107 = scalar_select %p104, %s105, %s106
    %p110 = pneg %p104
    %p111 = scmp.eq.s32.totalorder %s11, 7
    %p112 = por %p110, %p111
    %p113 = scmp.ne.s32.totalorder %s105, %s108
    %p114 = scmp.eq.s32.totalorder %s11, 0
    %p115 = por %p113, %p114
    %p116 = scmp.ne.s32.totalorder %s105, %s108
    %p117 = scmp.eq.s32.totalorder %s16, 7
    %p118 = por %p116, %p117
    %p119 = scmp.ne.s32.totalorder %s108, %s109
    %p120 = scmp.eq.s32.totalorder %s16, 0
    %p121 = por %p119, %p120
    %p122 = scmp.ne.s32.totalorder %s108, %s109
    %p123 = scmp.eq.s32.totalorder %s17, 7
    %p124 = por %p122, %p123
    %p126 = scmp.ne.s32.totalorder %s109, %s125
    %p127 = scmp.eq.s32.totalorder %s17, 0
    %p128 = por %p126, %p127
    %p129 = scmp.le.s32.totalorder 1, %s11
    %p130 = scmp.lt.s32.totalorder %s11, 9
    %p131 = pnand %p129, %p130
    %p132 = pneg %p131
    // Predicated region
    $region9: #{_lambda_.8} parent=5 // pred_check
      _
    $region10: #{_lambda_.8} parent=5 // pred_check_branch
      %134 = sbr.rel (%p131) target = $region12
    $region11: #{_lambda_.8} parent=5 // pred_region
      %s135 = ssub.s32 %s11, 1
      // Predicated region
      $region13: #{_lambda_.8} parent=11 // pred_check
        %p136 = pneg %p44
      $region14: #{_lambda_.8} parent=11 // pred_check_branch
        %138 = sbr.rel (%p136) target = $region16
      $region15: #{_lambda_.8} parent=11 // pred_region
        _
      $region16: #{_lambda_.8} parent=11 // pred_fallthru
        _
      // Predicated region
      $region17: #{_lambda_.8} parent=11 // pred_check
        %p139 = pneg %p65
      $region18: #{_lambda_.8} parent=11 // pred_check_branch
        %141 = sbr.rel (%p139) target = $region20
      $region19: #{_lambda_.8} parent=11 // pred_region
        _
      $region20: #{_lambda_.8} parent=11 // pred_fallthru
        _
    $region12: #{_lambda_.8} parent=5 // pred_fallthru
      _
    %p142 = scmp.lt.s32.totalorder %s11, 8
    // Predicated region
    $region21: #{_lambda_.8} parent=5 // pred_check
      %p143 = pneg %p142
    $region22: #{_lambda_.8} parent=5 // pred_check_branch
      %145 = sbr.rel (%p143) target = $region24
    $region23: #{_lambda_.8} parent=5 // pred_region
      _
    $region24: #{_lambda_.8} parent=5 // pred_fallthru
      _
    %p146 = scmp.le.s32.totalorder 1, %s11
    %p147 = scmp.lt.s32.totalorder %s11, 9
    %p148 = pnand %p146, %p147
    %p149 = pneg %p148
    // Predicated region
    $region25: #{_lambda_.8} parent=5 // pred_check
      _
    $region26: #{_lambda_.8} parent=5 // pred_check_branch
      %151 = sbr.rel (%p148) target = $region28
    $region27: #{_lambda_.8} parent=5 // pred_region
      %s152 = ssub.s32 %s11, 1
      %p153 = pneg %p44
      %p154 = pneg %p41
      %p155 = pneg %p65
      %p156 = pneg %p62
      %p157 = pneg %p93
      %p158 = pneg %p90
      %s159 = smul.u32 4, %s21
      %p160 = scmp.lt.s32.totalorder %s20, 1
      %s161 = scalar_select %p160, %s20, 1
      %p162 = scmp.lt.s32.totalorder %s159, 15
      %s163 = scalar_select %p162, %s159, 15
      %s164 = smul.addr %s163, 2
      %s165 = smul.addr %s161, 32
      %s166 = sadd.s32 %s164, %s165
      %s167 = smul.addr %s166, 4
      %s168 = scalar_lea.vmem %s3, %s167
      %p169 = pneg %p121
      %p170 = pneg %p118
      %p171 = scmp.lt.s32.totalorder %s20, 1
      %s172 = scalar_select %p171, %s20, 1
      %p173 = scmp.lt.s32.totalorder %s21, 3
      %s174 = scalar_select %p173, %s21, 3
      %s175 = smul.addr %s172, 4
      %s176 = sadd.s32 %s174, %s175
      %s177 = smul.addr %s176, 2
      %s178 = scalar_lea.vmem %s4, %s177
      %s179 = smul.u32 4, %s21
      %p180 = scmp.lt.s32.totalorder %s20, 1
      %s181 = scalar_select %p180, %s20, 1
      %p182 = scmp.lt.s32.totalorder %s179, 15
      %s183 = scalar_select %p182, %s179, 15
      %s184 = smul.addr %s183, 2
      %s185 = smul.addr %s181, 32
      %s186 = sadd.s32 %s184, %s185
      %s187 = smul.addr %s186, 4
      %s188 = scalar_lea.vmem %s3, %s187
      %s189 = smul.u32 4, %s21
      %p190 = scmp.lt.s32.totalorder %s20, 1
      %s191 = scalar_select %p190, %s20, 1
      %p192 = scmp.lt.s32.totalorder %s21, 3
      %s193 = scalar_select %p192, %s21, 3
      %s194 = smul.addr %s191, 4
      %s195 = sadd.s32 %s193, %s194
      %s196 = smul.addr %s195, 2
      %s197 = scalar_lea.vmem %s4, %s196
      %p199 = scmp.lt.s32.totalorder %s21, 0
      %s200 = ssub.s32 0, %s21
      %s201 = scalar_select %p199, %s200, %s21
      %s202 = sand.u32 %s201, 1
      %s203 = ssub.s32 0, %s202
      %s204 = scalar_select %p199, %s203, %s202
      %p205 = scmp.ne.s32.totalorder %s204, 0
      %p206 = scmp.lt.s32.totalorder %s204, 0
      %p207 = pnand %p206, %p205
      %p208 = pneg %p207
      %s209 = sadd.s32 %s204, 2
      %s210 = scalar_select %p208, %s209, %s204
      %p211 = scmp.eq.s32.totalorder %s21, 0
      // Predicated region
      $region29: #{_lambda_.8} parent=27 // pred_check
        %p212 = pneg %p211
      $region30: #{_lambda_.8} parent=27 // pred_check_branch
        %214 = sbr.rel (%p212) target = $region32
      $region31: #{_lambda_.8} parent=27 // pred_region
        %s215 = smul.u32 %s20, 54
        %s216 = smul.addr %s215, 4
        %s217 = scalar_lea.vmem %s0, %s216
        %p219 = scmp.lt.u32.totalorder 72, 8
        %p220 = pneg %p219
        // Predicated region
        $region33: #{_lambda_.8} parent=31 // pred_check
          _
        $region34: #{_lambda_.8} parent=31 // pred_check_branch
          %222 = sbr.rel (%p219) target = $region36
        $region35: #{_lambda_.8} parent=31 // pred_region
          %s238 = sand.u32 72, 7
          %p239 = scmp.eq.s32.totalorder %s238, 0
          // Predicated region
          $region48: #{_lambda_.8} parent=35 // pred_check
            %p240 = pneg %p239
          $region49: #{_lambda_.8} parent=35 // pred_check_branch
            %242 = sbr.rel (%p240) target = $region51
          $region50: #{_lambda_.8} parent=35 // pred_region
            loop: start=0, step=1, limit=1
            $region52: #{_lambda_.8} parent=50 // loop_pre_header
              _
            $region53: #{_lambda_.8} parent=50 // loop_header
              %s244 = sphi 0, %s248
              %p245 = scmp.ge.s32.totalorder %s244, 1
              %s249 = sphi %s217, %s217
              %s250 = sphi [#allocation2], [#allocation2]
            $region54: #{_lambda_.8} parent=50 // loop_header_branch
              %247 = sbr.rel (%p245) target = $region58
            $region55: #{_lambda_.8} parent=50 // loop_body
              %v251 = vld [vmem:[%s249] sm:$0xff]
              %252 = vst [vmem:[%s250] sm:$0xff] %v251
              %v253 = vld [vmem:[%s249 + $0x8] sm:$0xff]
              %254 = vst [vmem:[%s250 + $0x8] sm:$0xff] %v253
              %v255 = vld [vmem:[%s249 + $0x10] sm:$0xff]
              %256 = vst [vmem:[%s250 + $0x10] sm:$0xff] %v255
              %v257 = vld [vmem:[%s249 + $0x18] sm:$0xff]
              %258 = vst [vmem:[%s250 + $0x18] sm:$0xff] %v257
              %v259 = vld [vmem:[%s249 + $0x20] sm:$0xff]
              %260 = vst [vmem:[%s250 + $0x20] sm:$0xff] %v259
              %v261 = vld [vmem:[%s249 + $0x28] sm:$0xff]
              %262 = vst [vmem:[%s250 + $0x28] sm:$0xff] %v261
              %v263 = vld [vmem:[%s249 + $0x30] sm:$0xff]
              %264 = vst [vmem:[%s250 + $0x30] sm:$0xff] %v263
              %v265 = vld [vmem:[%s249 + $0x38] sm:$0xff]
              %266 = vst [vmem:[%s250 + $0x38] sm:$0xff] %v265
              %v267 = vld [vmem:[%s249 + $0x40] sm:$0xff]
              %268 = vst [vmem:[%s250 + $0x40] sm:$0xff] %v267
            $region56: #{_lambda_.8} parent=50 // loop_footer
              %s248 = sadd.s32 1, %s244
            $region57: #{_lambda_.8} parent=50 // loop_footer_branch
              %243 = sbr.rel target = $region53
            $region58: #{_lambda_.8} parent=50 // loop_exit
              _
          $region51: #{_lambda_.8} parent=35 // pred_fallthru
            _
          %p269 = pneg %p239
          // Predicated region
          $region59: #{_lambda_.8} parent=35 // pred_check
            _
          $region60: #{_lambda_.8} parent=35 // pred_check_branch
            %271 = sbr.rel (%p239) target = $region62
          $region61: #{_lambda_.8} parent=35 // pred_region
            %s272 = sand.u32 72, 7
          $region62: #{_lambda_.8} parent=35 // pred_fallthru
            _
        $region36: #{_lambda_.8} parent=31 // pred_fallthru
          _
        // Predicated region
        $region37: #{_lambda_.8} parent=31 // pred_check
          %p223 = pneg %p219
        $region38: #{_lambda_.8} parent=31 // pred_check_branch
          %225 = sbr.rel (%p223) target = $region40
        $region39: #{_lambda_.8} parent=31 // pred_region
          %s226 = sshll.u32 1, 72
          %s227 = ssub.s32 %s226, 1
          loop: start=0, step=1, limit=1
          $region41: #{_lambda_.8} parent=39 // loop_pre_header
            _
          $region42: #{_lambda_.8} parent=39 // loop_header
            %s229 = sphi 0, %s233
            %p230 = scmp.ge.s32.totalorder %s229, 1
            %s234 = sphi %s217, %s217
            %s235 = sphi [#allocation2], [#allocation2]
          $region43: #{_lambda_.8} parent=39 // loop_header_branch
            %232 = sbr.rel (%p230) target = $region47
          $region44: #{_lambda_.8} parent=39 // loop_body
            %v236 = vld [vmem:[%s234] sm:%s227]
            %237 = vst [vmem:[%s235] sm:%s227] %v236
          $region45: #{_lambda_.8} parent=39 // loop_footer
            %s233 = sadd.s32 1, %s229
          $region46: #{_lambda_.8} parent=39 // loop_footer_branch
            %228 = sbr.rel target = $region42
          $region47: #{_lambda_.8} parent=39 // loop_exit
            _
        $region40: #{_lambda_.8} parent=31 // pred_fallthru
          _
        // Predicated region
        $region63: #{_lambda_.8} parent=31 // pred_check
          _
        $region64: #{_lambda_.8} parent=31 // pred_check_branch
          %275 = sbr.rel (0) target = $region66
        $region65: #{_lambda_.8} parent=31 // pred_region
          %276 = vsyncadd [#allocation3], 1152
        $region66: #{_lambda_.8} parent=31 // pred_fallthru
          _
      $region32: #{_lambda_.8} parent=27 // pred_fallthru
        _
      %s277 = smul.u32 %s210, 18
      %s278 = smul.addr %s277, 4
      %s279 = scalar_lea.vmem [#allocation2], %s278
      %s280 = scalar_lea.sflag [#allocation3], %s210
      %s281 = smul.u32 4, 18
      %s282 = smul.u32 %s281, 1
      %s283 = sshll.u32 %s282, 4
      %284 = dma.done %s280, %s283
      %s285 = sadd.s32 %s21, 1
      %p286 = scmp.lt.s32.totalorder %s285, 4
      // Predicated region
      $region67: #{_lambda_.8} parent=27 // pred_check
        %p287 = pneg %p286
      $region68: #{_lambda_.8} parent=27 // pred_check_branch
        %289 = sbr.rel (%p287) target = $region70
      $region69: #{_lambda_.8} parent=27 // pred_region
        %s290 = ssub.s32 1, %s210
        %s291 = smul.u32 %s285, 96
        %s292 = sshra.s32 %s291, 3
        %s293 = sand.u32 %s291, 7
        %s294 = smul.u32 %s20, 54
        %s295 = sadd.s32 %s292, %s294
        %s296 = smul.addr %s295, 4
        %s297 = scalar_lea.vmem %s0, %s296
        %s298 = smul.u32 %s290, 18
        %s299 = smul.addr %s298, 4
        %s300 = scalar_lea.vmem [#allocation2], %s299
        %s301 = scalar_lea.sflag [#allocation3], %s290
        %p303 = scmp.lt.u32.totalorder 72, 8
        %p304 = pneg %p303
        // Predicated region
        $region71: #{_lambda_.8} parent=69 // pred_check
          _
        $region72: #{_lambda_.8} parent=69 // pred_check_branch
          %306 = sbr.rel (%p303) target = $region74
        $region73: #{_lambda_.8} parent=69 // pred_region
          %s322 = sand.u32 72, 7
          %p323 = scmp.eq.s32.totalorder %s322, 0
          // Predicated region
          $region86: #{_lambda_.8} parent=73 // pred_check
            %p324 = pneg %p323
          $region87: #{_lambda_.8} parent=73 // pred_check_branch
            %326 = sbr.rel (%p324) target = $region89
          $region88: #{_lambda_.8} parent=73 // pred_region
            loop: start=0, step=1, limit=1
            $region90: #{_lambda_.8} parent=88 // loop_pre_header
              _
            $region91: #{_lambda_.8} parent=88 // loop_header
              %s328 = sphi 0, %s332
              %p329 = scmp.ge.s32.totalorder %s328, 1
              %s333 = sphi %s297, %s297
              %s334 = sphi %s300, %s300
            $region92: #{_lambda_.8} parent=88 // loop_header_branch
              %331 = sbr.rel (%p329) target = $region96
            $region93: #{_lambda_.8} parent=88 // loop_body
              %v335 = vld [vmem:[%s333] sm:$0xff]
              %336 = vst [vmem:[%s334] sm:$0xff] %v335
              %v337 = vld [vmem:[%s333 + $0x8] sm:$0xff]
              %338 = vst [vmem:[%s334 + $0x8] sm:$0xff] %v337
              %v339 = vld [vmem:[%s333 + $0x10] sm:$0xff]
              %340 = vst [vmem:[%s334 + $0x10] sm:$0xff] %v339
              %v341 = vld [vmem:[%s333 + $0x18] sm:$0xff]
              %342 = vst [vmem:[%s334 + $0x18] sm:$0xff] %v341
              %v343 = vld [vmem:[%s333 + $0x20] sm:$0xff]
              %344 = vst [vmem:[%s334 + $0x20] sm:$0xff] %v343
              %v345 = vld [vmem:[%s333 + $0x28] sm:$0xff]
              %346 = vst [vmem:[%s334 + $0x28] sm:$0xff] %v345
              %v347 = vld [vmem:[%s333 + $0x30] sm:$0xff]
              %348 = vst [vmem:[%s334 + $0x30] sm:$0xff] %v347
              %v349 = vld [vmem:[%s333 + $0x38] sm:$0xff]
              %350 = vst [vmem:[%s334 + $0x38] sm:$0xff] %v349
              %v351 = vld [vmem:[%s333 + $0x40] sm:$0xff]
              %352 = vst [vmem:[%s334 + $0x40] sm:$0xff] %v351
            $region94: #{_lambda_.8} parent=88 // loop_footer
              %s332 = sadd.s32 1, %s328
            $region95: #{_lambda_.8} parent=88 // loop_footer_branch
              %327 = sbr.rel target = $region91
            $region96: #{_lambda_.8} parent=88 // loop_exit
              _
          $region89: #{_lambda_.8} parent=73 // pred_fallthru
            _
          %p353 = pneg %p323
          // Predicated region
          $region97: #{_lambda_.8} parent=73 // pred_check
            _
          $region98: #{_lambda_.8} parent=73 // pred_check_branch
            %355 = sbr.rel (%p323) target = $region100
          $region99: #{_lambda_.8} parent=73 // pred_region
            %s356 = sand.u32 72, 7
          $region100: #{_lambda_.8} parent=73 // pred_fallthru
            _
        $region74: #{_lambda_.8} parent=69 // pred_fallthru
          _
        // Predicated region
        $region75: #{_lambda_.8} parent=69 // pred_check
          %p307 = pneg %p303
        $region76: #{_lambda_.8} parent=69 // pred_check_branch
          %309 = sbr.rel (%p307) target = $region78
        $region77: #{_lambda_.8} parent=69 // pred_region
          %s310 = sshll.u32 1, 72
          %s311 = ssub.s32 %s310, 1
          loop: start=0, step=1, limit=1
          $region79: #{_lambda_.8} parent=77 // loop_pre_header
            _
          $region80: #{_lambda_.8} parent=77 // loop_header
            %s313 = sphi 0, %s317
            %p314 = scmp.ge.s32.totalorder %s313, 1
            %s318 = sphi %s297, %s297
            %s319 = sphi %s300, %s300
          $region81: #{_lambda_.8} parent=77 // loop_header_branch
            %316 = sbr.rel (%p314) target = $region85
          $region82: #{_lambda_.8} parent=77 // loop_body
            %v320 = vld [vmem:[%s318] sm:%s311]
            %321 = vst [vmem:[%s319] sm:%s311] %v320
          $region83: #{_lambda_.8} parent=77 // loop_footer
            %s317 = sadd.s32 1, %s313
          $region84: #{_lambda_.8} parent=77 // loop_footer_branch
            %312 = sbr.rel target = $region80
          $region85: #{_lambda_.8} parent=77 // loop_exit
            _
        $region78: #{_lambda_.8} parent=69 // pred_fallthru
          _
        // Predicated region
        $region101: #{_lambda_.8} parent=69 // pred_check
          _
        $region102: #{_lambda_.8} parent=69 // pred_check_branch
          %359 = sbr.rel (0) target = $region104
        $region103: #{_lambda_.8} parent=69 // pred_region
          %360 = vsyncadd %s301, 1152
        $region104: #{_lambda_.8} parent=69 // pred_fallthru
          _
      $region70: #{_lambda_.8} parent=27 // pred_fallthru
        _
      %v361 = vld [vmem:[%s279] sm:$0xf]
      %v362 = vld [vmem:[%s279 + $0x4] sm:$0xf]
      %v363 = vld [vmem:[%s279 + $0x8] sm:$0xf]
      %v364 = vld [vmem:[%s279 + $0xc] sm:$0xf]
      %v365 = vld [vmem:[%s279 + $0x10] sm:$0xf]
      %v366 = vld [vmem:[%s279 + $0x14] sm:$0xf]
      %v367 = vld [vmem:[%s279 + $0x18] sm:$0xf]
      %v368 = vld [vmem:[%s279 + $0x1c] sm:$0xf]
      %v369 = vld [vmem:[%s279 + $0x20] sm:$0xf]
      %v370 = vld [vmem:[%s279 + $0x24] sm:$0xf]
      %v371 = vld [vmem:[%s279 + $0x28] sm:$0xf]
      %v372 = vld [vmem:[%s279 + $0x2c] sm:$0xf]
      %v373 = vld [vmem:[%s1] sm:$0xf]
      %v374 = vld [vmem:[%s1 + $0x4] sm:$0xf]
      %v375 = vld [vmem:[%s1 + $0x8] sm:$0xf]
      %v376 = vld [vmem:[%s1 + $0xc] sm:$0xf]
      %v377 = vld [vmem:[%s1 + $0x10] sm:$0xf]
      %v378 = vld [vmem:[%s1 + $0x14] sm:$0xf]
      %v379 = vld [vmem:[%s1 + $0x18] sm:$0xf]
      %v380 = vld [vmem:[%s1 + $0x1c] sm:$0xf]
      %v381 = vld [vmem:[%s1 + $0x20] sm:$0xf]
      %v382 = vld [vmem:[%s1 + $0x24] sm:$0xf]
      %v383 = vld [vmem:[%s1 + $0x28] sm:$0xf]
      %v384 = vld [vmem:[%s1 + $0x2c] sm:$0xf]
      %v385 = vld [vmem:[%s1 + $0x30] sm:$0xf]
      %v386 = vld [vmem:[%s1 + $0x34] sm:$0xf]
      %v387 = vld [vmem:[%s1 + $0x38] sm:$0xf]
      %v388 = vld [vmem:[%s1 + $0x3c] sm:$0xf]
      %v389 = vld [vmem:[%s279 + $0x30] sm:$0xf]
      %v390 = vld [vmem:[%s279 + $0x34] sm:$0xf]
      %v391 = vld [vmem:[%s279 + $0x38] sm:$0xf]
      %s392 = scalar_lea.vmem %s1, 192
      %v393 = vld [vmem:[%s392] sm:$0xf]
      %v394 = vld [vmem:[%s392 + $0x4] sm:$0xf]
      %v395 = vld [vmem:[%s392 + $0x8] sm:$0xf]
      %v396 = vld [vmem:[%s392 + $0xc] sm:$0xf]
      %v397 = vld [vmem:[%s392 + $0x10] sm:$0xf]
      %v398 = vld [vmem:[%s392 + $0x14] sm:$0xf]
      %v399 = vld [vmem:[%s392 + $0x18] sm:$0xf]
      %v400 = vld [vmem:[%s392 + $0x1c] sm:$0xf]
      %v401 = vld [vmem:[%s392 + $0x20] sm:$0xf]
      %v402 = vld [vmem:[%s392 + $0x24] sm:$0xf]
      %v403 = vld [vmem:[%s392 + $0x28] sm:$0xf]
      %v404 = vld [vmem:[%s392 + $0x2c] sm:$0xf]
      %v405 = vld [vmem:[%s392 + $0x30] sm:$0xf]
      %v406 = vld [vmem:[%s392 + $0x34] sm:$0xf]
      %v407 = vld [vmem:[%s392 + $0x38] sm:$0xf]
      %v408 = vld [vmem:[%s392 + $0x3c] sm:$0xf]
      %v421 = vunpack.c.l.b16 %v364
      %v422 = vunpack.c.l.b16 %v365
      %v423 = vunpack.c.l.b16 %v366
      %v424 = vunpack.c.l.b16 %v367
      %v425 = vunpack.c.l.b16 %v368
      %v426 = vunpack.c.l.b16 %v369
      %v427 = vunpack.c.l.b16 %v370
      %v428 = vunpack.c.l.b16 %v371
      %v429 = vunpack.c.l.b16 %v372
      %v430 = vunpack.c.l.b16 %v389
      %v431 = vunpack.c.l.b16 %v390
      %v432 = vunpack.c.l.b16 %v391
      %v433 = vpack.c.b16 %v422, %v421
      %v434 = vpack.c.b16 %v424, %v423
      %v435 = vpack.c.b16 %v426, %v425
      %v436 = vpack.c.b16 %v428, %v427
      %v437 = vpack.c.b16 %v430, %v429
      %v438 = vpack.c.b16 %v432, %v431
      %v461 = vunpack.c.l.b16 %v393
      %v462 = vunpack.c.l.b16 %v394
      %v463 = vunpack.c.l.b16 %v395
      %v464 = vunpack.c.l.b16 %v396
      %v465 = vunpack.c.l.b16 %v397
      %v466 = vunpack.c.l.b16 %v398
      %v467 = vunpack.c.l.b16 %v399
      %v468 = vunpack.c.l.b16 %v400
      %v469 = vunpack.c.l.b16 %v401
      %v470 = vunpack.c.l.b16 %v402
      %v471 = vunpack.c.l.b16 %v403
      %v472 = vunpack.c.l.b16 %v404
      %v473 = vunpack.c.l.b16 %v405
      %v474 = vunpack.c.l.b16 %v406
      %v475 = vunpack.c.l.b16 %v407
      %v476 = vunpack.c.l.b16 %v408
      %v477 = vpack.c.b16 %v462, %v461
      %v478 = vpack.c.b16 %v464, %v463
      %v479 = vpack.c.b16 %v466, %v465
      %v480 = vpack.c.b16 %v468, %v467
      %v481 = vpack.c.b16 %v470, %v469
      %v482 = vpack.c.b16 %v472, %v471
      %v483 = vpack.c.b16 %v474, %v473
      %v484 = vpack.c.b16 %v476, %v475
      %493 = vmatprep.subr.bf16.mxu0 0
      %494 = vmatpush1.bf16.msra.mxu0 %v484
      %495 = vmatprep.subr.bf16.mxu0 0
      %496 = vmatpush1.bf16.msra.mxu0 %v483
      %497 = vmatprep.subr.bf16.mxu0 0
      %498 = vmatpush1.bf16.msra.mxu0 %v482
      %499 = vmatprep.subr.bf16.mxu0 0
      %500 = vmatpush1.bf16.msra.mxu0 %v481
      %501 = vmatprep.subr.bf16.mxu0 0
      %502 = vmatpush1.bf16.msra.mxu0 %v480
      %503 = vmatprep.subr.bf16.mxu0 0
      %504 = vmatpush1.bf16.msra.mxu0 %v479
      %505 = vmatprep.subr.bf16.mxu0 0
      %506 = vmatpush1.bf16.msra.mxu0 %v478
      %507 = vmatprep.subr.bf16.mxu0 0
      %508 = vmatpush1.bf16.msra.mxu0 %v477
      %509 = vmatprep.subr.bf16.mxu0 0
      %510 = vmatpush2.bf16.msra.mxu0 0
      %511 = vmatprep.subr.bf16.mxu0 0
      %512 = vmatpush2.bf16.msra.mxu0 0
      %513 = vmatprep.subr.bf16.mxu0 0
      %514 = vmatpush2.bf16.msra.mxu0 0
      %515 = vmatprep.subr.bf16.mxu0 0
      %516 = vmatpush2.bf16.msra.mxu0 0
      %517 = vmatprep.subr.bf16.mxu0 0
      %518 = vmatpush2.bf16.msra.mxu0 0
      %519 = vmatprep.subr.bf16.mxu0 0
      %520 = vmatpush2.bf16.msra.mxu0 0
      %521 = vmatprep.subr.bf16.mxu0 0
      %522 = vmatpush2.bf16.msra.mxu0 0
      %523 = vmatprep.subr.bf16.mxu0 0
      %524 = vmatpush2.bf16.msra.mxu0 0
      %525 = vmatprep.mubr.bf16.mxu0 0
      %526 = vmatmul.mubr.bf16.gmra.mxu0 %v433
      %v527 = vpop.f32.mrf.mxu0
      %v528 = vadd.f32 0.0, %v527
      %v529 = vpop.f32.mrf.mxu0
      %v530 = vpop.f32.mrf.mxu0
      %v531 = vadd.f32 0.0, %v530
      %v532 = vpop.f32.mrf.mxu0
      %533 = vmatprep.mubr.bf16.mxu0 0
      %534 = vmatmul.mubr.bf16.gmra.mxu0 %v434
      %v535 = vpop.f32.mrf.mxu0
      %v536 = vadd.f32 0.0, %v535
      %v537 = vpop.f32.mrf.mxu0
      %v538 = vpop.f32.mrf.mxu0
      %v539 = vadd.f32 0.0, %v538
      %v540 = vpop.f32.mrf.mxu0
      %541 = vmatprep.mubr.bf16.mxu0 0
      %542 = vmatmul.mubr.bf16.gmra.mxu0 %v435
      %v543 = vpop.f32.mrf.mxu0
      %v544 = vadd.f32 0.0, %v543
      %v545 = vpop.f32.mrf.mxu0
      %v546 = vpop.f32.mrf.mxu0
      %v547 = vadd.f32 0.0, %v546
      %v548 = vpop.f32.mrf.mxu0
      %549 = vmatprep.mubr.bf16.mxu0 0
      %550 = vmatmul.mubr.bf16.gmra.mxu0 %v436
      %v551 = vpop.f32.mrf.mxu0
      %v552 = vadd.f32 0.0, %v551
      %v553 = vpop.f32.mrf.mxu0
      %v554 = vpop.f32.mrf.mxu0
      %v555 = vadd.f32 0.0, %v554
      %v556 = vpop.f32.mrf.mxu0
      %557 = vmatprep.mubr.bf16.mxu0 0
      %558 = vmatmul.mubr.bf16.gmra.mxu0 %v437
      %v559 = vpop.f32.mrf.mxu0
      %v560 = vadd.f32 0.0, %v559
      %v561 = vpop.f32.mrf.mxu0
      %v562 = vpop.f32.mrf.mxu0
      %v563 = vadd.f32 0.0, %v562
      %v564 = vpop.f32.mrf.mxu0
      %565 = vmatprep.mubr.bf16.mxu0 0
      %566 = vmatmul.mubr.bf16.gmra.mxu0 %v438
      %v567 = vpop.f32.mrf.mxu0
      %v568 = vadd.f32 0.0, %v567
      %v569 = vpop.f32.mrf.mxu0
      %v570 = vpop.f32.mrf.mxu0
      %v571 = vadd.f32 0.0, %v570
      %v572 = vpop.f32.mrf.mxu0
      %573 = vdwg.mxu0
      %v577 = vunpack.c.l.b16 %v361
      %v578 = vunpack.c.l.b16 %v362
      %v579 = vunpack.c.l.b16 %v363
      %v580 = vpack.c.b16 %v578, %v577
      %v581 = vpack.c.b16 %v421, %v579
      %v582 = vpack.c.b16 %v423, %v422
      %v583 = vpack.c.b16 %v425, %v424
      %v584 = vpack.c.b16 %v427, %v426
      %v585 = vpack.c.b16 %v429, %v428
      %v608 = vunpack.c.l.b16 %v373
      %v609 = vunpack.c.l.b16 %v374
      %v610 = vunpack.c.l.b16 %v375
      %v611 = vunpack.c.l.b16 %v376
      %v612 = vunpack.c.l.b16 %v377
      %v613 = vunpack.c.l.b16 %v378
      %v614 = vunpack.c.l.b16 %v379
      %v615 = vunpack.c.l.b16 %v380
      %v616 = vunpack.c.l.b16 %v381
      %v617 = vunpack.c.l.b16 %v382
      %v618 = vunpack.c.l.b16 %v383
      %v619 = vunpack.c.l.b16 %v384
      %v620 = vunpack.c.l.b16 %v385
      %v621 = vunpack.c.l.b16 %v386
      %v622 = vunpack.c.l.b16 %v387
      %v623 = vunpack.c.l.b16 %v388
      %v624 = vpack.c.b16 %v609, %v608
      %v625 = vpack.c.b16 %v611, %v610
      %v626 = vpack.c.b16 %v613, %v612
      %v627 = vpack.c.b16 %v615, %v614
      %v628 = vpack.c.b16 %v617, %v616
      %v629 = vpack.c.b16 %v619, %v618
      %v630 = vpack.c.b16 %v621, %v620
      %v631 = vpack.c.b16 %v623, %v622
      %640 = vmatprep.subr.bf16.mxu0 0
      %641 = vmatpush1.bf16.msra.mxu0 %v631
      %642 = vmatprep.subr.bf16.mxu0 0
      %643 = vmatpush1.bf16.msra.mxu0 %v630
      %644 = vmatprep.subr.bf16.mxu0 0
      %645 = vmatpush1.bf16.msra.mxu0 %v629
      %646 = vmatprep.subr.bf16.mxu0 0
      %647 = vmatpush1.bf16.msra.mxu0 %v628
      %648 = vmatprep.subr.bf16.mxu0 0
      %649 = vmatpush1.bf16.msra.mxu0 %v627
      %650 = vmatprep.subr.bf16.mxu0 0
      %651 = vmatpush1.bf16.msra.mxu0 %v626
      %652 = vmatprep.subr.bf16.mxu0 0
      %653 = vmatpush1.bf16.msra.mxu0 %v625
      %654 = vmatprep.subr.bf16.mxu0 0
      %655 = vmatpush1.bf16.msra.mxu0 %v624
      %656 = vmatprep.subr.bf16.mxu0 0
      %657 = vmatpush2.bf16.msra.mxu0 0
      %658 = vmatprep.subr.bf16.mxu0 0
      %659 = vmatpush2.bf16.msra.mxu0 0
      %660 = vmatprep.subr.bf16.mxu0 0
      %661 = vmatpush2.bf16.msra.mxu0 0
      %662 = vmatprep.subr.bf16.mxu0 0
      %663 = vmatpush2.bf16.msra.mxu0 0
      %664 = vmatprep.subr.bf16.mxu0 0
      %665 = vmatpush2.bf16.msra.mxu0 0
      %666 = vmatprep.subr.bf16.mxu0 0
      %667 = vmatpush2.bf16.msra.mxu0 0
      %668 = vmatprep.subr.bf16.mxu0 0
      %669 = vmatpush2.bf16.msra.mxu0 0
      %670 = vmatprep.subr.bf16.mxu0 0
      %671 = vmatpush2.bf16.msra.mxu0 0
      %672 = vmatprep.mubr.bf16.mxu0 0
      %673 = vmatmul.mubr.bf16.gmra.mxu0 %v580
      %v674 = vpop.f32.mrf.mxu0
      %v675 = vadd.f32 %v528, %v674
      %v676 = vpop.f32.mrf.mxu0
      %v677 = vpop.f32.mrf.mxu0
      %v678 = vadd.f32 %v531, %v677
      %v679 = vpop.f32.mrf.mxu0
      %680 = vmatprep.mubr.bf16.mxu0 0
      %681 = vmatmul.mubr.bf16.gmra.mxu0 %v581
      %v682 = vpop.f32.mrf.mxu0
      %v683 = vadd.f32 %v536, %v682
      %v684 = vpop.f32.mrf.mxu0
      %v685 = vpop.f32.mrf.mxu0
      %v686 = vadd.f32 %v539, %v685
      %v687 = vpop.f32.mrf.mxu0
      %688 = vmatprep.mubr.bf16.mxu0 0
      %689 = vmatmul.mubr.bf16.gmra.mxu0 %v582
      %v690 = vpop.f32.mrf.mxu0
      %v691 = vadd.f32 %v544, %v690
      %v692 = vpop.f32.mrf.mxu0
      %v693 = vpop.f32.mrf.mxu0
      %v694 = vadd.f32 %v547, %v693
      %v695 = vpop.f32.mrf.mxu0
      %696 = vmatprep.mubr.bf16.mxu0 0
      %697 = vmatmul.mubr.bf16.gmra.mxu0 %v583
      %v698 = vpop.f32.mrf.mxu0
      %v699 = vadd.f32 %v552, %v698
      %v700 = vpop.f32.mrf.mxu0
      %v701 = vpop.f32.mrf.mxu0
      %v702 = vadd.f32 %v555, %v701
      %v703 = vpop.f32.mrf.mxu0
      %704 = vmatprep.mubr.bf16.mxu0 0
      %705 = vmatmul.mubr.bf16.gmra.mxu0 %v584
      %v706 = vpop.f32.mrf.mxu0
      %v707 = vadd.f32 %v560, %v706
      %v708 = vpop.f32.mrf.mxu0
      %v709 = vpop.f32.mrf.mxu0
      %v710 = vadd.f32 %v563, %v709
      %v711 = vpop.f32.mrf.mxu0
      %712 = vmatprep.mubr.bf16.mxu0 0
      %713 = vmatmul.mubr.bf16.gmra.mxu0 %v585
      %v714 = vpop.f32.mrf.mxu0
      %v715 = vadd.f32 %v568, %v714
      %v716 = vpop.f32.mrf.mxu0
      %v717 = vpop.f32.mrf.mxu0
      %v718 = vadd.f32 %v571, %v717
      %v719 = vpop.f32.mrf.mxu0
      %720 = vdwg.mxu0
      %v721 = vld [vmem:[%s279 + $0x18] sm:$0xf]
      %v722 = vld [vmem:[%s279 + $0x1c] sm:$0xf]
      %v723 = vld [vmem:[%s279 + $0x20] sm:$0xf]
      %v724 = vld [vmem:[%s279 + $0x24] sm:$0xf]
      %v725 = vld [vmem:[%s279 + $0x28] sm:$0xf]
      %v726 = vld [vmem:[%s279 + $0x2c] sm:$0xf]
      %v727 = vld [vmem:[%s279 + $0x30] sm:$0xf]
      %v728 = vld [vmem:[%s279 + $0x34] sm:$0xf]
      %v729 = vld [vmem:[%s279 + $0x38] sm:$0xf]
      %v730 = vld [vmem:[%s279 + $0x3c] sm:$0xf]
      %v731 = vld [vmem:[%s279 + $0x40] sm:$0xf]
      %v732 = vld [vmem:[%s279 + $0x44] sm:$0xf]
      %s733 = scalar_lea.vmem %s1, 384
      %v734 = vld [vmem:[%s733] sm:$0xf]
      %v735 = vld [vmem:[%s733 + $0x4] sm:$0xf]
      %v736 = vld [vmem:[%s733 + $0x8] sm:$0xf]
      %v737 = vld [vmem:[%s733 + $0xc] sm:$0xf]
      %v738 = vld [vmem:[%s733 + $0x10] sm:$0xf]
      %v739 = vld [vmem:[%s733 + $0x14] sm:$0xf]
      %v740 = vld [vmem:[%s733 + $0x18] sm:$0xf]
      %v741 = vld [vmem:[%s733 + $0x1c] sm:$0xf]
      %v742 = vld [vmem:[%s733 + $0x20] sm:$0xf]
      %v743 = vld [vmem:[%s733 + $0x24] sm:$0xf]
      %v744 = vld [vmem:[%s733 + $0x28] sm:$0xf]
      %v745 = vld [vmem:[%s733 + $0x2c] sm:$0xf]
      %v746 = vld [vmem:[%s733 + $0x30] sm:$0xf]
      %v747 = vld [vmem:[%s733 + $0x34] sm:$0xf]
      %v748 = vld [vmem:[%s733 + $0x38] sm:$0xf]
      %v749 = vld [vmem:[%s733 + $0x3c] sm:$0xf]
      %v762 = vunpack.c.l.b16 %v721
      %v763 = vunpack.c.l.b16 %v722
      %v764 = vunpack.c.l.b16 %v723
      %v765 = vunpack.c.l.b16 %v724
      %v766 = vunpack.c.l.b16 %v725
      %v767 = vunpack.c.l.b16 %v726
      %v768 = vunpack.c.l.b16 %v727
      %v769 = vunpack.c.l.b16 %v728
      %v770 = vunpack.c.l.b16 %v729
      %v771 = vunpack.c.l.b16 %v730
      %v772 = vunpack.c.l.b16 %v731
      %v773 = vunpack.c.l.b16 %v732
      %v774 = vpack.c.b16 %v763, %v762
      %v775 = vpack.c.b16 %v765, %v764
      %v776 = vpack.c.b16 %v767, %v766
      %v777 = vpack.c.b16 %v769, %v768
      %v778 = vpack.c.b16 %v771, %v770
      %v779 = vpack.c.b16 %v773, %v772
      %v802 = vunpack.c.l.b16 %v734
      %v803 = vunpack.c.l.b16 %v735
      %v804 = vunpack.c.l.b16 %v736
      %v805 = vunpack.c.l.b16 %v737
      %v806 = vunpack.c.l.b16 %v738
      %v807 = vunpack.c.l.b16 %v739
      %v808 = vunpack.c.l.b16 %v740
      %v809 = vunpack.c.l.b16 %v741
      %v810 = vunpack.c.l.b16 %v742
      %v811 = vunpack.c.l.b16 %v743
      %v812 = vunpack.c.l.b16 %v744
      %v813 = vunpack.c.l.b16 %v745
      %v814 = vunpack.c.l.b16 %v746
      %v815 = vunpack.c.l.b16 %v747
      %v816 = vunpack.c.l.b16 %v748
      %v817 = vunpack.c.l.b16 %v749
      %v818 = vpack.c.b16 %v803, %v802
      %v819 = vpack.c.b16 %v805, %v804
      %v820 = vpack.c.b16 %v807, %v806
      %v821 = vpack.c.b16 %v809, %v808
      %v822 = vpack.c.b16 %v811, %v810
      %v823 = vpack.c.b16 %v813, %v812
      %v824 = vpack.c.b16 %v815, %v814
      %v825 = vpack.c.b16 %v817, %v816
      %834 = vmatprep.subr.bf16.mxu0 0
      %835 = vmatpush1.bf16.msra.mxu0 %v825
      %836 = vmatprep.subr.bf16.mxu0 0
      %837 = vmatpush1.bf16.msra.mxu0 %v824
      %838 = vmatprep.subr.bf16.mxu0 0
      %839 = vmatpush1.bf16.msra.mxu0 %v823
      %840 = vmatprep.subr.bf16.mxu0 0
      %841 = vmatpush1.bf16.msra.mxu0 %v822
      %842 = vmatprep.subr.bf16.mxu0 0
      %843 = vmatpush1.bf16.msra.mxu0 %v821
      %844 = vmatprep.subr.bf16.mxu0 0
      %845 = vmatpush1.bf16.msra.mxu0 %v820
      %846 = vmatprep.subr.bf16.mxu0 0
      %847 = vmatpush1.bf16.msra.mxu0 %v819
      %848 = vmatprep.subr.bf16.mxu0 0
      %849 = vmatpush1.bf16.msra.mxu0 %v818
      %850 = vmatprep.subr.bf16.mxu0 0
      %851 = vmatpush2.bf16.msra.mxu0 0
      %852 = vmatprep.subr.bf16.mxu0 0
      %853 = vmatpush2.bf16.msra.mxu0 0
      %854 = vmatprep.subr.bf16.mxu0 0
      %855 = vmatpush2.bf16.msra.mxu0 0
      %856 = vmatprep.subr.bf16.mxu0 0
      %857 = vmatpush2.bf16.msra.mxu0 0
      %858 = vmatprep.subr.bf16.mxu0 0
      %859 = vmatpush2.bf16.msra.mxu0 0
      %860 = vmatprep.subr.bf16.mxu0 0
      %861 = vmatpush2.bf16.msra.mxu0 0
      %862 = vmatprep.subr.bf16.mxu0 0
      %863 = vmatpush2.bf16.msra.mxu0 0
      %864 = vmatprep.subr.bf16.mxu0 0
      %865 = vmatpush2.bf16.msra.mxu0 0
      %866 = vmatprep.mubr.bf16.mxu0 0
      %867 = vmatmul.mubr.bf16.gmra.mxu0 %v774
      %v868 = vpop.f32.mrf.mxu0
      %v869 = vadd.f32 0.0, %v868
      %v870 = vpop.f32.mrf.mxu0
      %v871 = vpop.f32.mrf.mxu0
      %v872 = vadd.f32 0.0, %v871
      %v873 = vpop.f32.mrf.mxu0
      %874 = vmatprep.mubr.bf16.mxu0 0
      %875 = vmatmul.mubr.bf16.gmra.mxu0 %v775
      %v876 = vpop.f32.mrf.mxu0
      %v877 = vadd.f32 0.0, %v876
      %v878 = vpop.f32.mrf.mxu0
      %v879 = vpop.f32.mrf.mxu0
      %v880 = vadd.f32 0.0, %v879
      %v881 = vpop.f32.mrf.mxu0
      %882 = vmatprep.mubr.bf16.mxu0 0
      %883 = vmatmul.mubr.bf16.gmra.mxu0 %v776
      %v884 = vpop.f32.mrf.mxu0
      %v885 = vadd.f32 0.0, %v884
      %v886 = vpop.f32.mrf.mxu0
      %v887 = vpop.f32.mrf.mxu0
      %v888 = vadd.f32 0.0, %v887
      %v889 = vpop.f32.mrf.mxu0
      %890 = vmatprep.mubr.bf16.mxu0 0
      %891 = vmatmul.mubr.bf16.gmra.mxu0 %v777
      %v892 = vpop.f32.mrf.mxu0
      %v893 = vadd.f32 0.0, %v892
      %v894 = vpop.f32.mrf.mxu0
      %v895 = vpop.f32.mrf.mxu0
      %v896 = vadd.f32 0.0, %v895
      %v897 = vpop.f32.mrf.mxu0
      %898 = vmatprep.mubr.bf16.mxu0 0
      %899 = vmatmul.mubr.bf16.gmra.mxu0 %v778
      %v900 = vpop.f32.mrf.mxu0
      %v901 = vadd.f32 0.0, %v900
      %v902 = vpop.f32.mrf.mxu0
      %v903 = vpop.f32.mrf.mxu0
      %v904 = vadd.f32 0.0, %v903
      %v905 = vpop.f32.mrf.mxu0
      %906 = vmatprep.mubr.bf16.mxu0 0
      %907 = vmatmul.mubr.bf16.gmra.mxu0 %v779
      %v908 = vpop.f32.mrf.mxu0
      %v909 = vadd.f32 0.0, %v908
      %v910 = vpop.f32.mrf.mxu0
      %v911 = vpop.f32.mrf.mxu0
      %v912 = vadd.f32 0.0, %v911
      %v913 = vpop.f32.mrf.mxu0
      %914 = vdwg.mxu0
      %v915 = vadd.f32 %v675, %v869
      %v916 = vadd.f32 %v678, %v872
      %v917 = vadd.f32 %v683, %v877
      %v918 = vadd.f32 %v686, %v880
      %v919 = vadd.f32 %v691, %v885
      %v920 = vadd.f32 %v694, %v888
      %v921 = vadd.f32 %v699, %v893
      %v922 = vadd.f32 %v702, %v896
      %v923 = vadd.f32 %v707, %v901
      %v924 = vadd.f32 %v710, %v904
      %v925 = vadd.f32 %v715, %v909
      %v926 = vadd.f32 %v718, %v912
      %s927 = scalar_lea.vmem %s1, 64
      %v928 = vld [vmem:[%s927] sm:$0xf]
      %v929 = vld [vmem:[%s927 + $0x4] sm:$0xf]
      %v930 = vld [vmem:[%s927 + $0x8] sm:$0xf]
      %v931 = vld [vmem:[%s927 + $0xc] sm:$0xf]
      %v932 = vld [vmem:[%s927 + $0x10] sm:$0xf]
      %v933 = vld [vmem:[%s927 + $0x14] sm:$0xf]
      %v934 = vld [vmem:[%s927 + $0x18] sm:$0xf]
      %v935 = vld [vmem:[%s927 + $0x1c] sm:$0xf]
      %v936 = vld [vmem:[%s927 + $0x20] sm:$0xf]
      %v937 = vld [vmem:[%s927 + $0x24] sm:$0xf]
      %v938 = vld [vmem:[%s927 + $0x28] sm:$0xf]
      %v939 = vld [vmem:[%s927 + $0x2c] sm:$0xf]
      %v940 = vld [vmem:[%s927 + $0x30] sm:$0xf]
      %v941 = vld [vmem:[%s927 + $0x34] sm:$0xf]
      %v942 = vld [vmem:[%s927 + $0x38] sm:$0xf]
      %v943 = vld [vmem:[%s927 + $0x3c] sm:$0xf]
      %s944 = scalar_lea.vmem %s1, 256
      %v945 = vld [vmem:[%s944] sm:$0xf]
      %v946 = vld [vmem:[%s944 + $0x4] sm:$0xf]
      %v947 = vld [vmem:[%s944 + $0x8] sm:$0xf]
      %v948 = vld [vmem:[%s944 + $0xc] sm:$0xf]
      %v949 = vld [vmem:[%s944 + $0x10] sm:$0xf]
      %v950 = vld [vmem:[%s944 + $0x14] sm:$0xf]
      %v951 = vld [vmem:[%s944 + $0x18] sm:$0xf]
      %v952 = vld [vmem:[%s944 + $0x1c] sm:$0xf]
      %v953 = vld [vmem:[%s944 + $0x20] sm:$0xf]
      %v954 = vld [vmem:[%s944 + $0x24] sm:$0xf]
      %v955 = vld [vmem:[%s944 + $0x28] sm:$0xf]
      %v956 = vld [vmem:[%s944 + $0x2c] sm:$0xf]
      %v957 = vld [vmem:[%s944 + $0x30] sm:$0xf]
      %v958 = vld [vmem:[%s944 + $0x34] sm:$0xf]
      %v959 = vld [vmem:[%s944 + $0x38] sm:$0xf]
      %v960 = vld [vmem:[%s944 + $0x3c] sm:$0xf]
      %v977 = vunpack.c.l.b16 %v945
      %v978 = vunpack.c.l.b16 %v946
      %v979 = vunpack.c.l.b16 %v947
      %v980 = vunpack.c.l.b16 %v948
      %v981 = vunpack.c.l.b16 %v949
      %v982 = vunpack.c.l.b16 %v950
      %v983 = vunpack.c.l.b16 %v951
      %v984 = vunpack.c.l.b16 %v952
      %v985 = vunpack.c.l.b16 %v953
      %v986 = vunpack.c.l.b16 %v954
      %v987 = vunpack.c.l.b16 %v955
      %v988 = vunpack.c.l.b16 %v956
      %v989 = vunpack.c.l.b16 %v957
      %v990 = vunpack.c.l.b16 %v958
      %v991 = vunpack.c.l.b16 %v959
      %v992 = vunpack.c.l.b16 %v960
      %v993 = vpack.c.b16 %v978, %v977
      %v994 = vpack.c.b16 %v980, %v979
      %v995 = vpack.c.b16 %v982, %v981
      %v996 = vpack.c.b16 %v984, %v983
      %v997 = vpack.c.b16 %v986, %v985
      %v998 = vpack.c.b16 %v988, %v987
      %v999 = vpack.c.b16 %v990, %v989
      %v1000 = vpack.c.b16 %v992, %v991
      %1009 = vmatprep.subr.bf16.mxu0 0
      %1010 = vmatpush1.bf16.msra.mxu0 %v1000
      %1011 = vmatprep.subr.bf16.mxu0 0
      %1012 = vmatpush1.bf16.msra.mxu0 %v999
      %1013 = vmatprep.subr.bf16.mxu0 0
      %1014 = vmatpush1.bf16.msra.mxu0 %v998
      %1015 = vmatprep.subr.bf16.mxu0 0
      %1016 = vmatpush1.bf16.msra.mxu0 %v997
      %1017 = vmatprep.subr.bf16.mxu0 0
      %1018 = vmatpush1.bf16.msra.mxu0 %v996
      %1019 = vmatprep.subr.bf16.mxu0 0
      %1020 = vmatpush1.bf16.msra.mxu0 %v995
      %1021 = vmatprep.subr.bf16.mxu0 0
      %1022 = vmatpush1.bf16.msra.mxu0 %v994
      %1023 = vmatprep.subr.bf16.mxu0 0
      %1024 = vmatpush1.bf16.msra.mxu0 %v993
      %1025 = vmatprep.subr.bf16.mxu0 0
      %1026 = vmatpush2.bf16.msra.mxu0 0
      %1027 = vmatprep.subr.bf16.mxu0 0
      %1028 = vmatpush2.bf16.msra.mxu0 0
      %1029 = vmatprep.subr.bf16.mxu0 0
      %1030 = vmatpush2.bf16.msra.mxu0 0
      %1031 = vmatprep.subr.bf16.mxu0 0
      %1032 = vmatpush2.bf16.msra.mxu0 0
      %1033 = vmatprep.subr.bf16.mxu0 0
      %1034 = vmatpush2.bf16.msra.mxu0 0
      %1035 = vmatprep.subr.bf16.mxu0 0
      %1036 = vmatpush2.bf16.msra.mxu0 0
      %1037 = vmatprep.subr.bf16.mxu0 0
      %1038 = vmatpush2.bf16.msra.mxu0 0
      %1039 = vmatprep.subr.bf16.mxu0 0
      %1040 = vmatpush2.bf16.msra.mxu0 0
      %1041 = vmatprep.mubr.bf16.mxu0 0
      %1042 = vmatmul.mubr.bf16.gmra.mxu0 %v433
      %v1043 = vpop.f32.mrf.mxu0
      %v1044 = vadd.f32 0.0, %v1043
      %v1045 = vpop.f32.mrf.mxu0
      %v1046 = vpop.f32.mrf.mxu0
      %v1047 = vadd.f32 0.0, %v1046
      %v1048 = vpop.f32.mrf.mxu0
      %1049 = vmatprep.mubr.bf16.mxu0 0
      %1050 = vmatmul.mubr.bf16.gmra.mxu0 %v434
      %v1051 = vpop.f32.mrf.mxu0
      %v1052 = vadd.f32 0.0, %v1051
      %v1053 = vpop.f32.mrf.mxu0
      %v1054 = vpop.f32.mrf.mxu0
      %v1055 = vadd.f32 0.0, %v1054
      %v1056 = vpop.f32.mrf.mxu0
      %1057 = vmatprep.mubr.bf16.mxu0 0
      %1058 = vmatmul.mubr.bf16.gmra.mxu0 %v435
      %v1059 = vpop.f32.mrf.mxu0
      %v1060 = vadd.f32 0.0, %v1059
      %v1061 = vpop.f32.mrf.mxu0
      %v1062 = vpop.f32.mrf.mxu0
      %v1063 = vadd.f32 0.0, %v1062
      %v1064 = vpop.f32.mrf.mxu0
      %1065 = vmatprep.mubr.bf16.mxu0 0
      %1066 = vmatmul.mubr.bf16.gmra.mxu0 %v436
      %v1067 = vpop.f32.mrf.mxu0
      %v1068 = vadd.f32 0.0, %v1067
      %v1069 = vpop.f32.mrf.mxu0
      %v1070 = vpop.f32.mrf.mxu0
      %v1071 = vadd.f32 0.0, %v1070
      %v1072 = vpop.f32.mrf.mxu0
      %1073 = vmatprep.mubr.bf16.mxu0 0
      %1074 = vmatmul.mubr.bf16.gmra.mxu0 %v437
      %v1075 = vpop.f32.mrf.mxu0
      %v1076 = vadd.f32 0.0, %v1075
      %v1077 = vpop.f32.mrf.mxu0
      %v1078 = vpop.f32.mrf.mxu0
      %v1079 = vadd.f32 0.0, %v1078
      %v1080 = vpop.f32.mrf.mxu0
      %1081 = vmatprep.mubr.bf16.mxu0 0
      %1082 = vmatmul.mubr.bf16.gmra.mxu0 %v438
      %v1083 = vpop.f32.mrf.mxu0
      %v1084 = vadd.f32 0.0, %v1083
      %v1085 = vpop.f32.mrf.mxu0
      %v1086 = vpop.f32.mrf.mxu0
      %v1087 = vadd.f32 0.0, %v1086
      %v1088 = vpop.f32.mrf.mxu0
      %1089 = vdwg.mxu0
      %v1106 = vunpack.c.l.b16 %v928
      %v1107 = vunpack.c.l.b16 %v929
      %v1108 = vunpack.c.l.b16 %v930
      %v1109 = vunpack.c.l.b16 %v931
      %v1110 = vunpack.c.l.b16 %v932
      %v1111 = vunpack.c.l.b16 %v933
      %v1112 = vunpack.c.l.b16 %v934
      %v1113 = vunpack.c.l.b16 %v935
      %v1114 = vunpack.c.l.b16 %v936
      %v1115 = vunpack.c.l.b16 %v937
      %v1116 = vunpack.c.l.b16 %v938
      %v1117 = vunpack.c.l.b16 %v939
      %v1118 = vunpack.c.l.b16 %v940
      %v1119 = vunpack.c.l.b16 %v941
      %v1120 = vunpack.c.l.b16 %v942
      %v1121 = vunpack.c.l.b16 %v943
      %v1122 = vpack.c.b16 %v1107, %v1106
      %v1123 = vpack.c.b16 %v1109, %v1108
      %v1124 = vpack.c.b16 %v1111, %v1110
      %v1125 = vpack.c.b16 %v1113, %v1112
      %v1126 = vpack.c.b16 %v1115, %v1114
      %v1127 = vpack.c.b16 %v1117, %v1116
      %v1128 = vpack.c.b16 %v1119, %v1118
      %v1129 = vpack.c.b16 %v1121, %v1120
      %1138 = vmatprep.subr.bf16.mxu0 0
      %1139 = vmatpush1.bf16.msra.mxu0 %v1129
      %1140 = vmatprep.subr.bf16.mxu0 0
      %1141 = vmatpush1.bf16.msra.mxu0 %v1128
      %1142 = vmatprep.subr.bf16.mxu0 0
      %1143 = vmatpush1.bf16.msra.mxu0 %v1127
      %1144 = vmatprep.subr.bf16.mxu0 0
      %1145 = vmatpush1.bf16.msra.mxu0 %v1126
      %1146 = vmatprep.subr.bf16.mxu0 0
      %1147 = vmatpush1.bf16.msra.mxu0 %v1125
      %1148 = vmatprep.subr.bf16.mxu0 0
      %1149 = vmatpush1.bf16.msra.mxu0 %v1124
      %1150 = vmatprep.subr.bf16.mxu0 0
      %1151 = vmatpush1.bf16.msra.mxu0 %v1123
      %1152 = vmatprep.subr.bf16.mxu0 0
      %1153 = vmatpush1.bf16.msra.mxu0 %v1122
      %1154 = vmatprep.subr.bf16.mxu0 0
      %1155 = vmatpush2.bf16.msra.mxu0 0
      %1156 = vmatprep.subr.bf16.mxu0 0
      %1157 = vmatpush2.bf16.msra.mxu0 0
      %1158 = vmatprep.subr.bf16.mxu0 0
      %1159 = vmatpush2.bf16.msra.mxu0 0
      %1160 = vmatprep.subr.bf16.mxu0 0
      %1161 = vmatpush2.bf16.msra.mxu0 0
      %1162 = vmatprep.subr.bf16.mxu0 0
      %1163 = vmatpush2.bf16.msra.mxu0 0
      %1164 = vmatprep.subr.bf16.mxu0 0
      %1165 = vmatpush2.bf16.msra.mxu0 0
      %1166 = vmatprep.subr.bf16.mxu0 0
      %1167 = vmatpush2.bf16.msra.mxu0 0
      %1168 = vmatprep.subr.bf16.mxu0 0
      %1169 = vmatpush2.bf16.msra.mxu0 0
      %1170 = vmatprep.mubr.bf16.mxu0 0
      %1171 = vmatmul.mubr.bf16.gmra.mxu0 %v580
      %v1172 = vpop.f32.mrf.mxu0
      %v1173 = vadd.f32 %v1044, %v1172
      %v1174 = vpop.f32.mrf.mxu0
      %v1175 = vpop.f32.mrf.mxu0
      %v1176 = vadd.f32 %v1047, %v1175
      %v1177 = vpop.f32.mrf.mxu0
      %1178 = vmatprep.mubr.bf16.mxu0 0
      %1179 = vmatmul.mubr.bf16.gmra.mxu0 %v581
      %v1180 = vpop.f32.mrf.mxu0
      %v1181 = vadd.f32 %v1052, %v1180
      %v1182 = vpop.f32.mrf.mxu0
      %v1183 = vpop.f32.mrf.mxu0
      %v1184 = vadd.f32 %v1055, %v1183
      %v1185 = vpop.f32.mrf.mxu0
      %1186 = vmatprep.mubr.bf16.mxu0 0
      %1187 = vmatmul.mubr.bf16.gmra.mxu0 %v582
      %v1188 = vpop.f32.mrf.mxu0
      %v1189 = vadd.f32 %v1060, %v1188
      %v1190 = vpop.f32.mrf.mxu0
      %v1191 = vpop.f32.mrf.mxu0
      %v1192 = vadd.f32 %v1063, %v1191
      %v1193 = vpop.f32.mrf.mxu0
      %1194 = vmatprep.mubr.bf16.mxu0 0
      %1195 = vmatmul.mubr.bf16.gmra.mxu0 %v583
      %v1196 = vpop.f32.mrf.mxu0
      %v1197 = vadd.f32 %v1068, %v1196
      %v1198 = vpop.f32.mrf.mxu0
      %v1199 = vpop.f32.mrf.mxu0
      %v1200 = vadd.f32 %v1071, %v1199
      %v1201 = vpop.f32.mrf.mxu0
      %1202 = vmatprep.mubr.bf16.mxu0 0
      %1203 = vmatmul.mubr.bf16.gmra.mxu0 %v584
      %v1204 = vpop.f32.mrf.mxu0
      %v1205 = vadd.f32 %v1076, %v1204
      %v1206 = vpop.f32.mrf.mxu0
      %v1207 = vpop.f32.mrf.mxu0
      %v1208 = vadd.f32 %v1079, %v1207
      %v1209 = vpop.f32.mrf.mxu0
      %1210 = vmatprep.mubr.bf16.mxu0 0
      %1211 = vmatmul.mubr.bf16.gmra.mxu0 %v585
      %v1212 = vpop.f32.mrf.mxu0
      %v1213 = vadd.f32 %v1084, %v1212
      %v1214 = vpop.f32.mrf.mxu0
      %v1215 = vpop.f32.mrf.mxu0
      %v1216 = vadd.f32 %v1087, %v1215
      %v1217 = vpop.f32.mrf.mxu0
      %1218 = vdwg.mxu0
      %s1219 = scalar_lea.vmem %s1, 448
      %v1220 = vld [vmem:[%s1219] sm:$0xf]
      %v1221 = vld [vmem:[%s1219 + $0x4] sm:$0xf]
      %v1222 = vld [vmem:[%s1219 + $0x8] sm:$0xf]
      %v1223 = vld [vmem:[%s1219 + $0xc] sm:$0xf]
      %v1224 = vld [vmem:[%s1219 + $0x10] sm:$0xf]
      %v1225 = vld [vmem:[%s1219 + $0x14] sm:$0xf]
      %v1226 = vld [vmem:[%s1219 + $0x18] sm:$0xf]
      %v1227 = vld [vmem:[%s1219 + $0x1c] sm:$0xf]
      %v1228 = vld [vmem:[%s1219 + $0x20] sm:$0xf]
      %v1229 = vld [vmem:[%s1219 + $0x24] sm:$0xf]
      %v1230 = vld [vmem:[%s1219 + $0x28] sm:$0xf]
      %v1231 = vld [vmem:[%s1219 + $0x2c] sm:$0xf]
      %v1232 = vld [vmem:[%s1219 + $0x30] sm:$0xf]
      %v1233 = vld [vmem:[%s1219 + $0x34] sm:$0xf]
      %v1234 = vld [vmem:[%s1219 + $0x38] sm:$0xf]
      %v1235 = vld [vmem:[%s1219 + $0x3c] sm:$0xf]
      %v1252 = vunpack.c.l.b16 %v1220
      %v1253 = vunpack.c.l.b16 %v1221
      %v1254 = vunpack.c.l.b16 %v1222
      %v1255 = vunpack.c.l.b16 %v1223
      %v1256 = vunpack.c.l.b16 %v1224
      %v1257 = vunpack.c.l.b16 %v1225
      %v1258 = vunpack.c.l.b16 %v1226
      %v1259 = vunpack.c.l.b16 %v1227
      %v1260 = vunpack.c.l.b16 %v1228
      %v1261 = vunpack.c.l.b16 %v1229
      %v1262 = vunpack.c.l.b16 %v1230
      %v1263 = vunpack.c.l.b16 %v1231
      %v1264 = vunpack.c.l.b16 %v1232
      %v1265 = vunpack.c.l.b16 %v1233
      %v1266 = vunpack.c.l.b16 %v1234
      %v1267 = vunpack.c.l.b16 %v1235
      %v1268 = vpack.c.b16 %v1253, %v1252
      %v1269 = vpack.c.b16 %v1255, %v1254
      %v1270 = vpack.c.b16 %v1257, %v1256
      %v1271 = vpack.c.b16 %v1259, %v1258
      %v1272 = vpack.c.b16 %v1261, %v1260
      %v1273 = vpack.c.b16 %v1263, %v1262
      %v1274 = vpack.c.b16 %v1265, %v1264
      %v1275 = vpack.c.b16 %v1267, %v1266
      %1284 = vmatprep.subr.bf16.mxu0 0
      %1285 = vmatpush1.bf16.msra.mxu0 %v1275
      %1286 = vmatprep.subr.bf16.mxu0 0
      %1287 = vmatpush1.bf16.msra.mxu0 %v1274
      %1288 = vmatprep.subr.bf16.mxu0 0
      %1289 = vmatpush1.bf16.msra.mxu0 %v1273
      %1290 = vmatprep.subr.bf16.mxu0 0
      %1291 = vmatpush1.bf16.msra.mxu0 %v1272
      %1292 = vmatprep.subr.bf16.mxu0 0
      %1293 = vmatpush1.bf16.msra.mxu0 %v1271
      %1294 = vmatprep.subr.bf16.mxu0 0
      %1295 = vmatpush1.bf16.msra.mxu0 %v1270
      %1296 = vmatprep.subr.bf16.mxu0 0
      %1297 = vmatpush1.bf16.msra.mxu0 %v1269
      %1298 = vmatprep.subr.bf16.mxu0 0
      %1299 = vmatpush1.bf16.msra.mxu0 %v1268
      %1300 = vmatprep.subr.bf16.mxu0 0
      %1301 = vmatpush2.bf16.msra.mxu0 0
      %1302 = vmatprep.subr.bf16.mxu0 0
      %1303 = vmatpush2.bf16.msra.mxu0 0
      %1304 = vmatprep.subr.bf16.mxu0 0
      %1305 = vmatpush2.bf16.msra.mxu0 0
      %1306 = vmatprep.subr.bf16.mxu0 0
      %1307 = vmatpush2.bf16.msra.mxu0 0
      %1308 = vmatprep.subr.bf16.mxu0 0
      %1309 = vmatpush2.bf16.msra.mxu0 0
      %1310 = vmatprep.subr.bf16.mxu0 0
      %1311 = vmatpush2.bf16.msra.mxu0 0
      %1312 = vmatprep.subr.bf16.mxu0 0
      %1313 = vmatpush2.bf16.msra.mxu0 0
      %1314 = vmatprep.subr.bf16.mxu0 0
      %1315 = vmatpush2.bf16.msra.mxu0 0
      %1316 = vmatprep.mubr.bf16.mxu0 0
      %1317 = vmatmul.mubr.bf16.gmra.mxu0 %v774
      %v1318 = vpop.f32.mrf.mxu0
      %v1319 = vadd.f32 0.0, %v1318
      %v1320 = vpop.f32.mrf.mxu0
      %v1321 = vpop.f32.mrf.mxu0
      %v1322 = vadd.f32 0.0, %v1321
      %v1323 = vpop.f32.mrf.mxu0
      %1324 = vmatprep.mubr.bf16.mxu0 0
      %1325 = vmatmul.mubr.bf16.gmra.mxu0 %v775
      %v1326 = vpop.f32.mrf.mxu0
      %v1327 = vadd.f32 0.0, %v1326
      %v1328 = vpop.f32.mrf.mxu0
      %v1329 = vpop.f32.mrf.mxu0
      %v1330 = vadd.f32 0.0, %v1329
      %v1331 = vpop.f32.mrf.mxu0
      %1332 = vmatprep.mubr.bf16.mxu0 0
      %1333 = vmatmul.mubr.bf16.gmra.mxu0 %v776
      %v1334 = vpop.f32.mrf.mxu0
      %v1335 = vadd.f32 0.0, %v1334
      %v1336 = vpop.f32.mrf.mxu0
      %v1337 = vpop.f32.mrf.mxu0
      %v1338 = vadd.f32 0.0, %v1337
      %v1339 = vpop.f32.mrf.mxu0
      %1340 = vmatprep.mubr.bf16.mxu0 0
      %1341 = vmatmul.mubr.bf16.gmra.mxu0 %v777
      %v1342 = vpop.f32.mrf.mxu0
      %v1343 = vadd.f32 0.0, %v1342
      %v1344 = vpop.f32.mrf.mxu0
      %v1345 = vpop.f32.mrf.mxu0
      %v1346 = vadd.f32 0.0, %v1345
      %v1347 = vpop.f32.mrf.mxu0
      %1348 = vmatprep.mubr.bf16.mxu0 0
      %1349 = vmatmul.mubr.bf16.gmra.mxu0 %v778
      %v1350 = vpop.f32.mrf.mxu0
      %v1351 = vadd.f32 0.0, %v1350
      %v1352 = vpop.f32.mrf.mxu0
      %v1353 = vpop.f32.mrf.mxu0
      %v1354 = vadd.f32 0.0, %v1353
      %v1355 = vpop.f32.mrf.mxu0
      %1356 = vmatprep.mubr.bf16.mxu0 0
      %1357 = vmatmul.mubr.bf16.gmra.mxu0 %v779
      %v1358 = vpop.f32.mrf.mxu0
      %v1359 = vadd.f32 0.0, %v1358
      %v1360 = vpop.f32.mrf.mxu0
      %v1361 = vpop.f32.mrf.mxu0
      %v1362 = vadd.f32 0.0, %v1361
      %v1363 = vpop.f32.mrf.mxu0
      %1364 = vdwg.mxu0
      %v1365 = vadd.f32 %v1173, %v1319
      %v1366 = vadd.f32 %v1176, %v1322
      %v1367 = vadd.f32 %v1181, %v1327
      %v1368 = vadd.f32 %v1184, %v1330
      %v1369 = vadd.f32 %v1189, %v1335
      %v1370 = vadd.f32 %v1192, %v1338
      %v1371 = vadd.f32 %v1197, %v1343
      %v1372 = vadd.f32 %v1200, %v1346
      %v1373 = vadd.f32 %v1205, %v1351
      %v1374 = vadd.f32 %v1208, %v1354
      %v1375 = vadd.f32 %v1213, %v1359
      %v1376 = vadd.f32 %v1216, %v1362
      %vm1389 = vcmask 1046528
      %v1390 = vrot.slane %v1365, 1
      %v1391 = vrot.slane %v1366, 1
      %v1392 = vsel %vm1389, %v1390, %v1391
      %v1393 = vrot.slane %v1367, 1
      %v1394 = vsel %vm1389, %v1391, %v1393
      %v1395 = vrot.slane %v1368, 1
      %v1396 = vsel %vm1389, %v1393, %v1395
      %v1397 = vrot.slane %v1369, 1
      %v1398 = vsel %vm1389, %v1395, %v1397
      %v1399 = vrot.slane %v1370, 1
      %v1400 = vsel %vm1389, %v1397, %v1399
      %v1401 = vrot.slane %v1371, 1
      %v1402 = vsel %vm1389, %v1399, %v1401
      %v1403 = vrot.slane %v1372, 1
      %v1404 = vsel %vm1389, %v1401, %v1403
      %v1405 = vrot.slane %v1373, 1
      %v1406 = vsel %vm1389, %v1403, %v1405
      %v1407 = vrot.slane %v1374, 1
      %v1408 = vsel %vm1389, %v1405, %v1407
      %v1409 = vrot.slane %v1375, 1
      %v1410 = vsel %vm1389, %v1407, %v1409
      %v1411 = vrot.slane %v1376, 1
      %v1412 = vsel %vm1389, %v1409, %v1411
      %v1426 = vsel %vm1389, %v1411, %v1390
      %v1427 = vadd.f32 %v915, %v1392
      %v1428 = vadd.f32 %v916, %v1394
      %v1429 = vadd.f32 %v917, %v1396
      %v1430 = vadd.f32 %v918, %v1398
      %v1431 = vadd.f32 %v919, %v1400
      %v1432 = vadd.f32 %v920, %v1402
      %v1433 = vadd.f32 %v921, %v1404
      %v1434 = vadd.f32 %v922, %v1406
      %v1435 = vadd.f32 %v923, %v1408
      %v1436 = vadd.f32 %v924, %v1410
      %v1437 = vadd.f32 %v925, %v1412
      %v1438 = vadd.f32 %v926, %v1426
      %s1439 = scalar_lea.vmem %s1, 128
      %v1440 = vld [vmem:[%s1439] sm:$0xf]
      %v1441 = vld [vmem:[%s1439 + $0x4] sm:$0xf]
      %v1442 = vld [vmem:[%s1439 + $0x8] sm:$0xf]
      %v1443 = vld [vmem:[%s1439 + $0xc] sm:$0xf]
      %v1444 = vld [vmem:[%s1439 + $0x10] sm:$0xf]
      %v1445 = vld [vmem:[%s1439 + $0x14] sm:$0xf]
      %v1446 = vld [vmem:[%s1439 + $0x18] sm:$0xf]
      %v1447 = vld [vmem:[%s1439 + $0x1c] sm:$0xf]
      %v1448 = vld [vmem:[%s1439 + $0x20] sm:$0xf]
      %v1449 = vld [vmem:[%s1439 + $0x24] sm:$0xf]
      %v1450 = vld [vmem:[%s1439 + $0x28] sm:$0xf]
      %v1451 = vld [vmem:[%s1439 + $0x2c] sm:$0xf]
      %v1452 = vld [vmem:[%s1439 + $0x30] sm:$0xf]
      %v1453 = vld [vmem:[%s1439 + $0x34] sm:$0xf]
      %v1454 = vld [vmem:[%s1439 + $0x38] sm:$0xf]
      %v1455 = vld [vmem:[%s1439 + $0x3c] sm:$0xf]
      %s1456 = scalar_lea.vmem %s1, 320
      %v1457 = vld [vmem:[%s1456] sm:$0xf]
      %v1458 = vld [vmem:[%s1456 + $0x4] sm:$0xf]
      %v1459 = vld [vmem:[%s1456 + $0x8] sm:$0xf]
      %v1460 = vld [vmem:[%s1456 + $0xc] sm:$0xf]
      %v1461 = vld [vmem:[%s1456 + $0x10] sm:$0xf]
      %v1462 = vld [vmem:[%s1456 + $0x14] sm:$0xf]
      %v1463 = vld [vmem:[%s1456 + $0x18] sm:$0xf]
      %v1464 = vld [vmem:[%s1456 + $0x1c] sm:$0xf]
      %v1465 = vld [vmem:[%s1456 + $0x20] sm:$0xf]
      %v1466 = vld [vmem:[%s1456 + $0x24] sm:$0xf]
      %v1467 = vld [vmem:[%s1456 + $0x28] sm:$0xf]
      %v1468 = vld [vmem:[%s1456 + $0x2c] sm:$0xf]
      %v1469 = vld [vmem:[%s1456 + $0x30] sm:$0xf]
      %v1470 = vld [vmem:[%s1456 + $0x34] sm:$0xf]
      %v1471 = vld [vmem:[%s1456 + $0x38] sm:$0xf]
      %v1472 = vld [vmem:[%s1456 + $0x3c] sm:$0xf]
      %v1489 = vunpack.c.l.b16 %v1457
      %v1490 = vunpack.c.l.b16 %v1458
      %v1491 = vunpack.c.l.b16 %v1459
      %v1492 = vunpack.c.l.b16 %v1460
      %v1493 = vunpack.c.l.b16 %v1461
      %v1494 = vunpack.c.l.b16 %v1462
      %v1495 = vunpack.c.l.b16 %v1463
      %v1496 = vunpack.c.l.b16 %v1464
      %v1497 = vunpack.c.l.b16 %v1465
      %v1498 = vunpack.c.l.b16 %v1466
      %v1499 = vunpack.c.l.b16 %v1467
      %v1500 = vunpack.c.l.b16 %v1468
      %v1501 = vunpack.c.l.b16 %v1469
      %v1502 = vunpack.c.l.b16 %v1470
      %v1503 = vunpack.c.l.b16 %v1471
      %v1504 = vunpack.c.l.b16 %v1472
      %v1505 = vpack.c.b16 %v1490, %v1489
      %v1506 = vpack.c.b16 %v1492, %v1491
      %v1507 = vpack.c.b16 %v1494, %v1493
      %v1508 = vpack.c.b16 %v1496, %v1495
      %v1509 = vpack.c.b16 %v1498, %v1497
      %v1510 = vpack.c.b16 %v1500, %v1499
      %v1511 = vpack.c.b16 %v1502, %v1501
      %v1512 = vpack.c.b16 %v1504, %v1503
      %1521 = vmatprep.subr.bf16.mxu0 0
      %1522 = vmatpush1.bf16.msra.mxu0 %v1512
      %1523 = vmatprep.subr.bf16.mxu0 0
      %1524 = vmatpush1.bf16.msra.mxu0 %v1511
      %1525 = vmatprep.subr.bf16.mxu0 0
      %1526 = vmatpush1.bf16.msra.mxu0 %v1510
      %1527 = vmatprep.subr.bf16.mxu0 0
      %1528 = vmatpush1.bf16.msra.mxu0 %v1509
      %1529 = vmatprep.subr.bf16.mxu0 0
      %1530 = vmatpush1.bf16.msra.mxu0 %v1508
      %1531 = vmatprep.subr.bf16.mxu0 0
      %1532 = vmatpush1.bf16.msra.mxu0 %v1507
      %1533 = vmatprep.subr.bf16.mxu0 0
      %1534 = vmatpush1.bf16.msra.mxu0 %v1506
      %1535 = vmatprep.subr.bf16.mxu0 0
      %1536 = vmatpush1.bf16.msra.mxu0 %v1505
      %1537 = vmatprep.subr.bf16.mxu0 0
      %1538 = vmatpush2.bf16.msra.mxu0 0
      %1539 = vmatprep.subr.bf16.mxu0 0
      %1540 = vmatpush2.bf16.msra.mxu0 0
      %1541 = vmatprep.subr.bf16.mxu0 0
      %1542 = vmatpush2.bf16.msra.mxu0 0
      %1543 = vmatprep.subr.bf16.mxu0 0
      %1544 = vmatpush2.bf16.msra.mxu0 0
      %1545 = vmatprep.subr.bf16.mxu0 0
      %1546 = vmatpush2.bf16.msra.mxu0 0
      %1547 = vmatprep.subr.bf16.mxu0 0
      %1548 = vmatpush2.bf16.msra.mxu0 0
      %1549 = vmatprep.subr.bf16.mxu0 0
      %1550 = vmatpush2.bf16.msra.mxu0 0
      %1551 = vmatprep.subr.bf16.mxu0 0
      %1552 = vmatpush2.bf16.msra.mxu0 0
      %1553 = vmatprep.mubr.bf16.mxu0 0
      %1554 = vmatmul.mubr.bf16.gmra.mxu0 %v433
      %v1555 = vpop.f32.mrf.mxu0
      %v1556 = vadd.f32 0.0, %v1555
      %v1557 = vpop.f32.mrf.mxu0
      %v1558 = vpop.f32.mrf.mxu0
      %v1559 = vadd.f32 0.0, %v1558
      %v1560 = vpop.f32.mrf.mxu0
      %1561 = vmatprep.mubr.bf16.mxu0 0
      %1562 = vmatmul.mubr.bf16.gmra.mxu0 %v434
      %v1563 = vpop.f32.mrf.mxu0
      %v1564 = vadd.f32 0.0, %v1563
      %v1565 = vpop.f32.mrf.mxu0
      %v1566 = vpop.f32.mrf.mxu0
      %v1567 = vadd.f32 0.0, %v1566
      %v1568 = vpop.f32.mrf.mxu0
      %1569 = vmatprep.mubr.bf16.mxu0 0
      %1570 = vmatmul.mubr.bf16.gmra.mxu0 %v435
      %v1571 = vpop.f32.mrf.mxu0
      %v1572 = vadd.f32 0.0, %v1571
      %v1573 = vpop.f32.mrf.mxu0
      %v1574 = vpop.f32.mrf.mxu0
      %v1575 = vadd.f32 0.0, %v1574
      %v1576 = vpop.f32.mrf.mxu0
      %1577 = vmatprep.mubr.bf16.mxu0 0
      %1578 = vmatmul.mubr.bf16.gmra.mxu0 %v436
      %v1579 = vpop.f32.mrf.mxu0
      %v1580 = vadd.f32 0.0, %v1579
      %v1581 = vpop.f32.mrf.mxu0
      %v1582 = vpop.f32.mrf.mxu0
      %v1583 = vadd.f32 0.0, %v1582
      %v1584 = vpop.f32.mrf.mxu0
      %1585 = vmatprep.mubr.bf16.mxu0 0
      %1586 = vmatmul.mubr.bf16.gmra.mxu0 %v437
      %v1587 = vpop.f32.mrf.mxu0
      %v1588 = vadd.f32 0.0, %v1587
      %v1589 = vpop.f32.mrf.mxu0
      %v1590 = vpop.f32.mrf.mxu0
      %v1591 = vadd.f32 0.0, %v1590
      %v1592 = vpop.f32.mrf.mxu0
      %1593 = vmatprep.mubr.bf16.mxu0 0
      %1594 = vmatmul.mubr.bf16.gmra.mxu0 %v438
      %v1595 = vpop.f32.mrf.mxu0
      %v1596 = vadd.f32 0.0, %v1595
      %v1597 = vpop.f32.mrf.mxu0
      %v1598 = vpop.f32.mrf.mxu0
      %v1599 = vadd.f32 0.0, %v1598
      %v1600 = vpop.f32.mrf.mxu0
      %1601 = vdwg.mxu0
      %v1618 = vunpack.c.l.b16 %v1440
      %v1619 = vunpack.c.l.b16 %v1441
      %v1620 = vunpack.c.l.b16 %v1442
      %v1621 = vunpack.c.l.b16 %v1443
      %v1622 = vunpack.c.l.b16 %v1444
      %v1623 = vunpack.c.l.b16 %v1445
      %v1624 = vunpack.c.l.b16 %v1446
      %v1625 = vunpack.c.l.b16 %v1447
      %v1626 = vunpack.c.l.b16 %v1448
      %v1627 = vunpack.c.l.b16 %v1449
      %v1628 = vunpack.c.l.b16 %v1450
      %v1629 = vunpack.c.l.b16 %v1451
      %v1630 = vunpack.c.l.b16 %v1452
      %v1631 = vunpack.c.l.b16 %v1453
      %v1632 = vunpack.c.l.b16 %v1454
      %v1633 = vunpack.c.l.b16 %v1455
      %v1634 = vpack.c.b16 %v1619, %v1618
      %v1635 = vpack.c.b16 %v1621, %v1620
      %v1636 = vpack.c.b16 %v1623, %v1622
      %v1637 = vpack.c.b16 %v1625, %v1624
      %v1638 = vpack.c.b16 %v1627, %v1626
      %v1639 = vpack.c.b16 %v1629, %v1628
      %v1640 = vpack.c.b16 %v1631, %v1630
      %v1641 = vpack.c.b16 %v1633, %v1632
      %1650 = vmatprep.subr.bf16.mxu0 0
      %1651 = vmatpush1.bf16.msra.mxu0 %v1641
      %1652 = vmatprep.subr.bf16.mxu0 0
      %1653 = vmatpush1.bf16.msra.mxu0 %v1640
      %1654 = vmatprep.subr.bf16.mxu0 0
      %1655 = vmatpush1.bf16.msra.mxu0 %v1639
      %1656 = vmatprep.subr.bf16.mxu0 0
      %1657 = vmatpush1.bf16.msra.mxu0 %v1638
      %1658 = vmatprep.subr.bf16.mxu0 0
      %1659 = vmatpush1.bf16.msra.mxu0 %v1637
      %1660 = vmatprep.subr.bf16.mxu0 0
      %1661 = vmatpush1.bf16.msra.mxu0 %v1636
      %1662 = vmatprep.subr.bf16.mxu0 0
      %1663 = vmatpush1.bf16.msra.mxu0 %v1635
      %1664 = vmatprep.subr.bf16.mxu0 0
      %1665 = vmatpush1.bf16.msra.mxu0 %v1634
      %1666 = vmatprep.subr.bf16.mxu0 0
      %1667 = vmatpush2.bf16.msra.mxu0 0
      %1668 = vmatprep.subr.bf16.mxu0 0
      %1669 = vmatpush2.bf16.msra.mxu0 0
      %1670 = vmatprep.subr.bf16.mxu0 0
      %1671 = vmatpush2.bf16.msra.mxu0 0
      %1672 = vmatprep.subr.bf16.mxu0 0
      %1673 = vmatpush2.bf16.msra.mxu0 0
      %1674 = vmatprep.subr.bf16.mxu0 0
      %1675 = vmatpush2.bf16.msra.mxu0 0
      %1676 = vmatprep.subr.bf16.mxu0 0
      %1677 = vmatpush2.bf16.msra.mxu0 0
      %1678 = vmatprep.subr.bf16.mxu0 0
      %1679 = vmatpush2.bf16.msra.mxu0 0
      %1680 = vmatprep.subr.bf16.mxu0 0
      %1681 = vmatpush2.bf16.msra.mxu0 0
      %1682 = vmatprep.mubr.bf16.mxu0 0
      %1683 = vmatmul.mubr.bf16.gmra.mxu0 %v580
      %v1684 = vpop.f32.mrf.mxu0
      %v1685 = vadd.f32 %v1556, %v1684
      %v1686 = vpop.f32.mrf.mxu0
      %v1687 = vpop.f32.mrf.mxu0
      %v1688 = vadd.f32 %v1559, %v1687
      %v1689 = vpop.f32.mrf.mxu0
      %1690 = vmatprep.mubr.bf16.mxu0 0
      %1691 = vmatmul.mubr.bf16.gmra.mxu0 %v581
      %v1692 = vpop.f32.mrf.mxu0
      %v1693 = vadd.f32 %v1564, %v1692
      %v1694 = vpop.f32.mrf.mxu0
      %v1695 = vpop.f32.mrf.mxu0
      %v1696 = vadd.f32 %v1567, %v1695
      %v1697 = vpop.f32.mrf.mxu0
      %1698 = vmatprep.mubr.bf16.mxu0 0
      %1699 = vmatmul.mubr.bf16.gmra.mxu0 %v582
      %v1700 = vpop.f32.mrf.mxu0
      %v1701 = vadd.f32 %v1572, %v1700
      %v1702 = vpop.f32.mrf.mxu0
      %v1703 = vpop.f32.mrf.mxu0
      %v1704 = vadd.f32 %v1575, %v1703
      %v1705 = vpop.f32.mrf.mxu0
      %1706 = vmatprep.mubr.bf16.mxu0 0
      %1707 = vmatmul.mubr.bf16.gmra.mxu0 %v583
      %v1708 = vpop.f32.mrf.mxu0
      %v1709 = vadd.f32 %v1580, %v1708
      %v1710 = vpop.f32.mrf.mxu0
      %v1711 = vpop.f32.mrf.mxu0
      %v1712 = vadd.f32 %v1583, %v1711
      %v1713 = vpop.f32.mrf.mxu0
      %1714 = vmatprep.mubr.bf16.mxu0 0
      %1715 = vmatmul.mubr.bf16.gmra.mxu0 %v584
      %v1716 = vpop.f32.mrf.mxu0
      %v1717 = vadd.f32 %v1588, %v1716
      %v1718 = vpop.f32.mrf.mxu0
      %v1719 = vpop.f32.mrf.mxu0
      %v1720 = vadd.f32 %v1591, %v1719
      %v1721 = vpop.f32.mrf.mxu0
      %1722 = vmatprep.mubr.bf16.mxu0 0
      %1723 = vmatmul.mubr.bf16.gmra.mxu0 %v585
      %v1724 = vpop.f32.mrf.mxu0
      %v1725 = vadd.f32 %v1596, %v1724
      %v1726 = vpop.f32.mrf.mxu0
      %v1727 = vpop.f32.mrf.mxu0
      %v1728 = vadd.f32 %v1599, %v1727
      %v1729 = vpop.f32.mrf.mxu0
      %1730 = vdwg.mxu0
      %s1731 = scalar_lea.vmem %s1, 512
      %v1732 = vld [vmem:[%s1731] sm:$0xf]
      %v1733 = vld [vmem:[%s1731 + $0x4] sm:$0xf]
      %v1734 = vld [vmem:[%s1731 + $0x8] sm:$0xf]
      %v1735 = vld [vmem:[%s1731 + $0xc] sm:$0xf]
      %v1736 = vld [vmem:[%s1731 + $0x10] sm:$0xf]
      %v1737 = vld [vmem:[%s1731 + $0x14] sm:$0xf]
      %v1738 = vld [vmem:[%s1731 + $0x18] sm:$0xf]
      %v1739 = vld [vmem:[%s1731 + $0x1c] sm:$0xf]
      %v1740 = vld [vmem:[%s1731 + $0x20] sm:$0xf]
      %v1741 = vld [vmem:[%s1731 + $0x24] sm:$0xf]
      %v1742 = vld [vmem:[%s1731 + $0x28] sm:$0xf]
      %v1743 = vld [vmem:[%s1731 + $0x2c] sm:$0xf]
      %v1744 = vld [vmem:[%s1731 + $0x30] sm:$0xf]
      %v1745 = vld [vmem:[%s1731 + $0x34] sm:$0xf]
      %v1746 = vld [vmem:[%s1731 + $0x38] sm:$0xf]
      %v1747 = vld [vmem:[%s1731 + $0x3c] sm:$0xf]
      %v1764 = vunpack.c.l.b16 %v1732
      %v1765 = vunpack.c.l.b16 %v1733
      %v1766 = vunpack.c.l.b16 %v1734
      %v1767 = vunpack.c.l.b16 %v1735
      %v1768 = vunpack.c.l.b16 %v1736
      %v1769 = vunpack.c.l.b16 %v1737
      %v1770 = vunpack.c.l.b16 %v1738
      %v1771 = vunpack.c.l.b16 %v1739
      %v1772 = vunpack.c.l.b16 %v1740
      %v1773 = vunpack.c.l.b16 %v1741
      %v1774 = vunpack.c.l.b16 %v1742
      %v1775 = vunpack.c.l.b16 %v1743
      %v1776 = vunpack.c.l.b16 %v1744
      %v1777 = vunpack.c.l.b16 %v1745
      %v1778 = vunpack.c.l.b16 %v1746
      %v1779 = vunpack.c.l.b16 %v1747
      %v1780 = vpack.c.b16 %v1765, %v1764
      %v1781 = vpack.c.b16 %v1767, %v1766
      %v1782 = vpack.c.b16 %v1769, %v1768
      %v1783 = vpack.c.b16 %v1771, %v1770
      %v1784 = vpack.c.b16 %v1773, %v1772
      %v1785 = vpack.c.b16 %v1775, %v1774
      %v1786 = vpack.c.b16 %v1777, %v1776
      %v1787 = vpack.c.b16 %v1779, %v1778
      %1796 = vmatprep.subr.bf16.mxu0 0
      %1797 = vmatpush1.bf16.msra.mxu0 %v1787
      %1798 = vmatprep.subr.bf16.mxu0 0
      %1799 = vmatpush1.bf16.msra.mxu0 %v1786
      %1800 = vmatprep.subr.bf16.mxu0 0
      %1801 = vmatpush1.bf16.msra.mxu0 %v1785
      %1802 = vmatprep.subr.bf16.mxu0 0
      %1803 = vmatpush1.bf16.msra.mxu0 %v1784
      %1804 = vmatprep.subr.bf16.mxu0 0
      %1805 = vmatpush1.bf16.msra.mxu0 %v1783
      %1806 = vmatprep.subr.bf16.mxu0 0
      %1807 = vmatpush1.bf16.msra.mxu0 %v1782
      %1808 = vmatprep.subr.bf16.mxu0 0
      %1809 = vmatpush1.bf16.msra.mxu0 %v1781
      %1810 = vmatprep.subr.bf16.mxu0 0
      %1811 = vmatpush1.bf16.msra.mxu0 %v1780
      %1812 = vmatprep.subr.bf16.mxu0 0
      %1813 = vmatpush2.bf16.msra.mxu0 0
      %1814 = vmatprep.subr.bf16.mxu0 0
      %1815 = vmatpush2.bf16.msra.mxu0 0
      %1816 = vmatprep.subr.bf16.mxu0 0
      %1817 = vmatpush2.bf16.msra.mxu0 0
      %1818 = vmatprep.subr.bf16.mxu0 0
      %1819 = vmatpush2.bf16.msra.mxu0 0
      %1820 = vmatprep.subr.bf16.mxu0 0
      %1821 = vmatpush2.bf16.msra.mxu0 0
      %1822 = vmatprep.subr.bf16.mxu0 0
      %1823 = vmatpush2.bf16.msra.mxu0 0
      %1824 = vmatprep.subr.bf16.mxu0 0
      %1825 = vmatpush2.bf16.msra.mxu0 0
      %1826 = vmatprep.subr.bf16.mxu0 0
      %1827 = vmatpush2.bf16.msra.mxu0 0
      %1828 = vmatprep.mubr.bf16.mxu0 0
      %1829 = vmatmul.mubr.bf16.gmra.mxu0 %v774
      %v1830 = vpop.f32.mrf.mxu0
      %v1831 = vadd.f32 0.0, %v1830
      %v1832 = vpop.f32.mrf.mxu0
      %v1833 = vpop.f32.mrf.mxu0
      %v1834 = vadd.f32 0.0, %v1833
      %v1835 = vpop.f32.mrf.mxu0
      %1836 = vmatprep.mubr.bf16.mxu0 0
      %1837 = vmatmul.mubr.bf16.gmra.mxu0 %v775
      %v1838 = vpop.f32.mrf.mxu0
      %v1839 = vadd.f32 0.0, %v1838
      %v1840 = vpop.f32.mrf.mxu0
      %v1841 = vpop.f32.mrf.mxu0
      %v1842 = vadd.f32 0.0, %v1841
      %v1843 = vpop.f32.mrf.mxu0
      %1844 = vmatprep.mubr.bf16.mxu0 0
      %1845 = vmatmul.mubr.bf16.gmra.mxu0 %v776
      %v1846 = vpop.f32.mrf.mxu0
      %v1847 = vadd.f32 0.0, %v1846
      %v1848 = vpop.f32.mrf.mxu0
      %v1849 = vpop.f32.mrf.mxu0
      %v1850 = vadd.f32 0.0, %v1849
      %v1851 = vpop.f32.mrf.mxu0
      %1852 = vmatprep.mubr.bf16.mxu0 0
      %1853 = vmatmul.mubr.bf16.gmra.mxu0 %v777
      %v1854 = vpop.f32.mrf.mxu0
      %v1855 = vadd.f32 0.0, %v1854
      %v1856 = vpop.f32.mrf.mxu0
      %v1857 = vpop.f32.mrf.mxu0
      %v1858 = vadd.f32 0.0, %v1857
      %v1859 = vpop.f32.mrf.mxu0
      %1860 = vmatprep.mubr.bf16.mxu0 0
      %1861 = vmatmul.mubr.bf16.gmra.mxu0 %v778
      %v1862 = vpop.f32.mrf.mxu0
      %v1863 = vadd.f32 0.0, %v1862
      %v1864 = vpop.f32.mrf.mxu0
      %v1865 = vpop.f32.mrf.mxu0
      %v1866 = vadd.f32 0.0, %v1865
      %v1867 = vpop.f32.mrf.mxu0
      %1868 = vmatprep.mubr.bf16.mxu0 0
      %1869 = vmatmul.mubr.bf16.gmra.mxu0 %v779
      %v1870 = vpop.f32.mrf.mxu0
      %v1871 = vadd.f32 0.0, %v1870
      %v1872 = vpop.f32.mrf.mxu0
      %v1873 = vpop.f32.mrf.mxu0
      %v1874 = vadd.f32 0.0, %v1873
      %v1875 = vpop.f32.mrf.mxu0
      %1876 = vdwg.mxu0
      %v1877 = vadd.f32 %v1685, %v1831
      %v1878 = vadd.f32 %v1688, %v1834
      %v1879 = vadd.f32 %v1693, %v1839
      %v1880 = vadd.f32 %v1696, %v1842
      %v1881 = vadd.f32 %v1701, %v1847
      %v1882 = vadd.f32 %v1704, %v1850
      %v1883 = vadd.f32 %v1709, %v1855
      %v1884 = vadd.f32 %v1712, %v1858
      %v1885 = vadd.f32 %v1717, %v1863
      %v1886 = vadd.f32 %v1720, %v1866
      %v1887 = vadd.f32 %v1725, %v1871
      %v1888 = vadd.f32 %v1728, %v1874
      %vm1901 = vcmask 1045504
      %v1902 = vrot.slane %v1877, 2
      %v1903 = vrot.slane %v1878, 2
      %v1904 = vsel %vm1901, %v1902, %v1903
      %v1905 = vrot.slane %v1879, 2
      %v1906 = vsel %vm1901, %v1903, %v1905
      %v1907 = vrot.slane %v1880, 2
      %v1908 = vsel %vm1901, %v1905, %v1907
      %v1909 = vrot.slane %v1881, 2
      %v1910 = vsel %vm1901, %v1907, %v1909
      %v1911 = vrot.slane %v1882, 2
      %v1912 = vsel %vm1901, %v1909, %v1911
      %v1913 = vrot.slane %v1883, 2
      %v1914 = vsel %vm1901, %v1911, %v1913
      %v1915 = vrot.slane %v1884, 2
      %v1916 = vsel %vm1901, %v1913, %v1915
      %v1917 = vrot.slane %v1885, 2
      %v1918 = vsel %vm1901, %v1915, %v1917
      %v1919 = vrot.slane %v1886, 2
      %v1920 = vsel %vm1901, %v1917, %v1919
      %v1921 = vrot.slane %v1887, 2
      %v1922 = vsel %vm1901, %v1919, %v1921
      %v1923 = vrot.slane %v1888, 2
      %v1924 = vsel %vm1901, %v1921, %v1923
      %v1938 = vsel %vm1901, %v1923, %v1902
      %v1939 = vadd.f32 %v1427, %v1904
      %v1940 = vadd.f32 %v1428, %v1906
      %v1941 = vadd.f32 %v1429, %v1908
      %v1942 = vadd.f32 %v1430, %v1910
      %v1943 = vadd.f32 %v1431, %v1912
      %v1944 = vadd.f32 %v1432, %v1914
      %v1945 = vadd.f32 %v1433, %v1916
      %v1946 = vadd.f32 %v1434, %v1918
      %v1947 = vadd.f32 %v1435, %v1920
      %v1948 = vadd.f32 %v1436, %v1922
      %v1949 = vadd.f32 %v1437, %v1924
      %v1950 = vadd.f32 %v1438, %v1938
      %v1951 = vld [vmem:[%s2] sm:$0x1]
      %v1953 = vlaneseq
      %v1954 = vshrl.u32 %v1953, 7
      %v1955 = vsub.s32 0, %v1954
      %v1956 = vrot.slane %v1951, %v1955
      %v1958 = vadd.f32 %v1939, %v1956
      %v1959 = vadd.f32 %v1940, %v1956
      %v1960 = vadd.f32 %v1941, %v1956
      %v1961 = vadd.f32 %v1942, %v1956
      %v1962 = vadd.f32 %v1943, %v1956
      %v1963 = vadd.f32 %v1944, %v1956
      %v1964 = vadd.f32 %v1945, %v1956
      %v1965 = vadd.f32 %v1946, %v1956
      %v1966 = vadd.f32 %v1947, %v1956
      %v1967 = vadd.f32 %v1948, %v1956
      %v1968 = vadd.f32 %v1949, %v1956
      %v1969 = vadd.f32 %v1950, %v1956
      %v1970 = vlaneseq
      %v1971 = vshrl.u32 %v1970, 7
      %v1972 = vadd.s32 %v1971, 8
      %v1973 = vadd.s32 %v1971, 16
      %v1974 = vadd.s32 %v1971, 24
      %v1975 = vadd.s32 %v1971, 32
      %v1976 = vadd.s32 %v1971, 40
      %v1977 = vadd.s32 %v1971, 48
      %v1978 = vadd.s32 %v1971, 56
      %v1979 = vadd.s32 %v1971, 64
      %v1980 = vadd.s32 %v1971, 72
      %v1981 = vadd.s32 %v1971, 80
      %v1982 = vadd.s32 %v1971, 88
      %vm1983 = vcmp.lt.s32.totalorder %v1971, 0
      %v1984 = vsub.s32 0, %v1971
      %v1985 = vsel %vm1983, %v1984, %v1971
      %v1986 = vmul.u32.u64.compose %v1985, 2863311531
      %v1987 = vextract.low.u32 %v1986
      %v1988 = vextract.high.u32 %v1986
      %v1989 = vshrl.u32 %v1988, 4
      %v1990 = vmul.u32 %v1989, 24
      %v1991 = vsub.s32 %v1985, %v1990
      %v1992 = vsub.s32 0, %v1991
      %v1993 = vsel %vm1983, %v1992, %v1991
      %vm1994 = vcmp.lt.s32.totalorder %v1972, 0
      %v1995 = vsub.s32 0, %v1972
      %v1996 = vsel %vm1994, %v1995, %v1972
      %v1997 = vmul.u32.u64.compose %v1996, 2863311531
      %v1998 = vextract.low.u32 %v1997
      %v1999 = vextract.high.u32 %v1997
      %v2000 = vshrl.u32 %v1999, 4
      %v2001 = vmul.u32 %v2000, 24
      %v2002 = vsub.s32 %v1996, %v2001
      %v2003 = vsub.s32 0, %v2002
      %v2004 = vsel %vm1994, %v2003, %v2002
      %vm2005 = vcmp.lt.s32.totalorder %v1973, 0
      %v2006 = vsub.s32 0, %v1973
      %v2007 = vsel %vm2005, %v2006, %v1973
      %v2008 = vmul.u32.u64.compose %v2007, 2863311531
      %v2009 = vextract.low.u32 %v2008
      %v2010 = vextract.high.u32 %v2008
      %v2011 = vshrl.u32 %v2010, 4
      %v2012 = vmul.u32 %v2011, 24
      %v2013 = vsub.s32 %v2007, %v2012
      %v2014 = vsub.s32 0, %v2013
      %v2015 = vsel %vm2005, %v2014, %v2013
      %vm2016 = vcmp.lt.s32.totalorder %v1974, 0
      %v2017 = vsub.s32 0, %v1974
      %v2018 = vsel %vm2016, %v2017, %v1974
      %v2019 = vmul.u32.u64.compose %v2018, 2863311531
      %v2020 = vextract.low.u32 %v2019
      %v2021 = vextract.high.u32 %v2019
      %v2022 = vshrl.u32 %v2021, 4
      %v2023 = vmul.u32 %v2022, 24
      %v2024 = vsub.s32 %v2018, %v2023
      %v2025 = vsub.s32 0, %v2024
      %v2026 = vsel %vm2016, %v2025, %v2024
      %vm2027 = vcmp.lt.s32.totalorder %v1975, 0
      %v2028 = vsub.s32 0, %v1975
      %v2029 = vsel %vm2027, %v2028, %v1975
      %v2030 = vmul.u32.u64.compose %v2029, 2863311531
      %v2031 = vextract.low.u32 %v2030
      %v2032 = vextract.high.u32 %v2030
      %v2033 = vshrl.u32 %v2032, 4
      %v2034 = vmul.u32 %v2033, 24
      %v2035 = vsub.s32 %v2029, %v2034
      %v2036 = vsub.s32 0, %v2035
      %v2037 = vsel %vm2027, %v2036, %v2035
      %vm2038 = vcmp.lt.s32.totalorder %v1976, 0
      %v2039 = vsub.s32 0, %v1976
      %v2040 = vsel %vm2038, %v2039, %v1976
      %v2041 = vmul.u32.u64.compose %v2040, 2863311531
      %v2042 = vextract.low.u32 %v2041
      %v2043 = vextract.high.u32 %v2041
      %v2044 = vshrl.u32 %v2043, 4
      %v2045 = vmul.u32 %v2044, 24
      %v2046 = vsub.s32 %v2040, %v2045
      %v2047 = vsub.s32 0, %v2046
      %v2048 = vsel %vm2038, %v2047, %v2046
      %vm2049 = vcmp.lt.s32.totalorder %v1977, 0
      %v2050 = vsub.s32 0, %v1977
      %v2051 = vsel %vm2049, %v2050, %v1977
      %v2052 = vmul.u32.u64.compose %v2051, 2863311531
      %v2053 = vextract.low.u32 %v2052
      %v2054 = vextract.high.u32 %v2052
      %v2055 = vshrl.u32 %v2054, 4
      %v2056 = vmul.u32 %v2055, 24
      %v2057 = vsub.s32 %v2051, %v2056
      %v2058 = vsub.s32 0, %v2057
      %v2059 = vsel %vm2049, %v2058, %v2057
      %vm2060 = vcmp.lt.s32.totalorder %v1978, 0
      %v2061 = vsub.s32 0, %v1978
      %v2062 = vsel %vm2060, %v2061, %v1978
      %v2063 = vmul.u32.u64.compose %v2062, 2863311531
      %v2064 = vextract.low.u32 %v2063
      %v2065 = vextract.high.u32 %v2063
      %v2066 = vshrl.u32 %v2065, 4
      %v2067 = vmul.u32 %v2066, 24
      %v2068 = vsub.s32 %v2062, %v2067
      %v2069 = vsub.s32 0, %v2068
      %v2070 = vsel %vm2060, %v2069, %v2068
      %vm2071 = vcmp.lt.s32.totalorder %v1979, 0
      %v2072 = vsub.s32 0, %v1979
      %v2073 = vsel %vm2071, %v2072, %v1979
      %v2074 = vmul.u32.u64.compose %v2073, 2863311531
      %v2075 = vextract.low.u32 %v2074
      %v2076 = vextract.high.u32 %v2074
      %v2077 = vshrl.u32 %v2076, 4
      %v2078 = vmul.u32 %v2077, 24
      %v2079 = vsub.s32 %v2073, %v2078
      %v2080 = vsub.s32 0, %v2079
      %v2081 = vsel %vm2071, %v2080, %v2079
      %vm2082 = vcmp.lt.s32.totalorder %v1980, 0
      %v2083 = vsub.s32 0, %v1980
      %v2084 = vsel %vm2082, %v2083, %v1980
      %v2085 = vmul.u32.u64.compose %v2084, 2863311531
      %v2086 = vextract.low.u32 %v2085
      %v2087 = vextract.high.u32 %v2085
      %v2088 = vshrl.u32 %v2087, 4
      %v2089 = vmul.u32 %v2088, 24
      %v2090 = vsub.s32 %v2084, %v2089
      %v2091 = vsub.s32 0, %v2090
      %v2092 = vsel %vm2082, %v2091, %v2090
      %vm2093 = vcmp.lt.s32.totalorder %v1981, 0
      %v2094 = vsub.s32 0, %v1981
      %v2095 = vsel %vm2093, %v2094, %v1981
      %v2096 = vmul.u32.u64.compose %v2095, 2863311531
      %v2097 = vextract.low.u32 %v2096
      %v2098 = vextract.high.u32 %v2096
      %v2099 = vshrl.u32 %v2098, 4
      %v2100 = vmul.u32 %v2099, 24
      %v2101 = vsub.s32 %v2095, %v2100
      %v2102 = vsub.s32 0, %v2101
      %v2103 = vsel %vm2093, %v2102, %v2101
      %vm2104 = vcmp.lt.s32.totalorder %v1982, 0
      %v2105 = vsub.s32 0, %v1982
      %v2106 = vsel %vm2104, %v2105, %v1982
      %v2107 = vmul.u32.u64.compose %v2106, 2863311531
      %v2108 = vextract.low.u32 %v2107
      %v2109 = vextract.high.u32 %v2107
      %v2110 = vshrl.u32 %v2109, 4
      %v2111 = vmul.u32 %v2110, 24
      %v2112 = vsub.s32 %v2106, %v2111
      %v2113 = vsub.s32 0, %v2112
      %v2114 = vsel %vm2104, %v2113, %v2112
      %vm2115 = vcmp.ne.s32.totalorder %v1993, 0
      %vm2116 = vcmp.ne.s32.totalorder %v2004, 0
      %vm2117 = vcmp.ne.s32.totalorder %v2015, 0
      %vm2118 = vcmp.ne.s32.totalorder %v2026, 0
      %vm2119 = vcmp.ne.s32.totalorder %v2037, 0
      %vm2120 = vcmp.ne.s32.totalorder %v2048, 0
      %vm2121 = vcmp.ne.s32.totalorder %v2059, 0
      %vm2122 = vcmp.ne.s32.totalorder %v2070, 0
      %vm2123 = vcmp.ne.s32.totalorder %v2081, 0
      %vm2124 = vcmp.ne.s32.totalorder %v2092, 0
      %vm2125 = vcmp.ne.s32.totalorder %v2103, 0
      %vm2126 = vcmp.ne.s32.totalorder %v2114, 0
      %vm2127 = vcmp.lt.s32.totalorder %v1993, 0
      %vm2128 = vcmp.lt.s32.totalorder %v2004, 0
      %vm2129 = vcmp.lt.s32.totalorder %v2015, 0
      %vm2130 = vcmp.lt.s32.totalorder %v2026, 0
      %vm2131 = vcmp.lt.s32.totalorder %v2037, 0
      %vm2132 = vcmp.lt.s32.totalorder %v2048, 0
      %vm2133 = vcmp.lt.s32.totalorder %v2059, 0
      %vm2134 = vcmp.lt.s32.totalorder %v2070, 0
      %vm2135 = vcmp.lt.s32.totalorder %v2081, 0
      %vm2136 = vcmp.lt.s32.totalorder %v2092, 0
      %vm2137 = vcmp.lt.s32.totalorder %v2103, 0
      %vm2138 = vcmp.lt.s32.totalorder %v2114, 0
      %vm2139 = vmand %vm2127, %vm2115
      %vm2140 = vmand %vm2128, %vm2116
      %vm2141 = vmand %vm2129, %vm2117
      %vm2142 = vmand %vm2130, %vm2118
      %vm2143 = vmand %vm2131, %vm2119
      %vm2144 = vmand %vm2132, %vm2120
      %vm2145 = vmand %vm2133, %vm2121
      %vm2146 = vmand %vm2134, %vm2122
      %vm2147 = vmand %vm2135, %vm2123
      %vm2148 = vmand %vm2136, %vm2124
      %vm2149 = vmand %vm2137, %vm2125
      %vm2150 = vmand %vm2138, %vm2126
      %v2151 = vadd.s32 %v1993, 24
      %v2152 = vadd.s32 %v2004, 24
      %v2153 = vadd.s32 %v2015, 24
      %v2154 = vadd.s32 %v2026, 24
      %v2155 = vadd.s32 %v2037, 24
      %v2156 = vadd.s32 %v2048, 24
      %v2157 = vadd.s32 %v2059, 24
      %v2158 = vadd.s32 %v2070, 24
      %v2159 = vadd.s32 %v2081, 24
      %v2160 = vadd.s32 %v2092, 24
      %v2161 = vadd.s32 %v2103, 24
      %v2162 = vadd.s32 %v2114, 24
      %v2163 = vsel %vm2139, %v2151, %v1993
      %v2164 = vsel %vm2140, %v2152, %v2004
      %v2165 = vsel %vm2141, %v2153, %v2015
      %v2166 = vsel %vm2142, %v2154, %v2026
      %v2167 = vsel %vm2143, %v2155, %v2037
      %v2168 = vsel %vm2144, %v2156, %v2048
      %v2169 = vsel %vm2145, %v2157, %v2059
      %v2170 = vsel %vm2146, %v2158, %v2070
      %v2171 = vsel %vm2147, %v2159, %v2081
      %v2172 = vsel %vm2148, %v2160, %v2092
      %v2173 = vsel %vm2149, %v2161, %v2103
      %v2174 = vsel %vm2150, %v2162, %v2114
      %vm2175 = vcmp.lt.s32.totalorder %v2163, 16
      %vm2176 = vcmp.lt.s32.totalorder %v2164, 16
      %vm2177 = vcmp.lt.s32.totalorder %v2165, 16
      %vm2178 = vcmp.lt.s32.totalorder %v2166, 16
      %vm2179 = vcmp.lt.s32.totalorder %v2167, 16
      %vm2180 = vcmp.lt.s32.totalorder %v2168, 16
      %vm2181 = vcmp.lt.s32.totalorder %v2169, 16
      %vm2182 = vcmp.lt.s32.totalorder %v2170, 16
      %vm2183 = vcmp.lt.s32.totalorder %v2171, 16
      %vm2184 = vcmp.lt.s32.totalorder %v2172, 16
      %vm2185 = vcmp.lt.s32.totalorder %v2173, 16
      %vm2186 = vcmp.lt.s32.totalorder %v2174, 16
      %v2187 = vsel %vm2175, 1, 0
      %v2188 = vsel %vm2176, 1, 0
      %v2189 = vsel %vm2177, 1, 0
      %v2190 = vsel %vm2178, 1, 0
      %v2191 = vsel %vm2179, 1, 0
      %v2192 = vsel %vm2180, 1, 0
      %v2193 = vsel %vm2181, 1, 0
      %v2194 = vsel %vm2182, 1, 0
      %v2195 = vsel %vm2183, 1, 0
      %v2196 = vsel %vm2184, 1, 0
      %v2197 = vsel %vm2185, 1, 0
      %v2198 = vsel %vm2186, 1, 0
      %vm2199 = vcmp.eq.s32.totalorder %v2187, 1
      %vm2200 = vcmp.eq.s32.totalorder %v2188, 1
      %vm2201 = vcmp.eq.s32.totalorder %v2189, 1
      %vm2202 = vcmp.eq.s32.totalorder %v2190, 1
      %vm2203 = vcmp.eq.s32.totalorder %v2191, 1
      %vm2204 = vcmp.eq.s32.totalorder %v2192, 1
      %vm2205 = vcmp.eq.s32.totalorder %v2193, 1
      %vm2206 = vcmp.eq.s32.totalorder %v2194, 1
      %vm2207 = vcmp.eq.s32.totalorder %v2195, 1
      %vm2208 = vcmp.eq.s32.totalorder %v2196, 1
      %vm2209 = vcmp.eq.s32.totalorder %v2197, 1
      %vm2210 = vcmp.eq.s32.totalorder %v2198, 1
      %v2211 = vsel %vm2199, %v1958, 0.0
      %v2212 = vsel %vm2200, %v1959, 0.0
      %v2213 = vsel %vm2201, %v1960, 0.0
      %v2214 = vsel %vm2202, %v1961, 0.0
      %v2215 = vsel %vm2203, %v1962, 0.0
      %v2216 = vsel %vm2204, %v1963, 0.0
      %v2217 = vsel %vm2205, %v1964, 0.0
      %v2218 = vsel %vm2206, %v1965, 0.0
      %v2219 = vsel %vm2207, %v1966, 0.0
      %v2220 = vsel %vm2208, %v1967, 0.0
      %v2221 = vsel %vm2209, %v1968, 0.0
      %v2222 = vsel %vm2210, %v1969, 0.0
      %v2223 = vadd.f32 %v2211, %v2212
      %v2224 = vadd.f32 %v2223, %v2213
      %v2225 = vadd.f32 %v2224, %v2214
      %v2226 = vadd.f32 %v2225, %v2215
      %v2227 = vadd.f32 %v2226, %v2216
      %v2228 = vadd.f32 %v2227, %v2217
      %v2229 = vadd.f32 %v2228, %v2218
      %v2230 = vadd.f32 %v2229, %v2219
      %v2231 = vadd.f32 %v2230, %v2220
      %v2232 = vadd.f32 %v2231, %v2221
      %v2233 = vadd.f32 %v2232, %v2222
      %v2234 = vrot.slane %v2233, 4
      %v2235 = vadd.f32 %v2233, %v2234
      %v2236 = vrot.slane %v2235, 2
      %v2237 = vadd.f32 %v2235, %v2236
      %v2238 = vrot.slane %v2237, 1
      %v2239 = vadd.f32 %v2237, %v2238
      %v2240 = vmul.f32 %v2211, %v2211
      %v2241 = vmul.f32 %v2212, %v2212
      %v2242 = vmul.f32 %v2213, %v2213
      %v2243 = vmul.f32 %v2214, %v2214
      %v2244 = vmul.f32 %v2215, %v2215
      %v2245 = vmul.f32 %v2216, %v2216
      %v2246 = vmul.f32 %v2217, %v2217
      %v2247 = vmul.f32 %v2218, %v2218
      %v2248 = vmul.f32 %v2219, %v2219
      %v2249 = vmul.f32 %v2220, %v2220
      %v2250 = vmul.f32 %v2221, %v2221
      %v2251 = vmul.f32 %v2222, %v2222
      %v2252 = vadd.f32 %v2240, %v2241
      %v2253 = vadd.f32 %v2252, %v2242
      %v2254 = vadd.f32 %v2253, %v2243
      %v2255 = vadd.f32 %v2254, %v2244
      %v2256 = vadd.f32 %v2255, %v2245
      %v2257 = vadd.f32 %v2256, %v2246
      %v2258 = vadd.f32 %v2257, %v2247
      %v2259 = vadd.f32 %v2258, %v2248
      %v2260 = vadd.f32 %v2259, %v2249
      %v2261 = vadd.f32 %v2260, %v2250
      %v2262 = vadd.f32 %v2261, %v2251
      %v2263 = vrot.slane %v2262, 4
      %v2264 = vadd.f32 %v2262, %v2263
      %v2265 = vrot.slane %v2264, 2
      %v2266 = vadd.f32 %v2264, %v2265
      %v2267 = vrot.slane %v2266, 1
      %v2268 = vadd.f32 %v2266, %v2267
      %vm2269 = vcmask 1040384
      %v2270 = vsel %vm2269, %v2239, %v2268
      %2271 = vst [vmem:[%s197] sm:$0x3] %v2270
      %v2272 = vpack.c.bf16 %v1959, %v1958
      %v2273 = vpack.c.bf16 %v1962, %v1961
      %v2274 = vpack.c.bf16 %v1965, %v1964
      %v2275 = vpack.c.bf16 %v1968, %v1967
      %v2280 = vunpack.c.l.b16 %v2272
      %v2281 = vunpack.c.h.b16 %v2272
      %v2282 = vunpack.c.l.b16 %v2273
      %v2283 = vunpack.c.h.b16 %v2273
      %v2284 = vunpack.c.l.b16 %v2274
      %v2285 = vunpack.c.h.b16 %v2274
      %v2286 = vunpack.c.l.b16 %v2275
      %v2287 = vunpack.c.h.b16 %v2275
      %v2288 = vpack.c.b16 %v2280, %v2280
      %v2289 = vpack.c.b16 %v2281, %v2281
      %v2290 = vpack.c.b16 %v2282, %v2282
      %v2291 = vpack.c.b16 %v2283, %v2283
      %v2292 = vpack.c.b16 %v2284, %v2284
      %v2293 = vpack.c.b16 %v2285, %v2285
      %v2294 = vpack.c.b16 %v2286, %v2286
      %v2295 = vpack.c.b16 %v2287, %v2287
      %2304 = vst [vmem:[%s188] sm:$0xf] %v2288
      %2305 = vst [vmem:[%s188 + $0x4] sm:$0xf] %v2289
      %2306 = vst [vmem:[%s188 + $0x8] sm:$0xf] %v2290
      %2307 = vst [vmem:[%s188 + $0xc] sm:$0xf] %v2291
      %2308 = vst [vmem:[%s188 + $0x10] sm:$0xf] %v2292
      %2309 = vst [vmem:[%s188 + $0x14] sm:$0xf] %v2293
      %2310 = vst [vmem:[%s188 + $0x18] sm:$0xf] %v2294
      %2311 = vst [vmem:[%s188 + $0x1c] sm:$0xf] %v2295
      %s2312 = smul.u32 4, %s21
      %p2313 = scmp.lt.s32.totalorder %s20, 1
      %s2314 = scalar_select %p2313, %s20, 1
      %p2315 = scmp.lt.s32.totalorder %s2312, 15
      %s2316 = scalar_select %p2315, %s2312, 15
      %s2317 = smul.addr %s2316, 2
      %s2318 = smul.addr %s2314, 32
      %s2319 = sadd.s32 %s2317, %s2318
      %s2320 = smul.addr %s2319, 4
      %s2321 = scalar_lea.vmem %s3, %s2320
      %p2322 = scmp.lt.s32.totalorder %s20, 1
      %s2323 = scalar_select %p2322, %s20, 1
      %p2324 = scmp.lt.s32.totalorder %s21, 3
      %s2325 = scalar_select %p2324, %s21, 3
      %s2326 = smul.addr %s2323, 4
      %s2327 = sadd.s32 %s2325, %s2326
      %s2328 = smul.addr %s2327, 2
      %s2329 = scalar_lea.vmem %s4, %s2328
      // Predicated region
      $region105: #{_lambda_.8} parent=27 // pred_check
        %p2330 = pneg %p90
      $region106: #{_lambda_.8} parent=27 // pred_check_branch
        %2332 = sbr.rel (%p2330) target = $region108
      $region107: #{_lambda_.8} parent=27 // pred_region
        %s2333 = smul.u32 4, %s21
      $region108: #{_lambda_.8} parent=27 // pred_fallthru
        _
      // Predicated region
      $region109: #{_lambda_.8} parent=27 // pred_check
        %p2334 = pneg %p118
      $region110: #{_lambda_.8} parent=27 // pred_check_branch
        %2336 = sbr.rel (%p2334) target = $region112
      $region111: #{_lambda_.8} parent=27 // pred_region
        _
      $region112: #{_lambda_.8} parent=27 // pred_fallthru
        _
    $region28: #{_lambda_.8} parent=5 // pred_fallthru
      _
    %p2337 = scmp.le.s32.totalorder 2, %s11
    // Predicated region
    $region113: #{_lambda_.8} parent=5 // pred_check
      %p2338 = pneg %p2337
    $region114: #{_lambda_.8} parent=5 // pred_check_branch
      %2340 = sbr.rel (%p2338) target = $region116
    $region115: #{_lambda_.8} parent=5 // pred_region
      %s2341 = ssub.s32 %s11, 2
      // Predicated region
      $region117: #{_lambda_.8} parent=115 // pred_check
        %p2342 = pneg %p96
      $region118: #{_lambda_.8} parent=115 // pred_check_branch
        %2344 = sbr.rel (%p2342) target = $region120
      $region119: #{_lambda_.8} parent=115 // pred_region
        %s2345 = smul.u32 4, %s23
        %p2346 = scmp.lt.s32.totalorder %s22, 1
        %s2347 = scalar_select %p2346, %s22, 1
        %p2348 = scmp.lt.s32.totalorder %s2345, 15
        %s2349 = scalar_select %p2348, %s2345, 15
        %s2350 = smul.addr %s2349, 2
        %s2351 = smul.addr %s2347, 32
        %s2352 = sadd.s32 %s2350, %s2351
        %s2353 = smul.addr %s2352, 4
        %s2354 = scalar_lea.vmem %s3, %s2353
      $region120: #{_lambda_.8} parent=115 // pred_fallthru
        _
      // Predicated region
      $region121: #{_lambda_.8} parent=115 // pred_check
        %p2355 = pneg %p124
      $region122: #{_lambda_.8} parent=115 // pred_check_branch
        %2357 = sbr.rel (%p2355) target = $region124
      $region123: #{_lambda_.8} parent=115 // pred_region
        %p2358 = scmp.lt.s32.totalorder %s22, 1
        %s2359 = scalar_select %p2358, %s22, 1
        %p2360 = scmp.lt.s32.totalorder %s23, 3
        %s2361 = scalar_select %p2360, %s23, 3
        %s2362 = smul.addr %s2359, 4
        %s2363 = sadd.s32 %s2361, %s2362
        %s2364 = smul.addr %s2363, 2
        %s2365 = scalar_lea.vmem %s4, %s2364
      $region124: #{_lambda_.8} parent=115 // pred_fallthru
        _
    $region116: #{_lambda_.8} parent=5 // pred_fallthru
      _
  $region6: #{_lambda_.8} parent=0 // loop_footer
    %s15 = sadd.s32 1, %s11
  $region7: #{_lambda_.8} parent=0 // loop_footer_branch
    %10 = sbr.rel target = $region3
  $region8: #{_lambda_.8} parent=0 // loop_exit
    _
  %2366 = vsyncmov [#allocation3]
  %s2367 = vpop.sfrf %2366
  %p2368 = scmp.eq.s32.totalorder %s2367, 0
  %p2369 = pneg %p2368
  %2371 = shalt.err (%p2369)
  %s2372 = scalar_lea.sflag [#allocation3], 1
  %2373 = vsyncmov %s2372
  %s2374 = vpop.sfrf %2373
  %p2375 = scmp.eq.s32.totalorder %s2374, 0
  %p2376 = pneg %p2375
  %2378 = shalt.err (%p2376)

// kernel: _lambda_.6
$region0: #{_lambda_.6}
  #allocation0 [shape = 'u32[]', space=smem, size = 0x4, offset = 0x4, fixed_abs, tag = 'smem constant byte address 0x4 - core index']
  #allocation1 [shape = 'u32[144,128]{1,0:T(1,128)}', space=vmem, size = 0x12000, scoped, tag = 'internal scratch']
  #allocation2 [shape = 'bf16[2,144,128]{2,1,0:T(8,128)(2,1)}', space=vmem, size = 0x12000, scoped, tag = 'scratch operand']
  #allocation3 [shape = 'bf16[2,144,128]{2,1,0:T(8,128)(2,1)}', space=vmem, size = 0x12000, scoped, tag = 'scratch operand']
  #allocation4 [shape = 's32[4]{0}', space=sflag, size = 0x10, scoped, tag = 'scratch operand']
  #allocation5 [shape = 's32[]', space=sflag, size = 0x4, offset = 0, fixed_abs, tag = 'sflag constant byte address 0x0 - dummy sync flag']
  #allocation6 [shape = 's32[]', space=sflag, size = 0x4, offset = 0, fixed_abs, tag = 'sflag constant byte address 0x0 - dummy sync flag']
  #allocation7 [shape = 's32[]', space=sflag, size = 0x4, offset = 0, fixed_abs, tag = 'sflag constant byte address 0x0 - dummy sync flag']
  #allocation8 [shape = 's32[]', space=sflag, size = 0x4, offset = 0, fixed_abs, tag = 'sflag constant byte address 0x0 - dummy sync flag']
  %s0 = inlined_call_operand.vmem [shape: bf16[2,432,128], index: 0, kind: input, shape index: {}]
  %s1 = inlined_call_operand.vmem [shape: bf16[2,432,128], index: 1, kind: input, shape index: {}]
  %s2 = inlined_call_operand.vmem [shape: bf16[9,128,128], index: 2, kind: input, shape index: {}]
  %s3 = inlined_call_operand.vmem [shape: bf16[9,128,128], index: 3, kind: input, shape index: {}]
  %s4 = inlined_call_operand.vmem [shape: f32[1,128], index: 4, kind: input, shape index: {}]
  %s5 = inlined_call_operand.vmem [shape: bf16[2,16,16,128], index: 5, kind: output, shape index: {0}]
  %s6 = inlined_call_operand.vmem [shape: f32[2,4,2,128], index: 6, kind: output, shape index: {1}]
  %7 = xla_tuple %s5, %s6
  %s8 = sld [smem:[#allocation0]]
  $region197: #{_lambda_.6} parent=0
    _
  %s10 = ssub.s32 1, %s8
  %s11 = scalar_select 0, %s10, %s8
  loop: start=0, step=1, limit=10
  $region2: #{_lambda_.6} parent=0 // loop_pre_header
    _
  $region3: #{_lambda_.6} parent=0 // loop_header
    %s13 = sphi 0, %s17
    %p14 = scmp.ge.s32.totalorder %s13, 10
    %s20 = sphi 0, %s32
    %s21 = sphi 0, %s28
    %s22 = sphi 0, %s20
    %s23 = sphi 0, %s21
    %s24 = sphi 0, %s22
    %s25 = sphi 0, %s23
    %s33 = sphi 0, %s33
    %s35 = sphi 0, %s33
    %s36 = sphi 0, %s35
    %s50 = sphi 0, %s36
    %s54 = sphi 0, %s54
    %s56 = sphi 0, %s54
    %s57 = sphi 0, %s56
    %s71 = sphi 0, %s57
    %s75 = sphi 0, %s75
    %s77 = sphi 0, %s75
    %s78 = sphi 0, %s77
    %s92 = sphi 0, %s78
    %s100 = sphi 0, %s102
    %s103 = sphi 0, %s100
    %s104 = sphi 0, %s103
    %s120 = sphi 0, %s104
    %s128 = sphi 0, %s130
    %s131 = sphi 0, %s128
    %s132 = sphi 0, %s131
    %s148 = sphi 0, %s132
  $region4: #{_lambda_.6} parent=0 // loop_header_branch
    %16 = sbr.rel (%p14) target = $region8
  $region5: #{_lambda_.6} parent=0 // loop_body
    %s18 = ssub.s32 %s13, 1
    %s19 = ssub.s32 %s13, 2
    %s26 = sadd.s32 1, %s21
    %p27 = scmp.ge.s32.totalorder %s26, 4
    %s28 = scalar_select %p27, 0, %s26
    %s29 = sadd.s32 1, %s20
    %s30 = scalar_select %p27, %s29, %s20
    %p31 = scmp.ge.s32.totalorder %s30, 2
    %s32 = scalar_select %p31, 0, %s30
    %s34 = sadd.s32 %s33, 1
    %p37 = scmp.eq.s32.totalorder %s13, 7
    %p38 = scmp.ne.s32.totalorder %s33, %s35
    %p39 = scmp.eq.s32.totalorder %s13, 0
    %p40 = por %p38, %p39
    %p41 = scmp.ne.s32.totalorder %s33, %s35
    %p42 = scmp.eq.s32.totalorder %s18, 7
    %p43 = por %p41, %p42
    %p44 = scmp.ne.s32.totalorder %s35, %s36
    %p45 = scmp.eq.s32.totalorder %s18, 0
    %p46 = por %p44, %p45
    %p47 = scmp.ne.s32.totalorder %s35, %s36
    %p48 = scmp.eq.s32.totalorder %s19, 7
    %p49 = por %p47, %p48
    %p51 = scmp.ne.s32.totalorder %s36, %s50
    %p52 = scmp.eq.s32.totalorder %s19, 0
    %p53 = por %p51, %p52
    %s55 = sadd.s32 %s54, 1
    %p58 = scmp.eq.s32.totalorder %s13, 7
    %p59 = scmp.ne.s32.totalorder %s54, %s56
    %p60 = scmp.eq.s32.totalorder %s13, 0
    %p61 = por %p59, %p60
    %p62 = scmp.ne.s32.totalorder %s54, %s56
    %p63 = scmp.eq.s32.totalorder %s18, 7
    %p64 = por %p62, %p63
    %p65 = scmp.ne.s32.totalorder %s56, %s57
    %p66 = scmp.eq.s32.totalorder %s18, 0
    %p67 = por %p65, %p66
    %p68 = scmp.ne.s32.totalorder %s56, %s57
    %p69 = scmp.eq.s32.totalorder %s19, 7
    %p70 = por %p68, %p69
    %p72 = scmp.ne.s32.totalorder %s57, %s71
    %p73 = scmp.eq.s32.totalorder %s19, 0
    %p74 = por %p72, %p73
    %s76 = sadd.s32 %s75, 1
    %p79 = scmp.eq.s32.totalorder %s13, 7
    %p80 = scmp.ne.s32.totalorder %s75, %s77
    %p81 = scmp.eq.s32.totalorder %s13, 0
    %p82 = por %p80, %p81
    %p83 = scmp.ne.s32.totalorder %s75, %s77
    %p84 = scmp.eq.s32.totalorder %s18, 7
    %p85 = por %p83, %p84
    %p86 = scmp.ne.s32.totalorder %s77, %s78
    %p87 = scmp.eq.s32.totalorder %s18, 0
    %p88 = por %p86, %p87
    %p89 = scmp.ne.s32.totalorder %s77, %s78
    %p90 = scmp.eq.s32.totalorder %s19, 7
    %p91 = por %p89, %p90
    %p93 = scmp.ne.s32.totalorder %s78, %s92
    %p94 = scmp.eq.s32.totalorder %s19, 0
    %p95 = por %p93, %p94
    %s96 = ssub.s32 %s20, %s32
    %s97 = ssub.s32 %s21, %s28
    %s98 = sor.u32 %s96, %s97
    %p99 = scmp.eq.s32.totalorder %s98, 0
    %s101 = sadd.s32 %s100, 1
    %s102 = scalar_select %p99, %s100, %s101
    %p105 = pneg %p99
    %p106 = scmp.eq.s32.totalorder %s13, 7
    %p107 = por %p105, %p106
    %p108 = scmp.ne.s32.totalorder %s100, %s103
    %p109 = scmp.eq.s32.totalorder %s13, 0
    %p110 = por %p108, %p109
    %p111 = scmp.ne.s32.totalorder %s100, %s103
    %p112 = scmp.eq.s32.totalorder %s18, 7
    %p113 = por %p111, %p112
    %p114 = scmp.ne.s32.totalorder %s103, %s104
    %p115 = scmp.eq.s32.totalorder %s18, 0
    %p116 = por %p114, %p115
    %p117 = scmp.ne.s32.totalorder %s103, %s104
    %p118 = scmp.eq.s32.totalorder %s19, 7
    %p119 = por %p117, %p118
    %p121 = scmp.ne.s32.totalorder %s104, %s120
    %p122 = scmp.eq.s32.totalorder %s19, 0
    %p123 = por %p121, %p122
    %s124 = ssub.s32 %s20, %s32
    %s125 = ssub.s32 %s21, %s28
    %s126 = sor.u32 %s124, %s125
    %p127 = scmp.eq.s32.totalorder %s126, 0
    %s129 = sadd.s32 %s128, 1
    %s130 = scalar_select %p127, %s128, %s129
    %p133 = pneg %p127
    %p134 = scmp.eq.s32.totalorder %s13, 7
    %p135 = por %p133, %p134
    %p136 = scmp.ne.s32.totalorder %s128, %s131
    %p137 = scmp.eq.s32.totalorder %s13, 0
    %p138 = por %p136, %p137
    %p139 = scmp.ne.s32.totalorder %s128, %s131
    %p140 = scmp.eq.s32.totalorder %s18, 7
    %p141 = por %p139, %p140
    %p142 = scmp.ne.s32.totalorder %s131, %s132
    %p143 = scmp.eq.s32.totalorder %s18, 0
    %p144 = por %p142, %p143
    %p145 = scmp.ne.s32.totalorder %s131, %s132
    %p146 = scmp.eq.s32.totalorder %s19, 7
    %p147 = por %p145, %p146
    %p149 = scmp.ne.s32.totalorder %s132, %s148
    %p150 = scmp.eq.s32.totalorder %s19, 0
    %p151 = por %p149, %p150
    %p152 = scmp.le.s32.totalorder 1, %s13
    %p153 = scmp.lt.s32.totalorder %s13, 9
    %p154 = pnand %p152, %p153
    %p155 = pneg %p154
    // Predicated region
    $region9: #{_lambda_.6} parent=5 // pred_check
      _
    $region10: #{_lambda_.6} parent=5 // pred_check_branch
      %157 = sbr.rel (%p154) target = $region12
    $region11: #{_lambda_.6} parent=5 // pred_region
      %s158 = ssub.s32 %s13, 1
      // Predicated region
      $region13: #{_lambda_.6} parent=11 // pred_check
        %p159 = pneg %p46
      $region14: #{_lambda_.6} parent=11 // pred_check_branch
        %161 = sbr.rel (%p159) target = $region16
      $region15: #{_lambda_.6} parent=11 // pred_region
        _
      $region16: #{_lambda_.6} parent=11 // pred_fallthru
        _
      // Predicated region
      $region17: #{_lambda_.6} parent=11 // pred_check
        %p162 = pneg %p67
      $region18: #{_lambda_.6} parent=11 // pred_check_branch
        %164 = sbr.rel (%p162) target = $region20
      $region19: #{_lambda_.6} parent=11 // pred_region
        _
      $region20: #{_lambda_.6} parent=11 // pred_fallthru
        _
      // Predicated region
      $region21: #{_lambda_.6} parent=11 // pred_check
        %p165 = pneg %p88
      $region22: #{_lambda_.6} parent=11 // pred_check_branch
        %167 = sbr.rel (%p165) target = $region24
      $region23: #{_lambda_.6} parent=11 // pred_region
        _
      $region24: #{_lambda_.6} parent=11 // pred_fallthru
        _
    $region12: #{_lambda_.6} parent=5 // pred_fallthru
      _
    %p168 = scmp.lt.s32.totalorder %s13, 8
    // Predicated region
    $region25: #{_lambda_.6} parent=5 // pred_check
      %p169 = pneg %p168
    $region26: #{_lambda_.6} parent=5 // pred_check_branch
      %171 = sbr.rel (%p169) target = $region28
    $region27: #{_lambda_.6} parent=5 // pred_region
      _
    $region28: #{_lambda_.6} parent=5 // pred_fallthru
      _
    %p172 = scmp.le.s32.totalorder 1, %s13
    %p173 = scmp.lt.s32.totalorder %s13, 9
    %p174 = pnand %p172, %p173
    %p175 = pneg %p174
    // Predicated region
    $region29: #{_lambda_.6} parent=5 // pred_check
      _
    $region30: #{_lambda_.6} parent=5 // pred_check_branch
      %177 = sbr.rel (%p174) target = $region32
    $region31: #{_lambda_.6} parent=5 // pred_region
      %s178 = ssub.s32 %s13, 1
      %p179 = pneg %p46
      %p180 = pneg %p43
      %p181 = pneg %p67
      %p182 = pneg %p64
      %p183 = pneg %p88
      %p184 = pneg %p85
      %p185 = pneg %p116
      %p186 = pneg %p113
      %s187 = smul.u32 4, %s23
      %p188 = scmp.lt.s32.totalorder %s22, 1
      %s189 = scalar_select %p188, %s22, 1
      %p190 = scmp.lt.s32.totalorder %s187, 15
      %s191 = scalar_select %p190, %s187, 15
      %s192 = smul.addr %s191, 2
      %s193 = smul.addr %s189, 32
      %s194 = sadd.s32 %s192, %s193
      %s195 = smul.addr %s194, 4
      %s196 = scalar_lea.vmem %s5, %s195
      %p197 = pneg %p144
      %p198 = pneg %p141
      %p199 = scmp.lt.s32.totalorder %s22, 1
      %s200 = scalar_select %p199, %s22, 1
      %p201 = scmp.lt.s32.totalorder %s23, 3
      %s202 = scalar_select %p201, %s23, 3
      %s203 = smul.addr %s200, 4
      %s204 = sadd.s32 %s202, %s203
      %s205 = smul.addr %s204, 2
      %s206 = scalar_lea.vmem %s6, %s205
      %s207 = smul.u32 4, %s23
      %p208 = scmp.lt.s32.totalorder %s22, 1
      %s209 = scalar_select %p208, %s22, 1
      %p210 = scmp.lt.s32.totalorder %s207, 15
      %s211 = scalar_select %p210, %s207, 15
      %s212 = smul.addr %s211, 2
      %s213 = smul.addr %s209, 32
      %s214 = sadd.s32 %s212, %s213
      %s215 = smul.addr %s214, 4
      %s216 = scalar_lea.vmem %s5, %s215
      %s217 = smul.u32 4, %s23
      %p218 = scmp.lt.s32.totalorder %s22, 1
      %s219 = scalar_select %p218, %s22, 1
      %p220 = scmp.lt.s32.totalorder %s23, 3
      %s221 = scalar_select %p220, %s23, 3
      %s222 = smul.addr %s219, 4
      %s223 = sadd.s32 %s221, %s222
      %s224 = smul.addr %s223, 2
      %s225 = scalar_lea.vmem %s6, %s224
      %p227 = scmp.lt.s32.totalorder %s23, 0
      %s228 = ssub.s32 0, %s23
      %s229 = scalar_select %p227, %s228, %s23
      %s230 = sand.u32 %s229, 1
      %s231 = ssub.s32 0, %s230
      %s232 = scalar_select %p227, %s231, %s230
      %p233 = scmp.ne.s32.totalorder %s232, 0
      %p234 = scmp.lt.s32.totalorder %s232, 0
      %p235 = pnand %p234, %p233
      %p236 = pneg %p235
      %s237 = sadd.s32 %s232, 2
      %s238 = scalar_select %p236, %s237, %s232
      %p239 = scmp.eq.s32.totalorder %s23, 0
      // Predicated region
      $region33: #{_lambda_.6} parent=31 // pred_check
        %p240 = pneg %p239
      $region34: #{_lambda_.6} parent=31 // pred_check_branch
        %242 = sbr.rel (%p240) target = $region36
      $region35: #{_lambda_.6} parent=31 // pred_region
        %s243 = smul.u32 %s22, 54
        %s244 = smul.addr %s243, 4
        %s245 = scalar_lea.vmem %s0, %s244
        %p247 = scmp.lt.u32.totalorder 72, 8
        %p248 = pneg %p247
        // Predicated region
        $region37: #{_lambda_.6} parent=35 // pred_check
          _
        $region38: #{_lambda_.6} parent=35 // pred_check_branch
          %250 = sbr.rel (%p247) target = $region40
        $region39: #{_lambda_.6} parent=35 // pred_region
          %s266 = sand.u32 72, 7
          %p267 = scmp.eq.s32.totalorder %s266, 0
          // Predicated region
          $region52: #{_lambda_.6} parent=39 // pred_check
            %p268 = pneg %p267
          $region53: #{_lambda_.6} parent=39 // pred_check_branch
            %270 = sbr.rel (%p268) target = $region55
          $region54: #{_lambda_.6} parent=39 // pred_region
            loop: start=0, step=1, limit=1
            $region56: #{_lambda_.6} parent=54 // loop_pre_header
              _
            $region57: #{_lambda_.6} parent=54 // loop_header
              %s272 = sphi 0, %s276
              %p273 = scmp.ge.s32.totalorder %s272, 1
              %s277 = sphi %s245, %s245
              %s278 = sphi [#allocation2], [#allocation2]
            $region58: #{_lambda_.6} parent=54 // loop_header_branch
              %275 = sbr.rel (%p273) target = $region62
            $region59: #{_lambda_.6} parent=54 // loop_body
              %v279 = vld [vmem:[%s277] sm:$0xff]
              %280 = vst [vmem:[%s278] sm:$0xff] %v279
              %v281 = vld [vmem:[%s277 + $0x8] sm:$0xff]
              %282 = vst [vmem:[%s278 + $0x8] sm:$0xff] %v281
              %v283 = vld [vmem:[%s277 + $0x10] sm:$0xff]
              %284 = vst [vmem:[%s278 + $0x10] sm:$0xff] %v283
              %v285 = vld [vmem:[%s277 + $0x18] sm:$0xff]
              %286 = vst [vmem:[%s278 + $0x18] sm:$0xff] %v285
              %v287 = vld [vmem:[%s277 + $0x20] sm:$0xff]
              %288 = vst [vmem:[%s278 + $0x20] sm:$0xff] %v287
              %v289 = vld [vmem:[%s277 + $0x28] sm:$0xff]
              %290 = vst [vmem:[%s278 + $0x28] sm:$0xff] %v289
              %v291 = vld [vmem:[%s277 + $0x30] sm:$0xff]
              %292 = vst [vmem:[%s278 + $0x30] sm:$0xff] %v291
              %v293 = vld [vmem:[%s277 + $0x38] sm:$0xff]
              %294 = vst [vmem:[%s278 + $0x38] sm:$0xff] %v293
              %v295 = vld [vmem:[%s277 + $0x40] sm:$0xff]
              %296 = vst [vmem:[%s278 + $0x40] sm:$0xff] %v295
            $region60: #{_lambda_.6} parent=54 // loop_footer
              %s276 = sadd.s32 1, %s272
            $region61: #{_lambda_.6} parent=54 // loop_footer_branch
              %271 = sbr.rel target = $region57
            $region62: #{_lambda_.6} parent=54 // loop_exit
              _
          $region55: #{_lambda_.6} parent=39 // pred_fallthru
            _
          %p297 = pneg %p267
          // Predicated region
          $region63: #{_lambda_.6} parent=39 // pred_check
            _
          $region64: #{_lambda_.6} parent=39 // pred_check_branch
            %299 = sbr.rel (%p267) target = $region66
          $region65: #{_lambda_.6} parent=39 // pred_region
            %s300 = sand.u32 72, 7
          $region66: #{_lambda_.6} parent=39 // pred_fallthru
            _
        $region40: #{_lambda_.6} parent=35 // pred_fallthru
          _
        // Predicated region
        $region41: #{_lambda_.6} parent=35 // pred_check
          %p251 = pneg %p247
        $region42: #{_lambda_.6} parent=35 // pred_check_branch
          %253 = sbr.rel (%p251) target = $region44
        $region43: #{_lambda_.6} parent=35 // pred_region
          %s254 = sshll.u32 1, 72
          %s255 = ssub.s32 %s254, 1
          loop: start=0, step=1, limit=1
          $region45: #{_lambda_.6} parent=43 // loop_pre_header
            _
          $region46: #{_lambda_.6} parent=43 // loop_header
            %s257 = sphi 0, %s261
            %p258 = scmp.ge.s32.totalorder %s257, 1
            %s262 = sphi %s245, %s245
            %s263 = sphi [#allocation2], [#allocation2]
          $region47: #{_lambda_.6} parent=43 // loop_header_branch
            %260 = sbr.rel (%p258) target = $region51
          $region48: #{_lambda_.6} parent=43 // loop_body
            %v264 = vld [vmem:[%s262] sm:%s255]
            %265 = vst [vmem:[%s263] sm:%s255] %v264
          $region49: #{_lambda_.6} parent=43 // loop_footer
            %s261 = sadd.s32 1, %s257
          $region50: #{_lambda_.6} parent=43 // loop_footer_branch
            %256 = sbr.rel target = $region46
          $region51: #{_lambda_.6} parent=43 // loop_exit
            _
        $region44: #{_lambda_.6} parent=35 // pred_fallthru
          _
        // Predicated region
        $region67: #{_lambda_.6} parent=35 // pred_check
          _
        $region68: #{_lambda_.6} parent=35 // pred_check_branch
          %303 = sbr.rel (0) target = $region70
        $region69: #{_lambda_.6} parent=35 // pred_region
          %304 = vsyncadd [#allocation4], 1152
        $region70: #{_lambda_.6} parent=35 // pred_fallthru
          _
        %s305 = smul.addr %s243, 4
        %s306 = scalar_lea.vmem %s1, %s305
        %s307 = scalar_lea.sflag [#allocation4], 2
        %p309 = scmp.lt.u32.totalorder 72, 8
        %p310 = pneg %p309
        // Predicated region
        $region71: #{_lambda_.6} parent=35 // pred_check
          _
        $region72: #{_lambda_.6} parent=35 // pred_check_branch
          %312 = sbr.rel (%p309) target = $region74
        $region73: #{_lambda_.6} parent=35 // pred_region
          %s328 = sand.u32 72, 7
          %p329 = scmp.eq.s32.totalorder %s328, 0
          // Predicated region
          $region86: #{_lambda_.6} parent=73 // pred_check
            %p330 = pneg %p329
          $region87: #{_lambda_.6} parent=73 // pred_check_branch
            %332 = sbr.rel (%p330) target = $region89
          $region88: #{_lambda_.6} parent=73 // pred_region
            loop: start=0, step=1, limit=1
            $region90: #{_lambda_.6} parent=88 // loop_pre_header
              _
            $region91: #{_lambda_.6} parent=88 // loop_header
              %s334 = sphi 0, %s338
              %p335 = scmp.ge.s32.totalorder %s334, 1
              %s339 = sphi %s306, %s306
              %s340 = sphi [#allocation3], [#allocation3]
            $region92: #{_lambda_.6} parent=88 // loop_header_branch
              %337 = sbr.rel (%p335) target = $region96
            $region93: #{_lambda_.6} parent=88 // loop_body
              %v341 = vld [vmem:[%s339] sm:$0xff]
              %342 = vst [vmem:[%s340] sm:$0xff] %v341
              %v343 = vld [vmem:[%s339 + $0x8] sm:$0xff]
              %344 = vst [vmem:[%s340 + $0x8] sm:$0xff] %v343
              %v345 = vld [vmem:[%s339 + $0x10] sm:$0xff]
              %346 = vst [vmem:[%s340 + $0x10] sm:$0xff] %v345
              %v347 = vld [vmem:[%s339 + $0x18] sm:$0xff]
              %348 = vst [vmem:[%s340 + $0x18] sm:$0xff] %v347
              %v349 = vld [vmem:[%s339 + $0x20] sm:$0xff]
              %350 = vst [vmem:[%s340 + $0x20] sm:$0xff] %v349
              %v351 = vld [vmem:[%s339 + $0x28] sm:$0xff]
              %352 = vst [vmem:[%s340 + $0x28] sm:$0xff] %v351
              %v353 = vld [vmem:[%s339 + $0x30] sm:$0xff]
              %354 = vst [vmem:[%s340 + $0x30] sm:$0xff] %v353
              %v355 = vld [vmem:[%s339 + $0x38] sm:$0xff]
              %356 = vst [vmem:[%s340 + $0x38] sm:$0xff] %v355
              %v357 = vld [vmem:[%s339 + $0x40] sm:$0xff]
              %358 = vst [vmem:[%s340 + $0x40] sm:$0xff] %v357
            $region94: #{_lambda_.6} parent=88 // loop_footer
              %s338 = sadd.s32 1, %s334
            $region95: #{_lambda_.6} parent=88 // loop_footer_branch
              %333 = sbr.rel target = $region91
            $region96: #{_lambda_.6} parent=88 // loop_exit
              _
          $region89: #{_lambda_.6} parent=73 // pred_fallthru
            _
          %p359 = pneg %p329
          // Predicated region
          $region97: #{_lambda_.6} parent=73 // pred_check
            _
          $region98: #{_lambda_.6} parent=73 // pred_check_branch
            %361 = sbr.rel (%p329) target = $region100
          $region99: #{_lambda_.6} parent=73 // pred_region
            %s362 = sand.u32 72, 7
          $region100: #{_lambda_.6} parent=73 // pred_fallthru
            _
        $region74: #{_lambda_.6} parent=35 // pred_fallthru
          _
        // Predicated region
        $region75: #{_lambda_.6} parent=35 // pred_check
          %p313 = pneg %p309
        $region76: #{_lambda_.6} parent=35 // pred_check_branch
          %315 = sbr.rel (%p313) target = $region78
        $region77: #{_lambda_.6} parent=35 // pred_region
          %s316 = sshll.u32 1, 72
          %s317 = ssub.s32 %s316, 1
          loop: start=0, step=1, limit=1
          $region79: #{_lambda_.6} parent=77 // loop_pre_header
            _
          $region80: #{_lambda_.6} parent=77 // loop_header
            %s319 = sphi 0, %s323
            %p320 = scmp.ge.s32.totalorder %s319, 1
            %s324 = sphi %s306, %s306
            %s325 = sphi [#allocation3], [#allocation3]
          $region81: #{_lambda_.6} parent=77 // loop_header_branch
            %322 = sbr.rel (%p320) target = $region85
          $region82: #{_lambda_.6} parent=77 // loop_body
            %v326 = vld [vmem:[%s324] sm:%s317]
            %327 = vst [vmem:[%s325] sm:%s317] %v326
          $region83: #{_lambda_.6} parent=77 // loop_footer
            %s323 = sadd.s32 1, %s319
          $region84: #{_lambda_.6} parent=77 // loop_footer_branch
            %318 = sbr.rel target = $region80
          $region85: #{_lambda_.6} parent=77 // loop_exit
            _
        $region78: #{_lambda_.6} parent=35 // pred_fallthru
          _
        // Predicated region
        $region101: #{_lambda_.6} parent=35 // pred_check
          _
        $region102: #{_lambda_.6} parent=35 // pred_check_branch
          %365 = sbr.rel (0) target = $region104
        $region103: #{_lambda_.6} parent=35 // pred_region
          %366 = vsyncadd %s307, 1152
        $region104: #{_lambda_.6} parent=35 // pred_fallthru
          _
      $region36: #{_lambda_.6} parent=31 // pred_fallthru
        _
      %s367 = smul.u32 %s238, 18
      %s368 = smul.addr %s367, 4
      %s369 = scalar_lea.vmem [#allocation2], %s368
      %s370 = scalar_lea.sflag [#allocation4], %s238
      %s371 = smul.u32 4, 18
      %s372 = smul.u32 %s371, 1
      %s373 = sshll.u32 %s372, 4
      %374 = dma.done %s370, %s373
      %s375 = smul.addr %s367, 4
      %s376 = scalar_lea.vmem [#allocation3], %s375
      %s377 = sadd.s32 %s238, 2
      %s378 = scalar_lea.sflag [#allocation4], %s377
      %s379 = sshll.u32 %s372, 4
      %380 = dma.done %s378, %s379
      %s381 = sadd.s32 %s23, 1
      %p382 = scmp.lt.s32.totalorder %s381, 4
      // Predicated region
      $region105: #{_lambda_.6} parent=31 // pred_check
        %p383 = pneg %p382
      $region106: #{_lambda_.6} parent=31 // pred_check_branch
        %385 = sbr.rel (%p383) target = $region108
      $region107: #{_lambda_.6} parent=31 // pred_region
        %s386 = ssub.s32 1, %s238
        %s387 = smul.u32 %s381, 96
        %s388 = sshra.s32 %s387, 3
        %s389 = sand.u32 %s387, 7
        %s390 = smul.u32 %s22, 54
        %s391 = sadd.s32 %s388, %s390
        %s392 = smul.addr %s391, 4
        %s393 = scalar_lea.vmem %s0, %s392
        %s394 = smul.u32 %s386, 18
        %s395 = smul.addr %s394, 4
        %s396 = scalar_lea.vmem [#allocation2], %s395
        %s397 = scalar_lea.sflag [#allocation4], %s386
        %p399 = scmp.lt.u32.totalorder 72, 8
        %p400 = pneg %p399
        // Predicated region
        $region109: #{_lambda_.6} parent=107 // pred_check
          _
        $region110: #{_lambda_.6} parent=107 // pred_check_branch
          %402 = sbr.rel (%p399) target = $region112
        $region111: #{_lambda_.6} parent=107 // pred_region
          %s418 = sand.u32 72, 7
          %p419 = scmp.eq.s32.totalorder %s418, 0
          // Predicated region
          $region124: #{_lambda_.6} parent=111 // pred_check
            %p420 = pneg %p419
          $region125: #{_lambda_.6} parent=111 // pred_check_branch
            %422 = sbr.rel (%p420) target = $region127
          $region126: #{_lambda_.6} parent=111 // pred_region
            loop: start=0, step=1, limit=1
            $region128: #{_lambda_.6} parent=126 // loop_pre_header
              _
            $region129: #{_lambda_.6} parent=126 // loop_header
              %s424 = sphi 0, %s428
              %p425 = scmp.ge.s32.totalorder %s424, 1
              %s429 = sphi %s393, %s393
              %s430 = sphi %s396, %s396
            $region130: #{_lambda_.6} parent=126 // loop_header_branch
              %427 = sbr.rel (%p425) target = $region134
            $region131: #{_lambda_.6} parent=126 // loop_body
              %v431 = vld [vmem:[%s429] sm:$0xff]
              %432 = vst [vmem:[%s430] sm:$0xff] %v431
              %v433 = vld [vmem:[%s429 + $0x8] sm:$0xff]
              %434 = vst [vmem:[%s430 + $0x8] sm:$0xff] %v433
              %v435 = vld [vmem:[%s429 + $0x10] sm:$0xff]
              %436 = vst [vmem:[%s430 + $0x10] sm:$0xff] %v435
              %v437 = vld [vmem:[%s429 + $0x18] sm:$0xff]
              %438 = vst [vmem:[%s430 + $0x18] sm:$0xff] %v437
              %v439 = vld [vmem:[%s429 + $0x20] sm:$0xff]
              %440 = vst [vmem:[%s430 + $0x20] sm:$0xff] %v439
              %v441 = vld [vmem:[%s429 + $0x28] sm:$0xff]
              %442 = vst [vmem:[%s430 + $0x28] sm:$0xff] %v441
              %v443 = vld [vmem:[%s429 + $0x30] sm:$0xff]
              %444 = vst [vmem:[%s430 + $0x30] sm:$0xff] %v443
              %v445 = vld [vmem:[%s429 + $0x38] sm:$0xff]
              %446 = vst [vmem:[%s430 + $0x38] sm:$0xff] %v445
              %v447 = vld [vmem:[%s429 + $0x40] sm:$0xff]
              %448 = vst [vmem:[%s430 + $0x40] sm:$0xff] %v447
            $region132: #{_lambda_.6} parent=126 // loop_footer
              %s428 = sadd.s32 1, %s424
            $region133: #{_lambda_.6} parent=126 // loop_footer_branch
              %423 = sbr.rel target = $region129
            $region134: #{_lambda_.6} parent=126 // loop_exit
              _
          $region127: #{_lambda_.6} parent=111 // pred_fallthru
            _
          %p449 = pneg %p419
          // Predicated region
          $region135: #{_lambda_.6} parent=111 // pred_check
            _
          $region136: #{_lambda_.6} parent=111 // pred_check_branch
            %451 = sbr.rel (%p419) target = $region138
          $region137: #{_lambda_.6} parent=111 // pred_region
            %s452 = sand.u32 72, 7
          $region138: #{_lambda_.6} parent=111 // pred_fallthru
            _
        $region112: #{_lambda_.6} parent=107 // pred_fallthru
          _
        // Predicated region
        $region113: #{_lambda_.6} parent=107 // pred_check
          %p403 = pneg %p399
        $region114: #{_lambda_.6} parent=107 // pred_check_branch
          %405 = sbr.rel (%p403) target = $region116
        $region115: #{_lambda_.6} parent=107 // pred_region
          %s406 = sshll.u32 1, 72
          %s407 = ssub.s32 %s406, 1
          loop: start=0, step=1, limit=1
          $region117: #{_lambda_.6} parent=115 // loop_pre_header
            _
          $region118: #{_lambda_.6} parent=115 // loop_header
            %s409 = sphi 0, %s413
            %p410 = scmp.ge.s32.totalorder %s409, 1
            %s414 = sphi %s393, %s393
            %s415 = sphi %s396, %s396
          $region119: #{_lambda_.6} parent=115 // loop_header_branch
            %412 = sbr.rel (%p410) target = $region123
          $region120: #{_lambda_.6} parent=115 // loop_body
            %v416 = vld [vmem:[%s414] sm:%s407]
            %417 = vst [vmem:[%s415] sm:%s407] %v416
          $region121: #{_lambda_.6} parent=115 // loop_footer
            %s413 = sadd.s32 1, %s409
          $region122: #{_lambda_.6} parent=115 // loop_footer_branch
            %408 = sbr.rel target = $region118
          $region123: #{_lambda_.6} parent=115 // loop_exit
            _
        $region116: #{_lambda_.6} parent=107 // pred_fallthru
          _
        // Predicated region
        $region139: #{_lambda_.6} parent=107 // pred_check
          _
        $region140: #{_lambda_.6} parent=107 // pred_check_branch
          %455 = sbr.rel (0) target = $region142
        $region141: #{_lambda_.6} parent=107 // pred_region
          %456 = vsyncadd %s397, 1152
        $region142: #{_lambda_.6} parent=107 // pred_fallthru
          _
        %s457 = smul.addr %s391, 4
        %s458 = scalar_lea.vmem %s1, %s457
        %s459 = smul.addr %s394, 4
        %s460 = scalar_lea.vmem [#allocation3], %s459
        %s461 = sadd.s32 %s386, 2
        %s462 = scalar_lea.sflag [#allocation4], %s461
        %p464 = scmp.lt.u32.totalorder 72, 8
        %p465 = pneg %p464
        // Predicated region
        $region143: #{_lambda_.6} parent=107 // pred_check
          _
        $region144: #{_lambda_.6} parent=107 // pred_check_branch
          %467 = sbr.rel (%p464) target = $region146
        $region145: #{_lambda_.6} parent=107 // pred_region
          %s483 = sand.u32 72, 7
          %p484 = scmp.eq.s32.totalorder %s483, 0
          // Predicated region
          $region158: #{_lambda_.6} parent=145 // pred_check
            %p485 = pneg %p484
          $region159: #{_lambda_.6} parent=145 // pred_check_branch
            %487 = sbr.rel (%p485) target = $region161
          $region160: #{_lambda_.6} parent=145 // pred_region
            loop: start=0, step=1, limit=1
            $region162: #{_lambda_.6} parent=160 // loop_pre_header
              _
            $region163: #{_lambda_.6} parent=160 // loop_header
              %s489 = sphi 0, %s493
              %p490 = scmp.ge.s32.totalorder %s489, 1
              %s494 = sphi %s458, %s458
              %s495 = sphi %s460, %s460
            $region164: #{_lambda_.6} parent=160 // loop_header_branch
              %492 = sbr.rel (%p490) target = $region168
            $region165: #{_lambda_.6} parent=160 // loop_body
              %v496 = vld [vmem:[%s494] sm:$0xff]
              %497 = vst [vmem:[%s495] sm:$0xff] %v496
              %v498 = vld [vmem:[%s494 + $0x8] sm:$0xff]
              %499 = vst [vmem:[%s495 + $0x8] sm:$0xff] %v498
              %v500 = vld [vmem:[%s494 + $0x10] sm:$0xff]
              %501 = vst [vmem:[%s495 + $0x10] sm:$0xff] %v500
              %v502 = vld [vmem:[%s494 + $0x18] sm:$0xff]
              %503 = vst [vmem:[%s495 + $0x18] sm:$0xff] %v502
              %v504 = vld [vmem:[%s494 + $0x20] sm:$0xff]
              %505 = vst [vmem:[%s495 + $0x20] sm:$0xff] %v504
              %v506 = vld [vmem:[%s494 + $0x28] sm:$0xff]
              %507 = vst [vmem:[%s495 + $0x28] sm:$0xff] %v506
              %v508 = vld [vmem:[%s494 + $0x30] sm:$0xff]
              %509 = vst [vmem:[%s495 + $0x30] sm:$0xff] %v508
              %v510 = vld [vmem:[%s494 + $0x38] sm:$0xff]
              %511 = vst [vmem:[%s495 + $0x38] sm:$0xff] %v510
              %v512 = vld [vmem:[%s494 + $0x40] sm:$0xff]
              %513 = vst [vmem:[%s495 + $0x40] sm:$0xff] %v512
            $region166: #{_lambda_.6} parent=160 // loop_footer
              %s493 = sadd.s32 1, %s489
            $region167: #{_lambda_.6} parent=160 // loop_footer_branch
              %488 = sbr.rel target = $region163
            $region168: #{_lambda_.6} parent=160 // loop_exit
              _
          $region161: #{_lambda_.6} parent=145 // pred_fallthru
            _
          %p514 = pneg %p484
          // Predicated region
          $region169: #{_lambda_.6} parent=145 // pred_check
            _
          $region170: #{_lambda_.6} parent=145 // pred_check_branch
            %516 = sbr.rel (%p484) target = $region172
          $region171: #{_lambda_.6} parent=145 // pred_region
            %s517 = sand.u32 72, 7
          $region172: #{_lambda_.6} parent=145 // pred_fallthru
            _
        $region146: #{_lambda_.6} parent=107 // pred_fallthru
          _
        // Predicated region
        $region147: #{_lambda_.6} parent=107 // pred_check
          %p468 = pneg %p464
        $region148: #{_lambda_.6} parent=107 // pred_check_branch
          %470 = sbr.rel (%p468) target = $region150
        $region149: #{_lambda_.6} parent=107 // pred_region
          %s471 = sshll.u32 1, 72
          %s472 = ssub.s32 %s471, 1
          loop: start=0, step=1, limit=1
          $region151: #{_lambda_.6} parent=149 // loop_pre_header
            _
          $region152: #{_lambda_.6} parent=149 // loop_header
            %s474 = sphi 0, %s478
            %p475 = scmp.ge.s32.totalorder %s474, 1
            %s479 = sphi %s458, %s458
            %s480 = sphi %s460, %s460
          $region153: #{_lambda_.6} parent=149 // loop_header_branch
            %477 = sbr.rel (%p475) target = $region157
          $region154: #{_lambda_.6} parent=149 // loop_body
            %v481 = vld [vmem:[%s479] sm:%s472]
            %482 = vst [vmem:[%s480] sm:%s472] %v481
          $region155: #{_lambda_.6} parent=149 // loop_footer
            %s478 = sadd.s32 1, %s474
          $region156: #{_lambda_.6} parent=149 // loop_footer_branch
            %473 = sbr.rel target = $region152
          $region157: #{_lambda_.6} parent=149 // loop_exit
            _
        $region150: #{_lambda_.6} parent=107 // pred_fallthru
          _
        // Predicated region
        $region173: #{_lambda_.6} parent=107 // pred_check
          _
        $region174: #{_lambda_.6} parent=107 // pred_check_branch
          %520 = sbr.rel (0) target = $region176
        $region175: #{_lambda_.6} parent=107 // pred_region
          %521 = vsyncadd %s462, 1152
        $region176: #{_lambda_.6} parent=107 // pred_fallthru
          _
      $region108: #{_lambda_.6} parent=31 // pred_fallthru
        _
      %v522 = vld [vmem:[%s369] sm:$0xf]
      %v523 = vld [vmem:[%s369 + $0x4] sm:$0xf]
      %v524 = vld [vmem:[%s369 + $0x8] sm:$0xf]
      %v525 = vld [vmem:[%s369 + $0xc] sm:$0xf]
      %v526 = vld [vmem:[%s369 + $0x10] sm:$0xf]
      %v527 = vld [vmem:[%s369 + $0x14] sm:$0xf]
      %v528 = vld [vmem:[%s369 + $0x18] sm:$0xf]
      %v529 = vld [vmem:[%s369 + $0x1c] sm:$0xf]
      %v530 = vld [vmem:[%s369 + $0x20] sm:$0xf]
      %v531 = vld [vmem:[%s369 + $0x24] sm:$0xf]
      %v532 = vld [vmem:[%s369 + $0x28] sm:$0xf]
      %v533 = vld [vmem:[%s369 + $0x2c] sm:$0xf]
      %v534 = vld [vmem:[%s2] sm:$0xf]
      %v535 = vld [vmem:[%s2 + $0x4] sm:$0xf]
      %v536 = vld [vmem:[%s2 + $0x8] sm:$0xf]
      %v537 = vld [vmem:[%s2 + $0xc] sm:$0xf]
      %v538 = vld [vmem:[%s2 + $0x10] sm:$0xf]
      %v539 = vld [vmem:[%s2 + $0x14] sm:$0xf]
      %v540 = vld [vmem:[%s2 + $0x18] sm:$0xf]
      %v541 = vld [vmem:[%s2 + $0x1c] sm:$0xf]
      %v542 = vld [vmem:[%s2 + $0x20] sm:$0xf]
      %v543 = vld [vmem:[%s2 + $0x24] sm:$0xf]
      %v544 = vld [vmem:[%s2 + $0x28] sm:$0xf]
      %v545 = vld [vmem:[%s2 + $0x2c] sm:$0xf]
      %v546 = vld [vmem:[%s2 + $0x30] sm:$0xf]
      %v547 = vld [vmem:[%s2 + $0x34] sm:$0xf]
      %v548 = vld [vmem:[%s2 + $0x38] sm:$0xf]
      %v549 = vld [vmem:[%s2 + $0x3c] sm:$0xf]
      %v550 = vld [vmem:[%s369 + $0x30] sm:$0xf]
      %v551 = vld [vmem:[%s369 + $0x34] sm:$0xf]
      %v552 = vld [vmem:[%s369 + $0x38] sm:$0xf]
      %s553 = scalar_lea.vmem %s2, 192
      %v554 = vld [vmem:[%s553] sm:$0xf]
      %v555 = vld [vmem:[%s553 + $0x4] sm:$0xf]
      %v556 = vld [vmem:[%s553 + $0x8] sm:$0xf]
      %v557 = vld [vmem:[%s553 + $0xc] sm:$0xf]
      %v558 = vld [vmem:[%s553 + $0x10] sm:$0xf]
      %v559 = vld [vmem:[%s553 + $0x14] sm:$0xf]
      %v560 = vld [vmem:[%s553 + $0x18] sm:$0xf]
      %v561 = vld [vmem:[%s553 + $0x1c] sm:$0xf]
      %v562 = vld [vmem:[%s553 + $0x20] sm:$0xf]
      %v563 = vld [vmem:[%s553 + $0x24] sm:$0xf]
      %v564 = vld [vmem:[%s553 + $0x28] sm:$0xf]
      %v565 = vld [vmem:[%s553 + $0x2c] sm:$0xf]
      %v566 = vld [vmem:[%s553 + $0x30] sm:$0xf]
      %v567 = vld [vmem:[%s553 + $0x34] sm:$0xf]
      %v568 = vld [vmem:[%s553 + $0x38] sm:$0xf]
      %v569 = vld [vmem:[%s553 + $0x3c] sm:$0xf]
      %v582 = vunpack.c.l.b16 %v525
      %v583 = vunpack.c.l.b16 %v526
      %v584 = vunpack.c.l.b16 %v527
      %v585 = vunpack.c.l.b16 %v528
      %v586 = vunpack.c.l.b16 %v529
      %v587 = vunpack.c.l.b16 %v530
      %v588 = vunpack.c.l.b16 %v531
      %v589 = vunpack.c.l.b16 %v532
      %v590 = vunpack.c.l.b16 %v533
      %v591 = vunpack.c.l.b16 %v550
      %v592 = vunpack.c.l.b16 %v551
      %v593 = vunpack.c.l.b16 %v552
      %v594 = vpack.c.b16 %v583, %v582
      %v595 = vpack.c.b16 %v585, %v584
      %v596 = vpack.c.b16 %v587, %v586
      %v597 = vpack.c.b16 %v589, %v588
      %v598 = vpack.c.b16 %v591, %v590
      %v599 = vpack.c.b16 %v593, %v592
      %v622 = vunpack.c.l.b16 %v554
      %v623 = vunpack.c.l.b16 %v555
      %v624 = vunpack.c.l.b16 %v556
      %v625 = vunpack.c.l.b16 %v557
      %v626 = vunpack.c.l.b16 %v558
      %v627 = vunpack.c.l.b16 %v559
      %v628 = vunpack.c.l.b16 %v560
      %v629 = vunpack.c.l.b16 %v561
      %v630 = vunpack.c.l.b16 %v562
      %v631 = vunpack.c.l.b16 %v563
      %v632 = vunpack.c.l.b16 %v564
      %v633 = vunpack.c.l.b16 %v565
      %v634 = vunpack.c.l.b16 %v566
      %v635 = vunpack.c.l.b16 %v567
      %v636 = vunpack.c.l.b16 %v568
      %v637 = vunpack.c.l.b16 %v569
      %v638 = vpack.c.b16 %v623, %v622
      %v639 = vpack.c.b16 %v625, %v624
      %v640 = vpack.c.b16 %v627, %v626
      %v641 = vpack.c.b16 %v629, %v628
      %v642 = vpack.c.b16 %v631, %v630
      %v643 = vpack.c.b16 %v633, %v632
      %v644 = vpack.c.b16 %v635, %v634
      %v645 = vpack.c.b16 %v637, %v636
      %654 = vmatprep.subr.bf16.mxu0 0
      %655 = vmatpush1.bf16.msra.mxu0 %v645
      %656 = vmatprep.subr.bf16.mxu0 0
      %657 = vmatpush1.bf16.msra.mxu0 %v644
      %658 = vmatprep.subr.bf16.mxu0 0
      %659 = vmatpush1.bf16.msra.mxu0 %v643
      %660 = vmatprep.subr.bf16.mxu0 0
      %661 = vmatpush1.bf16.msra.mxu0 %v642
      %662 = vmatprep.subr.bf16.mxu0 0
      %663 = vmatpush1.bf16.msra.mxu0 %v641
      %664 = vmatprep.subr.bf16.mxu0 0
      %665 = vmatpush1.bf16.msra.mxu0 %v640
      %666 = vmatprep.subr.bf16.mxu0 0
      %667 = vmatpush1.bf16.msra.mxu0 %v639
      %668 = vmatprep.subr.bf16.mxu0 0
      %669 = vmatpush1.bf16.msra.mxu0 %v638
      %670 = vmatprep.subr.bf16.mxu0 0
      %671 = vmatpush2.bf16.msra.mxu0 0
      %672 = vmatprep.subr.bf16.mxu0 0
      %673 = vmatpush2.bf16.msra.mxu0 0
      %674 = vmatprep.subr.bf16.mxu0 0
      %675 = vmatpush2.bf16.msra.mxu0 0
      %676 = vmatprep.subr.bf16.mxu0 0
      %677 = vmatpush2.bf16.msra.mxu0 0
      %678 = vmatprep.subr.bf16.mxu0 0
      %679 = vmatpush2.bf16.msra.mxu0 0
      %680 = vmatprep.subr.bf16.mxu0 0
      %681 = vmatpush2.bf16.msra.mxu0 0
      %682 = vmatprep.subr.bf16.mxu0 0
      %683 = vmatpush2.bf16.msra.mxu0 0
      %684 = vmatprep.subr.bf16.mxu0 0
      %685 = vmatpush2.bf16.msra.mxu0 0
      %686 = vmatprep.mubr.bf16.mxu0 0
      %687 = vmatmul.mubr.bf16.gmra.mxu0 %v594
      %v688 = vpop.f32.mrf.mxu0
      %v689 = vadd.f32 0.0, %v688
      %v690 = vpop.f32.mrf.mxu0
      %v691 = vpop.f32.mrf.mxu0
      %v692 = vadd.f32 0.0, %v691
      %v693 = vpop.f32.mrf.mxu0
      %694 = vmatprep.mubr.bf16.mxu0 0
      %695 = vmatmul.mubr.bf16.gmra.mxu0 %v595
      %v696 = vpop.f32.mrf.mxu0
      %v697 = vadd.f32 0.0, %v696
      %v698 = vpop.f32.mrf.mxu0
      %v699 = vpop.f32.mrf.mxu0
      %v700 = vadd.f32 0.0, %v699
      %v701 = vpop.f32.mrf.mxu0
      %702 = vmatprep.mubr.bf16.mxu0 0
      %703 = vmatmul.mubr.bf16.gmra.mxu0 %v596
      %v704 = vpop.f32.mrf.mxu0
      %v705 = vadd.f32 0.0, %v704
      %v706 = vpop.f32.mrf.mxu0
      %v707 = vpop.f32.mrf.mxu0
      %v708 = vadd.f32 0.0, %v707
      %v709 = vpop.f32.mrf.mxu0
      %710 = vmatprep.mubr.bf16.mxu0 0
      %711 = vmatmul.mubr.bf16.gmra.mxu0 %v597
      %v712 = vpop.f32.mrf.mxu0
      %v713 = vadd.f32 0.0, %v712
      %v714 = vpop.f32.mrf.mxu0
      %v715 = vpop.f32.mrf.mxu0
      %v716 = vadd.f32 0.0, %v715
      %v717 = vpop.f32.mrf.mxu0
      %718 = vmatprep.mubr.bf16.mxu0 0
      %719 = vmatmul.mubr.bf16.gmra.mxu0 %v598
      %v720 = vpop.f32.mrf.mxu0
      %v721 = vadd.f32 0.0, %v720
      %v722 = vpop.f32.mrf.mxu0
      %v723 = vpop.f32.mrf.mxu0
      %v724 = vadd.f32 0.0, %v723
      %v725 = vpop.f32.mrf.mxu0
      %726 = vmatprep.mubr.bf16.mxu0 0
      %727 = vmatmul.mubr.bf16.gmra.mxu0 %v599
      %v728 = vpop.f32.mrf.mxu0
      %v729 = vadd.f32 0.0, %v728
      %v730 = vpop.f32.mrf.mxu0
      %v731 = vpop.f32.mrf.mxu0
      %v732 = vadd.f32 0.0, %v731
      %v733 = vpop.f32.mrf.mxu0
      %734 = vdwg.mxu0
      %v738 = vunpack.c.l.b16 %v522
      %v739 = vunpack.c.l.b16 %v523
      %v740 = vunpack.c.l.b16 %v524
      %v741 = vpack.c.b16 %v739, %v738
      %v742 = vpack.c.b16 %v582, %v740
      %v743 = vpack.c.b16 %v584, %v583
      %v744 = vpack.c.b16 %v586, %v585
      %v745 = vpack.c.b16 %v588, %v587
      %v746 = vpack.c.b16 %v590, %v589
      %v769 = vunpack.c.l.b16 %v534
      %v770 = vunpack.c.l.b16 %v535
      %v771 = vunpack.c.l.b16 %v536
      %v772 = vunpack.c.l.b16 %v537
      %v773 = vunpack.c.l.b16 %v538
      %v774 = vunpack.c.l.b16 %v539
      %v775 = vunpack.c.l.b16 %v540
      %v776 = vunpack.c.l.b16 %v541
      %v777 = vunpack.c.l.b16 %v542
      %v778 = vunpack.c.l.b16 %v543
      %v779 = vunpack.c.l.b16 %v544
      %v780 = vunpack.c.l.b16 %v545
      %v781 = vunpack.c.l.b16 %v546
      %v782 = vunpack.c.l.b16 %v547
      %v783 = vunpack.c.l.b16 %v548
      %v784 = vunpack.c.l.b16 %v549
      %v785 = vpack.c.b16 %v770, %v769
      %v786 = vpack.c.b16 %v772, %v771
      %v787 = vpack.c.b16 %v774, %v773
      %v788 = vpack.c.b16 %v776, %v775
      %v789 = vpack.c.b16 %v778, %v777
      %v790 = vpack.c.b16 %v780, %v779
      %v791 = vpack.c.b16 %v782, %v781
      %v792 = vpack.c.b16 %v784, %v783
      %801 = vmatprep.subr.bf16.mxu0 0
      %802 = vmatpush1.bf16.msra.mxu0 %v792
      %803 = vmatprep.subr.bf16.mxu0 0
      %804 = vmatpush1.bf16.msra.mxu0 %v791
      %805 = vmatprep.subr.bf16.mxu0 0
      %806 = vmatpush1.bf16.msra.mxu0 %v790
      %807 = vmatprep.subr.bf16.mxu0 0
      %808 = vmatpush1.bf16.msra.mxu0 %v789
      %809 = vmatprep.subr.bf16.mxu0 0
      %810 = vmatpush1.bf16.msra.mxu0 %v788
      %811 = vmatprep.subr.bf16.mxu0 0
      %812 = vmatpush1.bf16.msra.mxu0 %v787
      %813 = vmatprep.subr.bf16.mxu0 0
      %814 = vmatpush1.bf16.msra.mxu0 %v786
      %815 = vmatprep.subr.bf16.mxu0 0
      %816 = vmatpush1.bf16.msra.mxu0 %v785
      %817 = vmatprep.subr.bf16.mxu0 0
      %818 = vmatpush2.bf16.msra.mxu0 0
      %819 = vmatprep.subr.bf16.mxu0 0
      %820 = vmatpush2.bf16.msra.mxu0 0
      %821 = vmatprep.subr.bf16.mxu0 0
      %822 = vmatpush2.bf16.msra.mxu0 0
      %823 = vmatprep.subr.bf16.mxu0 0
      %824 = vmatpush2.bf16.msra.mxu0 0
      %825 = vmatprep.subr.bf16.mxu0 0
      %826 = vmatpush2.bf16.msra.mxu0 0
      %827 = vmatprep.subr.bf16.mxu0 0
      %828 = vmatpush2.bf16.msra.mxu0 0
      %829 = vmatprep.subr.bf16.mxu0 0
      %830 = vmatpush2.bf16.msra.mxu0 0
      %831 = vmatprep.subr.bf16.mxu0 0
      %832 = vmatpush2.bf16.msra.mxu0 0
      %833 = vmatprep.mubr.bf16.mxu0 0
      %834 = vmatmul.mubr.bf16.gmra.mxu0 %v741
      %v835 = vpop.f32.mrf.mxu0
      %v836 = vadd.f32 %v689, %v835
      %v837 = vpop.f32.mrf.mxu0
      %v838 = vpop.f32.mrf.mxu0
      %v839 = vadd.f32 %v692, %v838
      %v840 = vpop.f32.mrf.mxu0
      %841 = vmatprep.mubr.bf16.mxu0 0
      %842 = vmatmul.mubr.bf16.gmra.mxu0 %v742
      %v843 = vpop.f32.mrf.mxu0
      %v844 = vadd.f32 %v697, %v843
      %v845 = vpop.f32.mrf.mxu0
      %v846 = vpop.f32.mrf.mxu0
      %v847 = vadd.f32 %v700, %v846
      %v848 = vpop.f32.mrf.mxu0
      %849 = vmatprep.mubr.bf16.mxu0 0
      %850 = vmatmul.mubr.bf16.gmra.mxu0 %v743
      %v851 = vpop.f32.mrf.mxu0
      %v852 = vadd.f32 %v705, %v851
      %v853 = vpop.f32.mrf.mxu0
      %v854 = vpop.f32.mrf.mxu0
      %v855 = vadd.f32 %v708, %v854
      %v856 = vpop.f32.mrf.mxu0
      %857 = vmatprep.mubr.bf16.mxu0 0
      %858 = vmatmul.mubr.bf16.gmra.mxu0 %v744
      %v859 = vpop.f32.mrf.mxu0
      %v860 = vadd.f32 %v713, %v859
      %v861 = vpop.f32.mrf.mxu0
      %v862 = vpop.f32.mrf.mxu0
      %v863 = vadd.f32 %v716, %v862
      %v864 = vpop.f32.mrf.mxu0
      %865 = vmatprep.mubr.bf16.mxu0 0
      %866 = vmatmul.mubr.bf16.gmra.mxu0 %v745
      %v867 = vpop.f32.mrf.mxu0
      %v868 = vadd.f32 %v721, %v867
      %v869 = vpop.f32.mrf.mxu0
      %v870 = vpop.f32.mrf.mxu0
      %v871 = vadd.f32 %v724, %v870
      %v872 = vpop.f32.mrf.mxu0
      %873 = vmatprep.mubr.bf16.mxu0 0
      %874 = vmatmul.mubr.bf16.gmra.mxu0 %v746
      %v875 = vpop.f32.mrf.mxu0
      %v876 = vadd.f32 %v729, %v875
      %v877 = vpop.f32.mrf.mxu0
      %v878 = vpop.f32.mrf.mxu0
      %v879 = vadd.f32 %v732, %v878
      %v880 = vpop.f32.mrf.mxu0
      %881 = vdwg.mxu0
      %v882 = vld [vmem:[%s369 + $0x18] sm:$0xf]
      %v883 = vld [vmem:[%s369 + $0x1c] sm:$0xf]
      %v884 = vld [vmem:[%s369 + $0x20] sm:$0xf]
      %v885 = vld [vmem:[%s369 + $0x24] sm:$0xf]
      %v886 = vld [vmem:[%s369 + $0x28] sm:$0xf]
      %v887 = vld [vmem:[%s369 + $0x2c] sm:$0xf]
      %v888 = vld [vmem:[%s369 + $0x30] sm:$0xf]
      %v889 = vld [vmem:[%s369 + $0x34] sm:$0xf]
      %v890 = vld [vmem:[%s369 + $0x38] sm:$0xf]
      %v891 = vld [vmem:[%s369 + $0x3c] sm:$0xf]
      %v892 = vld [vmem:[%s369 + $0x40] sm:$0xf]
      %v893 = vld [vmem:[%s369 + $0x44] sm:$0xf]
      %s894 = scalar_lea.vmem %s2, 384
      %v895 = vld [vmem:[%s894] sm:$0xf]
      %v896 = vld [vmem:[%s894 + $0x4] sm:$0xf]
      %v897 = vld [vmem:[%s894 + $0x8] sm:$0xf]
      %v898 = vld [vmem:[%s894 + $0xc] sm:$0xf]
      %v899 = vld [vmem:[%s894 + $0x10] sm:$0xf]
      %v900 = vld [vmem:[%s894 + $0x14] sm:$0xf]
      %v901 = vld [vmem:[%s894 + $0x18] sm:$0xf]
      %v902 = vld [vmem:[%s894 + $0x1c] sm:$0xf]
      %v903 = vld [vmem:[%s894 + $0x20] sm:$0xf]
      %v904 = vld [vmem:[%s894 + $0x24] sm:$0xf]
      %v905 = vld [vmem:[%s894 + $0x28] sm:$0xf]
      %v906 = vld [vmem:[%s894 + $0x2c] sm:$0xf]
      %v907 = vld [vmem:[%s894 + $0x30] sm:$0xf]
      %v908 = vld [vmem:[%s894 + $0x34] sm:$0xf]
      %v909 = vld [vmem:[%s894 + $0x38] sm:$0xf]
      %v910 = vld [vmem:[%s894 + $0x3c] sm:$0xf]
      %v923 = vunpack.c.l.b16 %v882
      %v924 = vunpack.c.l.b16 %v883
      %v925 = vunpack.c.l.b16 %v884
      %v926 = vunpack.c.l.b16 %v885
      %v927 = vunpack.c.l.b16 %v886
      %v928 = vunpack.c.l.b16 %v887
      %v929 = vunpack.c.l.b16 %v888
      %v930 = vunpack.c.l.b16 %v889
      %v931 = vunpack.c.l.b16 %v890
      %v932 = vunpack.c.l.b16 %v891
      %v933 = vunpack.c.l.b16 %v892
      %v934 = vunpack.c.l.b16 %v893
      %v935 = vpack.c.b16 %v924, %v923
      %v936 = vpack.c.b16 %v926, %v925
      %v937 = vpack.c.b16 %v928, %v927
      %v938 = vpack.c.b16 %v930, %v929
      %v939 = vpack.c.b16 %v932, %v931
      %v940 = vpack.c.b16 %v934, %v933
      %v963 = vunpack.c.l.b16 %v895
      %v964 = vunpack.c.l.b16 %v896
      %v965 = vunpack.c.l.b16 %v897
      %v966 = vunpack.c.l.b16 %v898
      %v967 = vunpack.c.l.b16 %v899
      %v968 = vunpack.c.l.b16 %v900
      %v969 = vunpack.c.l.b16 %v901
      %v970 = vunpack.c.l.b16 %v902
      %v971 = vunpack.c.l.b16 %v903
      %v972 = vunpack.c.l.b16 %v904
      %v973 = vunpack.c.l.b16 %v905
      %v974 = vunpack.c.l.b16 %v906
      %v975 = vunpack.c.l.b16 %v907
      %v976 = vunpack.c.l.b16 %v908
      %v977 = vunpack.c.l.b16 %v909
      %v978 = vunpack.c.l.b16 %v910
      %v979 = vpack.c.b16 %v964, %v963
      %v980 = vpack.c.b16 %v966, %v965
      %v981 = vpack.c.b16 %v968, %v967
      %v982 = vpack.c.b16 %v970, %v969
      %v983 = vpack.c.b16 %v972, %v971
      %v984 = vpack.c.b16 %v974, %v973
      %v985 = vpack.c.b16 %v976, %v975
      %v986 = vpack.c.b16 %v978, %v977
      %995 = vmatprep.subr.bf16.mxu0 0
      %996 = vmatpush1.bf16.msra.mxu0 %v986
      %997 = vmatprep.subr.bf16.mxu0 0
      %998 = vmatpush1.bf16.msra.mxu0 %v985
      %999 = vmatprep.subr.bf16.mxu0 0
      %1000 = vmatpush1.bf16.msra.mxu0 %v984
      %1001 = vmatprep.subr.bf16.mxu0 0
      %1002 = vmatpush1.bf16.msra.mxu0 %v983
      %1003 = vmatprep.subr.bf16.mxu0 0
      %1004 = vmatpush1.bf16.msra.mxu0 %v982
      %1005 = vmatprep.subr.bf16.mxu0 0
      %1006 = vmatpush1.bf16.msra.mxu0 %v981
      %1007 = vmatprep.subr.bf16.mxu0 0
      %1008 = vmatpush1.bf16.msra.mxu0 %v980
      %1009 = vmatprep.subr.bf16.mxu0 0
      %1010 = vmatpush1.bf16.msra.mxu0 %v979
      %1011 = vmatprep.subr.bf16.mxu0 0
      %1012 = vmatpush2.bf16.msra.mxu0 0
      %1013 = vmatprep.subr.bf16.mxu0 0
      %1014 = vmatpush2.bf16.msra.mxu0 0
      %1015 = vmatprep.subr.bf16.mxu0 0
      %1016 = vmatpush2.bf16.msra.mxu0 0
      %1017 = vmatprep.subr.bf16.mxu0 0
      %1018 = vmatpush2.bf16.msra.mxu0 0
      %1019 = vmatprep.subr.bf16.mxu0 0
      %1020 = vmatpush2.bf16.msra.mxu0 0
      %1021 = vmatprep.subr.bf16.mxu0 0
      %1022 = vmatpush2.bf16.msra.mxu0 0
      %1023 = vmatprep.subr.bf16.mxu0 0
      %1024 = vmatpush2.bf16.msra.mxu0 0
      %1025 = vmatprep.subr.bf16.mxu0 0
      %1026 = vmatpush2.bf16.msra.mxu0 0
      %1027 = vmatprep.mubr.bf16.mxu0 0
      %1028 = vmatmul.mubr.bf16.gmra.mxu0 %v935
      %v1029 = vpop.f32.mrf.mxu0
      %v1030 = vadd.f32 0.0, %v1029
      %v1031 = vpop.f32.mrf.mxu0
      %v1032 = vpop.f32.mrf.mxu0
      %v1033 = vadd.f32 0.0, %v1032
      %v1034 = vpop.f32.mrf.mxu0
      %1035 = vmatprep.mubr.bf16.mxu0 0
      %1036 = vmatmul.mubr.bf16.gmra.mxu0 %v936
      %v1037 = vpop.f32.mrf.mxu0
      %v1038 = vadd.f32 0.0, %v1037
      %v1039 = vpop.f32.mrf.mxu0
      %v1040 = vpop.f32.mrf.mxu0
      %v1041 = vadd.f32 0.0, %v1040
      %v1042 = vpop.f32.mrf.mxu0
      %1043 = vmatprep.mubr.bf16.mxu0 0
      %1044 = vmatmul.mubr.bf16.gmra.mxu0 %v937
      %v1045 = vpop.f32.mrf.mxu0
      %v1046 = vadd.f32 0.0, %v1045
      %v1047 = vpop.f32.mrf.mxu0
      %v1048 = vpop.f32.mrf.mxu0
      %v1049 = vadd.f32 0.0, %v1048
      %v1050 = vpop.f32.mrf.mxu0
      %1051 = vmatprep.mubr.bf16.mxu0 0
      %1052 = vmatmul.mubr.bf16.gmra.mxu0 %v938
      %v1053 = vpop.f32.mrf.mxu0
      %v1054 = vadd.f32 0.0, %v1053
      %v1055 = vpop.f32.mrf.mxu0
      %v1056 = vpop.f32.mrf.mxu0
      %v1057 = vadd.f32 0.0, %v1056
      %v1058 = vpop.f32.mrf.mxu0
      %1059 = vmatprep.mubr.bf16.mxu0 0
      %1060 = vmatmul.mubr.bf16.gmra.mxu0 %v939
      %v1061 = vpop.f32.mrf.mxu0
      %v1062 = vadd.f32 0.0, %v1061
      %v1063 = vpop.f32.mrf.mxu0
      %v1064 = vpop.f32.mrf.mxu0
      %v1065 = vadd.f32 0.0, %v1064
      %v1066 = vpop.f32.mrf.mxu0
      %1067 = vmatprep.mubr.bf16.mxu0 0
      %1068 = vmatmul.mubr.bf16.gmra.mxu0 %v940
      %v1069 = vpop.f32.mrf.mxu0
      %v1070 = vadd.f32 0.0, %v1069
      %v1071 = vpop.f32.mrf.mxu0
      %v1072 = vpop.f32.mrf.mxu0
      %v1073 = vadd.f32 0.0, %v1072
      %v1074 = vpop.f32.mrf.mxu0
      %1075 = vdwg.mxu0
      %v1076 = vadd.f32 %v836, %v1030
      %v1077 = vadd.f32 %v839, %v1033
      %v1078 = vadd.f32 %v844, %v1038
      %v1079 = vadd.f32 %v847, %v1041
      %v1080 = vadd.f32 %v852, %v1046
      %v1081 = vadd.f32 %v855, %v1049
      %v1082 = vadd.f32 %v860, %v1054
      %v1083 = vadd.f32 %v863, %v1057
      %v1084 = vadd.f32 %v868, %v1062
      %v1085 = vadd.f32 %v871, %v1065
      %v1086 = vadd.f32 %v876, %v1070
      %v1087 = vadd.f32 %v879, %v1073
      %v1088 = vld [vmem:[%s376] sm:$0xf]
      %v1089 = vld [vmem:[%s376 + $0x4] sm:$0xf]
      %v1090 = vld [vmem:[%s376 + $0x8] sm:$0xf]
      %v1091 = vld [vmem:[%s376 + $0xc] sm:$0xf]
      %v1092 = vld [vmem:[%s376 + $0x10] sm:$0xf]
      %v1093 = vld [vmem:[%s376 + $0x14] sm:$0xf]
      %v1094 = vld [vmem:[%s376 + $0x18] sm:$0xf]
      %v1095 = vld [vmem:[%s376 + $0x1c] sm:$0xf]
      %v1096 = vld [vmem:[%s376 + $0x20] sm:$0xf]
      %v1097 = vld [vmem:[%s376 + $0x24] sm:$0xf]
      %v1098 = vld [vmem:[%s376 + $0x28] sm:$0xf]
      %v1099 = vld [vmem:[%s376 + $0x2c] sm:$0xf]
      %v1100 = vld [vmem:[%s3] sm:$0xf]
      %v1101 = vld [vmem:[%s3 + $0x4] sm:$0xf]
      %v1102 = vld [vmem:[%s3 + $0x8] sm:$0xf]
      %v1103 = vld [vmem:[%s3 + $0xc] sm:$0xf]
      %v1104 = vld [vmem:[%s3 + $0x10] sm:$0xf]
      %v1105 = vld [vmem:[%s3 + $0x14] sm:$0xf]
      %v1106 = vld [vmem:[%s3 + $0x18] sm:$0xf]
      %v1107 = vld [vmem:[%s3 + $0x1c] sm:$0xf]
      %v1108 = vld [vmem:[%s3 + $0x20] sm:$0xf]
      %v1109 = vld [vmem:[%s3 + $0x24] sm:$0xf]
      %v1110 = vld [vmem:[%s3 + $0x28] sm:$0xf]
      %v1111 = vld [vmem:[%s3 + $0x2c] sm:$0xf]
      %v1112 = vld [vmem:[%s3 + $0x30] sm:$0xf]
      %v1113 = vld [vmem:[%s3 + $0x34] sm:$0xf]
      %v1114 = vld [vmem:[%s3 + $0x38] sm:$0xf]
      %v1115 = vld [vmem:[%s3 + $0x3c] sm:$0xf]
      %v1128 = vunpack.c.l.b16 %v1088
      %v1129 = vunpack.c.l.b16 %v1089
      %v1130 = vunpack.c.l.b16 %v1090
      %v1131 = vunpack.c.l.b16 %v1091
      %v1132 = vunpack.c.l.b16 %v1092
      %v1133 = vunpack.c.l.b16 %v1093
      %v1134 = vunpack.c.l.b16 %v1094
      %v1135 = vunpack.c.l.b16 %v1095
      %v1136 = vunpack.c.l.b16 %v1096
      %v1137 = vunpack.c.l.b16 %v1097
      %v1138 = vunpack.c.l.b16 %v1098
      %v1139 = vunpack.c.l.b16 %v1099
      %v1140 = vpack.c.b16 %v1129, %v1128
      %v1141 = vpack.c.b16 %v1131, %v1130
      %v1142 = vpack.c.b16 %v1133, %v1132
      %v1143 = vpack.c.b16 %v1135, %v1134
      %v1144 = vpack.c.b16 %v1137, %v1136
      %v1145 = vpack.c.b16 %v1139, %v1138
      %v1168 = vunpack.c.l.b16 %v1100
      %v1169 = vunpack.c.l.b16 %v1101
      %v1170 = vunpack.c.l.b16 %v1102
      %v1171 = vunpack.c.l.b16 %v1103
      %v1172 = vunpack.c.l.b16 %v1104
      %v1173 = vunpack.c.l.b16 %v1105
      %v1174 = vunpack.c.l.b16 %v1106
      %v1175 = vunpack.c.l.b16 %v1107
      %v1176 = vunpack.c.l.b16 %v1108
      %v1177 = vunpack.c.l.b16 %v1109
      %v1178 = vunpack.c.l.b16 %v1110
      %v1179 = vunpack.c.l.b16 %v1111
      %v1180 = vunpack.c.l.b16 %v1112
      %v1181 = vunpack.c.l.b16 %v1113
      %v1182 = vunpack.c.l.b16 %v1114
      %v1183 = vunpack.c.l.b16 %v1115
      %v1184 = vpack.c.b16 %v1169, %v1168
      %v1185 = vpack.c.b16 %v1171, %v1170
      %v1186 = vpack.c.b16 %v1173, %v1172
      %v1187 = vpack.c.b16 %v1175, %v1174
      %v1188 = vpack.c.b16 %v1177, %v1176
      %v1189 = vpack.c.b16 %v1179, %v1178
      %v1190 = vpack.c.b16 %v1181, %v1180
      %v1191 = vpack.c.b16 %v1183, %v1182
      %1200 = vmatprep.subr.bf16.mxu0 0
      %1201 = vmatpush1.bf16.msra.mxu0 %v1191
      %1202 = vmatprep.subr.bf16.mxu0 0
      %1203 = vmatpush1.bf16.msra.mxu0 %v1190
      %1204 = vmatprep.subr.bf16.mxu0 0
      %1205 = vmatpush1.bf16.msra.mxu0 %v1189
      %1206 = vmatprep.subr.bf16.mxu0 0
      %1207 = vmatpush1.bf16.msra.mxu0 %v1188
      %1208 = vmatprep.subr.bf16.mxu0 0
      %1209 = vmatpush1.bf16.msra.mxu0 %v1187
      %1210 = vmatprep.subr.bf16.mxu0 0
      %1211 = vmatpush1.bf16.msra.mxu0 %v1186
      %1212 = vmatprep.subr.bf16.mxu0 0
      %1213 = vmatpush1.bf16.msra.mxu0 %v1185
      %1214 = vmatprep.subr.bf16.mxu0 0
      %1215 = vmatpush1.bf16.msra.mxu0 %v1184
      %1216 = vmatprep.subr.bf16.mxu0 0
      %1217 = vmatpush2.bf16.msra.mxu0 0
      %1218 = vmatprep.subr.bf16.mxu0 0
      %1219 = vmatpush2.bf16.msra.mxu0 0
      %1220 = vmatprep.subr.bf16.mxu0 0
      %1221 = vmatpush2.bf16.msra.mxu0 0
      %1222 = vmatprep.subr.bf16.mxu0 0
      %1223 = vmatpush2.bf16.msra.mxu0 0
      %1224 = vmatprep.subr.bf16.mxu0 0
      %1225 = vmatpush2.bf16.msra.mxu0 0
      %1226 = vmatprep.subr.bf16.mxu0 0
      %1227 = vmatpush2.bf16.msra.mxu0 0
      %1228 = vmatprep.subr.bf16.mxu0 0
      %1229 = vmatpush2.bf16.msra.mxu0 0
      %1230 = vmatprep.subr.bf16.mxu0 0
      %1231 = vmatpush2.bf16.msra.mxu0 0
      %1232 = vmatprep.mubr.bf16.mxu0 0
      %1233 = vmatmul.mubr.bf16.gmra.mxu0 %v1140
      %v1234 = vpop.f32.mrf.mxu0
      %v1235 = vadd.f32 0.0, %v1234
      %v1236 = vpop.f32.mrf.mxu0
      %v1237 = vpop.f32.mrf.mxu0
      %v1238 = vadd.f32 0.0, %v1237
      %v1239 = vpop.f32.mrf.mxu0
      %1240 = vmatprep.mubr.bf16.mxu0 0
      %1241 = vmatmul.mubr.bf16.gmra.mxu0 %v1141
      %v1242 = vpop.f32.mrf.mxu0
      %v1243 = vadd.f32 0.0, %v1242
      %v1244 = vpop.f32.mrf.mxu0
      %v1245 = vpop.f32.mrf.mxu0
      %v1246 = vadd.f32 0.0, %v1245
      %v1247 = vpop.f32.mrf.mxu0
      %1248 = vmatprep.mubr.bf16.mxu0 0
      %1249 = vmatmul.mubr.bf16.gmra.mxu0 %v1142
      %v1250 = vpop.f32.mrf.mxu0
      %v1251 = vadd.f32 0.0, %v1250
      %v1252 = vpop.f32.mrf.mxu0
      %v1253 = vpop.f32.mrf.mxu0
      %v1254 = vadd.f32 0.0, %v1253
      %v1255 = vpop.f32.mrf.mxu0
      %1256 = vmatprep.mubr.bf16.mxu0 0
      %1257 = vmatmul.mubr.bf16.gmra.mxu0 %v1143
      %v1258 = vpop.f32.mrf.mxu0
      %v1259 = vadd.f32 0.0, %v1258
      %v1260 = vpop.f32.mrf.mxu0
      %v1261 = vpop.f32.mrf.mxu0
      %v1262 = vadd.f32 0.0, %v1261
      %v1263 = vpop.f32.mrf.mxu0
      %1264 = vmatprep.mubr.bf16.mxu0 0
      %1265 = vmatmul.mubr.bf16.gmra.mxu0 %v1144
      %v1266 = vpop.f32.mrf.mxu0
      %v1267 = vadd.f32 0.0, %v1266
      %v1268 = vpop.f32.mrf.mxu0
      %v1269 = vpop.f32.mrf.mxu0
      %v1270 = vadd.f32 0.0, %v1269
      %v1271 = vpop.f32.mrf.mxu0
      %1272 = vmatprep.mubr.bf16.mxu0 0
      %1273 = vmatmul.mubr.bf16.gmra.mxu0 %v1145
      %v1274 = vpop.f32.mrf.mxu0
      %v1275 = vadd.f32 0.0, %v1274
      %v1276 = vpop.f32.mrf.mxu0
      %v1277 = vpop.f32.mrf.mxu0
      %v1278 = vadd.f32 0.0, %v1277
      %v1279 = vpop.f32.mrf.mxu0
      %1280 = vdwg.mxu0
      %v1281 = vadd.f32 %v1076, %v1235
      %v1282 = vadd.f32 %v1077, %v1238
      %v1283 = vadd.f32 %v1078, %v1243
      %v1284 = vadd.f32 %v1079, %v1246
      %v1285 = vadd.f32 %v1080, %v1251
      %v1286 = vadd.f32 %v1081, %v1254
      %v1287 = vadd.f32 %v1082, %v1259
      %v1288 = vadd.f32 %v1083, %v1262
      %v1289 = vadd.f32 %v1084, %v1267
      %v1290 = vadd.f32 %v1085, %v1270
      %v1291 = vadd.f32 %v1086, %v1275
      %v1292 = vadd.f32 %v1087, %v1278
      %v1293 = vld [vmem:[%s376 + $0xc] sm:$0xf]
      %v1294 = vld [vmem:[%s376 + $0x10] sm:$0xf]
      %v1295 = vld [vmem:[%s376 + $0x14] sm:$0xf]
      %v1296 = vld [vmem:[%s376 + $0x18] sm:$0xf]
      %v1297 = vld [vmem:[%s376 + $0x1c] sm:$0xf]
      %v1298 = vld [vmem:[%s376 + $0x20] sm:$0xf]
      %v1299 = vld [vmem:[%s376 + $0x24] sm:$0xf]
      %v1300 = vld [vmem:[%s376 + $0x28] sm:$0xf]
      %v1301 = vld [vmem:[%s376 + $0x2c] sm:$0xf]
      %v1302 = vld [vmem:[%s376 + $0x30] sm:$0xf]
      %v1303 = vld [vmem:[%s376 + $0x34] sm:$0xf]
      %v1304 = vld [vmem:[%s376 + $0x38] sm:$0xf]
      %s1305 = scalar_lea.vmem %s3, 192
      %v1306 = vld [vmem:[%s1305] sm:$0xf]
      %v1307 = vld [vmem:[%s1305 + $0x4] sm:$0xf]
      %v1308 = vld [vmem:[%s1305 + $0x8] sm:$0xf]
      %v1309 = vld [vmem:[%s1305 + $0xc] sm:$0xf]
      %v1310 = vld [vmem:[%s1305 + $0x10] sm:$0xf]
      %v1311 = vld [vmem:[%s1305 + $0x14] sm:$0xf]
      %v1312 = vld [vmem:[%s1305 + $0x18] sm:$0xf]
      %v1313 = vld [vmem:[%s1305 + $0x1c] sm:$0xf]
      %v1314 = vld [vmem:[%s1305 + $0x20] sm:$0xf]
      %v1315 = vld [vmem:[%s1305 + $0x24] sm:$0xf]
      %v1316 = vld [vmem:[%s1305 + $0x28] sm:$0xf]
      %v1317 = vld [vmem:[%s1305 + $0x2c] sm:$0xf]
      %v1318 = vld [vmem:[%s1305 + $0x30] sm:$0xf]
      %v1319 = vld [vmem:[%s1305 + $0x34] sm:$0xf]
      %v1320 = vld [vmem:[%s1305 + $0x38] sm:$0xf]
      %v1321 = vld [vmem:[%s1305 + $0x3c] sm:$0xf]
      %v1334 = vunpack.c.l.b16 %v1293
      %v1335 = vunpack.c.l.b16 %v1294
      %v1336 = vunpack.c.l.b16 %v1295
      %v1337 = vunpack.c.l.b16 %v1296
      %v1338 = vunpack.c.l.b16 %v1297
      %v1339 = vunpack.c.l.b16 %v1298
      %v1340 = vunpack.c.l.b16 %v1299
      %v1341 = vunpack.c.l.b16 %v1300
      %v1342 = vunpack.c.l.b16 %v1301
      %v1343 = vunpack.c.l.b16 %v1302
      %v1344 = vunpack.c.l.b16 %v1303
      %v1345 = vunpack.c.l.b16 %v1304
      %v1346 = vpack.c.b16 %v1335, %v1334
      %v1347 = vpack.c.b16 %v1337, %v1336
      %v1348 = vpack.c.b16 %v1339, %v1338
      %v1349 = vpack.c.b16 %v1341, %v1340
      %v1350 = vpack.c.b16 %v1343, %v1342
      %v1351 = vpack.c.b16 %v1345, %v1344
      %v1374 = vunpack.c.l.b16 %v1306
      %v1375 = vunpack.c.l.b16 %v1307
      %v1376 = vunpack.c.l.b16 %v1308
      %v1377 = vunpack.c.l.b16 %v1309
      %v1378 = vunpack.c.l.b16 %v1310
      %v1379 = vunpack.c.l.b16 %v1311
      %v1380 = vunpack.c.l.b16 %v1312
      %v1381 = vunpack.c.l.b16 %v1313
      %v1382 = vunpack.c.l.b16 %v1314
      %v1383 = vunpack.c.l.b16 %v1315
      %v1384 = vunpack.c.l.b16 %v1316
      %v1385 = vunpack.c.l.b16 %v1317
      %v1386 = vunpack.c.l.b16 %v1318
      %v1387 = vunpack.c.l.b16 %v1319
      %v1388 = vunpack.c.l.b16 %v1320
      %v1389 = vunpack.c.l.b16 %v1321
      %v1390 = vpack.c.b16 %v1375, %v1374
      %v1391 = vpack.c.b16 %v1377, %v1376
      %v1392 = vpack.c.b16 %v1379, %v1378
      %v1393 = vpack.c.b16 %v1381, %v1380
      %v1394 = vpack.c.b16 %v1383, %v1382
      %v1395 = vpack.c.b16 %v1385, %v1384
      %v1396 = vpack.c.b16 %v1387, %v1386
      %v1397 = vpack.c.b16 %v1389, %v1388
      %1406 = vmatprep.subr.bf16.mxu0 0
      %1407 = vmatpush1.bf16.msra.mxu0 %v1397
      %1408 = vmatprep.subr.bf16.mxu0 0
      %1409 = vmatpush1.bf16.msra.mxu0 %v1396
      %1410 = vmatprep.subr.bf16.mxu0 0
      %1411 = vmatpush1.bf16.msra.mxu0 %v1395
      %1412 = vmatprep.subr.bf16.mxu0 0
      %1413 = vmatpush1.bf16.msra.mxu0 %v1394
      %1414 = vmatprep.subr.bf16.mxu0 0
      %1415 = vmatpush1.bf16.msra.mxu0 %v1393
      %1416 = vmatprep.subr.bf16.mxu0 0
      %1417 = vmatpush1.bf16.msra.mxu0 %v1392
      %1418 = vmatprep.subr.bf16.mxu0 0
      %1419 = vmatpush1.bf16.msra.mxu0 %v1391
      %1420 = vmatprep.subr.bf16.mxu0 0
      %1421 = vmatpush1.bf16.msra.mxu0 %v1390
      %1422 = vmatprep.subr.bf16.mxu0 0
      %1423 = vmatpush2.bf16.msra.mxu0 0
      %1424 = vmatprep.subr.bf16.mxu0 0
      %1425 = vmatpush2.bf16.msra.mxu0 0
      %1426 = vmatprep.subr.bf16.mxu0 0
      %1427 = vmatpush2.bf16.msra.mxu0 0
      %1428 = vmatprep.subr.bf16.mxu0 0
      %1429 = vmatpush2.bf16.msra.mxu0 0
      %1430 = vmatprep.subr.bf16.mxu0 0
      %1431 = vmatpush2.bf16.msra.mxu0 0
      %1432 = vmatprep.subr.bf16.mxu0 0
      %1433 = vmatpush2.bf16.msra.mxu0 0
      %1434 = vmatprep.subr.bf16.mxu0 0
      %1435 = vmatpush2.bf16.msra.mxu0 0
      %1436 = vmatprep.subr.bf16.mxu0 0
      %1437 = vmatpush2.bf16.msra.mxu0 0
      %1438 = vmatprep.mubr.bf16.mxu0 0
      %1439 = vmatmul.mubr.bf16.gmra.mxu0 %v1346
      %v1440 = vpop.f32.mrf.mxu0
      %v1441 = vadd.f32 0.0, %v1440
      %v1442 = vpop.f32.mrf.mxu0
      %v1443 = vpop.f32.mrf.mxu0
      %v1444 = vadd.f32 0.0, %v1443
      %v1445 = vpop.f32.mrf.mxu0
      %1446 = vmatprep.mubr.bf16.mxu0 0
      %1447 = vmatmul.mubr.bf16.gmra.mxu0 %v1347
      %v1448 = vpop.f32.mrf.mxu0
      %v1449 = vadd.f32 0.0, %v1448
      %v1450 = vpop.f32.mrf.mxu0
      %v1451 = vpop.f32.mrf.mxu0
      %v1452 = vadd.f32 0.0, %v1451
      %v1453 = vpop.f32.mrf.mxu0
      %1454 = vmatprep.mubr.bf16.mxu0 0
      %1455 = vmatmul.mubr.bf16.gmra.mxu0 %v1348
      %v1456 = vpop.f32.mrf.mxu0
      %v1457 = vadd.f32 0.0, %v1456
      %v1458 = vpop.f32.mrf.mxu0
      %v1459 = vpop.f32.mrf.mxu0
      %v1460 = vadd.f32 0.0, %v1459
      %v1461 = vpop.f32.mrf.mxu0
      %1462 = vmatprep.mubr.bf16.mxu0 0
      %1463 = vmatmul.mubr.bf16.gmra.mxu0 %v1349
      %v1464 = vpop.f32.mrf.mxu0
      %v1465 = vadd.f32 0.0, %v1464
      %v1466 = vpop.f32.mrf.mxu0
      %v1467 = vpop.f32.mrf.mxu0
      %v1468 = vadd.f32 0.0, %v1467
      %v1469 = vpop.f32.mrf.mxu0
      %1470 = vmatprep.mubr.bf16.mxu0 0
      %1471 = vmatmul.mubr.bf16.gmra.mxu0 %v1350
      %v1472 = vpop.f32.mrf.mxu0
      %v1473 = vadd.f32 0.0, %v1472
      %v1474 = vpop.f32.mrf.mxu0
      %v1475 = vpop.f32.mrf.mxu0
      %v1476 = vadd.f32 0.0, %v1475
      %v1477 = vpop.f32.mrf.mxu0
      %1478 = vmatprep.mubr.bf16.mxu0 0
      %1479 = vmatmul.mubr.bf16.gmra.mxu0 %v1351
      %v1480 = vpop.f32.mrf.mxu0
      %v1481 = vadd.f32 0.0, %v1480
      %v1482 = vpop.f32.mrf.mxu0
      %v1483 = vpop.f32.mrf.mxu0
      %v1484 = vadd.f32 0.0, %v1483
      %v1485 = vpop.f32.mrf.mxu0
      %1486 = vdwg.mxu0
      %v1487 = vadd.f32 %v1281, %v1441
      %v1488 = vadd.f32 %v1282, %v1444
      %v1489 = vadd.f32 %v1283, %v1449
      %v1490 = vadd.f32 %v1284, %v1452
      %v1491 = vadd.f32 %v1285, %v1457
      %v1492 = vadd.f32 %v1286, %v1460
      %v1493 = vadd.f32 %v1287, %v1465
      %v1494 = vadd.f32 %v1288, %v1468
      %v1495 = vadd.f32 %v1289, %v1473
      %v1496 = vadd.f32 %v1290, %v1476
      %v1497 = vadd.f32 %v1291, %v1481
      %v1498 = vadd.f32 %v1292, %v1484
      %v1499 = vld [vmem:[%s376 + $0x18] sm:$0xf]
      %v1500 = vld [vmem:[%s376 + $0x1c] sm:$0xf]
      %v1501 = vld [vmem:[%s376 + $0x20] sm:$0xf]
      %v1502 = vld [vmem:[%s376 + $0x24] sm:$0xf]
      %v1503 = vld [vmem:[%s376 + $0x28] sm:$0xf]
      %v1504 = vld [vmem:[%s376 + $0x2c] sm:$0xf]
      %v1505 = vld [vmem:[%s376 + $0x30] sm:$0xf]
      %v1506 = vld [vmem:[%s376 + $0x34] sm:$0xf]
      %v1507 = vld [vmem:[%s376 + $0x38] sm:$0xf]
      %v1508 = vld [vmem:[%s376 + $0x3c] sm:$0xf]
      %v1509 = vld [vmem:[%s376 + $0x40] sm:$0xf]
      %v1510 = vld [vmem:[%s376 + $0x44] sm:$0xf]
      %s1511 = scalar_lea.vmem %s3, 384
      %v1512 = vld [vmem:[%s1511] sm:$0xf]
      %v1513 = vld [vmem:[%s1511 + $0x4] sm:$0xf]
      %v1514 = vld [vmem:[%s1511 + $0x8] sm:$0xf]
      %v1515 = vld [vmem:[%s1511 + $0xc] sm:$0xf]
      %v1516 = vld [vmem:[%s1511 + $0x10] sm:$0xf]
      %v1517 = vld [vmem:[%s1511 + $0x14] sm:$0xf]
      %v1518 = vld [vmem:[%s1511 + $0x18] sm:$0xf]
      %v1519 = vld [vmem:[%s1511 + $0x1c] sm:$0xf]
      %v1520 = vld [vmem:[%s1511 + $0x20] sm:$0xf]
      %v1521 = vld [vmem:[%s1511 + $0x24] sm:$0xf]
      %v1522 = vld [vmem:[%s1511 + $0x28] sm:$0xf]
      %v1523 = vld [vmem:[%s1511 + $0x2c] sm:$0xf]
      %v1524 = vld [vmem:[%s1511 + $0x30] sm:$0xf]
      %v1525 = vld [vmem:[%s1511 + $0x34] sm:$0xf]
      %v1526 = vld [vmem:[%s1511 + $0x38] sm:$0xf]
      %v1527 = vld [vmem:[%s1511 + $0x3c] sm:$0xf]
      %v1540 = vunpack.c.l.b16 %v1499
      %v1541 = vunpack.c.l.b16 %v1500
      %v1542 = vunpack.c.l.b16 %v1501
      %v1543 = vunpack.c.l.b16 %v1502
      %v1544 = vunpack.c.l.b16 %v1503
      %v1545 = vunpack.c.l.b16 %v1504
      %v1546 = vunpack.c.l.b16 %v1505
      %v1547 = vunpack.c.l.b16 %v1506
      %v1548 = vunpack.c.l.b16 %v1507
      %v1549 = vunpack.c.l.b16 %v1508
      %v1550 = vunpack.c.l.b16 %v1509
      %v1551 = vunpack.c.l.b16 %v1510
      %v1552 = vpack.c.b16 %v1541, %v1540
      %v1553 = vpack.c.b16 %v1543, %v1542
      %v1554 = vpack.c.b16 %v1545, %v1544
      %v1555 = vpack.c.b16 %v1547, %v1546
      %v1556 = vpack.c.b16 %v1549, %v1548
      %v1557 = vpack.c.b16 %v1551, %v1550
      %v1580 = vunpack.c.l.b16 %v1512
      %v1581 = vunpack.c.l.b16 %v1513
      %v1582 = vunpack.c.l.b16 %v1514
      %v1583 = vunpack.c.l.b16 %v1515
      %v1584 = vunpack.c.l.b16 %v1516
      %v1585 = vunpack.c.l.b16 %v1517
      %v1586 = vunpack.c.l.b16 %v1518
      %v1587 = vunpack.c.l.b16 %v1519
      %v1588 = vunpack.c.l.b16 %v1520
      %v1589 = vunpack.c.l.b16 %v1521
      %v1590 = vunpack.c.l.b16 %v1522
      %v1591 = vunpack.c.l.b16 %v1523
      %v1592 = vunpack.c.l.b16 %v1524
      %v1593 = vunpack.c.l.b16 %v1525
      %v1594 = vunpack.c.l.b16 %v1526
      %v1595 = vunpack.c.l.b16 %v1527
      %v1596 = vpack.c.b16 %v1581, %v1580
      %v1597 = vpack.c.b16 %v1583, %v1582
      %v1598 = vpack.c.b16 %v1585, %v1584
      %v1599 = vpack.c.b16 %v1587, %v1586
      %v1600 = vpack.c.b16 %v1589, %v1588
      %v1601 = vpack.c.b16 %v1591, %v1590
      %v1602 = vpack.c.b16 %v1593, %v1592
      %v1603 = vpack.c.b16 %v1595, %v1594
      %1612 = vmatprep.subr.bf16.mxu0 0
      %1613 = vmatpush1.bf16.msra.mxu0 %v1603
      %1614 = vmatprep.subr.bf16.mxu0 0
      %1615 = vmatpush1.bf16.msra.mxu0 %v1602
      %1616 = vmatprep.subr.bf16.mxu0 0
      %1617 = vmatpush1.bf16.msra.mxu0 %v1601
      %1618 = vmatprep.subr.bf16.mxu0 0
      %1619 = vmatpush1.bf16.msra.mxu0 %v1600
      %1620 = vmatprep.subr.bf16.mxu0 0
      %1621 = vmatpush1.bf16.msra.mxu0 %v1599
      %1622 = vmatprep.subr.bf16.mxu0 0
      %1623 = vmatpush1.bf16.msra.mxu0 %v1598
      %1624 = vmatprep.subr.bf16.mxu0 0
      %1625 = vmatpush1.bf16.msra.mxu0 %v1597
      %1626 = vmatprep.subr.bf16.mxu0 0
      %1627 = vmatpush1.bf16.msra.mxu0 %v1596
      %1628 = vmatprep.subr.bf16.mxu0 0
      %1629 = vmatpush2.bf16.msra.mxu0 0
      %1630 = vmatprep.subr.bf16.mxu0 0
      %1631 = vmatpush2.bf16.msra.mxu0 0
      %1632 = vmatprep.subr.bf16.mxu0 0
      %1633 = vmatpush2.bf16.msra.mxu0 0
      %1634 = vmatprep.subr.bf16.mxu0 0
      %1635 = vmatpush2.bf16.msra.mxu0 0
      %1636 = vmatprep.subr.bf16.mxu0 0
      %1637 = vmatpush2.bf16.msra.mxu0 0
      %1638 = vmatprep.subr.bf16.mxu0 0
      %1639 = vmatpush2.bf16.msra.mxu0 0
      %1640 = vmatprep.subr.bf16.mxu0 0
      %1641 = vmatpush2.bf16.msra.mxu0 0
      %1642 = vmatprep.subr.bf16.mxu0 0
      %1643 = vmatpush2.bf16.msra.mxu0 0
      %1644 = vmatprep.mubr.bf16.mxu0 0
      %1645 = vmatmul.mubr.bf16.gmra.mxu0 %v1552
      %v1646 = vpop.f32.mrf.mxu0
      %v1647 = vadd.f32 0.0, %v1646
      %v1648 = vpop.f32.mrf.mxu0
      %v1649 = vpop.f32.mrf.mxu0
      %v1650 = vadd.f32 0.0, %v1649
      %v1651 = vpop.f32.mrf.mxu0
      %1652 = vmatprep.mubr.bf16.mxu0 0
      %1653 = vmatmul.mubr.bf16.gmra.mxu0 %v1553
      %v1654 = vpop.f32.mrf.mxu0
      %v1655 = vadd.f32 0.0, %v1654
      %v1656 = vpop.f32.mrf.mxu0
      %v1657 = vpop.f32.mrf.mxu0
      %v1658 = vadd.f32 0.0, %v1657
      %v1659 = vpop.f32.mrf.mxu0
      %1660 = vmatprep.mubr.bf16.mxu0 0
      %1661 = vmatmul.mubr.bf16.gmra.mxu0 %v1554
      %v1662 = vpop.f32.mrf.mxu0
      %v1663 = vadd.f32 0.0, %v1662
      %v1664 = vpop.f32.mrf.mxu0
      %v1665 = vpop.f32.mrf.mxu0
      %v1666 = vadd.f32 0.0, %v1665
      %v1667 = vpop.f32.mrf.mxu0
      %1668 = vmatprep.mubr.bf16.mxu0 0
      %1669 = vmatmul.mubr.bf16.gmra.mxu0 %v1555
      %v1670 = vpop.f32.mrf.mxu0
      %v1671 = vadd.f32 0.0, %v1670
      %v1672 = vpop.f32.mrf.mxu0
      %v1673 = vpop.f32.mrf.mxu0
      %v1674 = vadd.f32 0.0, %v1673
      %v1675 = vpop.f32.mrf.mxu0
      %1676 = vmatprep.mubr.bf16.mxu0 0
      %1677 = vmatmul.mubr.bf16.gmra.mxu0 %v1556
      %v1678 = vpop.f32.mrf.mxu0
      %v1679 = vadd.f32 0.0, %v1678
      %v1680 = vpop.f32.mrf.mxu0
      %v1681 = vpop.f32.mrf.mxu0
      %v1682 = vadd.f32 0.0, %v1681
      %v1683 = vpop.f32.mrf.mxu0
      %1684 = vmatprep.mubr.bf16.mxu0 0
      %1685 = vmatmul.mubr.bf16.gmra.mxu0 %v1557
      %v1686 = vpop.f32.mrf.mxu0
      %v1687 = vadd.f32 0.0, %v1686
      %v1688 = vpop.f32.mrf.mxu0
      %v1689 = vpop.f32.mrf.mxu0
      %v1690 = vadd.f32 0.0, %v1689
      %v1691 = vpop.f32.mrf.mxu0
      %1692 = vdwg.mxu0
      %v1693 = vadd.f32 %v1487, %v1647
      %v1694 = vadd.f32 %v1488, %v1650
      %v1695 = vadd.f32 %v1489, %v1655
      %v1696 = vadd.f32 %v1490, %v1658
      %v1697 = vadd.f32 %v1491, %v1663
      %v1698 = vadd.f32 %v1492, %v1666
      %v1699 = vadd.f32 %v1493, %v1671
      %v1700 = vadd.f32 %v1494, %v1674
      %v1701 = vadd.f32 %v1495, %v1679
      %v1702 = vadd.f32 %v1496, %v1682
      %v1703 = vadd.f32 %v1497, %v1687
      %v1704 = vadd.f32 %v1498, %v1690
      %s1705 = scalar_lea.vmem %s2, 64
      %v1706 = vld [vmem:[%s1705] sm:$0xf]
      %v1707 = vld [vmem:[%s1705 + $0x4] sm:$0xf]
      %v1708 = vld [vmem:[%s1705 + $0x8] sm:$0xf]
      %v1709 = vld [vmem:[%s1705 + $0xc] sm:$0xf]
      %v1710 = vld [vmem:[%s1705 + $0x10] sm:$0xf]
      %v1711 = vld [vmem:[%s1705 + $0x14] sm:$0xf]
      %v1712 = vld [vmem:[%s1705 + $0x18] sm:$0xf]
      %v1713 = vld [vmem:[%s1705 + $0x1c] sm:$0xf]
      %v1714 = vld [vmem:[%s1705 + $0x20] sm:$0xf]
      %v1715 = vld [vmem:[%s1705 + $0x24] sm:$0xf]
      %v1716 = vld [vmem:[%s1705 + $0x28] sm:$0xf]
      %v1717 = vld [vmem:[%s1705 + $0x2c] sm:$0xf]
      %v1718 = vld [vmem:[%s1705 + $0x30] sm:$0xf]
      %v1719 = vld [vmem:[%s1705 + $0x34] sm:$0xf]
      %v1720 = vld [vmem:[%s1705 + $0x38] sm:$0xf]
      %v1721 = vld [vmem:[%s1705 + $0x3c] sm:$0xf]
      %s1722 = scalar_lea.vmem %s2, 256
      %v1723 = vld [vmem:[%s1722] sm:$0xf]
      %v1724 = vld [vmem:[%s1722 + $0x4] sm:$0xf]
      %v1725 = vld [vmem:[%s1722 + $0x8] sm:$0xf]
      %v1726 = vld [vmem:[%s1722 + $0xc] sm:$0xf]
      %v1727 = vld [vmem:[%s1722 + $0x10] sm:$0xf]
      %v1728 = vld [vmem:[%s1722 + $0x14] sm:$0xf]
      %v1729 = vld [vmem:[%s1722 + $0x18] sm:$0xf]
      %v1730 = vld [vmem:[%s1722 + $0x1c] sm:$0xf]
      %v1731 = vld [vmem:[%s1722 + $0x20] sm:$0xf]
      %v1732 = vld [vmem:[%s1722 + $0x24] sm:$0xf]
      %v1733 = vld [vmem:[%s1722 + $0x28] sm:$0xf]
      %v1734 = vld [vmem:[%s1722 + $0x2c] sm:$0xf]
      %v1735 = vld [vmem:[%s1722 + $0x30] sm:$0xf]
      %v1736 = vld [vmem:[%s1722 + $0x34] sm:$0xf]
      %v1737 = vld [vmem:[%s1722 + $0x38] sm:$0xf]
      %v1738 = vld [vmem:[%s1722 + $0x3c] sm:$0xf]
      %v1755 = vunpack.c.l.b16 %v1723
      %v1756 = vunpack.c.l.b16 %v1724
      %v1757 = vunpack.c.l.b16 %v1725
      %v1758 = vunpack.c.l.b16 %v1726
      %v1759 = vunpack.c.l.b16 %v1727
      %v1760 = vunpack.c.l.b16 %v1728
      %v1761 = vunpack.c.l.b16 %v1729
      %v1762 = vunpack.c.l.b16 %v1730
      %v1763 = vunpack.c.l.b16 %v1731
      %v1764 = vunpack.c.l.b16 %v1732
      %v1765 = vunpack.c.l.b16 %v1733
      %v1766 = vunpack.c.l.b16 %v1734
      %v1767 = vunpack.c.l.b16 %v1735
      %v1768 = vunpack.c.l.b16 %v1736
      %v1769 = vunpack.c.l.b16 %v1737
      %v1770 = vunpack.c.l.b16 %v1738
      %v1771 = vpack.c.b16 %v1756, %v1755
      %v1772 = vpack.c.b16 %v1758, %v1757
      %v1773 = vpack.c.b16 %v1760, %v1759
      %v1774 = vpack.c.b16 %v1762, %v1761
      %v1775 = vpack.c.b16 %v1764, %v1763
      %v1776 = vpack.c.b16 %v1766, %v1765
      %v1777 = vpack.c.b16 %v1768, %v1767
      %v1778 = vpack.c.b16 %v1770, %v1769
      %1787 = vmatprep.subr.bf16.mxu0 0
      %1788 = vmatpush1.bf16.msra.mxu0 %v1778
      %1789 = vmatprep.subr.bf16.mxu0 0
      %1790 = vmatpush1.bf16.msra.mxu0 %v1777
      %1791 = vmatprep.subr.bf16.mxu0 0
      %1792 = vmatpush1.bf16.msra.mxu0 %v1776
      %1793 = vmatprep.subr.bf16.mxu0 0
      %1794 = vmatpush1.bf16.msra.mxu0 %v1775
      %1795 = vmatprep.subr.bf16.mxu0 0
      %1796 = vmatpush1.bf16.msra.mxu0 %v1774
      %1797 = vmatprep.subr.bf16.mxu0 0
      %1798 = vmatpush1.bf16.msra.mxu0 %v1773
      %1799 = vmatprep.subr.bf16.mxu0 0
      %1800 = vmatpush1.bf16.msra.mxu0 %v1772
      %1801 = vmatprep.subr.bf16.mxu0 0
      %1802 = vmatpush1.bf16.msra.mxu0 %v1771
      %1803 = vmatprep.subr.bf16.mxu0 0
      %1804 = vmatpush2.bf16.msra.mxu0 0
      %1805 = vmatprep.subr.bf16.mxu0 0
      %1806 = vmatpush2.bf16.msra.mxu0 0
      %1807 = vmatprep.subr.bf16.mxu0 0
      %1808 = vmatpush2.bf16.msra.mxu0 0
      %1809 = vmatprep.subr.bf16.mxu0 0
      %1810 = vmatpush2.bf16.msra.mxu0 0
      %1811 = vmatprep.subr.bf16.mxu0 0
      %1812 = vmatpush2.bf16.msra.mxu0 0
      %1813 = vmatprep.subr.bf16.mxu0 0
      %1814 = vmatpush2.bf16.msra.mxu0 0
      %1815 = vmatprep.subr.bf16.mxu0 0
      %1816 = vmatpush2.bf16.msra.mxu0 0
      %1817 = vmatprep.subr.bf16.mxu0 0
      %1818 = vmatpush2.bf16.msra.mxu0 0
      %1819 = vmatprep.mubr.bf16.mxu0 0
      %1820 = vmatmul.mubr.bf16.gmra.mxu0 %v594
      %v1821 = vpop.f32.mrf.mxu0
      %v1822 = vadd.f32 0.0, %v1821
      %v1823 = vpop.f32.mrf.mxu0
      %v1824 = vpop.f32.mrf.mxu0
      %v1825 = vadd.f32 0.0, %v1824
      %v1826 = vpop.f32.mrf.mxu0
      %1827 = vmatprep.mubr.bf16.mxu0 0
      %1828 = vmatmul.mubr.bf16.gmra.mxu0 %v595
      %v1829 = vpop.f32.mrf.mxu0
      %v1830 = vadd.f32 0.0, %v1829
      %v1831 = vpop.f32.mrf.mxu0
      %v1832 = vpop.f32.mrf.mxu0
      %v1833 = vadd.f32 0.0, %v1832
      %v1834 = vpop.f32.mrf.mxu0
      %1835 = vmatprep.mubr.bf16.mxu0 0
      %1836 = vmatmul.mubr.bf16.gmra.mxu0 %v596
      %v1837 = vpop.f32.mrf.mxu0
      %v1838 = vadd.f32 0.0, %v1837
      %v1839 = vpop.f32.mrf.mxu0
      %v1840 = vpop.f32.mrf.mxu0
      %v1841 = vadd.f32 0.0, %v1840
      %v1842 = vpop.f32.mrf.mxu0
      %1843 = vmatprep.mubr.bf16.mxu0 0
      %1844 = vmatmul.mubr.bf16.gmra.mxu0 %v597
      %v1845 = vpop.f32.mrf.mxu0
      %v1846 = vadd.f32 0.0, %v1845
      %v1847 = vpop.f32.mrf.mxu0
      %v1848 = vpop.f32.mrf.mxu0
      %v1849 = vadd.f32 0.0, %v1848
      %v1850 = vpop.f32.mrf.mxu0
      %1851 = vmatprep.mubr.bf16.mxu0 0
      %1852 = vmatmul.mubr.bf16.gmra.mxu0 %v598
      %v1853 = vpop.f32.mrf.mxu0
      %v1854 = vadd.f32 0.0, %v1853
      %v1855 = vpop.f32.mrf.mxu0
      %v1856 = vpop.f32.mrf.mxu0
      %v1857 = vadd.f32 0.0, %v1856
      %v1858 = vpop.f32.mrf.mxu0
      %1859 = vmatprep.mubr.bf16.mxu0 0
      %1860 = vmatmul.mubr.bf16.gmra.mxu0 %v599
      %v1861 = vpop.f32.mrf.mxu0
      %v1862 = vadd.f32 0.0, %v1861
      %v1863 = vpop.f32.mrf.mxu0
      %v1864 = vpop.f32.mrf.mxu0
      %v1865 = vadd.f32 0.0, %v1864
      %v1866 = vpop.f32.mrf.mxu0
      %1867 = vdwg.mxu0
      %v1884 = vunpack.c.l.b16 %v1706
      %v1885 = vunpack.c.l.b16 %v1707
      %v1886 = vunpack.c.l.b16 %v1708
      %v1887 = vunpack.c.l.b16 %v1709
      %v1888 = vunpack.c.l.b16 %v1710
      %v1889 = vunpack.c.l.b16 %v1711
      %v1890 = vunpack.c.l.b16 %v1712
      %v1891 = vunpack.c.l.b16 %v1713
      %v1892 = vunpack.c.l.b16 %v1714
      %v1893 = vunpack.c.l.b16 %v1715
      %v1894 = vunpack.c.l.b16 %v1716
      %v1895 = vunpack.c.l.b16 %v1717
      %v1896 = vunpack.c.l.b16 %v1718
      %v1897 = vunpack.c.l.b16 %v1719
      %v1898 = vunpack.c.l.b16 %v1720
      %v1899 = vunpack.c.l.b16 %v1721
      %v1900 = vpack.c.b16 %v1885, %v1884
      %v1901 = vpack.c.b16 %v1887, %v1886
      %v1902 = vpack.c.b16 %v1889, %v1888
      %v1903 = vpack.c.b16 %v1891, %v1890
      %v1904 = vpack.c.b16 %v1893, %v1892
      %v1905 = vpack.c.b16 %v1895, %v1894
      %v1906 = vpack.c.b16 %v1897, %v1896
      %v1907 = vpack.c.b16 %v1899, %v1898
      %1916 = vmatprep.subr.bf16.mxu0 0
      %1917 = vmatpush1.bf16.msra.mxu0 %v1907
      %1918 = vmatprep.subr.bf16.mxu0 0
      %1919 = vmatpush1.bf16.msra.mxu0 %v1906
      %1920 = vmatprep.subr.bf16.mxu0 0
      %1921 = vmatpush1.bf16.msra.mxu0 %v1905
      %1922 = vmatprep.subr.bf16.mxu0 0
      %1923 = vmatpush1.bf16.msra.mxu0 %v1904
      %1924 = vmatprep.subr.bf16.mxu0 0
      %1925 = vmatpush1.bf16.msra.mxu0 %v1903
      %1926 = vmatprep.subr.bf16.mxu0 0
      %1927 = vmatpush1.bf16.msra.mxu0 %v1902
      %1928 = vmatprep.subr.bf16.mxu0 0
      %1929 = vmatpush1.bf16.msra.mxu0 %v1901
      %1930 = vmatprep.subr.bf16.mxu0 0
      %1931 = vmatpush1.bf16.msra.mxu0 %v1900
      %1932 = vmatprep.subr.bf16.mxu0 0
      %1933 = vmatpush2.bf16.msra.mxu0 0
      %1934 = vmatprep.subr.bf16.mxu0 0
      %1935 = vmatpush2.bf16.msra.mxu0 0
      %1936 = vmatprep.subr.bf16.mxu0 0
      %1937 = vmatpush2.bf16.msra.mxu0 0
      %1938 = vmatprep.subr.bf16.mxu0 0
      %1939 = vmatpush2.bf16.msra.mxu0 0
      %1940 = vmatprep.subr.bf16.mxu0 0
      %1941 = vmatpush2.bf16.msra.mxu0 0
      %1942 = vmatprep.subr.bf16.mxu0 0
      %1943 = vmatpush2.bf16.msra.mxu0 0
      %1944 = vmatprep.subr.bf16.mxu0 0
      %1945 = vmatpush2.bf16.msra.mxu0 0
      %1946 = vmatprep.subr.bf16.mxu0 0
      %1947 = vmatpush2.bf16.msra.mxu0 0
      %1948 = vmatprep.mubr.bf16.mxu0 0
      %1949 = vmatmul.mubr.bf16.gmra.mxu0 %v741
      %v1950 = vpop.f32.mrf.mxu0
      %v1951 = vadd.f32 %v1822, %v1950
      %v1952 = vpop.f32.mrf.mxu0
      %v1953 = vpop.f32.mrf.mxu0
      %v1954 = vadd.f32 %v1825, %v1953
      %v1955 = vpop.f32.mrf.mxu0
      %1956 = vmatprep.mubr.bf16.mxu0 0
      %1957 = vmatmul.mubr.bf16.gmra.mxu0 %v742
      %v1958 = vpop.f32.mrf.mxu0
      %v1959 = vadd.f32 %v1830, %v1958
      %v1960 = vpop.f32.mrf.mxu0
      %v1961 = vpop.f32.mrf.mxu0
      %v1962 = vadd.f32 %v1833, %v1961
      %v1963 = vpop.f32.mrf.mxu0
      %1964 = vmatprep.mubr.bf16.mxu0 0
      %1965 = vmatmul.mubr.bf16.gmra.mxu0 %v743
      %v1966 = vpop.f32.mrf.mxu0
      %v1967 = vadd.f32 %v1838, %v1966
      %v1968 = vpop.f32.mrf.mxu0
      %v1969 = vpop.f32.mrf.mxu0
      %v1970 = vadd.f32 %v1841, %v1969
      %v1971 = vpop.f32.mrf.mxu0
      %1972 = vmatprep.mubr.bf16.mxu0 0
      %1973 = vmatmul.mubr.bf16.gmra.mxu0 %v744
      %v1974 = vpop.f32.mrf.mxu0
      %v1975 = vadd.f32 %v1846, %v1974
      %v1976 = vpop.f32.mrf.mxu0
      %v1977 = vpop.f32.mrf.mxu0
      %v1978 = vadd.f32 %v1849, %v1977
      %v1979 = vpop.f32.mrf.mxu0
      %1980 = vmatprep.mubr.bf16.mxu0 0
      %1981 = vmatmul.mubr.bf16.gmra.mxu0 %v745
      %v1982 = vpop.f32.mrf.mxu0
      %v1983 = vadd.f32 %v1854, %v1982
      %v1984 = vpop.f32.mrf.mxu0
      %v1985 = vpop.f32.mrf.mxu0
      %v1986 = vadd.f32 %v1857, %v1985
      %v1987 = vpop.f32.mrf.mxu0
      %1988 = vmatprep.mubr.bf16.mxu0 0
      %1989 = vmatmul.mubr.bf16.gmra.mxu0 %v746
      %v1990 = vpop.f32.mrf.mxu0
      %v1991 = vadd.f32 %v1862, %v1990
      %v1992 = vpop.f32.mrf.mxu0
      %v1993 = vpop.f32.mrf.mxu0
      %v1994 = vadd.f32 %v1865, %v1993
      %v1995 = vpop.f32.mrf.mxu0
      %1996 = vdwg.mxu0
      %s1997 = scalar_lea.vmem %s2, 448
      %v1998 = vld [vmem:[%s1997] sm:$0xf]
      %v1999 = vld [vmem:[%s1997 + $0x4] sm:$0xf]
      %v2000 = vld [vmem:[%s1997 + $0x8] sm:$0xf]
      %v2001 = vld [vmem:[%s1997 + $0xc] sm:$0xf]
      %v2002 = vld [vmem:[%s1997 + $0x10] sm:$0xf]
      %v2003 = vld [vmem:[%s1997 + $0x14] sm:$0xf]
      %v2004 = vld [vmem:[%s1997 + $0x18] sm:$0xf]
      %v2005 = vld [vmem:[%s1997 + $0x1c] sm:$0xf]
      %v2006 = vld [vmem:[%s1997 + $0x20] sm:$0xf]
      %v2007 = vld [vmem:[%s1997 + $0x24] sm:$0xf]
      %v2008 = vld [vmem:[%s1997 + $0x28] sm:$0xf]
      %v2009 = vld [vmem:[%s1997 + $0x2c] sm:$0xf]
      %v2010 = vld [vmem:[%s1997 + $0x30] sm:$0xf]
      %v2011 = vld [vmem:[%s1997 + $0x34] sm:$0xf]
      %v2012 = vld [vmem:[%s1997 + $0x38] sm:$0xf]
      %v2013 = vld [vmem:[%s1997 + $0x3c] sm:$0xf]
      %v2030 = vunpack.c.l.b16 %v1998
      %v2031 = vunpack.c.l.b16 %v1999
      %v2032 = vunpack.c.l.b16 %v2000
      %v2033 = vunpack.c.l.b16 %v2001
      %v2034 = vunpack.c.l.b16 %v2002
      %v2035 = vunpack.c.l.b16 %v2003
      %v2036 = vunpack.c.l.b16 %v2004
      %v2037 = vunpack.c.l.b16 %v2005
      %v2038 = vunpack.c.l.b16 %v2006
      %v2039 = vunpack.c.l.b16 %v2007
      %v2040 = vunpack.c.l.b16 %v2008
      %v2041 = vunpack.c.l.b16 %v2009
      %v2042 = vunpack.c.l.b16 %v2010
      %v2043 = vunpack.c.l.b16 %v2011
      %v2044 = vunpack.c.l.b16 %v2012
      %v2045 = vunpack.c.l.b16 %v2013
      %v2046 = vpack.c.b16 %v2031, %v2030
      %v2047 = vpack.c.b16 %v2033, %v2032
      %v2048 = vpack.c.b16 %v2035, %v2034
      %v2049 = vpack.c.b16 %v2037, %v2036
      %v2050 = vpack.c.b16 %v2039, %v2038
      %v2051 = vpack.c.b16 %v2041, %v2040
      %v2052 = vpack.c.b16 %v2043, %v2042
      %v2053 = vpack.c.b16 %v2045, %v2044
      %2062 = vmatprep.subr.bf16.mxu0 0
      %2063 = vmatpush1.bf16.msra.mxu0 %v2053
      %2064 = vmatprep.subr.bf16.mxu0 0
      %2065 = vmatpush1.bf16.msra.mxu0 %v2052
      %2066 = vmatprep.subr.bf16.mxu0 0
      %2067 = vmatpush1.bf16.msra.mxu0 %v2051
      %2068 = vmatprep.subr.bf16.mxu0 0
      %2069 = vmatpush1.bf16.msra.mxu0 %v2050
      %2070 = vmatprep.subr.bf16.mxu0 0
      %2071 = vmatpush1.bf16.msra.mxu0 %v2049
      %2072 = vmatprep.subr.bf16.mxu0 0
      %2073 = vmatpush1.bf16.msra.mxu0 %v2048
      %2074 = vmatprep.subr.bf16.mxu0 0
      %2075 = vmatpush1.bf16.msra.mxu0 %v2047
      %2076 = vmatprep.subr.bf16.mxu0 0
      %2077 = vmatpush1.bf16.msra.mxu0 %v2046
      %2078 = vmatprep.subr.bf16.mxu0 0
      %2079 = vmatpush2.bf16.msra.mxu0 0
      %2080 = vmatprep.subr.bf16.mxu0 0
      %2081 = vmatpush2.bf16.msra.mxu0 0
      %2082 = vmatprep.subr.bf16.mxu0 0
      %2083 = vmatpush2.bf16.msra.mxu0 0
      %2084 = vmatprep.subr.bf16.mxu0 0
      %2085 = vmatpush2.bf16.msra.mxu0 0
      %2086 = vmatprep.subr.bf16.mxu0 0
      %2087 = vmatpush2.bf16.msra.mxu0 0
      %2088 = vmatprep.subr.bf16.mxu0 0
      %2089 = vmatpush2.bf16.msra.mxu0 0
      %2090 = vmatprep.subr.bf16.mxu0 0
      %2091 = vmatpush2.bf16.msra.mxu0 0
      %2092 = vmatprep.subr.bf16.mxu0 0
      %2093 = vmatpush2.bf16.msra.mxu0 0
      %2094 = vmatprep.mubr.bf16.mxu0 0
      %2095 = vmatmul.mubr.bf16.gmra.mxu0 %v935
      %v2096 = vpop.f32.mrf.mxu0
      %v2097 = vadd.f32 0.0, %v2096
      %v2098 = vpop.f32.mrf.mxu0
      %v2099 = vpop.f32.mrf.mxu0
      %v2100 = vadd.f32 0.0, %v2099
      %v2101 = vpop.f32.mrf.mxu0
      %2102 = vmatprep.mubr.bf16.mxu0 0
      %2103 = vmatmul.mubr.bf16.gmra.mxu0 %v936
      %v2104 = vpop.f32.mrf.mxu0
      %v2105 = vadd.f32 0.0, %v2104
      %v2106 = vpop.f32.mrf.mxu0
      %v2107 = vpop.f32.mrf.mxu0
      %v2108 = vadd.f32 0.0, %v2107
      %v2109 = vpop.f32.mrf.mxu0
      %2110 = vmatprep.mubr.bf16.mxu0 0
      %2111 = vmatmul.mubr.bf16.gmra.mxu0 %v937
      %v2112 = vpop.f32.mrf.mxu0
      %v2113 = vadd.f32 0.0, %v2112
      %v2114 = vpop.f32.mrf.mxu0
      %v2115 = vpop.f32.mrf.mxu0
      %v2116 = vadd.f32 0.0, %v2115
      %v2117 = vpop.f32.mrf.mxu0
      %2118 = vmatprep.mubr.bf16.mxu0 0
      %2119 = vmatmul.mubr.bf16.gmra.mxu0 %v938
      %v2120 = vpop.f32.mrf.mxu0
      %v2121 = vadd.f32 0.0, %v2120
      %v2122 = vpop.f32.mrf.mxu0
      %v2123 = vpop.f32.mrf.mxu0
      %v2124 = vadd.f32 0.0, %v2123
      %v2125 = vpop.f32.mrf.mxu0
      %2126 = vmatprep.mubr.bf16.mxu0 0
      %2127 = vmatmul.mubr.bf16.gmra.mxu0 %v939
      %v2128 = vpop.f32.mrf.mxu0
      %v2129 = vadd.f32 0.0, %v2128
      %v2130 = vpop.f32.mrf.mxu0
      %v2131 = vpop.f32.mrf.mxu0
      %v2132 = vadd.f32 0.0, %v2131
      %v2133 = vpop.f32.mrf.mxu0
      %2134 = vmatprep.mubr.bf16.mxu0 0
      %2135 = vmatmul.mubr.bf16.gmra.mxu0 %v940
      %v2136 = vpop.f32.mrf.mxu0
      %v2137 = vadd.f32 0.0, %v2136
      %v2138 = vpop.f32.mrf.mxu0
      %v2139 = vpop.f32.mrf.mxu0
      %v2140 = vadd.f32 0.0, %v2139
      %v2141 = vpop.f32.mrf.mxu0
      %2142 = vdwg.mxu0
      %v2143 = vadd.f32 %v1951, %v2097
      %v2144 = vadd.f32 %v1954, %v2100
      %v2145 = vadd.f32 %v1959, %v2105
      %v2146 = vadd.f32 %v1962, %v2108
      %v2147 = vadd.f32 %v1967, %v2113
      %v2148 = vadd.f32 %v1970, %v2116
      %v2149 = vadd.f32 %v1975, %v2121
      %v2150 = vadd.f32 %v1978, %v2124
      %v2151 = vadd.f32 %v1983, %v2129
      %v2152 = vadd.f32 %v1986, %v2132
      %v2153 = vadd.f32 %v1991, %v2137
      %v2154 = vadd.f32 %v1994, %v2140
      %s2155 = scalar_lea.vmem %s3, 64
      %v2156 = vld [vmem:[%s2155] sm:$0xf]
      %v2157 = vld [vmem:[%s2155 + $0x4] sm:$0xf]
      %v2158 = vld [vmem:[%s2155 + $0x8] sm:$0xf]
      %v2159 = vld [vmem:[%s2155 + $0xc] sm:$0xf]
      %v2160 = vld [vmem:[%s2155 + $0x10] sm:$0xf]
      %v2161 = vld [vmem:[%s2155 + $0x14] sm:$0xf]
      %v2162 = vld [vmem:[%s2155 + $0x18] sm:$0xf]
      %v2163 = vld [vmem:[%s2155 + $0x1c] sm:$0xf]
      %v2164 = vld [vmem:[%s2155 + $0x20] sm:$0xf]
      %v2165 = vld [vmem:[%s2155 + $0x24] sm:$0xf]
      %v2166 = vld [vmem:[%s2155 + $0x28] sm:$0xf]
      %v2167 = vld [vmem:[%s2155 + $0x2c] sm:$0xf]
      %v2168 = vld [vmem:[%s2155 + $0x30] sm:$0xf]
      %v2169 = vld [vmem:[%s2155 + $0x34] sm:$0xf]
      %v2170 = vld [vmem:[%s2155 + $0x38] sm:$0xf]
      %v2171 = vld [vmem:[%s2155 + $0x3c] sm:$0xf]
      %v2188 = vunpack.c.l.b16 %v2156
      %v2189 = vunpack.c.l.b16 %v2157
      %v2190 = vunpack.c.l.b16 %v2158
      %v2191 = vunpack.c.l.b16 %v2159
      %v2192 = vunpack.c.l.b16 %v2160
      %v2193 = vunpack.c.l.b16 %v2161
      %v2194 = vunpack.c.l.b16 %v2162
      %v2195 = vunpack.c.l.b16 %v2163
      %v2196 = vunpack.c.l.b16 %v2164
      %v2197 = vunpack.c.l.b16 %v2165
      %v2198 = vunpack.c.l.b16 %v2166
      %v2199 = vunpack.c.l.b16 %v2167
      %v2200 = vunpack.c.l.b16 %v2168
      %v2201 = vunpack.c.l.b16 %v2169
      %v2202 = vunpack.c.l.b16 %v2170
      %v2203 = vunpack.c.l.b16 %v2171
      %v2204 = vpack.c.b16 %v2189, %v2188
      %v2205 = vpack.c.b16 %v2191, %v2190
      %v2206 = vpack.c.b16 %v2193, %v2192
      %v2207 = vpack.c.b16 %v2195, %v2194
      %v2208 = vpack.c.b16 %v2197, %v2196
      %v2209 = vpack.c.b16 %v2199, %v2198
      %v2210 = vpack.c.b16 %v2201, %v2200
      %v2211 = vpack.c.b16 %v2203, %v2202
      %2220 = vmatprep.subr.bf16.mxu0 0
      %2221 = vmatpush1.bf16.msra.mxu0 %v2211
      %2222 = vmatprep.subr.bf16.mxu0 0
      %2223 = vmatpush1.bf16.msra.mxu0 %v2210
      %2224 = vmatprep.subr.bf16.mxu0 0
      %2225 = vmatpush1.bf16.msra.mxu0 %v2209
      %2226 = vmatprep.subr.bf16.mxu0 0
      %2227 = vmatpush1.bf16.msra.mxu0 %v2208
      %2228 = vmatprep.subr.bf16.mxu0 0
      %2229 = vmatpush1.bf16.msra.mxu0 %v2207
      %2230 = vmatprep.subr.bf16.mxu0 0
      %2231 = vmatpush1.bf16.msra.mxu0 %v2206
      %2232 = vmatprep.subr.bf16.mxu0 0
      %2233 = vmatpush1.bf16.msra.mxu0 %v2205
      %2234 = vmatprep.subr.bf16.mxu0 0
      %2235 = vmatpush1.bf16.msra.mxu0 %v2204
      %2236 = vmatprep.subr.bf16.mxu0 0
      %2237 = vmatpush2.bf16.msra.mxu0 0
      %2238 = vmatprep.subr.bf16.mxu0 0
      %2239 = vmatpush2.bf16.msra.mxu0 0
      %2240 = vmatprep.subr.bf16.mxu0 0
      %2241 = vmatpush2.bf16.msra.mxu0 0
      %2242 = vmatprep.subr.bf16.mxu0 0
      %2243 = vmatpush2.bf16.msra.mxu0 0
      %2244 = vmatprep.subr.bf16.mxu0 0
      %2245 = vmatpush2.bf16.msra.mxu0 0
      %2246 = vmatprep.subr.bf16.mxu0 0
      %2247 = vmatpush2.bf16.msra.mxu0 0
      %2248 = vmatprep.subr.bf16.mxu0 0
      %2249 = vmatpush2.bf16.msra.mxu0 0
      %2250 = vmatprep.subr.bf16.mxu0 0
      %2251 = vmatpush2.bf16.msra.mxu0 0
      %2252 = vmatprep.mubr.bf16.mxu0 0
      %2253 = vmatmul.mubr.bf16.gmra.mxu0 %v1140
      %v2254 = vpop.f32.mrf.mxu0
      %v2255 = vadd.f32 0.0, %v2254
      %v2256 = vpop.f32.mrf.mxu0
      %v2257 = vpop.f32.mrf.mxu0
      %v2258 = vadd.f32 0.0, %v2257
      %v2259 = vpop.f32.mrf.mxu0
      %2260 = vmatprep.mubr.bf16.mxu0 0
      %2261 = vmatmul.mubr.bf16.gmra.mxu0 %v1141
      %v2262 = vpop.f32.mrf.mxu0
      %v2263 = vadd.f32 0.0, %v2262
      %v2264 = vpop.f32.mrf.mxu0
      %v2265 = vpop.f32.mrf.mxu0
      %v2266 = vadd.f32 0.0, %v2265
      %v2267 = vpop.f32.mrf.mxu0
      %2268 = vmatprep.mubr.bf16.mxu0 0
      %2269 = vmatmul.mubr.bf16.gmra.mxu0 %v1142
      %v2270 = vpop.f32.mrf.mxu0
      %v2271 = vadd.f32 0.0, %v2270
      %v2272 = vpop.f32.mrf.mxu0
      %v2273 = vpop.f32.mrf.mxu0
      %v2274 = vadd.f32 0.0, %v2273
      %v2275 = vpop.f32.mrf.mxu0
      %2276 = vmatprep.mubr.bf16.mxu0 0
      %2277 = vmatmul.mubr.bf16.gmra.mxu0 %v1143
      %v2278 = vpop.f32.mrf.mxu0
      %v2279 = vadd.f32 0.0, %v2278
      %v2280 = vpop.f32.mrf.mxu0
      %v2281 = vpop.f32.mrf.mxu0
      %v2282 = vadd.f32 0.0, %v2281
      %v2283 = vpop.f32.mrf.mxu0
      %2284 = vmatprep.mubr.bf16.mxu0 0
      %2285 = vmatmul.mubr.bf16.gmra.mxu0 %v1144
      %v2286 = vpop.f32.mrf.mxu0
      %v2287 = vadd.f32 0.0, %v2286
      %v2288 = vpop.f32.mrf.mxu0
      %v2289 = vpop.f32.mrf.mxu0
      %v2290 = vadd.f32 0.0, %v2289
      %v2291 = vpop.f32.mrf.mxu0
      %2292 = vmatprep.mubr.bf16.mxu0 0
      %2293 = vmatmul.mubr.bf16.gmra.mxu0 %v1145
      %v2294 = vpop.f32.mrf.mxu0
      %v2295 = vadd.f32 0.0, %v2294
      %v2296 = vpop.f32.mrf.mxu0
      %v2297 = vpop.f32.mrf.mxu0
      %v2298 = vadd.f32 0.0, %v2297
      %v2299 = vpop.f32.mrf.mxu0
      %2300 = vdwg.mxu0
      %v2301 = vadd.f32 %v2143, %v2255
      %v2302 = vadd.f32 %v2144, %v2258
      %v2303 = vadd.f32 %v2145, %v2263
      %v2304 = vadd.f32 %v2146, %v2266
      %v2305 = vadd.f32 %v2147, %v2271
      %v2306 = vadd.f32 %v2148, %v2274
      %v2307 = vadd.f32 %v2149, %v2279
      %v2308 = vadd.f32 %v2150, %v2282
      %v2309 = vadd.f32 %v2151, %v2287
      %v2310 = vadd.f32 %v2152, %v2290
      %v2311 = vadd.f32 %v2153, %v2295
      %v2312 = vadd.f32 %v2154, %v2298
      %s2313 = scalar_lea.vmem %s3, 256
      %v2314 = vld [vmem:[%s2313] sm:$0xf]
      %v2315 = vld [vmem:[%s2313 + $0x4] sm:$0xf]
      %v2316 = vld [vmem:[%s2313 + $0x8] sm:$0xf]
      %v2317 = vld [vmem:[%s2313 + $0xc] sm:$0xf]
      %v2318 = vld [vmem:[%s2313 + $0x10] sm:$0xf]
      %v2319 = vld [vmem:[%s2313 + $0x14] sm:$0xf]
      %v2320 = vld [vmem:[%s2313 + $0x18] sm:$0xf]
      %v2321 = vld [vmem:[%s2313 + $0x1c] sm:$0xf]
      %v2322 = vld [vmem:[%s2313 + $0x20] sm:$0xf]
      %v2323 = vld [vmem:[%s2313 + $0x24] sm:$0xf]
      %v2324 = vld [vmem:[%s2313 + $0x28] sm:$0xf]
      %v2325 = vld [vmem:[%s2313 + $0x2c] sm:$0xf]
      %v2326 = vld [vmem:[%s2313 + $0x30] sm:$0xf]
      %v2327 = vld [vmem:[%s2313 + $0x34] sm:$0xf]
      %v2328 = vld [vmem:[%s2313 + $0x38] sm:$0xf]
      %v2329 = vld [vmem:[%s2313 + $0x3c] sm:$0xf]
      %v2346 = vunpack.c.l.b16 %v2314
      %v2347 = vunpack.c.l.b16 %v2315
      %v2348 = vunpack.c.l.b16 %v2316
      %v2349 = vunpack.c.l.b16 %v2317
      %v2350 = vunpack.c.l.b16 %v2318
      %v2351 = vunpack.c.l.b16 %v2319
      %v2352 = vunpack.c.l.b16 %v2320
      %v2353 = vunpack.c.l.b16 %v2321
      %v2354 = vunpack.c.l.b16 %v2322
      %v2355 = vunpack.c.l.b16 %v2323
      %v2356 = vunpack.c.l.b16 %v2324
      %v2357 = vunpack.c.l.b16 %v2325
      %v2358 = vunpack.c.l.b16 %v2326
      %v2359 = vunpack.c.l.b16 %v2327
      %v2360 = vunpack.c.l.b16 %v2328
      %v2361 = vunpack.c.l.b16 %v2329
      %v2362 = vpack.c.b16 %v2347, %v2346
      %v2363 = vpack.c.b16 %v2349, %v2348
      %v2364 = vpack.c.b16 %v2351, %v2350
      %v2365 = vpack.c.b16 %v2353, %v2352
      %v2366 = vpack.c.b16 %v2355, %v2354
      %v2367 = vpack.c.b16 %v2357, %v2356
      %v2368 = vpack.c.b16 %v2359, %v2358
      %v2369 = vpack.c.b16 %v2361, %v2360
      %2378 = vmatprep.subr.bf16.mxu0 0
      %2379 = vmatpush1.bf16.msra.mxu0 %v2369
      %2380 = vmatprep.subr.bf16.mxu0 0
      %2381 = vmatpush1.bf16.msra.mxu0 %v2368
      %2382 = vmatprep.subr.bf16.mxu0 0
      %2383 = vmatpush1.bf16.msra.mxu0 %v2367
      %2384 = vmatprep.subr.bf16.mxu0 0
      %2385 = vmatpush1.bf16.msra.mxu0 %v2366
      %2386 = vmatprep.subr.bf16.mxu0 0
      %2387 = vmatpush1.bf16.msra.mxu0 %v2365
      %2388 = vmatprep.subr.bf16.mxu0 0
      %2389 = vmatpush1.bf16.msra.mxu0 %v2364
      %2390 = vmatprep.subr.bf16.mxu0 0
      %2391 = vmatpush1.bf16.msra.mxu0 %v2363
      %2392 = vmatprep.subr.bf16.mxu0 0
      %2393 = vmatpush1.bf16.msra.mxu0 %v2362
      %2394 = vmatprep.subr.bf16.mxu0 0
      %2395 = vmatpush2.bf16.msra.mxu0 0
      %2396 = vmatprep.subr.bf16.mxu0 0
      %2397 = vmatpush2.bf16.msra.mxu0 0
      %2398 = vmatprep.subr.bf16.mxu0 0
      %2399 = vmatpush2.bf16.msra.mxu0 0
      %2400 = vmatprep.subr.bf16.mxu0 0
      %2401 = vmatpush2.bf16.msra.mxu0 0
      %2402 = vmatprep.subr.bf16.mxu0 0
      %2403 = vmatpush2.bf16.msra.mxu0 0
      %2404 = vmatprep.subr.bf16.mxu0 0
      %2405 = vmatpush2.bf16.msra.mxu0 0
      %2406 = vmatprep.subr.bf16.mxu0 0
      %2407 = vmatpush2.bf16.msra.mxu0 0
      %2408 = vmatprep.subr.bf16.mxu0 0
      %2409 = vmatpush2.bf16.msra.mxu0 0
      %2410 = vmatprep.mubr.bf16.mxu0 0
      %2411 = vmatmul.mubr.bf16.gmra.mxu0 %v1346
      %v2412 = vpop.f32.mrf.mxu0
      %v2413 = vadd.f32 0.0, %v2412
      %v2414 = vpop.f32.mrf.mxu0
      %v2415 = vpop.f32.mrf.mxu0
      %v2416 = vadd.f32 0.0, %v2415
      %v2417 = vpop.f32.mrf.mxu0
      %2418 = vmatprep.mubr.bf16.mxu0 0
      %2419 = vmatmul.mubr.bf16.gmra.mxu0 %v1347
      %v2420 = vpop.f32.mrf.mxu0
      %v2421 = vadd.f32 0.0, %v2420
      %v2422 = vpop.f32.mrf.mxu0
      %v2423 = vpop.f32.mrf.mxu0
      %v2424 = vadd.f32 0.0, %v2423
      %v2425 = vpop.f32.mrf.mxu0
      %2426 = vmatprep.mubr.bf16.mxu0 0
      %2427 = vmatmul.mubr.bf16.gmra.mxu0 %v1348
      %v2428 = vpop.f32.mrf.mxu0
      %v2429 = vadd.f32 0.0, %v2428
      %v2430 = vpop.f32.mrf.mxu0
      %v2431 = vpop.f32.mrf.mxu0
      %v2432 = vadd.f32 0.0, %v2431
      %v2433 = vpop.f32.mrf.mxu0
      %2434 = vmatprep.mubr.bf16.mxu0 0
      %2435 = vmatmul.mubr.bf16.gmra.mxu0 %v1349
      %v2436 = vpop.f32.mrf.mxu0
      %v2437 = vadd.f32 0.0, %v2436
      %v2438 = vpop.f32.mrf.mxu0
      %v2439 = vpop.f32.mrf.mxu0
      %v2440 = vadd.f32 0.0, %v2439
      %v2441 = vpop.f32.mrf.mxu0
      %2442 = vmatprep.mubr.bf16.mxu0 0
      %2443 = vmatmul.mubr.bf16.gmra.mxu0 %v1350
      %v2444 = vpop.f32.mrf.mxu0
      %v2445 = vadd.f32 0.0, %v2444
      %v2446 = vpop.f32.mrf.mxu0
      %v2447 = vpop.f32.mrf.mxu0
      %v2448 = vadd.f32 0.0, %v2447
      %v2449 = vpop.f32.mrf.mxu0
      %2450 = vmatprep.mubr.bf16.mxu0 0
      %2451 = vmatmul.mubr.bf16.gmra.mxu0 %v1351
      %v2452 = vpop.f32.mrf.mxu0
      %v2453 = vadd.f32 0.0, %v2452
      %v2454 = vpop.f32.mrf.mxu0
      %v2455 = vpop.f32.mrf.mxu0
      %v2456 = vadd.f32 0.0, %v2455
      %v2457 = vpop.f32.mrf.mxu0
      %2458 = vdwg.mxu0
      %v2459 = vadd.f32 %v2301, %v2413
      %v2460 = vadd.f32 %v2302, %v2416
      %v2461 = vadd.f32 %v2303, %v2421
      %v2462 = vadd.f32 %v2304, %v2424
      %v2463 = vadd.f32 %v2305, %v2429
      %v2464 = vadd.f32 %v2306, %v2432
      %v2465 = vadd.f32 %v2307, %v2437
      %v2466 = vadd.f32 %v2308, %v2440
      %v2467 = vadd.f32 %v2309, %v2445
      %v2468 = vadd.f32 %v2310, %v2448
      %v2469 = vadd.f32 %v2311, %v2453
      %v2470 = vadd.f32 %v2312, %v2456
      %s2471 = scalar_lea.vmem %s3, 448
      %v2472 = vld [vmem:[%s2471] sm:$0xf]
      %v2473 = vld [vmem:[%s2471 + $0x4] sm:$0xf]
      %v2474 = vld [vmem:[%s2471 + $0x8] sm:$0xf]
      %v2475 = vld [vmem:[%s2471 + $0xc] sm:$0xf]
      %v2476 = vld [vmem:[%s2471 + $0x10] sm:$0xf]
      %v2477 = vld [vmem:[%s2471 + $0x14] sm:$0xf]
      %v2478 = vld [vmem:[%s2471 + $0x18] sm:$0xf]
      %v2479 = vld [vmem:[%s2471 + $0x1c] sm:$0xf]
      %v2480 = vld [vmem:[%s2471 + $0x20] sm:$0xf]
      %v2481 = vld [vmem:[%s2471 + $0x24] sm:$0xf]
      %v2482 = vld [vmem:[%s2471 + $0x28] sm:$0xf]
      %v2483 = vld [vmem:[%s2471 + $0x2c] sm:$0xf]
      %v2484 = vld [vmem:[%s2471 + $0x30] sm:$0xf]
      %v2485 = vld [vmem:[%s2471 + $0x34] sm:$0xf]
      %v2486 = vld [vmem:[%s2471 + $0x38] sm:$0xf]
      %v2487 = vld [vmem:[%s2471 + $0x3c] sm:$0xf]
      %v2504 = vunpack.c.l.b16 %v2472
      %v2505 = vunpack.c.l.b16 %v2473
      %v2506 = vunpack.c.l.b16 %v2474
      %v2507 = vunpack.c.l.b16 %v2475
      %v2508 = vunpack.c.l.b16 %v2476
      %v2509 = vunpack.c.l.b16 %v2477
      %v2510 = vunpack.c.l.b16 %v2478
      %v2511 = vunpack.c.l.b16 %v2479
      %v2512 = vunpack.c.l.b16 %v2480
      %v2513 = vunpack.c.l.b16 %v2481
      %v2514 = vunpack.c.l.b16 %v2482
      %v2515 = vunpack.c.l.b16 %v2483
      %v2516 = vunpack.c.l.b16 %v2484
      %v2517 = vunpack.c.l.b16 %v2485
      %v2518 = vunpack.c.l.b16 %v2486
      %v2519 = vunpack.c.l.b16 %v2487
      %v2520 = vpack.c.b16 %v2505, %v2504
      %v2521 = vpack.c.b16 %v2507, %v2506
      %v2522 = vpack.c.b16 %v2509, %v2508
      %v2523 = vpack.c.b16 %v2511, %v2510
      %v2524 = vpack.c.b16 %v2513, %v2512
      %v2525 = vpack.c.b16 %v2515, %v2514
      %v2526 = vpack.c.b16 %v2517, %v2516
      %v2527 = vpack.c.b16 %v2519, %v2518
      %2536 = vmatprep.subr.bf16.mxu0 0
      %2537 = vmatpush1.bf16.msra.mxu0 %v2527
      %2538 = vmatprep.subr.bf16.mxu0 0
      %2539 = vmatpush1.bf16.msra.mxu0 %v2526
      %2540 = vmatprep.subr.bf16.mxu0 0
      %2541 = vmatpush1.bf16.msra.mxu0 %v2525
      %2542 = vmatprep.subr.bf16.mxu0 0
      %2543 = vmatpush1.bf16.msra.mxu0 %v2524
      %2544 = vmatprep.subr.bf16.mxu0 0
      %2545 = vmatpush1.bf16.msra.mxu0 %v2523
      %2546 = vmatprep.subr.bf16.mxu0 0
      %2547 = vmatpush1.bf16.msra.mxu0 %v2522
      %2548 = vmatprep.subr.bf16.mxu0 0
      %2549 = vmatpush1.bf16.msra.mxu0 %v2521
      %2550 = vmatprep.subr.bf16.mxu0 0
      %2551 = vmatpush1.bf16.msra.mxu0 %v2520
      %2552 = vmatprep.subr.bf16.mxu0 0
      %2553 = vmatpush2.bf16.msra.mxu0 0
      %2554 = vmatprep.subr.bf16.mxu0 0
      %2555 = vmatpush2.bf16.msra.mxu0 0
      %2556 = vmatprep.subr.bf16.mxu0 0
      %2557 = vmatpush2.bf16.msra.mxu0 0
      %2558 = vmatprep.subr.bf16.mxu0 0
      %2559 = vmatpush2.bf16.msra.mxu0 0
      %2560 = vmatprep.subr.bf16.mxu0 0
      %2561 = vmatpush2.bf16.msra.mxu0 0
      %2562 = vmatprep.subr.bf16.mxu0 0
      %2563 = vmatpush2.bf16.msra.mxu0 0
      %2564 = vmatprep.subr.bf16.mxu0 0
      %2565 = vmatpush2.bf16.msra.mxu0 0
      %2566 = vmatprep.subr.bf16.mxu0 0
      %2567 = vmatpush2.bf16.msra.mxu0 0
      %2568 = vmatprep.mubr.bf16.mxu0 0
      %2569 = vmatmul.mubr.bf16.gmra.mxu0 %v1552
      %v2570 = vpop.f32.mrf.mxu0
      %v2571 = vadd.f32 0.0, %v2570
      %v2572 = vpop.f32.mrf.mxu0
      %v2573 = vpop.f32.mrf.mxu0
      %v2574 = vadd.f32 0.0, %v2573
      %v2575 = vpop.f32.mrf.mxu0
      %2576 = vmatprep.mubr.bf16.mxu0 0
      %2577 = vmatmul.mubr.bf16.gmra.mxu0 %v1553
      %v2578 = vpop.f32.mrf.mxu0
      %v2579 = vadd.f32 0.0, %v2578
      %v2580 = vpop.f32.mrf.mxu0
      %v2581 = vpop.f32.mrf.mxu0
      %v2582 = vadd.f32 0.0, %v2581
      %v2583 = vpop.f32.mrf.mxu0
      %2584 = vmatprep.mubr.bf16.mxu0 0
      %2585 = vmatmul.mubr.bf16.gmra.mxu0 %v1554
      %v2586 = vpop.f32.mrf.mxu0
      %v2587 = vadd.f32 0.0, %v2586
      %v2588 = vpop.f32.mrf.mxu0
      %v2589 = vpop.f32.mrf.mxu0
      %v2590 = vadd.f32 0.0, %v2589
      %v2591 = vpop.f32.mrf.mxu0
      %2592 = vmatprep.mubr.bf16.mxu0 0
      %2593 = vmatmul.mubr.bf16.gmra.mxu0 %v1555
      %v2594 = vpop.f32.mrf.mxu0
      %v2595 = vadd.f32 0.0, %v2594
      %v2596 = vpop.f32.mrf.mxu0
      %v2597 = vpop.f32.mrf.mxu0
      %v2598 = vadd.f32 0.0, %v2597
      %v2599 = vpop.f32.mrf.mxu0
      %2600 = vmatprep.mubr.bf16.mxu0 0
      %2601 = vmatmul.mubr.bf16.gmra.mxu0 %v1556
      %v2602 = vpop.f32.mrf.mxu0
      %v2603 = vadd.f32 0.0, %v2602
      %v2604 = vpop.f32.mrf.mxu0
      %v2605 = vpop.f32.mrf.mxu0
      %v2606 = vadd.f32 0.0, %v2605
      %v2607 = vpop.f32.mrf.mxu0
      %2608 = vmatprep.mubr.bf16.mxu0 0
      %2609 = vmatmul.mubr.bf16.gmra.mxu0 %v1557
      %v2610 = vpop.f32.mrf.mxu0
      %v2611 = vadd.f32 0.0, %v2610
      %v2612 = vpop.f32.mrf.mxu0
      %v2613 = vpop.f32.mrf.mxu0
      %v2614 = vadd.f32 0.0, %v2613
      %v2615 = vpop.f32.mrf.mxu0
      %2616 = vdwg.mxu0
      %v2617 = vadd.f32 %v2459, %v2571
      %v2618 = vadd.f32 %v2460, %v2574
      %v2619 = vadd.f32 %v2461, %v2579
      %v2620 = vadd.f32 %v2462, %v2582
      %v2621 = vadd.f32 %v2463, %v2587
      %v2622 = vadd.f32 %v2464, %v2590
      %v2623 = vadd.f32 %v2465, %v2595
      %v2624 = vadd.f32 %v2466, %v2598
      %v2625 = vadd.f32 %v2467, %v2603
      %v2626 = vadd.f32 %v2468, %v2606
      %v2627 = vadd.f32 %v2469, %v2611
      %v2628 = vadd.f32 %v2470, %v2614
      %vm2641 = vcmask 1046528
      %v2642 = vrot.slane %v2617, 1
      %v2643 = vrot.slane %v2618, 1
      %v2644 = vsel %vm2641, %v2642, %v2643
      %v2645 = vrot.slane %v2619, 1
      %v2646 = vsel %vm2641, %v2643, %v2645
      %v2647 = vrot.slane %v2620, 1
      %v2648 = vsel %vm2641, %v2645, %v2647
      %v2649 = vrot.slane %v2621, 1
      %v2650 = vsel %vm2641, %v2647, %v2649
      %v2651 = vrot.slane %v2622, 1
      %v2652 = vsel %vm2641, %v2649, %v2651
      %v2653 = vrot.slane %v2623, 1
      %v2654 = vsel %vm2641, %v2651, %v2653
      %v2655 = vrot.slane %v2624, 1
      %v2656 = vsel %vm2641, %v2653, %v2655
      %v2657 = vrot.slane %v2625, 1
      %v2658 = vsel %vm2641, %v2655, %v2657
      %v2659 = vrot.slane %v2626, 1
      %v2660 = vsel %vm2641, %v2657, %v2659
      %v2661 = vrot.slane %v2627, 1
      %v2662 = vsel %vm2641, %v2659, %v2661
      %v2663 = vrot.slane %v2628, 1
      %v2664 = vsel %vm2641, %v2661, %v2663
      %v2678 = vsel %vm2641, %v2663, %v2642
      %v2679 = vadd.f32 %v1693, %v2644
      %v2680 = vadd.f32 %v1694, %v2646
      %v2681 = vadd.f32 %v1695, %v2648
      %v2682 = vadd.f32 %v1696, %v2650
      %v2683 = vadd.f32 %v1697, %v2652
      %v2684 = vadd.f32 %v1698, %v2654
      %v2685 = vadd.f32 %v1699, %v2656
      %v2686 = vadd.f32 %v1700, %v2658
      %v2687 = vadd.f32 %v1701, %v2660
      %v2688 = vadd.f32 %v1702, %v2662
      %v2689 = vadd.f32 %v1703, %v2664
      %v2690 = vadd.f32 %v1704, %v2678
      %s2691 = scalar_lea.vmem %s2, 128
      %v2692 = vld [vmem:[%s2691] sm:$0xf]
      %v2693 = vld [vmem:[%s2691 + $0x4] sm:$0xf]
      %v2694 = vld [vmem:[%s2691 + $0x8] sm:$0xf]
      %v2695 = vld [vmem:[%s2691 + $0xc] sm:$0xf]
      %v2696 = vld [vmem:[%s2691 + $0x10] sm:$0xf]
      %v2697 = vld [vmem:[%s2691 + $0x14] sm:$0xf]
      %v2698 = vld [vmem:[%s2691 + $0x18] sm:$0xf]
      %v2699 = vld [vmem:[%s2691 + $0x1c] sm:$0xf]
      %v2700 = vld [vmem:[%s2691 + $0x20] sm:$0xf]
      %v2701 = vld [vmem:[%s2691 + $0x24] sm:$0xf]
      %v2702 = vld [vmem:[%s2691 + $0x28] sm:$0xf]
      %v2703 = vld [vmem:[%s2691 + $0x2c] sm:$0xf]
      %v2704 = vld [vmem:[%s2691 + $0x30] sm:$0xf]
      %v2705 = vld [vmem:[%s2691 + $0x34] sm:$0xf]
      %v2706 = vld [vmem:[%s2691 + $0x38] sm:$0xf]
      %v2707 = vld [vmem:[%s2691 + $0x3c] sm:$0xf]
      %s2708 = scalar_lea.vmem %s2, 320
      %v2709 = vld [vmem:[%s2708] sm:$0xf]
      %v2710 = vld [vmem:[%s2708 + $0x4] sm:$0xf]
      %v2711 = vld [vmem:[%s2708 + $0x8] sm:$0xf]
      %v2712 = vld [vmem:[%s2708 + $0xc] sm:$0xf]
      %v2713 = vld [vmem:[%s2708 + $0x10] sm:$0xf]
      %v2714 = vld [vmem:[%s2708 + $0x14] sm:$0xf]
      %v2715 = vld [vmem:[%s2708 + $0x18] sm:$0xf]
      %v2716 = vld [vmem:[%s2708 + $0x1c] sm:$0xf]
      %v2717 = vld [vmem:[%s2708 + $0x20] sm:$0xf]
      %v2718 = vld [vmem:[%s2708 + $0x24] sm:$0xf]
      %v2719 = vld [vmem:[%s2708 + $0x28] sm:$0xf]
      %v2720 = vld [vmem:[%s2708 + $0x2c] sm:$0xf]
      %v2721 = vld [vmem:[%s2708 + $0x30] sm:$0xf]
      %v2722 = vld [vmem:[%s2708 + $0x34] sm:$0xf]
      %v2723 = vld [vmem:[%s2708 + $0x38] sm:$0xf]
      %v2724 = vld [vmem:[%s2708 + $0x3c] sm:$0xf]
      %v2741 = vunpack.c.l.b16 %v2709
      %v2742 = vunpack.c.l.b16 %v2710
      %v2743 = vunpack.c.l.b16 %v2711
      %v2744 = vunpack.c.l.b16 %v2712
      %v2745 = vunpack.c.l.b16 %v2713
      %v2746 = vunpack.c.l.b16 %v2714
      %v2747 = vunpack.c.l.b16 %v2715
      %v2748 = vunpack.c.l.b16 %v2716
      %v2749 = vunpack.c.l.b16 %v2717
      %v2750 = vunpack.c.l.b16 %v2718
      %v2751 = vunpack.c.l.b16 %v2719
      %v2752 = vunpack.c.l.b16 %v2720
      %v2753 = vunpack.c.l.b16 %v2721
      %v2754 = vunpack.c.l.b16 %v2722
      %v2755 = vunpack.c.l.b16 %v2723
      %v2756 = vunpack.c.l.b16 %v2724
      %v2757 = vpack.c.b16 %v2742, %v2741
      %v2758 = vpack.c.b16 %v2744, %v2743
      %v2759 = vpack.c.b16 %v2746, %v2745
      %v2760 = vpack.c.b16 %v2748, %v2747
      %v2761 = vpack.c.b16 %v2750, %v2749
      %v2762 = vpack.c.b16 %v2752, %v2751
      %v2763 = vpack.c.b16 %v2754, %v2753
      %v2764 = vpack.c.b16 %v2756, %v2755
      %2773 = vmatprep.subr.bf16.mxu0 0
      %2774 = vmatpush1.bf16.msra.mxu0 %v2764
      %2775 = vmatprep.subr.bf16.mxu0 0
      %2776 = vmatpush1.bf16.msra.mxu0 %v2763
      %2777 = vmatprep.subr.bf16.mxu0 0
      %2778 = vmatpush1.bf16.msra.mxu0 %v2762
      %2779 = vmatprep.subr.bf16.mxu0 0
      %2780 = vmatpush1.bf16.msra.mxu0 %v2761
      %2781 = vmatprep.subr.bf16.mxu0 0
      %2782 = vmatpush1.bf16.msra.mxu0 %v2760
      %2783 = vmatprep.subr.bf16.mxu0 0
      %2784 = vmatpush1.bf16.msra.mxu0 %v2759
      %2785 = vmatprep.subr.bf16.mxu0 0
      %2786 = vmatpush1.bf16.msra.mxu0 %v2758
      %2787 = vmatprep.subr.bf16.mxu0 0
      %2788 = vmatpush1.bf16.msra.mxu0 %v2757
      %2789 = vmatprep.subr.bf16.mxu0 0
      %2790 = vmatpush2.bf16.msra.mxu0 0
      %2791 = vmatprep.subr.bf16.mxu0 0
      %2792 = vmatpush2.bf16.msra.mxu0 0
      %2793 = vmatprep.subr.bf16.mxu0 0
      %2794 = vmatpush2.bf16.msra.mxu0 0
      %2795 = vmatprep.subr.bf16.mxu0 0
      %2796 = vmatpush2.bf16.msra.mxu0 0
      %2797 = vmatprep.subr.bf16.mxu0 0
      %2798 = vmatpush2.bf16.msra.mxu0 0
      %2799 = vmatprep.subr.bf16.mxu0 0
      %2800 = vmatpush2.bf16.msra.mxu0 0
      %2801 = vmatprep.subr.bf16.mxu0 0
      %2802 = vmatpush2.bf16.msra.mxu0 0
      %2803 = vmatprep.subr.bf16.mxu0 0
      %2804 = vmatpush2.bf16.msra.mxu0 0
      %2805 = vmatprep.mubr.bf16.mxu0 0
      %2806 = vmatmul.mubr.bf16.gmra.mxu0 %v594
      %v2807 = vpop.f32.mrf.mxu0
      %v2808 = vadd.f32 0.0, %v2807
      %v2809 = vpop.f32.mrf.mxu0
      %v2810 = vpop.f32.mrf.mxu0
      %v2811 = vadd.f32 0.0, %v2810
      %v2812 = vpop.f32.mrf.mxu0
      %2813 = vmatprep.mubr.bf16.mxu0 0
      %2814 = vmatmul.mubr.bf16.gmra.mxu0 %v595
      %v2815 = vpop.f32.mrf.mxu0
      %v2816 = vadd.f32 0.0, %v2815
      %v2817 = vpop.f32.mrf.mxu0
      %v2818 = vpop.f32.mrf.mxu0
      %v2819 = vadd.f32 0.0, %v2818
      %v2820 = vpop.f32.mrf.mxu0
      %2821 = vmatprep.mubr.bf16.mxu0 0
      %2822 = vmatmul.mubr.bf16.gmra.mxu0 %v596
      %v2823 = vpop.f32.mrf.mxu0
      %v2824 = vadd.f32 0.0, %v2823
      %v2825 = vpop.f32.mrf.mxu0
      %v2826 = vpop.f32.mrf.mxu0
      %v2827 = vadd.f32 0.0, %v2826
      %v2828 = vpop.f32.mrf.mxu0
      %2829 = vmatprep.mubr.bf16.mxu0 0
      %2830 = vmatmul.mubr.bf16.gmra.mxu0 %v597
      %v2831 = vpop.f32.mrf.mxu0
      %v2832 = vadd.f32 0.0, %v2831
      %v2833 = vpop.f32.mrf.mxu0
      %v2834 = vpop.f32.mrf.mxu0
      %v2835 = vadd.f32 0.0, %v2834
      %v2836 = vpop.f32.mrf.mxu0
      %2837 = vmatprep.mubr.bf16.mxu0 0
      %2838 = vmatmul.mubr.bf16.gmra.mxu0 %v598
      %v2839 = vpop.f32.mrf.mxu0
      %v2840 = vadd.f32 0.0, %v2839
      %v2841 = vpop.f32.mrf.mxu0
      %v2842 = vpop.f32.mrf.mxu0
      %v2843 = vadd.f32 0.0, %v2842
      %v2844 = vpop.f32.mrf.mxu0
      %2845 = vmatprep.mubr.bf16.mxu0 0
      %2846 = vmatmul.mubr.bf16.gmra.mxu0 %v599
      %v2847 = vpop.f32.mrf.mxu0
      %v2848 = vadd.f32 0.0, %v2847
      %v2849 = vpop.f32.mrf.mxu0
      %v2850 = vpop.f32.mrf.mxu0
      %v2851 = vadd.f32 0.0, %v2850
      %v2852 = vpop.f32.mrf.mxu0
      %2853 = vdwg.mxu0
      %v2870 = vunpack.c.l.b16 %v2692
      %v2871 = vunpack.c.l.b16 %v2693
      %v2872 = vunpack.c.l.b16 %v2694
      %v2873 = vunpack.c.l.b16 %v2695
      %v2874 = vunpack.c.l.b16 %v2696
      %v2875 = vunpack.c.l.b16 %v2697
      %v2876 = vunpack.c.l.b16 %v2698
      %v2877 = vunpack.c.l.b16 %v2699
      %v2878 = vunpack.c.l.b16 %v2700
      %v2879 = vunpack.c.l.b16 %v2701
      %v2880 = vunpack.c.l.b16 %v2702
      %v2881 = vunpack.c.l.b16 %v2703
      %v2882 = vunpack.c.l.b16 %v2704
      %v2883 = vunpack.c.l.b16 %v2705
      %v2884 = vunpack.c.l.b16 %v2706
      %v2885 = vunpack.c.l.b16 %v2707
      %v2886 = vpack.c.b16 %v2871, %v2870
      %v2887 = vpack.c.b16 %v2873, %v2872
      %v2888 = vpack.c.b16 %v2875, %v2874
      %v2889 = vpack.c.b16 %v2877, %v2876
      %v2890 = vpack.c.b16 %v2879, %v2878
      %v2891 = vpack.c.b16 %v2881, %v2880
      %v2892 = vpack.c.b16 %v2883, %v2882
      %v2893 = vpack.c.b16 %v2885, %v2884
      %2902 = vmatprep.subr.bf16.mxu0 0
      %2903 = vmatpush1.bf16.msra.mxu0 %v2893
      %2904 = vmatprep.subr.bf16.mxu0 0
      %2905 = vmatpush1.bf16.msra.mxu0 %v2892
      %2906 = vmatprep.subr.bf16.mxu0 0
      %2907 = vmatpush1.bf16.msra.mxu0 %v2891
      %2908 = vmatprep.subr.bf16.mxu0 0
      %2909 = vmatpush1.bf16.msra.mxu0 %v2890
      %2910 = vmatprep.subr.bf16.mxu0 0
      %2911 = vmatpush1.bf16.msra.mxu0 %v2889
      %2912 = vmatprep.subr.bf16.mxu0 0
      %2913 = vmatpush1.bf16.msra.mxu0 %v2888
      %2914 = vmatprep.subr.bf16.mxu0 0
      %2915 = vmatpush1.bf16.msra.mxu0 %v2887
      %2916 = vmatprep.subr.bf16.mxu0 0
      %2917 = vmatpush1.bf16.msra.mxu0 %v2886
      %2918 = vmatprep.subr.bf16.mxu0 0
      %2919 = vmatpush2.bf16.msra.mxu0 0
      %2920 = vmatprep.subr.bf16.mxu0 0
      %2921 = vmatpush2.bf16.msra.mxu0 0
      %2922 = vmatprep.subr.bf16.mxu0 0
      %2923 = vmatpush2.bf16.msra.mxu0 0
      %2924 = vmatprep.subr.bf16.mxu0 0
      %2925 = vmatpush2.bf16.msra.mxu0 0
      %2926 = vmatprep.subr.bf16.mxu0 0
      %2927 = vmatpush2.bf16.msra.mxu0 0
      %2928 = vmatprep.subr.bf16.mxu0 0
      %2929 = vmatpush2.bf16.msra.mxu0 0
      %2930 = vmatprep.subr.bf16.mxu0 0
      %2931 = vmatpush2.bf16.msra.mxu0 0
      %2932 = vmatprep.subr.bf16.mxu0 0
      %2933 = vmatpush2.bf16.msra.mxu0 0
      %2934 = vmatprep.mubr.bf16.mxu0 0
      %2935 = vmatmul.mubr.bf16.gmra.mxu0 %v741
      %v2936 = vpop.f32.mrf.mxu0
      %v2937 = vadd.f32 %v2808, %v2936
      %v2938 = vpop.f32.mrf.mxu0
      %v2939 = vpop.f32.mrf.mxu0
      %v2940 = vadd.f32 %v2811, %v2939
      %v2941 = vpop.f32.mrf.mxu0
      %2942 = vmatprep.mubr.bf16.mxu0 0
      %2943 = vmatmul.mubr.bf16.gmra.mxu0 %v742
      %v2944 = vpop.f32.mrf.mxu0
      %v2945 = vadd.f32 %v2816, %v2944
      %v2946 = vpop.f32.mrf.mxu0
      %v2947 = vpop.f32.mrf.mxu0
      %v2948 = vadd.f32 %v2819, %v2947
      %v2949 = vpop.f32.mrf.mxu0
      %2950 = vmatprep.mubr.bf16.mxu0 0
      %2951 = vmatmul.mubr.bf16.gmra.mxu0 %v743
      %v2952 = vpop.f32.mrf.mxu0
      %v2953 = vadd.f32 %v2824, %v2952
      %v2954 = vpop.f32.mrf.mxu0
      %v2955 = vpop.f32.mrf.mxu0
      %v2956 = vadd.f32 %v2827, %v2955
      %v2957 = vpop.f32.mrf.mxu0
      %2958 = vmatprep.mubr.bf16.mxu0 0
      %2959 = vmatmul.mubr.bf16.gmra.mxu0 %v744
      %v2960 = vpop.f32.mrf.mxu0
      %v2961 = vadd.f32 %v2832, %v2960
      %v2962 = vpop.f32.mrf.mxu0
      %v2963 = vpop.f32.mrf.mxu0
      %v2964 = vadd.f32 %v2835, %v2963
      %v2965 = vpop.f32.mrf.mxu0
      %2966 = vmatprep.mubr.bf16.mxu0 0
      %2967 = vmatmul.mubr.bf16.gmra.mxu0 %v745
      %v2968 = vpop.f32.mrf.mxu0
      %v2969 = vadd.f32 %v2840, %v2968
      %v2970 = vpop.f32.mrf.mxu0
      %v2971 = vpop.f32.mrf.mxu0
      %v2972 = vadd.f32 %v2843, %v2971
      %v2973 = vpop.f32.mrf.mxu0
      %2974 = vmatprep.mubr.bf16.mxu0 0
      %2975 = vmatmul.mubr.bf16.gmra.mxu0 %v746
      %v2976 = vpop.f32.mrf.mxu0
      %v2977 = vadd.f32 %v2848, %v2976
      %v2978 = vpop.f32.mrf.mxu0
      %v2979 = vpop.f32.mrf.mxu0
      %v2980 = vadd.f32 %v2851, %v2979
      %v2981 = vpop.f32.mrf.mxu0
      %2982 = vdwg.mxu0
      %s2983 = scalar_lea.vmem %s2, 512
      %v2984 = vld [vmem:[%s2983] sm:$0xf]
      %v2985 = vld [vmem:[%s2983 + $0x4] sm:$0xf]
      %v2986 = vld [vmem:[%s2983 + $0x8] sm:$0xf]
      %v2987 = vld [vmem:[%s2983 + $0xc] sm:$0xf]
      %v2988 = vld [vmem:[%s2983 + $0x10] sm:$0xf]
      %v2989 = vld [vmem:[%s2983 + $0x14] sm:$0xf]
      %v2990 = vld [vmem:[%s2983 + $0x18] sm:$0xf]
      %v2991 = vld [vmem:[%s2983 + $0x1c] sm:$0xf]
      %v2992 = vld [vmem:[%s2983 + $0x20] sm:$0xf]
      %v2993 = vld [vmem:[%s2983 + $0x24] sm:$0xf]
      %v2994 = vld [vmem:[%s2983 + $0x28] sm:$0xf]
      %v2995 = vld [vmem:[%s2983 + $0x2c] sm:$0xf]
      %v2996 = vld [vmem:[%s2983 + $0x30] sm:$0xf]
      %v2997 = vld [vmem:[%s2983 + $0x34] sm:$0xf]
      %v2998 = vld [vmem:[%s2983 + $0x38] sm:$0xf]
      %v2999 = vld [vmem:[%s2983 + $0x3c] sm:$0xf]
      %v3016 = vunpack.c.l.b16 %v2984
      %v3017 = vunpack.c.l.b16 %v2985
      %v3018 = vunpack.c.l.b16 %v2986
      %v3019 = vunpack.c.l.b16 %v2987
      %v3020 = vunpack.c.l.b16 %v2988
      %v3021 = vunpack.c.l.b16 %v2989
      %v3022 = vunpack.c.l.b16 %v2990
      %v3023 = vunpack.c.l.b16 %v2991
      %v3024 = vunpack.c.l.b16 %v2992
      %v3025 = vunpack.c.l.b16 %v2993
      %v3026 = vunpack.c.l.b16 %v2994
      %v3027 = vunpack.c.l.b16 %v2995
      %v3028 = vunpack.c.l.b16 %v2996
      %v3029 = vunpack.c.l.b16 %v2997
      %v3030 = vunpack.c.l.b16 %v2998
      %v3031 = vunpack.c.l.b16 %v2999
      %v3032 = vpack.c.b16 %v3017, %v3016
      %v3033 = vpack.c.b16 %v3019, %v3018
      %v3034 = vpack.c.b16 %v3021, %v3020
      %v3035 = vpack.c.b16 %v3023, %v3022
      %v3036 = vpack.c.b16 %v3025, %v3024
      %v3037 = vpack.c.b16 %v3027, %v3026
      %v3038 = vpack.c.b16 %v3029, %v3028
      %v3039 = vpack.c.b16 %v3031, %v3030
      %3048 = vmatprep.subr.bf16.mxu0 0
      %3049 = vmatpush1.bf16.msra.mxu0 %v3039
      %3050 = vmatprep.subr.bf16.mxu0 0
      %3051 = vmatpush1.bf16.msra.mxu0 %v3038
      %3052 = vmatprep.subr.bf16.mxu0 0
      %3053 = vmatpush1.bf16.msra.mxu0 %v3037
      %3054 = vmatprep.subr.bf16.mxu0 0
      %3055 = vmatpush1.bf16.msra.mxu0 %v3036
      %3056 = vmatprep.subr.bf16.mxu0 0
      %3057 = vmatpush1.bf16.msra.mxu0 %v3035
      %3058 = vmatprep.subr.bf16.mxu0 0
      %3059 = vmatpush1.bf16.msra.mxu0 %v3034
      %3060 = vmatprep.subr.bf16.mxu0 0
      %3061 = vmatpush1.bf16.msra.mxu0 %v3033
      %3062 = vmatprep.subr.bf16.mxu0 0
      %3063 = vmatpush1.bf16.msra.mxu0 %v3032
      %3064 = vmatprep.subr.bf16.mxu0 0
      %3065 = vmatpush2.bf16.msra.mxu0 0
      %3066 = vmatprep.subr.bf16.mxu0 0
      %3067 = vmatpush2.bf16.msra.mxu0 0
      %3068 = vmatprep.subr.bf16.mxu0 0
      %3069 = vmatpush2.bf16.msra.mxu0 0
      %3070 = vmatprep.subr.bf16.mxu0 0
      %3071 = vmatpush2.bf16.msra.mxu0 0
      %3072 = vmatprep.subr.bf16.mxu0 0
      %3073 = vmatpush2.bf16.msra.mxu0 0
      %3074 = vmatprep.subr.bf16.mxu0 0
      %3075 = vmatpush2.bf16.msra.mxu0 0
      %3076 = vmatprep.subr.bf16.mxu0 0
      %3077 = vmatpush2.bf16.msra.mxu0 0
      %3078 = vmatprep.subr.bf16.mxu0 0
      %3079 = vmatpush2.bf16.msra.mxu0 0
      %3080 = vmatprep.mubr.bf16.mxu0 0
      %3081 = vmatmul.mubr.bf16.gmra.mxu0 %v935
      %v3082 = vpop.f32.mrf.mxu0
      %v3083 = vadd.f32 0.0, %v3082
      %v3084 = vpop.f32.mrf.mxu0
      %v3085 = vpop.f32.mrf.mxu0
      %v3086 = vadd.f32 0.0, %v3085
      %v3087 = vpop.f32.mrf.mxu0
      %3088 = vmatprep.mubr.bf16.mxu0 0
      %3089 = vmatmul.mubr.bf16.gmra.mxu0 %v936
      %v3090 = vpop.f32.mrf.mxu0
      %v3091 = vadd.f32 0.0, %v3090
      %v3092 = vpop.f32.mrf.mxu0
      %v3093 = vpop.f32.mrf.mxu0
      %v3094 = vadd.f32 0.0, %v3093
      %v3095 = vpop.f32.mrf.mxu0
      %3096 = vmatprep.mubr.bf16.mxu0 0
      %3097 = vmatmul.mubr.bf16.gmra.mxu0 %v937
      %v3098 = vpop.f32.mrf.mxu0
      %v3099 = vadd.f32 0.0, %v3098
      %v3100 = vpop.f32.mrf.mxu0
      %v3101 = vpop.f32.mrf.mxu0
      %v3102 = vadd.f32 0.0, %v3101
      %v3103 = vpop.f32.mrf.mxu0
      %3104 = vmatprep.mubr.bf16.mxu0 0
      %3105 = vmatmul.mubr.bf16.gmra.mxu0 %v938
      %v3106 = vpop.f32.mrf.mxu0
      %v3107 = vadd.f32 0.0, %v3106
      %v3108 = vpop.f32.mrf.mxu0
      %v3109 = vpop.f32.mrf.mxu0
      %v3110 = vadd.f32 0.0, %v3109
      %v3111 = vpop.f32.mrf.mxu0
      %3112 = vmatprep.mubr.bf16.mxu0 0
      %3113 = vmatmul.mubr.bf16.gmra.mxu0 %v939
      %v3114 = vpop.f32.mrf.mxu0
      %v3115 = vadd.f32 0.0, %v3114
      %v3116 = vpop.f32.mrf.mxu0
      %v3117 = vpop.f32.mrf.mxu0
      %v3118 = vadd.f32 0.0, %v3117
      %v3119 = vpop.f32.mrf.mxu0
      %3120 = vmatprep.mubr.bf16.mxu0 0
      %3121 = vmatmul.mubr.bf16.gmra.mxu0 %v940
      %v3122 = vpop.f32.mrf.mxu0
      %v3123 = vadd.f32 0.0, %v3122
      %v3124 = vpop.f32.mrf.mxu0
      %v3125 = vpop.f32.mrf.mxu0
      %v3126 = vadd.f32 0.0, %v3125
      %v3127 = vpop.f32.mrf.mxu0
      %3128 = vdwg.mxu0
      %v3129 = vadd.f32 %v2937, %v3083
      %v3130 = vadd.f32 %v2940, %v3086
      %v3131 = vadd.f32 %v2945, %v3091
      %v3132 = vadd.f32 %v2948, %v3094
      %v3133 = vadd.f32 %v2953, %v3099
      %v3134 = vadd.f32 %v2956, %v3102
      %v3135 = vadd.f32 %v2961, %v3107
      %v3136 = vadd.f32 %v2964, %v3110
      %v3137 = vadd.f32 %v2969, %v3115
      %v3138 = vadd.f32 %v2972, %v3118
      %v3139 = vadd.f32 %v2977, %v3123
      %v3140 = vadd.f32 %v2980, %v3126
      %s3141 = scalar_lea.vmem %s3, 128
      %v3142 = vld [vmem:[%s3141] sm:$0xf]
      %v3143 = vld [vmem:[%s3141 + $0x4] sm:$0xf]
      %v3144 = vld [vmem:[%s3141 + $0x8] sm:$0xf]
      %v3145 = vld [vmem:[%s3141 + $0xc] sm:$0xf]
      %v3146 = vld [vmem:[%s3141 + $0x10] sm:$0xf]
      %v3147 = vld [vmem:[%s3141 + $0x14] sm:$0xf]
      %v3148 = vld [vmem:[%s3141 + $0x18] sm:$0xf]
      %v3149 = vld [vmem:[%s3141 + $0x1c] sm:$0xf]
      %v3150 = vld [vmem:[%s3141 + $0x20] sm:$0xf]
      %v3151 = vld [vmem:[%s3141 + $0x24] sm:$0xf]
      %v3152 = vld [vmem:[%s3141 + $0x28] sm:$0xf]
      %v3153 = vld [vmem:[%s3141 + $0x2c] sm:$0xf]
      %v3154 = vld [vmem:[%s3141 + $0x30] sm:$0xf]
      %v3155 = vld [vmem:[%s3141 + $0x34] sm:$0xf]
      %v3156 = vld [vmem:[%s3141 + $0x38] sm:$0xf]
      %v3157 = vld [vmem:[%s3141 + $0x3c] sm:$0xf]
      %v3174 = vunpack.c.l.b16 %v3142
      %v3175 = vunpack.c.l.b16 %v3143
      %v3176 = vunpack.c.l.b16 %v3144
      %v3177 = vunpack.c.l.b16 %v3145
      %v3178 = vunpack.c.l.b16 %v3146
      %v3179 = vunpack.c.l.b16 %v3147
      %v3180 = vunpack.c.l.b16 %v3148
      %v3181 = vunpack.c.l.b16 %v3149
      %v3182 = vunpack.c.l.b16 %v3150
      %v3183 = vunpack.c.l.b16 %v3151
      %v3184 = vunpack.c.l.b16 %v3152
      %v3185 = vunpack.c.l.b16 %v3153
      %v3186 = vunpack.c.l.b16 %v3154
      %v3187 = vunpack.c.l.b16 %v3155
      %v3188 = vunpack.c.l.b16 %v3156
      %v3189 = vunpack.c.l.b16 %v3157
      %v3190 = vpack.c.b16 %v3175, %v3174
      %v3191 = vpack.c.b16 %v3177, %v3176
      %v3192 = vpack.c.b16 %v3179, %v3178
      %v3193 = vpack.c.b16 %v3181, %v3180
      %v3194 = vpack.c.b16 %v3183, %v3182
      %v3195 = vpack.c.b16 %v3185, %v3184
      %v3196 = vpack.c.b16 %v3187, %v3186
      %v3197 = vpack.c.b16 %v3189, %v3188
      %3206 = vmatprep.subr.bf16.mxu0 0
      %3207 = vmatpush1.bf16.msra.mxu0 %v3197
      %3208 = vmatprep.subr.bf16.mxu0 0
      %3209 = vmatpush1.bf16.msra.mxu0 %v3196
      %3210 = vmatprep.subr.bf16.mxu0 0
      %3211 = vmatpush1.bf16.msra.mxu0 %v3195
      %3212 = vmatprep.subr.bf16.mxu0 0
      %3213 = vmatpush1.bf16.msra.mxu0 %v3194
      %3214 = vmatprep.subr.bf16.mxu0 0
      %3215 = vmatpush1.bf16.msra.mxu0 %v3193
      %3216 = vmatprep.subr.bf16.mxu0 0
      %3217 = vmatpush1.bf16.msra.mxu0 %v3192
      %3218 = vmatprep.subr.bf16.mxu0 0
      %3219 = vmatpush1.bf16.msra.mxu0 %v3191
      %3220 = vmatprep.subr.bf16.mxu0 0
      %3221 = vmatpush1.bf16.msra.mxu0 %v3190
      %3222 = vmatprep.subr.bf16.mxu0 0
      %3223 = vmatpush2.bf16.msra.mxu0 0
      %3224 = vmatprep.subr.bf16.mxu0 0
      %3225 = vmatpush2.bf16.msra.mxu0 0
      %3226 = vmatprep.subr.bf16.mxu0 0
      %3227 = vmatpush2.bf16.msra.mxu0 0
      %3228 = vmatprep.subr.bf16.mxu0 0
      %3229 = vmatpush2.bf16.msra.mxu0 0
      %3230 = vmatprep.subr.bf16.mxu0 0
      %3231 = vmatpush2.bf16.msra.mxu0 0
      %3232 = vmatprep.subr.bf16.mxu0 0
      %3233 = vmatpush2.bf16.msra.mxu0 0
      %3234 = vmatprep.subr.bf16.mxu0 0
      %3235 = vmatpush2.bf16.msra.mxu0 0
      %3236 = vmatprep.subr.bf16.mxu0 0
      %3237 = vmatpush2.bf16.msra.mxu0 0
      %3238 = vmatprep.mubr.bf16.mxu0 0
      %3239 = vmatmul.mubr.bf16.gmra.mxu0 %v1140
      %v3240 = vpop.f32.mrf.mxu0
      %v3241 = vadd.f32 0.0, %v3240
      %v3242 = vpop.f32.mrf.mxu0
      %v3243 = vpop.f32.mrf.mxu0
      %v3244 = vadd.f32 0.0, %v3243
      %v3245 = vpop.f32.mrf.mxu0
      %3246 = vmatprep.mubr.bf16.mxu0 0
      %3247 = vmatmul.mubr.bf16.gmra.mxu0 %v1141
      %v3248 = vpop.f32.mrf.mxu0
      %v3249 = vadd.f32 0.0, %v3248
      %v3250 = vpop.f32.mrf.mxu0
      %v3251 = vpop.f32.mrf.mxu0
      %v3252 = vadd.f32 0.0, %v3251
      %v3253 = vpop.f32.mrf.mxu0
      %3254 = vmatprep.mubr.bf16.mxu0 0
      %3255 = vmatmul.mubr.bf16.gmra.mxu0 %v1142
      %v3256 = vpop.f32.mrf.mxu0
      %v3257 = vadd.f32 0.0, %v3256
      %v3258 = vpop.f32.mrf.mxu0
      %v3259 = vpop.f32.mrf.mxu0
      %v3260 = vadd.f32 0.0, %v3259
      %v3261 = vpop.f32.mrf.mxu0
      %3262 = vmatprep.mubr.bf16.mxu0 0
      %3263 = vmatmul.mubr.bf16.gmra.mxu0 %v1143
      %v3264 = vpop.f32.mrf.mxu0
      %v3265 = vadd.f32 0.0, %v3264
      %v3266 = vpop.f32.mrf.mxu0
      %v3267 = vpop.f32.mrf.mxu0
      %v3268 = vadd.f32 0.0, %v3267
      %v3269 = vpop.f32.mrf.mxu0
      %3270 = vmatprep.mubr.bf16.mxu0 0
      %3271 = vmatmul.mubr.bf16.gmra.mxu0 %v1144
      %v3272 = vpop.f32.mrf.mxu0
      %v3273 = vadd.f32 0.0, %v3272
      %v3274 = vpop.f32.mrf.mxu0
      %v3275 = vpop.f32.mrf.mxu0
      %v3276 = vadd.f32 0.0, %v3275
      %v3277 = vpop.f32.mrf.mxu0
      %3278 = vmatprep.mubr.bf16.mxu0 0
      %3279 = vmatmul.mubr.bf16.gmra.mxu0 %v1145
      %v3280 = vpop.f32.mrf.mxu0
      %v3281 = vadd.f32 0.0, %v3280
      %v3282 = vpop.f32.mrf.mxu0
      %v3283 = vpop.f32.mrf.mxu0
      %v3284 = vadd.f32 0.0, %v3283
      %v3285 = vpop.f32.mrf.mxu0
      %3286 = vdwg.mxu0
      %v3287 = vadd.f32 %v3129, %v3241
      %v3288 = vadd.f32 %v3130, %v3244
      %v3289 = vadd.f32 %v3131, %v3249
      %v3290 = vadd.f32 %v3132, %v3252
      %v3291 = vadd.f32 %v3133, %v3257
      %v3292 = vadd.f32 %v3134, %v3260
      %v3293 = vadd.f32 %v3135, %v3265
      %v3294 = vadd.f32 %v3136, %v3268
      %v3295 = vadd.f32 %v3137, %v3273
      %v3296 = vadd.f32 %v3138, %v3276
      %v3297 = vadd.f32 %v3139, %v3281
      %v3298 = vadd.f32 %v3140, %v3284
      %s3299 = scalar_lea.vmem %s3, 320
      %v3300 = vld [vmem:[%s3299] sm:$0xf]
      %v3301 = vld [vmem:[%s3299 + $0x4] sm:$0xf]
      %v3302 = vld [vmem:[%s3299 + $0x8] sm:$0xf]
      %v3303 = vld [vmem:[%s3299 + $0xc] sm:$0xf]
      %v3304 = vld [vmem:[%s3299 + $0x10] sm:$0xf]
      %v3305 = vld [vmem:[%s3299 + $0x14] sm:$0xf]
      %v3306 = vld [vmem:[%s3299 + $0x18] sm:$0xf]
      %v3307 = vld [vmem:[%s3299 + $0x1c] sm:$0xf]
      %v3308 = vld [vmem:[%s3299 + $0x20] sm:$0xf]
      %v3309 = vld [vmem:[%s3299 + $0x24] sm:$0xf]
      %v3310 = vld [vmem:[%s3299 + $0x28] sm:$0xf]
      %v3311 = vld [vmem:[%s3299 + $0x2c] sm:$0xf]
      %v3312 = vld [vmem:[%s3299 + $0x30] sm:$0xf]
      %v3313 = vld [vmem:[%s3299 + $0x34] sm:$0xf]
      %v3314 = vld [vmem:[%s3299 + $0x38] sm:$0xf]
      %v3315 = vld [vmem:[%s3299 + $0x3c] sm:$0xf]
      %v3332 = vunpack.c.l.b16 %v3300
      %v3333 = vunpack.c.l.b16 %v3301
      %v3334 = vunpack.c.l.b16 %v3302
      %v3335 = vunpack.c.l.b16 %v3303
      %v3336 = vunpack.c.l.b16 %v3304
      %v3337 = vunpack.c.l.b16 %v3305
      %v3338 = vunpack.c.l.b16 %v3306
      %v3339 = vunpack.c.l.b16 %v3307
      %v3340 = vunpack.c.l.b16 %v3308
      %v3341 = vunpack.c.l.b16 %v3309
      %v3342 = vunpack.c.l.b16 %v3310
      %v3343 = vunpack.c.l.b16 %v3311
      %v3344 = vunpack.c.l.b16 %v3312
      %v3345 = vunpack.c.l.b16 %v3313
      %v3346 = vunpack.c.l.b16 %v3314
      %v3347 = vunpack.c.l.b16 %v3315
      %v3348 = vpack.c.b16 %v3333, %v3332
      %v3349 = vpack.c.b16 %v3335, %v3334
      %v3350 = vpack.c.b16 %v3337, %v3336
      %v3351 = vpack.c.b16 %v3339, %v3338
      %v3352 = vpack.c.b16 %v3341, %v3340
      %v3353 = vpack.c.b16 %v3343, %v3342
      %v3354 = vpack.c.b16 %v3345, %v3344
      %v3355 = vpack.c.b16 %v3347, %v3346
      %3364 = vmatprep.subr.bf16.mxu0 0
      %3365 = vmatpush1.bf16.msra.mxu0 %v3355
      %3366 = vmatprep.subr.bf16.mxu0 0
      %3367 = vmatpush1.bf16.msra.mxu0 %v3354
      %3368 = vmatprep.subr.bf16.mxu0 0
      %3369 = vmatpush1.bf16.msra.mxu0 %v3353
      %3370 = vmatprep.subr.bf16.mxu0 0
      %3371 = vmatpush1.bf16.msra.mxu0 %v3352
      %3372 = vmatprep.subr.bf16.mxu0 0
      %3373 = vmatpush1.bf16.msra.mxu0 %v3351
      %3374 = vmatprep.subr.bf16.mxu0 0
      %3375 = vmatpush1.bf16.msra.mxu0 %v3350
      %3376 = vmatprep.subr.bf16.mxu0 0
      %3377 = vmatpush1.bf16.msra.mxu0 %v3349
      %3378 = vmatprep.subr.bf16.mxu0 0
      %3379 = vmatpush1.bf16.msra.mxu0 %v3348
      %3380 = vmatprep.subr.bf16.mxu0 0
      %3381 = vmatpush2.bf16.msra.mxu0 0
      %3382 = vmatprep.subr.bf16.mxu0 0
      %3383 = vmatpush2.bf16.msra.mxu0 0
      %3384 = vmatprep.subr.bf16.mxu0 0
      %3385 = vmatpush2.bf16.msra.mxu0 0
      %3386 = vmatprep.subr.bf16.mxu0 0
      %3387 = vmatpush2.bf16.msra.mxu0 0
      %3388 = vmatprep.subr.bf16.mxu0 0
      %3389 = vmatpush2.bf16.msra.mxu0 0
      %3390 = vmatprep.subr.bf16.mxu0 0
      %3391 = vmatpush2.bf16.msra.mxu0 0
      %3392 = vmatprep.subr.bf16.mxu0 0
      %3393 = vmatpush2.bf16.msra.mxu0 0
      %3394 = vmatprep.subr.bf16.mxu0 0
      %3395 = vmatpush2.bf16.msra.mxu0 0
      %3396 = vmatprep.mubr.bf16.mxu0 0
      %3397 = vmatmul.mubr.bf16.gmra.mxu0 %v1346
      %v3398 = vpop.f32.mrf.mxu0
      %v3399 = vadd.f32 0.0, %v3398
      %v3400 = vpop.f32.mrf.mxu0
      %v3401 = vpop.f32.mrf.mxu0
      %v3402 = vadd.f32 0.0, %v3401
      %v3403 = vpop.f32.mrf.mxu0
      %3404 = vmatprep.mubr.bf16.mxu0 0
      %3405 = vmatmul.mubr.bf16.gmra.mxu0 %v1347
      %v3406 = vpop.f32.mrf.mxu0
      %v3407 = vadd.f32 0.0, %v3406
      %v3408 = vpop.f32.mrf.mxu0
      %v3409 = vpop.f32.mrf.mxu0
      %v3410 = vadd.f32 0.0, %v3409
      %v3411 = vpop.f32.mrf.mxu0
      %3412 = vmatprep.mubr.bf16.mxu0 0
      %3413 = vmatmul.mubr.bf16.gmra.mxu0 %v1348
      %v3414 = vpop.f32.mrf.mxu0
      %v3415 = vadd.f32 0.0, %v3414
      %v3416 = vpop.f32.mrf.mxu0
      %v3417 = vpop.f32.mrf.mxu0
      %v3418 = vadd.f32 0.0, %v3417
      %v3419 = vpop.f32.mrf.mxu0
      %3420 = vmatprep.mubr.bf16.mxu0 0
      %3421 = vmatmul.mubr.bf16.gmra.mxu0 %v1349
      %v3422 = vpop.f32.mrf.mxu0
      %v3423 = vadd.f32 0.0, %v3422
      %v3424 = vpop.f32.mrf.mxu0
      %v3425 = vpop.f32.mrf.mxu0
      %v3426 = vadd.f32 0.0, %v3425
      %v3427 = vpop.f32.mrf.mxu0
      %3428 = vmatprep.mubr.bf16.mxu0 0
      %3429 = vmatmul.mubr.bf16.gmra.mxu0 %v1350
      %v3430 = vpop.f32.mrf.mxu0
      %v3431 = vadd.f32 0.0, %v3430
      %v3432 = vpop.f32.mrf.mxu0
      %v3433 = vpop.f32.mrf.mxu0
      %v3434 = vadd.f32 0.0, %v3433
      %v3435 = vpop.f32.mrf.mxu0
      %3436 = vmatprep.mubr.bf16.mxu0 0
      %3437 = vmatmul.mubr.bf16.gmra.mxu0 %v1351
      %v3438 = vpop.f32.mrf.mxu0
      %v3439 = vadd.f32 0.0, %v3438
      %v3440 = vpop.f32.mrf.mxu0
      %v3441 = vpop.f32.mrf.mxu0
      %v3442 = vadd.f32 0.0, %v3441
      %v3443 = vpop.f32.mrf.mxu0
      %3444 = vdwg.mxu0
      %v3445 = vadd.f32 %v3287, %v3399
      %v3446 = vadd.f32 %v3288, %v3402
      %v3447 = vadd.f32 %v3289, %v3407
      %v3448 = vadd.f32 %v3290, %v3410
      %v3449 = vadd.f32 %v3291, %v3415
      %v3450 = vadd.f32 %v3292, %v3418
      %v3451 = vadd.f32 %v3293, %v3423
      %v3452 = vadd.f32 %v3294, %v3426
      %v3453 = vadd.f32 %v3295, %v3431
      %v3454 = vadd.f32 %v3296, %v3434
      %v3455 = vadd.f32 %v3297, %v3439
      %v3456 = vadd.f32 %v3298, %v3442
      %s3457 = scalar_lea.vmem %s3, 512
      %v3458 = vld [vmem:[%s3457] sm:$0xf]
      %v3459 = vld [vmem:[%s3457 + $0x4] sm:$0xf]
      %v3460 = vld [vmem:[%s3457 + $0x8] sm:$0xf]
      %v3461 = vld [vmem:[%s3457 + $0xc] sm:$0xf]
      %v3462 = vld [vmem:[%s3457 + $0x10] sm:$0xf]
      %v3463 = vld [vmem:[%s3457 + $0x14] sm:$0xf]
      %v3464 = vld [vmem:[%s3457 + $0x18] sm:$0xf]
      %v3465 = vld [vmem:[%s3457 + $0x1c] sm:$0xf]
      %v3466 = vld [vmem:[%s3457 + $0x20] sm:$0xf]
      %v3467 = vld [vmem:[%s3457 + $0x24] sm:$0xf]
      %v3468 = vld [vmem:[%s3457 + $0x28] sm:$0xf]
      %v3469 = vld [vmem:[%s3457 + $0x2c] sm:$0xf]
      %v3470 = vld [vmem:[%s3457 + $0x30] sm:$0xf]
      %v3471 = vld [vmem:[%s3457 + $0x34] sm:$0xf]
      %v3472 = vld [vmem:[%s3457 + $0x38] sm:$0xf]
      %v3473 = vld [vmem:[%s3457 + $0x3c] sm:$0xf]
      %v3490 = vunpack.c.l.b16 %v3458
      %v3491 = vunpack.c.l.b16 %v3459
      %v3492 = vunpack.c.l.b16 %v3460
      %v3493 = vunpack.c.l.b16 %v3461
      %v3494 = vunpack.c.l.b16 %v3462
      %v3495 = vunpack.c.l.b16 %v3463
      %v3496 = vunpack.c.l.b16 %v3464
      %v3497 = vunpack.c.l.b16 %v3465
      %v3498 = vunpack.c.l.b16 %v3466
      %v3499 = vunpack.c.l.b16 %v3467
      %v3500 = vunpack.c.l.b16 %v3468
      %v3501 = vunpack.c.l.b16 %v3469
      %v3502 = vunpack.c.l.b16 %v3470
      %v3503 = vunpack.c.l.b16 %v3471
      %v3504 = vunpack.c.l.b16 %v3472
      %v3505 = vunpack.c.l.b16 %v3473
      %v3506 = vpack.c.b16 %v3491, %v3490
      %v3507 = vpack.c.b16 %v3493, %v3492
      %v3508 = vpack.c.b16 %v3495, %v3494
      %v3509 = vpack.c.b16 %v3497, %v3496
      %v3510 = vpack.c.b16 %v3499, %v3498
      %v3511 = vpack.c.b16 %v3501, %v3500
      %v3512 = vpack.c.b16 %v3503, %v3502
      %v3513 = vpack.c.b16 %v3505, %v3504
      %3522 = vmatprep.subr.bf16.mxu0 0
      %3523 = vmatpush1.bf16.msra.mxu0 %v3513
      %3524 = vmatprep.subr.bf16.mxu0 0
      %3525 = vmatpush1.bf16.msra.mxu0 %v3512
      %3526 = vmatprep.subr.bf16.mxu0 0
      %3527 = vmatpush1.bf16.msra.mxu0 %v3511
      %3528 = vmatprep.subr.bf16.mxu0 0
      %3529 = vmatpush1.bf16.msra.mxu0 %v3510
      %3530 = vmatprep.subr.bf16.mxu0 0
      %3531 = vmatpush1.bf16.msra.mxu0 %v3509
      %3532 = vmatprep.subr.bf16.mxu0 0
      %3533 = vmatpush1.bf16.msra.mxu0 %v3508
      %3534 = vmatprep.subr.bf16.mxu0 0
      %3535 = vmatpush1.bf16.msra.mxu0 %v3507
      %3536 = vmatprep.subr.bf16.mxu0 0
      %3537 = vmatpush1.bf16.msra.mxu0 %v3506
      %3538 = vmatprep.subr.bf16.mxu0 0
      %3539 = vmatpush2.bf16.msra.mxu0 0
      %3540 = vmatprep.subr.bf16.mxu0 0
      %3541 = vmatpush2.bf16.msra.mxu0 0
      %3542 = vmatprep.subr.bf16.mxu0 0
      %3543 = vmatpush2.bf16.msra.mxu0 0
      %3544 = vmatprep.subr.bf16.mxu0 0
      %3545 = vmatpush2.bf16.msra.mxu0 0
      %3546 = vmatprep.subr.bf16.mxu0 0
      %3547 = vmatpush2.bf16.msra.mxu0 0
      %3548 = vmatprep.subr.bf16.mxu0 0
      %3549 = vmatpush2.bf16.msra.mxu0 0
      %3550 = vmatprep.subr.bf16.mxu0 0
      %3551 = vmatpush2.bf16.msra.mxu0 0
      %3552 = vmatprep.subr.bf16.mxu0 0
      %3553 = vmatpush2.bf16.msra.mxu0 0
      %3554 = vmatprep.mubr.bf16.mxu0 0
      %3555 = vmatmul.mubr.bf16.gmra.mxu0 %v1552
      %v3556 = vpop.f32.mrf.mxu0
      %v3557 = vadd.f32 0.0, %v3556
      %v3558 = vpop.f32.mrf.mxu0
      %v3559 = vpop.f32.mrf.mxu0
      %v3560 = vadd.f32 0.0, %v3559
      %v3561 = vpop.f32.mrf.mxu0
      %3562 = vmatprep.mubr.bf16.mxu0 0
      %3563 = vmatmul.mubr.bf16.gmra.mxu0 %v1553
      %v3564 = vpop.f32.mrf.mxu0
      %v3565 = vadd.f32 0.0, %v3564
      %v3566 = vpop.f32.mrf.mxu0
      %v3567 = vpop.f32.mrf.mxu0
      %v3568 = vadd.f32 0.0, %v3567
      %v3569 = vpop.f32.mrf.mxu0
      %3570 = vmatprep.mubr.bf16.mxu0 0
      %3571 = vmatmul.mubr.bf16.gmra.mxu0 %v1554
      %v3572 = vpop.f32.mrf.mxu0
      %v3573 = vadd.f32 0.0, %v3572
      %v3574 = vpop.f32.mrf.mxu0
      %v3575 = vpop.f32.mrf.mxu0
      %v3576 = vadd.f32 0.0, %v3575
      %v3577 = vpop.f32.mrf.mxu0
      %3578 = vmatprep.mubr.bf16.mxu0 0
      %3579 = vmatmul.mubr.bf16.gmra.mxu0 %v1555
      %v3580 = vpop.f32.mrf.mxu0
      %v3581 = vadd.f32 0.0, %v3580
      %v3582 = vpop.f32.mrf.mxu0
      %v3583 = vpop.f32.mrf.mxu0
      %v3584 = vadd.f32 0.0, %v3583
      %v3585 = vpop.f32.mrf.mxu0
      %3586 = vmatprep.mubr.bf16.mxu0 0
      %3587 = vmatmul.mubr.bf16.gmra.mxu0 %v1556
      %v3588 = vpop.f32.mrf.mxu0
      %v3589 = vadd.f32 0.0, %v3588
      %v3590 = vpop.f32.mrf.mxu0
      %v3591 = vpop.f32.mrf.mxu0
      %v3592 = vadd.f32 0.0, %v3591
      %v3593 = vpop.f32.mrf.mxu0
      %3594 = vmatprep.mubr.bf16.mxu0 0
      %3595 = vmatmul.mubr.bf16.gmra.mxu0 %v1557
      %v3596 = vpop.f32.mrf.mxu0
      %v3597 = vadd.f32 0.0, %v3596
      %v3598 = vpop.f32.mrf.mxu0
      %v3599 = vpop.f32.mrf.mxu0
      %v3600 = vadd.f32 0.0, %v3599
      %v3601 = vpop.f32.mrf.mxu0
      %3602 = vdwg.mxu0
      %v3603 = vadd.f32 %v3445, %v3557
      %v3604 = vadd.f32 %v3446, %v3560
      %v3605 = vadd.f32 %v3447, %v3565
      %v3606 = vadd.f32 %v3448, %v3568
      %v3607 = vadd.f32 %v3449, %v3573
      %v3608 = vadd.f32 %v3450, %v3576
      %v3609 = vadd.f32 %v3451, %v3581
      %v3610 = vadd.f32 %v3452, %v3584
      %v3611 = vadd.f32 %v3453, %v3589
      %v3612 = vadd.f32 %v3454, %v3592
      %v3613 = vadd.f32 %v3455, %v3597
      %v3614 = vadd.f32 %v3456, %v3600
      %vm3627 = vcmask 1045504
      %v3628 = vrot.slane %v3603, 2
      %v3629 = vrot.slane %v3604, 2
      %v3630 = vsel %vm3627, %v3628, %v3629
      %v3631 = vrot.slane %v3605, 2
      %v3632 = vsel %vm3627, %v3629, %v3631
      %v3633 = vrot.slane %v3606, 2
      %v3634 = vsel %vm3627, %v3631, %v3633
      %v3635 = vrot.slane %v3607, 2
      %v3636 = vsel %vm3627, %v3633, %v3635
      %v3637 = vrot.slane %v3608, 2
      %v3638 = vsel %vm3627, %v3635, %v3637
      %v3639 = vrot.slane %v3609, 2
      %v3640 = vsel %vm3627, %v3637, %v3639
      %v3641 = vrot.slane %v3610, 2
      %v3642 = vsel %vm3627, %v3639, %v3641
      %v3643 = vrot.slane %v3611, 2
      %v3644 = vsel %vm3627, %v3641, %v3643
      %v3645 = vrot.slane %v3612, 2
      %v3646 = vsel %vm3627, %v3643, %v3645
      %v3647 = vrot.slane %v3613, 2
      %v3648 = vsel %vm3627, %v3645, %v3647
      %v3649 = vrot.slane %v3614, 2
      %v3650 = vsel %vm3627, %v3647, %v3649
      %v3664 = vsel %vm3627, %v3649, %v3628
      %v3665 = vadd.f32 %v2679, %v3630
      %v3666 = vadd.f32 %v2680, %v3632
      %v3667 = vadd.f32 %v2681, %v3634
      %v3668 = vadd.f32 %v2682, %v3636
      %v3669 = vadd.f32 %v2683, %v3638
      %v3670 = vadd.f32 %v2684, %v3640
      %v3671 = vadd.f32 %v2685, %v3642
      %v3672 = vadd.f32 %v2686, %v3644
      %v3673 = vadd.f32 %v2687, %v3646
      %v3674 = vadd.f32 %v2688, %v3648
      %v3675 = vadd.f32 %v2689, %v3650
      %v3676 = vadd.f32 %v2690, %v3664
      %v3677 = vld [vmem:[%s4] sm:$0x1]
      %v3679 = vlaneseq
      %v3680 = vshrl.u32 %v3679, 7
      %v3681 = vsub.s32 0, %v3680
      %v3682 = vrot.slane %v3677, %v3681
      %v3684 = vadd.f32 %v3665, %v3682
      %v3685 = vadd.f32 %v3666, %v3682
      %v3686 = vadd.f32 %v3667, %v3682
      %v3687 = vadd.f32 %v3668, %v3682
      %v3688 = vadd.f32 %v3669, %v3682
      %v3689 = vadd.f32 %v3670, %v3682
      %v3690 = vadd.f32 %v3671, %v3682
      %v3691 = vadd.f32 %v3672, %v3682
      %v3692 = vadd.f32 %v3673, %v3682
      %v3693 = vadd.f32 %v3674, %v3682
      %v3694 = vadd.f32 %v3675, %v3682
      %v3695 = vadd.f32 %v3676, %v3682
      %v3696 = vlaneseq
      %v3697 = vshrl.u32 %v3696, 7
      %v3698 = vadd.s32 %v3697, 8
      %v3699 = vadd.s32 %v3697, 16
      %v3700 = vadd.s32 %v3697, 24
      %v3701 = vadd.s32 %v3697, 32
      %v3702 = vadd.s32 %v3697, 40
      %v3703 = vadd.s32 %v3697, 48
      %v3704 = vadd.s32 %v3697, 56
      %v3705 = vadd.s32 %v3697, 64
      %v3706 = vadd.s32 %v3697, 72
      %v3707 = vadd.s32 %v3697, 80
      %v3708 = vadd.s32 %v3697, 88
      %vm3709 = vcmp.lt.s32.totalorder %v3697, 0
      %v3710 = vsub.s32 0, %v3697
      %v3711 = vsel %vm3709, %v3710, %v3697
      %v3712 = vmul.u32.u64.compose %v3711, 2863311531
      %v3713 = vextract.low.u32 %v3712
      %v3714 = vextract.high.u32 %v3712
      %v3715 = vshrl.u32 %v3714, 4
      %v3716 = vmul.u32 %v3715, 24
      %v3717 = vsub.s32 %v3711, %v3716
      %v3718 = vsub.s32 0, %v3717
      %v3719 = vsel %vm3709, %v3718, %v3717
      %vm3720 = vcmp.lt.s32.totalorder %v3698, 0
      %v3721 = vsub.s32 0, %v3698
      %v3722 = vsel %vm3720, %v3721, %v3698
      %v3723 = vmul.u32.u64.compose %v3722, 2863311531
      %v3724 = vextract.low.u32 %v3723
      %v3725 = vextract.high.u32 %v3723
      %v3726 = vshrl.u32 %v3725, 4
      %v3727 = vmul.u32 %v3726, 24
      %v3728 = vsub.s32 %v3722, %v3727
      %v3729 = vsub.s32 0, %v3728
      %v3730 = vsel %vm3720, %v3729, %v3728
      %vm3731 = vcmp.lt.s32.totalorder %v3699, 0
      %v3732 = vsub.s32 0, %v3699
      %v3733 = vsel %vm3731, %v3732, %v3699
      %v3734 = vmul.u32.u64.compose %v3733, 2863311531
      %v3735 = vextract.low.u32 %v3734
      %v3736 = vextract.high.u32 %v3734
      %v3737 = vshrl.u32 %v3736, 4
      %v3738 = vmul.u32 %v3737, 24
      %v3739 = vsub.s32 %v3733, %v3738
      %v3740 = vsub.s32 0, %v3739
      %v3741 = vsel %vm3731, %v3740, %v3739
      %vm3742 = vcmp.lt.s32.totalorder %v3700, 0
      %v3743 = vsub.s32 0, %v3700
      %v3744 = vsel %vm3742, %v3743, %v3700
      %v3745 = vmul.u32.u64.compose %v3744, 2863311531
      %v3746 = vextract.low.u32 %v3745
      %v3747 = vextract.high.u32 %v3745
      %v3748 = vshrl.u32 %v3747, 4
      %v3749 = vmul.u32 %v3748, 24
      %v3750 = vsub.s32 %v3744, %v3749
      %v3751 = vsub.s32 0, %v3750
      %v3752 = vsel %vm3742, %v3751, %v3750
      %vm3753 = vcmp.lt.s32.totalorder %v3701, 0
      %v3754 = vsub.s32 0, %v3701
      %v3755 = vsel %vm3753, %v3754, %v3701
      %v3756 = vmul.u32.u64.compose %v3755, 2863311531
      %v3757 = vextract.low.u32 %v3756
      %v3758 = vextract.high.u32 %v3756
      %v3759 = vshrl.u32 %v3758, 4
      %v3760 = vmul.u32 %v3759, 24
      %v3761 = vsub.s32 %v3755, %v3760
      %v3762 = vsub.s32 0, %v3761
      %v3763 = vsel %vm3753, %v3762, %v3761
      %vm3764 = vcmp.lt.s32.totalorder %v3702, 0
      %v3765 = vsub.s32 0, %v3702
      %v3766 = vsel %vm3764, %v3765, %v3702
      %v3767 = vmul.u32.u64.compose %v3766, 2863311531
      %v3768 = vextract.low.u32 %v3767
      %v3769 = vextract.high.u32 %v3767
      %v3770 = vshrl.u32 %v3769, 4
      %v3771 = vmul.u32 %v3770, 24
      %v3772 = vsub.s32 %v3766, %v3771
      %v3773 = vsub.s32 0, %v3772
      %v3774 = vsel %vm3764, %v3773, %v3772
      %vm3775 = vcmp.lt.s32.totalorder %v3703, 0
      %v3776 = vsub.s32 0, %v3703
      %v3777 = vsel %vm3775, %v3776, %v3703
      %v3778 = vmul.u32.u64.compose %v3777, 2863311531
      %v3779 = vextract.low.u32 %v3778
      %v3780 = vextract.high.u32 %v3778
      %v3781 = vshrl.u32 %v3780, 4
      %v3782 = vmul.u32 %v3781, 24
      %v3783 = vsub.s32 %v3777, %v3782
      %v3784 = vsub.s32 0, %v3783
      %v3785 = vsel %vm3775, %v3784, %v3783
      %vm3786 = vcmp.lt.s32.totalorder %v3704, 0
      %v3787 = vsub.s32 0, %v3704
      %v3788 = vsel %vm3786, %v3787, %v3704
      %v3789 = vmul.u32.u64.compose %v3788, 2863311531
      %v3790 = vextract.low.u32 %v3789
      %v3791 = vextract.high.u32 %v3789
      %v3792 = vshrl.u32 %v3791, 4
      %v3793 = vmul.u32 %v3792, 24
      %v3794 = vsub.s32 %v3788, %v3793
      %v3795 = vsub.s32 0, %v3794
      %v3796 = vsel %vm3786, %v3795, %v3794
      %vm3797 = vcmp.lt.s32.totalorder %v3705, 0
      %v3798 = vsub.s32 0, %v3705
      %v3799 = vsel %vm3797, %v3798, %v3705
      %v3800 = vmul.u32.u64.compose %v3799, 2863311531
      %v3801 = vextract.low.u32 %v3800
      %v3802 = vextract.high.u32 %v3800
      %v3803 = vshrl.u32 %v3802, 4
      %v3804 = vmul.u32 %v3803, 24
      %v3805 = vsub.s32 %v3799, %v3804
      %v3806 = vsub.s32 0, %v3805
      %v3807 = vsel %vm3797, %v3806, %v3805
      %vm3808 = vcmp.lt.s32.totalorder %v3706, 0
      %v3809 = vsub.s32 0, %v3706
      %v3810 = vsel %vm3808, %v3809, %v3706
      %v3811 = vmul.u32.u64.compose %v3810, 2863311531
      %v3812 = vextract.low.u32 %v3811
      %v3813 = vextract.high.u32 %v3811
      %v3814 = vshrl.u32 %v3813, 4
      %v3815 = vmul.u32 %v3814, 24
      %v3816 = vsub.s32 %v3810, %v3815
      %v3817 = vsub.s32 0, %v3816
      %v3818 = vsel %vm3808, %v3817, %v3816
      %vm3819 = vcmp.lt.s32.totalorder %v3707, 0
      %v3820 = vsub.s32 0, %v3707
      %v3821 = vsel %vm3819, %v3820, %v3707
      %v3822 = vmul.u32.u64.compose %v3821, 2863311531
      %v3823 = vextract.low.u32 %v3822
      %v3824 = vextract.high.u32 %v3822
      %v3825 = vshrl.u32 %v3824, 4
      %v3826 = vmul.u32 %v3825, 24
      %v3827 = vsub.s32 %v3821, %v3826
      %v3828 = vsub.s32 0, %v3827
      %v3829 = vsel %vm3819, %v3828, %v3827
      %vm3830 = vcmp.lt.s32.totalorder %v3708, 0
      %v3831 = vsub.s32 0, %v3708
      %v3832 = vsel %vm3830, %v3831, %v3708
      %v3833 = vmul.u32.u64.compose %v3832, 2863311531
      %v3834 = vextract.low.u32 %v3833
      %v3835 = vextract.high.u32 %v3833
      %v3836 = vshrl.u32 %v3835, 4
      %v3837 = vmul.u32 %v3836, 24
      %v3838 = vsub.s32 %v3832, %v3837
      %v3839 = vsub.s32 0, %v3838
      %v3840 = vsel %vm3830, %v3839, %v3838
      %vm3841 = vcmp.ne.s32.totalorder %v3719, 0
      %vm3842 = vcmp.ne.s32.totalorder %v3730, 0
      %vm3843 = vcmp.ne.s32.totalorder %v3741, 0
      %vm3844 = vcmp.ne.s32.totalorder %v3752, 0
      %vm3845 = vcmp.ne.s32.totalorder %v3763, 0
      %vm3846 = vcmp.ne.s32.totalorder %v3774, 0
      %vm3847 = vcmp.ne.s32.totalorder %v3785, 0
      %vm3848 = vcmp.ne.s32.totalorder %v3796, 0
      %vm3849 = vcmp.ne.s32.totalorder %v3807, 0
      %vm3850 = vcmp.ne.s32.totalorder %v3818, 0
      %vm3851 = vcmp.ne.s32.totalorder %v3829, 0
      %vm3852 = vcmp.ne.s32.totalorder %v3840, 0
      %vm3853 = vcmp.lt.s32.totalorder %v3719, 0
      %vm3854 = vcmp.lt.s32.totalorder %v3730, 0
      %vm3855 = vcmp.lt.s32.totalorder %v3741, 0
      %vm3856 = vcmp.lt.s32.totalorder %v3752, 0
      %vm3857 = vcmp.lt.s32.totalorder %v3763, 0
      %vm3858 = vcmp.lt.s32.totalorder %v3774, 0
      %vm3859 = vcmp.lt.s32.totalorder %v3785, 0
      %vm3860 = vcmp.lt.s32.totalorder %v3796, 0
      %vm3861 = vcmp.lt.s32.totalorder %v3807, 0
      %vm3862 = vcmp.lt.s32.totalorder %v3818, 0
      %vm3863 = vcmp.lt.s32.totalorder %v3829, 0
      %vm3864 = vcmp.lt.s32.totalorder %v3840, 0
      %vm3865 = vmand %vm3853, %vm3841
      %vm3866 = vmand %vm3854, %vm3842
      %vm3867 = vmand %vm3855, %vm3843
      %vm3868 = vmand %vm3856, %vm3844
      %vm3869 = vmand %vm3857, %vm3845
      %vm3870 = vmand %vm3858, %vm3846
      %vm3871 = vmand %vm3859, %vm3847
      %vm3872 = vmand %vm3860, %vm3848
      %vm3873 = vmand %vm3861, %vm3849
      %vm3874 = vmand %vm3862, %vm3850
      %vm3875 = vmand %vm3863, %vm3851
      %vm3876 = vmand %vm3864, %vm3852
      %v3877 = vadd.s32 %v3719, 24
      %v3878 = vadd.s32 %v3730, 24
      %v3879 = vadd.s32 %v3741, 24
      %v3880 = vadd.s32 %v3752, 24
      %v3881 = vadd.s32 %v3763, 24
      %v3882 = vadd.s32 %v3774, 24
      %v3883 = vadd.s32 %v3785, 24
      %v3884 = vadd.s32 %v3796, 24
      %v3885 = vadd.s32 %v3807, 24
      %v3886 = vadd.s32 %v3818, 24
      %v3887 = vadd.s32 %v3829, 24
      %v3888 = vadd.s32 %v3840, 24
      %v3889 = vsel %vm3865, %v3877, %v3719
      %v3890 = vsel %vm3866, %v3878, %v3730
      %v3891 = vsel %vm3867, %v3879, %v3741
      %v3892 = vsel %vm3868, %v3880, %v3752
      %v3893 = vsel %vm3869, %v3881, %v3763
      %v3894 = vsel %vm3870, %v3882, %v3774
      %v3895 = vsel %vm3871, %v3883, %v3785
      %v3896 = vsel %vm3872, %v3884, %v3796
      %v3897 = vsel %vm3873, %v3885, %v3807
      %v3898 = vsel %vm3874, %v3886, %v3818
      %v3899 = vsel %vm3875, %v3887, %v3829
      %v3900 = vsel %vm3876, %v3888, %v3840
      %vm3901 = vcmp.lt.s32.totalorder %v3889, 16
      %vm3902 = vcmp.lt.s32.totalorder %v3890, 16
      %vm3903 = vcmp.lt.s32.totalorder %v3891, 16
      %vm3904 = vcmp.lt.s32.totalorder %v3892, 16
      %vm3905 = vcmp.lt.s32.totalorder %v3893, 16
      %vm3906 = vcmp.lt.s32.totalorder %v3894, 16
      %vm3907 = vcmp.lt.s32.totalorder %v3895, 16
      %vm3908 = vcmp.lt.s32.totalorder %v3896, 16
      %vm3909 = vcmp.lt.s32.totalorder %v3897, 16
      %vm3910 = vcmp.lt.s32.totalorder %v3898, 16
      %vm3911 = vcmp.lt.s32.totalorder %v3899, 16
      %vm3912 = vcmp.lt.s32.totalorder %v3900, 16
      %v3913 = vsel %vm3901, 1, 0
      %v3914 = vsel %vm3902, 1, 0
      %v3915 = vsel %vm3903, 1, 0
      %v3916 = vsel %vm3904, 1, 0
      %v3917 = vsel %vm3905, 1, 0
      %v3918 = vsel %vm3906, 1, 0
      %v3919 = vsel %vm3907, 1, 0
      %v3920 = vsel %vm3908, 1, 0
      %v3921 = vsel %vm3909, 1, 0
      %v3922 = vsel %vm3910, 1, 0
      %v3923 = vsel %vm3911, 1, 0
      %v3924 = vsel %vm3912, 1, 0
      %vm3925 = vcmp.eq.s32.totalorder %v3913, 1
      %vm3926 = vcmp.eq.s32.totalorder %v3914, 1
      %vm3927 = vcmp.eq.s32.totalorder %v3915, 1
      %vm3928 = vcmp.eq.s32.totalorder %v3916, 1
      %vm3929 = vcmp.eq.s32.totalorder %v3917, 1
      %vm3930 = vcmp.eq.s32.totalorder %v3918, 1
      %vm3931 = vcmp.eq.s32.totalorder %v3919, 1
      %vm3932 = vcmp.eq.s32.totalorder %v3920, 1
      %vm3933 = vcmp.eq.s32.totalorder %v3921, 1
      %vm3934 = vcmp.eq.s32.totalorder %v3922, 1
      %vm3935 = vcmp.eq.s32.totalorder %v3923, 1
      %vm3936 = vcmp.eq.s32.totalorder %v3924, 1
      %v3937 = vsel %vm3925, %v3684, 0.0
      %v3938 = vsel %vm3926, %v3685, 0.0
      %v3939 = vsel %vm3927, %v3686, 0.0
      %v3940 = vsel %vm3928, %v3687, 0.0
      %v3941 = vsel %vm3929, %v3688, 0.0
      %v3942 = vsel %vm3930, %v3689, 0.0
      %v3943 = vsel %vm3931, %v3690, 0.0
      %v3944 = vsel %vm3932, %v3691, 0.0
      %v3945 = vsel %vm3933, %v3692, 0.0
      %v3946 = vsel %vm3934, %v3693, 0.0
      %v3947 = vsel %vm3935, %v3694, 0.0
      %v3948 = vsel %vm3936, %v3695, 0.0
      %v3949 = vadd.f32 %v3937, %v3938
      %v3950 = vadd.f32 %v3949, %v3939
      %v3951 = vadd.f32 %v3950, %v3940
      %v3952 = vadd.f32 %v3951, %v3941
      %v3953 = vadd.f32 %v3952, %v3942
      %v3954 = vadd.f32 %v3953, %v3943
      %v3955 = vadd.f32 %v3954, %v3944
      %v3956 = vadd.f32 %v3955, %v3945
      %v3957 = vadd.f32 %v3956, %v3946
      %v3958 = vadd.f32 %v3957, %v3947
      %v3959 = vadd.f32 %v3958, %v3948
      %v3960 = vrot.slane %v3959, 4
      %v3961 = vadd.f32 %v3959, %v3960
      %v3962 = vrot.slane %v3961, 2
      %v3963 = vadd.f32 %v3961, %v3962
      %v3964 = vrot.slane %v3963, 1
      %v3965 = vadd.f32 %v3963, %v3964
      %v3966 = vmul.f32 %v3937, %v3937
      %v3967 = vmul.f32 %v3938, %v3938
      %v3968 = vmul.f32 %v3939, %v3939
      %v3969 = vmul.f32 %v3940, %v3940
      %v3970 = vmul.f32 %v3941, %v3941
      %v3971 = vmul.f32 %v3942, %v3942
      %v3972 = vmul.f32 %v3943, %v3943
      %v3973 = vmul.f32 %v3944, %v3944
      %v3974 = vmul.f32 %v3945, %v3945
      %v3975 = vmul.f32 %v3946, %v3946
      %v3976 = vmul.f32 %v3947, %v3947
      %v3977 = vmul.f32 %v3948, %v3948
      %v3978 = vadd.f32 %v3966, %v3967
      %v3979 = vadd.f32 %v3978, %v3968
      %v3980 = vadd.f32 %v3979, %v3969
      %v3981 = vadd.f32 %v3980, %v3970
      %v3982 = vadd.f32 %v3981, %v3971
      %v3983 = vadd.f32 %v3982, %v3972
      %v3984 = vadd.f32 %v3983, %v3973
      %v3985 = vadd.f32 %v3984, %v3974
      %v3986 = vadd.f32 %v3985, %v3975
      %v3987 = vadd.f32 %v3986, %v3976
      %v3988 = vadd.f32 %v3987, %v3977
      %v3989 = vrot.slane %v3988, 4
      %v3990 = vadd.f32 %v3988, %v3989
      %v3991 = vrot.slane %v3990, 2
      %v3992 = vadd.f32 %v3990, %v3991
      %v3993 = vrot.slane %v3992, 1
      %v3994 = vadd.f32 %v3992, %v3993
      %vm3995 = vcmask 1040384
      %v3996 = vsel %vm3995, %v3965, %v3994
      %3997 = vst [vmem:[%s225] sm:$0x3] %v3996
      %v3998 = vpack.c.bf16 %v3685, %v3684
      %v3999 = vpack.c.bf16 %v3688, %v3687
      %v4000 = vpack.c.bf16 %v3691, %v3690
      %v4001 = vpack.c.bf16 %v3694, %v3693
      %v4006 = vunpack.c.l.b16 %v3998
      %v4007 = vunpack.c.h.b16 %v3998
      %v4008 = vunpack.c.l.b16 %v3999
      %v4009 = vunpack.c.h.b16 %v3999
      %v4010 = vunpack.c.l.b16 %v4000
      %v4011 = vunpack.c.h.b16 %v4000
      %v4012 = vunpack.c.l.b16 %v4001
      %v4013 = vunpack.c.h.b16 %v4001
      %v4014 = vpack.c.b16 %v4006, %v4006
      %v4015 = vpack.c.b16 %v4007, %v4007
      %v4016 = vpack.c.b16 %v4008, %v4008
      %v4017 = vpack.c.b16 %v4009, %v4009
      %v4018 = vpack.c.b16 %v4010, %v4010
      %v4019 = vpack.c.b16 %v4011, %v4011
      %v4020 = vpack.c.b16 %v4012, %v4012
      %v4021 = vpack.c.b16 %v4013, %v4013
      %4030 = vst [vmem:[%s216] sm:$0xf] %v4014
      %4031 = vst [vmem:[%s216 + $0x4] sm:$0xf] %v4015
      %4032 = vst [vmem:[%s216 + $0x8] sm:$0xf] %v4016
      %4033 = vst [vmem:[%s216 + $0xc] sm:$0xf] %v4017
      %4034 = vst [vmem:[%s216 + $0x10] sm:$0xf] %v4018
      %4035 = vst [vmem:[%s216 + $0x14] sm:$0xf] %v4019
      %4036 = vst [vmem:[%s216 + $0x18] sm:$0xf] %v4020
      %4037 = vst [vmem:[%s216 + $0x1c] sm:$0xf] %v4021
      %s4038 = smul.u32 4, %s23
      %p4039 = scmp.lt.s32.totalorder %s22, 1
      %s4040 = scalar_select %p4039, %s22, 1
      %p4041 = scmp.lt.s32.totalorder %s4038, 15
      %s4042 = scalar_select %p4041, %s4038, 15
      %s4043 = smul.addr %s4042, 2
      %s4044 = smul.addr %s4040, 32
      %s4045 = sadd.s32 %s4043, %s4044
      %s4046 = smul.addr %s4045, 4
      %s4047 = scalar_lea.vmem %s5, %s4046
      %p4048 = scmp.lt.s32.totalorder %s22, 1
      %s4049 = scalar_select %p4048, %s22, 1
      %p4050 = scmp.lt.s32.totalorder %s23, 3
      %s4051 = scalar_select %p4050, %s23, 3
      %s4052 = smul.addr %s4049, 4
      %s4053 = sadd.s32 %s4051, %s4052
      %s4054 = smul.addr %s4053, 2
      %s4055 = scalar_lea.vmem %s6, %s4054
      // Predicated region
      $region177: #{_lambda_.6} parent=31 // pred_check
        %p4056 = pneg %p113
      $region178: #{_lambda_.6} parent=31 // pred_check_branch
        %4058 = sbr.rel (%p4056) target = $region180
      $region179: #{_lambda_.6} parent=31 // pred_region
        %s4059 = smul.u32 4, %s23
      $region180: #{_lambda_.6} parent=31 // pred_fallthru
        _
      // Predicated region
      $region181: #{_lambda_.6} parent=31 // pred_check
        %p4060 = pneg %p141
      $region182: #{_lambda_.6} parent=31 // pred_check_branch
        %4062 = sbr.rel (%p4060) target = $region184
      $region183: #{_lambda_.6} parent=31 // pred_region
        _
      $region184: #{_lambda_.6} parent=31 // pred_fallthru
        _
    $region32: #{_lambda_.6} parent=5 // pred_fallthru
      _
    %p4063 = scmp.le.s32.totalorder 2, %s13
    // Predicated region
    $region185: #{_lambda_.6} parent=5 // pred_check
      %p4064 = pneg %p4063
    $region186: #{_lambda_.6} parent=5 // pred_check_branch
      %4066 = sbr.rel (%p4064) target = $region188
    $region187: #{_lambda_.6} parent=5 // pred_region
      %s4067 = ssub.s32 %s13, 2
      // Predicated region
      $region189: #{_lambda_.6} parent=187 // pred_check
        %p4068 = pneg %p119
      $region190: #{_lambda_.6} parent=187 // pred_check_branch
        %4070 = sbr.rel (%p4068) target = $region192
      $region191: #{_lambda_.6} parent=187 // pred_region
        %s4071 = smul.u32 4, %s25
        %p4072 = scmp.lt.s32.totalorder %s24, 1
        %s4073 = scalar_select %p4072, %s24, 1
        %p4074 = scmp.lt.s32.totalorder %s4071, 15
        %s4075 = scalar_select %p4074, %s4071, 15
        %s4076 = smul.addr %s4075, 2
        %s4077 = smul.addr %s4073, 32
        %s4078 = sadd.s32 %s4076, %s4077
        %s4079 = smul.addr %s4078, 4
        %s4080 = scalar_lea.vmem %s5, %s4079
      $region192: #{_lambda_.6} parent=187 // pred_fallthru
        _
      // Predicated region
      $region193: #{_lambda_.6} parent=187 // pred_check
        %p4081 = pneg %p147
      $region194: #{_lambda_.6} parent=187 // pred_check_branch
        %4083 = sbr.rel (%p4081) target = $region196
      $region195: #{_lambda_.6} parent=187 // pred_region
        %p4084 = scmp.lt.s32.totalorder %s24, 1
        %s4085 = scalar_select %p4084, %s24, 1
        %p4086 = scmp.lt.s32.totalorder %s25, 3
        %s4087 = scalar_select %p4086, %s25, 3
        %s4088 = smul.addr %s4085, 4
        %s4089 = sadd.s32 %s4087, %s4088
        %s4090 = smul.addr %s4089, 2
        %s4091 = scalar_lea.vmem %s6, %s4090
      $region196: #{_lambda_.6} parent=187 // pred_fallthru
        _
    $region188: #{_lambda_.6} parent=5 // pred_fallthru
      _
  $region6: #{_lambda_.6} parent=0 // loop_footer
    %s17 = sadd.s32 1, %s13
  $region7: #{_lambda_.6} parent=0 // loop_footer_branch
    %12 = sbr.rel target = $region3
  $region8: #{_lambda_.6} parent=0 // loop_exit
    _
  %4092 = vsyncmov [#allocation4]
  %s4093 = vpop.sfrf %4092
  %p4094 = scmp.eq.s32.totalorder %s4093, 0
  %p4095 = pneg %p4094
  %4097 = shalt.err (%p4095)
  %s4098 = scalar_lea.sflag [#allocation4], 1
  %4099 = vsyncmov %s4098
  %s4100 = vpop.sfrf %4099
  %p4101 = scmp.eq.s32.totalorder %s4100, 0
  %p4102 = pneg %p4101
  %4104 = shalt.err (%p4102)
  %s4105 = scalar_lea.sflag [#allocation4], 2
  %4106 = vsyncmov %s4105
  %s4107 = vpop.sfrf %4106
  %p4108 = scmp.eq.s32.totalorder %s4107, 0
  %p4109 = pneg %p4108
  %4111 = shalt.err (%p4109)
  %s4112 = scalar_lea.sflag [#allocation4], 3
  %4113 = vsyncmov %s4112
  %s4114 = vpop.sfrf %4113
  %p4115 = scmp.eq.s32.totalorder %s4114, 0
  %p4116 = pneg %p4115
  %4118 = shalt.err (%p4116)

</llo_original>
